<compile_context>
chip_gen: v7x
topology: tpu7x:2x2x1
jax: 0.10.0
libtpu: 0.0.40
codegen_flags: <defaults>
</compile_context>

<pallas_src>
import jax
import jax.numpy as jnp
from jax.experimental import pallas as pl
from jax.experimental.pallas import tpu as pltpu

# ----------------------------- config (small, synthetic) -----------------------------
VOCAB = 20
ENC_HIDDEN = 32          # transformer.encoder_hidden == transformer.decoder_hidden
N_HEAD = 2               # MultiHeadAttention(2, enc_hidden, enc_hidden, enc_hidden)
N_MELS = 16              # preprocessing.mel.n_mel_channels
BERT_DIM = 32
N_SPEAKER = 4
POSTNET_HIDDEN = 32
POSTNET_K = 5
POSTNET_ACTS = (True, True, True, True, False)   # tanh on first 4 layers only


def _r8(n):
    return ((n + 7) // 8) * 8


def _pad2d_to(a, rows, lanes):
    return jnp.pad(a, ((0, rows - a.shape[0]), (0, lanes - a.shape[1])))


# =============================== weight slab packing ===============================
def build_weight_slab(params):
    """Row-stack every weight/bias of the hot path into ONE (R, 32) f32 slab
    (single constant-index input DMA). Every chunk starts on a sublane(8)
    boundary; per-head Q/K/V/O weights are stored as 32x32 row blocks so the
    kernel never lane-slices."""
    D = ENC_HIDDEN
    chunks, offs = [], {}
    pos = [0]

    def add(name, arr2d, rows):
        chunks.append(_pad2d_to(arr2d, rows, D))
        offs[name] = pos[0]
        pos[0] += rows

    add("bp_w", params["bert_pros_w"], D)                    # (32,32)
    add("mp_w", params["mel_pros_w"], D)                     # (16,32) -> zero-padded rows
    for h in range(N_HEAD):
        add(f"q{h}", params["wq"][:, h * D:(h + 1) * D], D)
        add(f"k{h}", params["wk"][:, h * D:(h + 1) * D], D)
        add(f"v{h}", params["wv"][:, h * D:(h + 1) * D], D)
        add(f"o{h}", params["wo"][h * D:(h + 1) * D, :], D)
    add("mel_w", params["mel_linear_w"], D)                  # (32,16) -> zero-padded lanes
    for l, (cw, _cb) in enumerate(params["postnet"]):
        for k in range(POSTNET_K):
            add(f"pn{l}_{k}", cw[k], D)                      # (Cin,Cout) -> (32,32)
    # biases: each gets its own 8-row (aligned) slot, row 0 holds the data
    add("b_bp", params["bert_pros_b"][None, :], 8)
    add("b_mp", params["mel_pros_b"][None, :], 8)
    for h in range(N_HEAD):
        add(f"bq{h}", params["bq"][None, h * D:(h + 1) * D], 8)
        add(f"bk{h}", params["bk"][None, h * D:(h + 1) * D], 8)
        add(f"bv{h}", params["bv"][None, h * D:(h + 1) * D], 8)
    add("b_o", params["bo"][None, :], 8)
    add("b_mel", params["mel_linear_b"][None, :], 8)
    for l, (_cw, cb) in enumerate(params["postnet"]):
        add(f"b_pn{l}", cb[None, :], 8)

    slab = jnp.concatenate(chunks, axis=0)
    return slab, offs, slab.shape[0]


# ================================ fused forward kernel ================================
def pallas_fitted_core(x, bert, cutmel, spk, expw, expm, att_bias, params, gen):
    B, T_src, D = x.shape
    T_bert = bert.shape[1]
    T_mel = expm.shape[1]
    n_mels = cutmel.shape[2]

    slab, offs, wrows = build_weight_slab(params)

    # ---- pack all per-batch inputs into one sublane-aligned aux slab ----
    pieces = [x, expw, expm, att_bias, bert, cutmel, spk[:, None, :]]
    names = ["x", "expw", "expm", "att", "bert", "cut", "spk"]
    aux_off, padded, r = {}, [], 0
    for nm, p in zip(names, pieces):
        rows = _r8(p.shape[1])
        padded.append(jnp.pad(p, ((0, 0), (0, rows - p.shape[1]), (0, D - p.shape[2]))))
        aux_off[nm] = r
        r += rows
    aux = jnp.concatenate(padded, axis=1)
    AUX_ROWS = r

    # ---- one row-stacked output slab: [context | mel | postnet | pp | mp] ----
    OUT_ROWS = T_src + 2 * T_mel + 2 * T_bert
    O_CTX, O_MEL = 0, T_src
    O_POST = O_MEL + T_mel
    O_PP = O_POST + T_mel
    O_MP = O_PP + T_bert

    scale = 1.0 / float(D) ** 0.5
    f32 = jnp.float32

    def kernel(aux_ref, w_ref, o_ref):
        def wc(name):                       # 32x32 weight block (sublane-aligned slice)
            s = offs[name]
            return w_ref[s:s + D, :]

        def bias(name):                     # (1, 32) bias row
            s = offs[name]
            return w_ref[s:s + 1, :]

        def ax(name, rows, lanes=D):        # per-batch aux piece
            s = aux_off[name]
            return aux_ref[0, s:s + rows, :lanes]

        xx = ax("x", T_src)                 # (T_src, D)  encoder output
        ew = ax("expw", T_src, T_bert)      # (T_src, T_bert) LR one-hot (word->phoneme)
        em = ax("expm", T_mel, T_src)       # (T_mel, T_src)  LR one-hot (phoneme->mel)
        ab = ax("att", T_src, T_src)        # (T_src, T_src)  additive attention bias
        bb = ax("bert", T_bert)             # (T_bert, D)
        cm = ax("cut", T_bert)              # (T_bert, D) cutmel, lanes n_mels: are zero
        sp = ax("spk", 1)                   # (1, D) speaker embedding

        # --- word-level prosody projections ---
        # TODO(synk): history_dialogue_predictor / mel_prosody modules are not in the
        # provided file; linear-projection stand-ins.
        pp = jnp.dot(bb, wc("bp_w"), preferred_element_type=f32) + bias("b_bp")
        mp = jnp.dot(cm, wc("mp_w"), preferred_element_type=f32) + bias("b_mp")
        word_ctx = pp if gen else mp

        # --- LengthRegulator (word -> phoneme): one-hot MXU matmul; padded rows = 0 ---
        ctx_in = jnp.dot(ew, word_ctx, preferred_element_type=f32)          # (T_src, D)

        # --- 2-head cross attention: Q from encoder output, K/V from context ---
        attn = jnp.zeros((T_src, D), f32)
        for hd in range(N_HEAD):
            qh = jnp.dot(xx, wc(f"q{hd}"), preferred_element_type=f32) + bias(f"bq{hd}")
            kh = jnp.dot(ctx_in, wc(f"k{hd}"), preferred_element_type=f32) + bias(f"bk{hd}")
            vh = jnp.dot(ctx_in, wc(f"v{hd}"), preferred_element_type=f32) + bias(f"bv{hd}")
            # contract feature dims of both operands -> no explicit kh.T relayout
            s = jax.lax.dot_general(qh, kh, (((1,), (1,)), ((), ())),
                                    preferred_element_type=f32) * scale + ab
            s = s - jnp.max(s, axis=-1, keepdims=True)
            p = jnp.exp(s)
            p = p * pl.reciprocal(jnp.sum(p, axis=-1, keepdims=True), approx=True)
            head = jnp.dot(p, vh, preferred_element_type=f32)
            attn = attn + jnp.dot(head, wc(f"o{hd}"), preferred_element_type=f32)
        context = attn + bias("b_o")
        # TODO(synk): MultiHeadAttention's dropout / layer_norm are outside the file.

        fused = xx + context + sp                     # residual + speaker embedding add

        # --- LengthRegulator (phoneme -> mel): one-hot MXU matmul; padded rows = 0 ---
        dec_in = jnp.dot(em, fused, preferred_element_type=f32)             # (T_mel, D)
        # TODO(synk): Decoder FFT blocks are not in the provided file; identity.

        mel32 = jnp.dot(dec_in, wc("mel_w"), preferred_element_type=f32) + bias("b_mel")

        # --- PostNet: 5 Conv1d layers via shift-matrix matmuls (zero edge padding is
        #     baked into the shift matrices; no VMEM round-trips, no rolls) ---
        ri = jax.lax.broadcasted_iota(jnp.int32, (T_mel, T_mel), 0)
        ci = jax.lax.broadcasted_iota(jnp.int32, (T_mel, T_mel), 1)
        half = POSTNET_K // 2
        shifts = [(ci == ri + (k - half)).astype(f32) for k in range(POSTNET_K)]
        hcur = mel32
        for l, act in enumerate(POSTNET_ACTS):
            acc = jnp.zeros((T_mel, D), f32) + bias(f"b_pn{l}")
            for k in range(POSTNET_K):
                hk = jnp.dot(shifts[k], hcur, preferred_element_type=f32)   # shifted rows
                acc = acc + jnp.dot(hk, wc(f"pn{l}_{k}"), preferred_element_type=f32)
            if act:
                acc = jnp.tanh(acc)
            # TODO(synk): PostNet BatchNorm1d folded to identity (definition not provided).
            hcur = acc
        post32 = hcur + mel32                         # postnet residual

        # --- single row-stacked output slab ---
        o_ref[0, O_CTX:O_CTX + T_src, :] = context
        o_ref[0, O_MEL:O_MEL + T_mel, :] = mel32
        o_ref[0, O_POST:O_POST + T_mel, :] = post32
        o_ref[0, O_PP:O_PP + T_bert, :] = pp
        o_ref[0, O_MP:O_MP + T_bert, :] = mp

    out = pl.pallas_call(
        kernel,
        out_shape=jax.ShapeDtypeStruct((B, OUT_ROWS, D), jnp.float32),
        grid=(B,),
        in_specs=[pl.BlockSpec((1, AUX_ROWS, D), lambda b: (b, 0, 0)),
                  pl.BlockSpec((wrows, D), lambda b: (0, 0))],
        out_specs=pl.BlockSpec((1, OUT_ROWS, D), lambda b: (b, 0, 0)),
        compiler_params=pltpu.CompilerParams(dimension_semantics=("parallel",)),
    )(aux, slab)

    context = out[:, O_CTX:O_CTX + T_src, :]
    mel = out[:, O_MEL:O_MEL + T_mel, :n_mels]
    post = out[:, O_POST:O_POST + T_mel, :n_mels]
    pp = out[:, O_PP:O_PP + T_bert, :]
    mp = out[:, O_MP:O_MP + T_bert, :]
    return context, mel, post, pp, mp


# ===================================== glue =====================================
def get_mask_from_lengths(lengths, max_len):
    ids = jnp.arange(max_len)[None, :]
    return ids >= lengths[:, None]            # True = padding position


def lr_onehot(durations, out_len):
    """LengthRegulator as a one-hot matrix: oh[b, t, i] = 1 iff output frame t is a
    copy of unit i; rows past the expanded length are all-zero (LR zero padding)."""
    durations = durations.astype(jnp.int32)
    cum = jnp.cumsum(durations, axis=1)
    starts = cum - durations
    pos = jnp.arange(out_len, dtype=jnp.int32)[None, :, None]
    oh = (pos >= starts[:, None, :]) & (pos < cum[:, None, :])
    return oh.astype(jnp.float32)


def init_params(key):
    D, H = ENC_HIDDEN, N_HEAD
    dk = dv = ENC_HIDDEN
    ks = jax.random.split(key, 16)

    def w(k, shape, scale=0.05):
        return (scale * jax.random.normal(k, shape)).astype(jnp.float32)

    postnet = []
    dims = [(N_MELS, POSTNET_HIDDEN),
            (POSTNET_HIDDEN, POSTNET_HIDDEN),
            (POSTNET_HIDDEN, POSTNET_HIDDEN),
            (POSTNET_HIDDEN, POSTNET_HIDDEN),
            (POSTNET_HIDDEN, N_MELS)]
    pk = jax.random.split(ks[9], len(dims))
    for kk, (cin, cout) in zip(pk, dims):
        postnet.append((w(kk, (POSTNET_K, cin, cout)), jnp.zeros((cout,), jnp.float32)))

    return {
        "phone_emb": w(ks[0], (VOCAB, D)),
        "speaker_emb": w(ks[1], (N_SPEAKER + 1, D)),
        "wq": w(ks[2], (D, H * dk)), "bq": jnp.zeros((H * dk,), jnp.float32),
        "wk": w(ks[3], (D, H * dk)), "bk": jnp.zeros((H * dk,), jnp.float32),
        "wv": w(ks[4], (D, H * dv)), "bv": jnp.zeros((H * dv,), jnp.float32),
        "wo": w(ks[5], (H * dv, D)), "bo": jnp.zeros((D,), jnp.float32),
        "mel_linear_w": w(ks[6], (D, N_MELS)), "mel_linear_b": jnp.zeros((N_MELS,), jnp.float32),
        "bert_pros_w": w(ks[7], (BERT_DIM, D)), "bert_pros_b": jnp.zeros((D,), jnp.float32),
        "mel_pros_w": w(ks[8], (N_MELS, D)), "mel_pros_b": jnp.zeros((D,), jnp.float32),
        "postnet": postnet,
    }


def fitted_dt_forward(params, texts, src_lens, max_src_len, bert, bert_length,
                      max_bert_length, cutmel, speakers, pd_targets, tdd_targets,
                      max_mel_len, gen=False):
    src_masks = get_mask_from_lengths(src_lens, max_src_len)        # [B, T_src]
    bert_masks = get_mask_from_lengths(bert_length, max_bert_length)

    # ---------------- Encoder ----------------
    # TODO(synk): Encoder FFT blocks (self-attn + conv FFN) are defined outside the
    # provided file; only the phoneme-embedding front end is implemented.
    output = jnp.take(params["phone_emb"], texts, axis=0)           # [B, T_src, D]
    output = output * (~src_masks)[..., None].astype(jnp.float32)

    speaker_emb = jnp.take(params["speaker_emb"], speakers, axis=0)  # [B, D]

    # ---------------- history_context / mel_emb stand-ins ----------------
    # TODO(synk): history_dialogue_predictor / mel_prosody modules are not defined in
    # the provided file; word durations are used as t_round, projections run in-kernel.
    t_round = tdd_targets
    log_t_predictions = jnp.zeros(tdd_targets.shape, jnp.float32)

    # LengthRegulator expansion matrices + additive attention bias (consumed in-kernel).
    expw = lr_onehot(t_round, max_src_len)                          # word -> phoneme
    d_rounded = pd_targets
    mel_lens = jnp.sum(pd_targets, axis=1)
    mel_masks = get_mask_from_lengths(mel_lens, max_mel_len)
    expm = lr_onehot(d_rounded, max_mel_len)                        # phoneme -> mel
    # atten_mask = src_masks.unsqueeze(1) * src_masks.unsqueeze(-1), exactly as in ref.
    att_bias = (src_masks[:, None, :] & src_masks[:, :, None]).astype(jnp.float32) * -1e9

    context, mel, postnet_output, phone_prosody, mel_pros = pallas_fitted_core(
        output, bert, cutmel, speaker_emb, expw, expm, att_bias, params, gen)

    # ---------------- VarianceAdaptor (duration expansion handled in-kernel) ----------------
    # TODO(synk): pitch/energy predictors & embeddings of VarianceAdaptor are defined
    # elsewhere; only duration-target length regulation is implemented (in-kernel).
    p_predictions = jnp.zeros((output.shape[0], max_src_len), jnp.float32)
    e_predictions = jnp.zeros_like(p_predictions)
    log_d_predictions = jnp.zeros_like(p_predictions)

    # ---------------- FlowSpecDecoder ----------------
    # TODO(synk): FlowSpecDecoder (glow-based post decoder) definition not provided.
    z, logdet, mel_gen = None, None, None

    return {
        "z": z, "logdet": logdet, "mel_gen": mel_gen,
        "p_predictions": p_predictions, "e_predictions": e_predictions,
        "log_d_predictions": log_d_predictions, "log_t_predictions": log_t_predictions,
        "d_rounded": d_rounded, "src_masks": src_masks, "bert_masks": bert_masks,
        "mel_masks": mel_masks, "src_lens": src_lens, "mel_lens": mel_lens,
        "mel_prosody": mel_pros, "phone_prosody": phone_prosody,
        "context": context, "output": mel, "postnet_output": postnet_output,
    }


# ===================================== main =====================================
if __name__ == "__main__":
    key = jax.random.PRNGKey(0)
    kp, kt, kb, kc = jax.random.split(key, 4)
    params = init_params(kp)

    B, T_SRC, T_BERT, MAX_MEL = 2, 8, 4, 16
    texts = jax.random.randint(kt, (B, T_SRC), 0, VOCAB)
    src_lens = jnp.array([8, 6], jnp.int32)
    bert = jax.random.normal(kb, (B, T_BERT, BERT_DIM), jnp.float32)
    bert_length = jnp.array([4, 3], jnp.int32)
    cutmel = jax.random.normal(kc, (B, T_BERT, N_MELS), jnp.float32)
    speakers = jnp.array([0, 1], jnp.int32)
    pd_targets = jnp.array([[2, 2, 2, 2, 2, 2, 2, 2],
                            [2, 2, 2, 2, 2, 2, 0, 0]], jnp.int32)
    tdd_targets = jnp.array([[2, 2, 2, 2],
                             [2, 2, 2, 0]], jnp.int32)

    fwd = jax.jit(fitted_dt_forward, static_argnums=(3, 6, 11, 12))
    out = fwd(params, texts, src_lens, T_SRC, bert, bert_length,
              T_BERT, cutmel, speakers, pd_targets, tdd_targets, MAX_MEL, False)
    jax.block_until_ready(out)
    assert out["postnet_output"].shape == (B, MAX_MEL, N_MELS)
    assert out["context"].shape == (B, T_SRC, ENC_HIDDEN)
    assert bool(jnp.all(jnp.isfinite(out["postnet_output"])))
    print("KERNEL_OK")
</pallas_src>

<mosaic_0001>
module attributes {stable_mosaic.version = 11 : i64} {
  func.func @kernel(%arg0: i32, %arg1: memref<1x64x32xf32, #tpu.memory_space<vmem>>, %arg2: memref<1272x32xf32, #tpu.memory_space<vmem>>, %arg3: memref<1x48x32xf32, #tpu.memory_space<vmem>>) attributes {dimension_semantics = [#tpu.dimension_semantics<parallel>], iteration_bounds = array<i64: 2>, scalar_prefetch = 0 : i64, scratch_operands = 0 : i64, tpu.core_type = #tpu.core_type<tc>, window_params = [{transform_indices = @transform_0, window_bounds = array<i64: 1, 64, 32>}, {pipeline_mode = #tpu.pipeline_mode<synchronous>, transform_indices = @transform_1, window_bounds = array<i64: 1272, 32>}, {transform_indices = @transform_2, window_bounds = array<i64: 1, 48, 32>}]} {
    %c0 = arith.constant 0 : index
    %c0_0 = arith.constant 0 : index
    %c0_1 = arith.constant 0 : index
    %0 = vector.load %arg1[%c0, %c0_0, %c0_1] : memref<1x64x32xf32, #tpu.memory_space<vmem>>, vector<1x8x32xf32>
    %1 = vector.shape_cast %0 : vector<1x8x32xf32> to vector<8x32xf32>
    %c0_2 = arith.constant 0 : index
    %c8 = arith.constant 8 : index
    %c0_3 = arith.constant 0 : index
    %2 = vector.load %arg1[%c0_2, %c8, %c0_3] : memref<1x64x32xf32, #tpu.memory_space<vmem>>, vector<1x8x4xf32>
    %3 = vector.shape_cast %2 : vector<1x8x4xf32> to vector<8x4xf32>
    %c0_4 = arith.constant 0 : index
    %c16 = arith.constant 16 : index
    %c0_5 = arith.constant 0 : index
    %4 = vector.load %arg1[%c0_4, %c16, %c0_5] : memref<1x64x32xf32, #tpu.memory_space<vmem>>, vector<1x16x8xf32>
    %5 = vector.shape_cast %4 : vector<1x16x8xf32> to vector<16x8xf32>
    %c0_6 = arith.constant 0 : index
    %c32 = arith.constant 32 : index
    %c0_7 = arith.constant 0 : index
    %6 = vector.load %arg1[%c0_6, %c32, %c0_7] : memref<1x64x32xf32, #tpu.memory_space<vmem>>, vector<1x8x8xf32>
    %7 = vector.shape_cast %6 : vector<1x8x8xf32> to vector<8x8xf32>
    %c0_8 = arith.constant 0 : index
    %c40 = arith.constant 40 : index
    %c0_9 = arith.constant 0 : index
    %8 = vector.load %arg1[%c0_8, %c40, %c0_9] : memref<1x64x32xf32, #tpu.memory_space<vmem>>, vector<1x4x32xf32>
    %9 = vector.shape_cast %8 : vector<1x4x32xf32> to vector<4x32xf32>
    %c0_10 = arith.constant 0 : index
    %c48 = arith.constant 48 : index
    %c0_11 = arith.constant 0 : index
    %10 = vector.load %arg1[%c0_10, %c48, %c0_11] : memref<1x64x32xf32, #tpu.memory_space<vmem>>, vector<1x4x32xf32>
    %11 = vector.shape_cast %10 : vector<1x4x32xf32> to vector<4x32xf32>
    %c0_12 = arith.constant 0 : index
    %c56 = arith.constant 56 : index
    %c0_13 = arith.constant 0 : index
    %12 = vector.load %arg1[%c0_12, %c56, %c0_13] : memref<1x64x32xf32, #tpu.memory_space<vmem>>, vector<1x1x32xf32>
    %13 = vector.shape_cast %12 : vector<1x1x32xf32> to vector<1x32xf32>
    %c0_14 = arith.constant 0 : index
    %c0_15 = arith.constant 0 : index
    %14 = vector.load %arg2[%c0_14, %c0_15] : memref<1272x32xf32, #tpu.memory_space<vmem>>, vector<32x32xf32>
    %cst = arith.constant dense<0.000000e+00> : vector<4x32xf32>
    %15 = tpu.matmul %9, %14, %cst {dimension_numbers = #tpu.dot_dimension_numbers<[1], [0], [0], [1], [0, 0, 1, 1], [], []>} : vector<4x32xf32>, vector<32x32xf32>, vector<4x32xf32> -> vector<4x32xf32>
    %c1152 = arith.constant 1152 : index
    %c0_16 = arith.constant 0 : index
    %16 = vector.load %arg2[%c1152, %c0_16] : memref<1272x32xf32, #tpu.memory_space<vmem>>, vector<1x32xf32>
    %17 = vector.broadcast %16 : vector<1x32xf32> to vector<4x32xf32>
    %18 = arith.addf %15, %17 : vector<4x32xf32>
    %c32_17 = arith.constant 32 : index
    %c0_18 = arith.constant 0 : index
    %19 = vector.load %arg2[%c32_17, %c0_18] : memref<1272x32xf32, #tpu.memory_space<vmem>>, vector<32x32xf32>
    %cst_19 = arith.constant dense<0.000000e+00> : vector<4x32xf32>
    %20 = tpu.matmul %11, %19, %cst_19 {dimension_numbers = #tpu.dot_dimension_numbers<[1], [0], [0], [1], [0, 0, 1, 1], [], []>} : vector<4x32xf32>, vector<32x32xf32>, vector<4x32xf32> -> vector<4x32xf32>
    %c1160 = arith.constant 1160 : index
    %c0_20 = arith.constant 0 : index
    %21 = vector.load %arg2[%c1160, %c0_20] : memref<1272x32xf32, #tpu.memory_space<vmem>>, vector<1x32xf32>
    %22 = vector.broadcast %21 : vector<1x32xf32> to vector<4x32xf32>
    %23 = arith.addf %20, %22 : vector<4x32xf32>
    %cst_21 = arith.constant dense<0.000000e+00> : vector<8x32xf32>
    %24 = tpu.matmul %3, %23, %cst_21 {dimension_numbers = #tpu.dot_dimension_numbers<[1], [0], [0], [1], [0, 0, 1, 1], [], []>} : vector<8x4xf32>, vector<4x32xf32>, vector<8x32xf32> -> vector<8x32xf32>
    %cst_22 = arith.constant 0.000000e+00 : f32
    %25 = vector.broadcast %cst_22 : f32 to vector<8x32xf32>
    %c64 = arith.constant 64 : index
    %c0_23 = arith.constant 0 : index
    %26 = vector.load %arg2[%c64, %c0_23] : memref<1272x32xf32, #tpu.memory_space<vmem>>, vector<32x32xf32>
    %cst_24 = arith.constant dense<0.000000e+00> : vector<8x32xf32>
    %27 = tpu.matmul %1, %26, %cst_24 {dimension_numbers = #tpu.dot_dimension_numbers<[1], [0], [0], [1], [0, 0, 1, 1], [], []>} : vector<8x32xf32>, vector<32x32xf32>, vector<8x32xf32> -> vector<8x32xf32>
    %c1168 = arith.constant 1168 : index
    %c0_25 = arith.constant 0 : index
    %28 = vector.load %arg2[%c1168, %c0_25] : memref<1272x32xf32, #tpu.memory_space<vmem>>, vector<1x32xf32>
    %29 = vector.broadcast %28 : vector<1x32xf32> to vector<8x32xf32>
    %30 = arith.addf %27, %29 : vector<8x32xf32>
    %c96 = arith.constant 96 : index
    %c0_26 = arith.constant 0 : index
    %31 = vector.load %arg2[%c96, %c0_26] : memref<1272x32xf32, #tpu.memory_space<vmem>>, vector<32x32xf32>
    %cst_27 = arith.constant dense<0.000000e+00> : vector<8x32xf32>
    %32 = tpu.matmul %24, %31, %cst_27 {dimension_numbers = #tpu.dot_dimension_numbers<[1], [0], [0], [1], [0, 0, 1, 1], [], []>} : vector<8x32xf32>, vector<32x32xf32>, vector<8x32xf32> -> vector<8x32xf32>
    %c1176 = arith.constant 1176 : index
    %c0_28 = arith.constant 0 : index
    %33 = vector.load %arg2[%c1176, %c0_28] : memref<1272x32xf32, #tpu.memory_space<vmem>>, vector<1x32xf32>
    %34 = vector.broadcast %33 : vector<1x32xf32> to vector<8x32xf32>
    %35 = arith.addf %32, %34 : vector<8x32xf32>
    %c128 = arith.constant 128 : index
    %c0_29 = arith.constant 0 : index
    %36 = vector.load %arg2[%c128, %c0_29] : memref<1272x32xf32, #tpu.memory_space<vmem>>, vector<32x32xf32>
    %cst_30 = arith.constant dense<0.000000e+00> : vector<8x32xf32>
    %37 = tpu.matmul %24, %36, %cst_30 {dimension_numbers = #tpu.dot_dimension_numbers<[1], [0], [0], [1], [0, 0, 1, 1], [], []>} : vector<8x32xf32>, vector<32x32xf32>, vector<8x32xf32> -> vector<8x32xf32>
    %c1184 = arith.constant 1184 : index
    %c0_31 = arith.constant 0 : index
    %38 = vector.load %arg2[%c1184, %c0_31] : memref<1272x32xf32, #tpu.memory_space<vmem>>, vector<1x32xf32>
    %39 = vector.broadcast %38 : vector<1x32xf32> to vector<8x32xf32>
    %40 = arith.addf %37, %39 : vector<8x32xf32>
    %cst_32 = arith.constant dense<0.000000e+00> : vector<8x8xf32>
    %41 = tpu.matmul %30, %35, %cst_32 {dimension_numbers = #tpu.dot_dimension_numbers<[1], [1], [0], [0], [0, 0, 1, 0], [], []>} : vector<8x32xf32>, vector<8x32xf32>, vector<8x8xf32> -> vector<8x8xf32>
    %cst_33 = arith.constant 0.176776692 : f32
    %42 = vector.broadcast %cst_33 : f32 to vector<8x8xf32>
    %43 = arith.mulf %41, %42 : vector<8x8xf32>
    %44 = arith.addf %43, %7 : vector<8x8xf32>
    %cst_34 = arith.constant dense<0xFF800000> : vector<8xf32>
    %45 = vector.multi_reduction <maximumf>, %44, %cst_34 [1] : vector<8x8xf32> to vector<8xf32>
    %46 = vector.shape_cast %45 : vector<8xf32> to vector<8x1xf32>
    %47 = vector.broadcast %46 : vector<8x1xf32> to vector<8x8xf32>
    %48 = arith.subf %44, %47 : vector<8x8xf32>
    %49 = math.exp %48 : vector<8x8xf32>
    %cst_35 = arith.constant dense<0.000000e+00> : vector<8xf32>
    %50 = vector.multi_reduction <add>, %49, %cst_35 [1] : vector<8x8xf32> to vector<8xf32>
    %51 = vector.shape_cast %50 : vector<8xf32> to vector<8x1xf32>
    %52 = tpu.reciprocal %51 {approx = true} : vector<8x1xf32> -> vector<8x1xf32>
    %53 = vector.broadcast %52 : vector<8x1xf32> to vector<8x8xf32>
    %54 = arith.mulf %49, %53 : vector<8x8xf32>
    %cst_36 = arith.constant dense<0.000000e+00> : vector<8x32xf32>
    %55 = tpu.matmul %54, %40, %cst_36 {dimension_numbers = #tpu.dot_dimension_numbers<[1], [0], [0], [1], [0, 0, 1, 1], [], []>} : vector<8x8xf32>, vector<8x32xf32>, vector<8x32xf32> -> vector<8x32xf32>
    %c160 = arith.constant 160 : index
    %c0_37 = arith.constant 0 : index
    %56 = vector.load %arg2[%c160, %c0_37] : memref<1272x32xf32, #tpu.memory_space<vmem>>, vector<32x32xf32>
    %cst_38 = arith.constant dense<0.000000e+00> : vector<8x32xf32>
    %57 = tpu.matmul %55, %56, %cst_38 {dimension_numbers = #tpu.dot_dimension_numbers<[1], [0], [0], [1], [0, 0, 1, 1], [], []>} : vector<8x32xf32>, vector<32x32xf32>, vector<8x32xf32> -> vector<8x32xf32>
    %58 = arith.addf %25, %57 : vector<8x32xf32>
    %c192 = arith.constant 192 : index
    %c0_39 = arith.constant 0 : index
    %59 = vector.load %arg2[%c192, %c0_39] : memref<1272x32xf32, #tpu.memory_space<vmem>>, vector<32x32xf32>
    %cst_40 = arith.constant dense<0.000000e+00> : vector<8x32xf32>
    %60 = tpu.matmul %1, %59, %cst_40 {dimension_numbers = #tpu.dot_dimension_numbers<[1], [0], [0], [1], [0, 0, 1, 1], [], []>} : vector<8x32xf32>, vector<32x32xf32>, vector<8x32xf32> -> vector<8x32xf32>
    %c1192 = arith.constant 1192 : index
    %c0_41 = arith.constant 0 : index
    %61 = vector.load %arg2[%c1192, %c0_41] : memref<1272x32xf32, #tpu.memory_space<vmem>>, vector<1x32xf32>
    %62 = vector.broadcast %61 : vector<1x32xf32> to vector<8x32xf32>
    %63 = arith.addf %60, %62 : vector<8x32xf32>
    %c224 = arith.constant 224 : index
    %c0_42 = arith.constant 0 : index
    %64 = vector.load %arg2[%c224, %c0_42] : memref<1272x32xf32, #tpu.memory_space<vmem>>, vector<32x32xf32>
    %cst_43 = arith.constant dense<0.000000e+00> : vector<8x32xf32>
    %65 = tpu.matmul %24, %64, %cst_43 {dimension_numbers = #tpu.dot_dimension_numbers<[1], [0], [0], [1], [0, 0, 1, 1], [], []>} : vector<8x32xf32>, vector<32x32xf32>, vector<8x32xf32> -> vector<8x32xf32>
    %c1200 = arith.constant 1200 : index
    %c0_44 = arith.constant 0 : index
    %66 = vector.load %arg2[%c1200, %c0_44] : memref<1272x32xf32, #tpu.memory_space<vmem>>, vector<1x32xf32>
    %67 = vector.broadcast %66 : vector<1x32xf32> to vector<8x32xf32>
    %68 = arith.addf %65, %67 : vector<8x32xf32>
    %c256 = arith.constant 256 : index
    %c0_45 = arith.constant 0 : index
    %69 = vector.load %arg2[%c256, %c0_45] : memref<1272x32xf32, #tpu.memory_space<vmem>>, vector<32x32xf32>
    %cst_46 = arith.constant dense<0.000000e+00> : vector<8x32xf32>
    %70 = tpu.matmul %24, %69, %cst_46 {dimension_numbers = #tpu.dot_dimension_numbers<[1], [0], [0], [1], [0, 0, 1, 1], [], []>} : vector<8x32xf32>, vector<32x32xf32>, vector<8x32xf32> -> vector<8x32xf32>
    %c1208 = arith.constant 1208 : index
    %c0_47 = arith.constant 0 : index
    %71 = vector.load %arg2[%c1208, %c0_47] : memref<1272x32xf32, #tpu.memory_space<vmem>>, vector<1x32xf32>
    %72 = vector.broadcast %71 : vector<1x32xf32> to vector<8x32xf32>
    %73 = arith.addf %70, %72 : vector<8x32xf32>
    %cst_48 = arith.constant dense<0.000000e+00> : vector<8x8xf32>
    %74 = tpu.matmul %63, %68, %cst_48 {dimension_numbers = #tpu.dot_dimension_numbers<[1], [1], [0], [0], [0, 0, 1, 0], [], []>} : vector<8x32xf32>, vector<8x32xf32>, vector<8x8xf32> -> vector<8x8xf32>
    %cst_49 = arith.constant 0.176776692 : f32
    %75 = vector.broadcast %cst_49 : f32 to vector<8x8xf32>
    %76 = arith.mulf %74, %75 : vector<8x8xf32>
    %77 = arith.addf %76, %7 : vector<8x8xf32>
    %cst_50 = arith.constant dense<0xFF800000> : vector<8xf32>
    %78 = vector.multi_reduction <maximumf>, %77, %cst_50 [1] : vector<8x8xf32> to vector<8xf32>
    %79 = vector.shape_cast %78 : vector<8xf32> to vector<8x1xf32>
    %80 = vector.broadcast %79 : vector<8x1xf32> to vector<8x8xf32>
    %81 = arith.subf %77, %80 : vector<8x8xf32>
    %82 = math.exp %81 : vector<8x8xf32>
    %cst_51 = arith.constant dense<0.000000e+00> : vector<8xf32>
    %83 = vector.multi_reduction <add>, %82, %cst_51 [1] : vector<8x8xf32> to vector<8xf32>
    %84 = vector.shape_cast %83 : vector<8xf32> to vector<8x1xf32>
    %85 = tpu.reciprocal %84 {approx = true} : vector<8x1xf32> -> vector<8x1xf32>
    %86 = vector.broadcast %85 : vector<8x1xf32> to vector<8x8xf32>
    %87 = arith.mulf %82, %86 : vector<8x8xf32>
    %cst_52 = arith.constant dense<0.000000e+00> : vector<8x32xf32>
    %88 = tpu.matmul %87, %73, %cst_52 {dimension_numbers = #tpu.dot_dimension_numbers<[1], [0], [0], [1], [0, 0, 1, 1], [], []>} : vector<8x8xf32>, vector<8x32xf32>, vector<8x32xf32> -> vector<8x32xf32>
    %c288 = arith.constant 288 : index
    %c0_53 = arith.constant 0 : index
    %89 = vector.load %arg2[%c288, %c0_53] : memref<1272x32xf32, #tpu.memory_space<vmem>>, vector<32x32xf32>
    %cst_54 = arith.constant dense<0.000000e+00> : vector<8x32xf32>
    %90 = tpu.matmul %88, %89, %cst_54 {dimension_numbers = #tpu.dot_dimension_numbers<[1], [0], [0], [1], [0, 0, 1, 1], [], []>} : vector<8x32xf32>, vector<32x32xf32>, vector<8x32xf32> -> vector<8x32xf32>
    %91 = arith.addf %58, %90 : vector<8x32xf32>
    %c1216 = arith.constant 1216 : index
    %c0_55 = arith.constant 0 : index
    %92 = vector.load %arg2[%c1216, %c0_55] : memref<1272x32xf32, #tpu.memory_space<vmem>>, vector<1x32xf32>
    %93 = vector.broadcast %92 : vector<1x32xf32> to vector<8x32xf32>
    %94 = arith.addf %91, %93 : vector<8x32xf32>
    %95 = arith.addf %1, %94 : vector<8x32xf32>
    %96 = vector.broadcast %13 : vector<1x32xf32> to vector<8x32xf32>
    %97 = arith.addf %95, %96 : vector<8x32xf32>
    %cst_56 = arith.constant dense<0.000000e+00> : vector<16x32xf32>
    %98 = tpu.matmul %5, %97, %cst_56 {dimension_numbers = #tpu.dot_dimension_numbers<[1], [0], [0], [1], [0, 0, 1, 1], [], []>} : vector<16x8xf32>, vector<8x32xf32>, vector<16x32xf32> -> vector<16x32xf32>
    %c320 = arith.constant 320 : index
    %c0_57 = arith.constant 0 : index
    %99 = vector.load %arg2[%c320, %c0_57] : memref<1272x32xf32, #tpu.memory_space<vmem>>, vector<32x32xf32>
    %cst_58 = arith.constant dense<0.000000e+00> : vector<16x32xf32>
    %100 = tpu.matmul %98, %99, %cst_58 {dimension_numbers = #tpu.dot_dimension_numbers<[1], [0], [0], [1], [0, 0, 1, 1], [], []>} : vector<16x32xf32>, vector<32x32xf32>, vector<16x32xf32> -> vector<16x32xf32>
    %c1224 = arith.constant 1224 : index
    %c0_59 = arith.constant 0 : index
    %101 = vector.load %arg2[%c1224, %c0_59] : memref<1272x32xf32, #tpu.memory_space<vmem>>, vector<1x32xf32>
    %102 = vector.broadcast %101 : vector<1x32xf32> to vector<16x32xf32>
    %103 = arith.addf %100, %102 : vector<16x32xf32>
    %104 = tpu.iota {dimensions = array<i32: 0>} : vector<16x16xi32>
    %105 = tpu.iota {dimensions = array<i32: 1>} : vector<16x16xi32>
    %c-2_i32 = arith.constant -2 : i32
    %106 = vector.broadcast %c-2_i32 : i32 to vector<16x16xi32>
    %107 = arith.addi %104, %106 : vector<16x16xi32>
    %108 = arith.cmpi eq, %105, %107 : vector<16x16xi32>
    %109 = arith.extui %108 : vector<16x16xi1> to vector<16x16xi32>
    %110 = arith.sitofp %109 : vector<16x16xi32> to vector<16x16xf32>
    %c-1_i32 = arith.constant -1 : i32
    %111 = vector.broadcast %c-1_i32 : i32 to vector<16x16xi32>
    %112 = arith.addi %104, %111 : vector<16x16xi32>
    %113 = arith.cmpi eq, %105, %112 : vector<16x16xi32>
    %114 = arith.extui %113 : vector<16x16xi1> to vector<16x16xi32>
    %115 = arith.sitofp %114 : vector<16x16xi32> to vector<16x16xf32>
    %c0_i32 = arith.constant 0 : i32
    %116 = vector.broadcast %c0_i32 : i32 to vector<16x16xi32>
    %117 = arith.addi %104, %116 : vector<16x16xi32>
    %118 = arith.cmpi eq, %105, %117 : vector<16x16xi32>
    %119 = arith.extui %118 : vector<16x16xi1> to vector<16x16xi32>
    %120 = arith.sitofp %119 : vector<16x16xi32> to vector<16x16xf32>
    %c1_i32 = arith.constant 1 : i32
    %121 = vector.broadcast %c1_i32 : i32 to vector<16x16xi32>
    %122 = arith.addi %104, %121 : vector<16x16xi32>
    %123 = arith.cmpi eq, %105, %122 : vector<16x16xi32>
    %124 = arith.extui %123 : vector<16x16xi1> to vector<16x16xi32>
    %125 = arith.sitofp %124 : vector<16x16xi32> to vector<16x16xf32>
    %c2_i32 = arith.constant 2 : i32
    %126 = vector.broadcast %c2_i32 : i32 to vector<16x16xi32>
    %127 = arith.addi %104, %126 : vector<16x16xi32>
    %128 = arith.cmpi eq, %105, %127 : vector<16x16xi32>
    %129 = arith.extui %128 : vector<16x16xi1> to vector<16x16xi32>
    %130 = arith.sitofp %129 : vector<16x16xi32> to vector<16x16xf32>
    %cst_60 = arith.constant 0.000000e+00 : f32
    %131 = vector.broadcast %cst_60 : f32 to vector<16x32xf32>
    %c1232 = arith.constant 1232 : index
    %c0_61 = arith.constant 0 : index
    %132 = vector.load %arg2[%c1232, %c0_61] : memref<1272x32xf32, #tpu.memory_space<vmem>>, vector<1x32xf32>
    %133 = vector.broadcast %132 : vector<1x32xf32> to vector<16x32xf32>
    %134 = arith.addf %131, %133 : vector<16x32xf32>
    %cst_62 = arith.constant dense<0.000000e+00> : vector<16x32xf32>
    %135 = tpu.matmul %110, %103, %cst_62 {dimension_numbers = #tpu.dot_dimension_numbers<[1], [0], [0], [1], [0, 0, 1, 1], [], []>} : vector<16x16xf32>, vector<16x32xf32>, vector<16x32xf32> -> vector<16x32xf32>
    %c352 = arith.constant 352 : index
    %c0_63 = arith.constant 0 : index
    %136 = vector.load %arg2[%c352, %c0_63] : memref<1272x32xf32, #tpu.memory_space<vmem>>, vector<32x32xf32>
    %cst_64 = arith.constant dense<0.000000e+00> : vector<16x32xf32>
    %137 = tpu.matmul %135, %136, %cst_64 {dimension_numbers = #tpu.dot_dimension_numbers<[1], [0], [0], [1], [0, 0, 1, 1], [], []>} : vector<16x32xf32>, vector<32x32xf32>, vector<16x32xf32> -> vector<16x32xf32>
    %138 = arith.addf %134, %137 : vector<16x32xf32>
    %cst_65 = arith.constant dense<0.000000e+00> : vector<16x32xf32>
    %139 = tpu.matmul %115, %103, %cst_65 {dimension_numbers = #tpu.dot_dimension_numbers<[1], [0], [0], [1], [0, 0, 1, 1], [], []>} : vector<16x16xf32>, vector<16x32xf32>, vector<16x32xf32> -> vector<16x32xf32>
    %c384 = arith.constant 384 : index
    %c0_66 = arith.constant 0 : index
    %140 = vector.load %arg2[%c384, %c0_66] : memref<1272x32xf32, #tpu.memory_space<vmem>>, vector<32x32xf32>
    %cst_67 = arith.constant dense<0.000000e+00> : vector<16x32xf32>
    %141 = tpu.matmul %139, %140, %cst_67 {dimension_numbers = #tpu.dot_dimension_numbers<[1], [0], [0], [1], [0, 0, 1, 1], [], []>} : vector<16x32xf32>, vector<32x32xf32>, vector<16x32xf32> -> vector<16x32xf32>
    %142 = arith.addf %138, %141 : vector<16x32xf32>
    %cst_68 = arith.constant dense<0.000000e+00> : vector<16x32xf32>
    %143 = tpu.matmul %120, %103, %cst_68 {dimension_numbers = #tpu.dot_dimension_numbers<[1], [0], [0], [1], [0, 0, 1, 1], [], []>} : vector<16x16xf32>, vector<16x32xf32>, vector<16x32xf32> -> vector<16x32xf32>
    %c416 = arith.constant 416 : index
    %c0_69 = arith.constant 0 : index
    %144 = vector.load %arg2[%c416, %c0_69] : memref<1272x32xf32, #tpu.memory_space<vmem>>, vector<32x32xf32>
    %cst_70 = arith.constant dense<0.000000e+00> : vector<16x32xf32>
    %145 = tpu.matmul %143, %144, %cst_70 {dimension_numbers = #tpu.dot_dimension_numbers<[1], [0], [0], [1], [0, 0, 1, 1], [], []>} : vector<16x32xf32>, vector<32x32xf32>, vector<16x32xf32> -> vector<16x32xf32>
    %146 = arith.addf %142, %145 : vector<16x32xf32>
    %cst_71 = arith.constant dense<0.000000e+00> : vector<16x32xf32>
    %147 = tpu.matmul %125, %103, %cst_71 {dimension_numbers = #tpu.dot_dimension_numbers<[1], [0], [0], [1], [0, 0, 1, 1], [], []>} : vector<16x16xf32>, vector<16x32xf32>, vector<16x32xf32> -> vector<16x32xf32>
    %c448 = arith.constant 448 : index
    %c0_72 = arith.constant 0 : index
    %148 = vector.load %arg2[%c448, %c0_72] : memref<1272x32xf32, #tpu.memory_space<vmem>>, vector<32x32xf32>
    %cst_73 = arith.constant dense<0.000000e+00> : vector<16x32xf32>
    %149 = tpu.matmul %147, %148, %cst_73 {dimension_numbers = #tpu.dot_dimension_numbers<[1], [0], [0], [1], [0, 0, 1, 1], [], []>} : vector<16x32xf32>, vector<32x32xf32>, vector<16x32xf32> -> vector<16x32xf32>
    %150 = arith.addf %146, %149 : vector<16x32xf32>
    %cst_74 = arith.constant dense<0.000000e+00> : vector<16x32xf32>
    %151 = tpu.matmul %130, %103, %cst_74 {dimension_numbers = #tpu.dot_dimension_numbers<[1], [0], [0], [1], [0, 0, 1, 1], [], []>} : vector<16x16xf32>, vector<16x32xf32>, vector<16x32xf32> -> vector<16x32xf32>
    %c480 = arith.constant 480 : index
    %c0_75 = arith.constant 0 : index
    %152 = vector.load %arg2[%c480, %c0_75] : memref<1272x32xf32, #tpu.memory_space<vmem>>, vector<32x32xf32>
    %cst_76 = arith.constant dense<0.000000e+00> : vector<16x32xf32>
    %153 = tpu.matmul %151, %152, %cst_76 {dimension_numbers = #tpu.dot_dimension_numbers<[1], [0], [0], [1], [0, 0, 1, 1], [], []>} : vector<16x32xf32>, vector<32x32xf32>, vector<16x32xf32> -> vector<16x32xf32>
    %154 = arith.addf %150, %153 : vector<16x32xf32>
    %155 = math.tanh %154 : vector<16x32xf32>
    %cst_77 = arith.constant 0.000000e+00 : f32
    %156 = vector.broadcast %cst_77 : f32 to vector<16x32xf32>
    %c1240 = arith.constant 1240 : index
    %c0_78 = arith.constant 0 : index
    %157 = vector.load %arg2[%c1240, %c0_78] : memref<1272x32xf32, #tpu.memory_space<vmem>>, vector<1x32xf32>
    %158 = vector.broadcast %157 : vector<1x32xf32> to vector<16x32xf32>
    %159 = arith.addf %156, %158 : vector<16x32xf32>
    %cst_79 = arith.constant dense<0.000000e+00> : vector<16x32xf32>
    %160 = tpu.matmul %110, %155, %cst_79 {dimension_numbers = #tpu.dot_dimension_numbers<[1], [0], [0], [1], [0, 0, 1, 1], [], []>} : vector<16x16xf32>, vector<16x32xf32>, vector<16x32xf32> -> vector<16x32xf32>
    %c512 = arith.constant 512 : index
    %c0_80 = arith.constant 0 : index
    %161 = vector.load %arg2[%c512, %c0_80] : memref<1272x32xf32, #tpu.memory_space<vmem>>, vector<32x32xf32>
    %cst_81 = arith.constant dense<0.000000e+00> : vector<16x32xf32>
    %162 = tpu.matmul %160, %161, %cst_81 {dimension_numbers = #tpu.dot_dimension_numbers<[1], [0], [0], [1], [0, 0, 1, 1], [], []>} : vector<16x32xf32>, vector<32x32xf32>, vector<16x32xf32> -> vector<16x32xf32>
    %163 = arith.addf %159, %162 : vector<16x32xf32>
    %cst_82 = arith.constant dense<0.000000e+00> : vector<16x32xf32>
    %164 = tpu.matmul %115, %155, %cst_82 {dimension_numbers = #tpu.dot_dimension_numbers<[1], [0], [0], [1], [0, 0, 1, 1], [], []>} : vector<16x16xf32>, vector<16x32xf32>, vector<16x32xf32> -> vector<16x32xf32>
    %c544 = arith.constant 544 : index
    %c0_83 = arith.constant 0 : index
    %165 = vector.load %arg2[%c544, %c0_83] : memref<1272x32xf32, #tpu.memory_space<vmem>>, vector<32x32xf32>
    %cst_84 = arith.constant dense<0.000000e+00> : vector<16x32xf32>
    %166 = tpu.matmul %164, %165, %cst_84 {dimension_numbers = #tpu.dot_dimension_numbers<[1], [0], [0], [1], [0, 0, 1, 1], [], []>} : vector<16x32xf32>, vector<32x32xf32>, vector<16x32xf32> -> vector<16x32xf32>
    %167 = arith.addf %163, %166 : vector<16x32xf32>
    %cst_85 = arith.constant dense<0.000000e+00> : vector<16x32xf32>
    %168 = tpu.matmul %120, %155, %cst_85 {dimension_numbers = #tpu.dot_dimension_numbers<[1], [0], [0], [1], [0, 0, 1, 1], [], []>} : vector<16x16xf32>, vector<16x32xf32>, vector<16x32xf32> -> vector<16x32xf32>
    %c576 = arith.constant 576 : index
    %c0_86 = arith.constant 0 : index
    %169 = vector.load %arg2[%c576, %c0_86] : memref<1272x32xf32, #tpu.memory_space<vmem>>, vector<32x32xf32>
    %cst_87 = arith.constant dense<0.000000e+00> : vector<16x32xf32>
    %170 = tpu.matmul %168, %169, %cst_87 {dimension_numbers = #tpu.dot_dimension_numbers<[1], [0], [0], [1], [0, 0, 1, 1], [], []>} : vector<16x32xf32>, vector<32x32xf32>, vector<16x32xf32> -> vector<16x32xf32>
    %171 = arith.addf %167, %170 : vector<16x32xf32>
    %cst_88 = arith.constant dense<0.000000e+00> : vector<16x32xf32>
    %172 = tpu.matmul %125, %155, %cst_88 {dimension_numbers = #tpu.dot_dimension_numbers<[1], [0], [0], [1], [0, 0, 1, 1], [], []>} : vector<16x16xf32>, vector<16x32xf32>, vector<16x32xf32> -> vector<16x32xf32>
    %c608 = arith.constant 608 : index
    %c0_89 = arith.constant 0 : index
    %173 = vector.load %arg2[%c608, %c0_89] : memref<1272x32xf32, #tpu.memory_space<vmem>>, vector<32x32xf32>
    %cst_90 = arith.constant dense<0.000000e+00> : vector<16x32xf32>
    %174 = tpu.matmul %172, %173, %cst_90 {dimension_numbers = #tpu.dot_dimension_numbers<[1], [0], [0], [1], [0, 0, 1, 1], [], []>} : vector<16x32xf32>, vector<32x32xf32>, vector<16x32xf32> -> vector<16x32xf32>
    %175 = arith.addf %171, %174 : vector<16x32xf32>
    %cst_91 = arith.constant dense<0.000000e+00> : vector<16x32xf32>
    %176 = tpu.matmul %130, %155, %cst_91 {dimension_numbers = #tpu.dot_dimension_numbers<[1], [0], [0], [1], [0, 0, 1, 1], [], []>} : vector<16x16xf32>, vector<16x32xf32>, vector<16x32xf32> -> vector<16x32xf32>
    %c640 = arith.constant 640 : index
    %c0_92 = arith.constant 0 : index
    %177 = vector.load %arg2[%c640, %c0_92] : memref<1272x32xf32, #tpu.memory_space<vmem>>, vector<32x32xf32>
    %cst_93 = arith.constant dense<0.000000e+00> : vector<16x32xf32>
    %178 = tpu.matmul %176, %177, %cst_93 {dimension_numbers = #tpu.dot_dimension_numbers<[1], [0], [0], [1], [0, 0, 1, 1], [], []>} : vector<16x32xf32>, vector<32x32xf32>, vector<16x32xf32> -> vector<16x32xf32>
    %179 = arith.addf %175, %178 : vector<16x32xf32>
    %180 = math.tanh %179 : vector<16x32xf32>
    %cst_94 = arith.constant 0.000000e+00 : f32
    %181 = vector.broadcast %cst_94 : f32 to vector<16x32xf32>
    %c1248 = arith.constant 1248 : index
    %c0_95 = arith.constant 0 : index
    %182 = vector.load %arg2[%c1248, %c0_95] : memref<1272x32xf32, #tpu.memory_space<vmem>>, vector<1x32xf32>
    %183 = vector.broadcast %182 : vector<1x32xf32> to vector<16x32xf32>
    %184 = arith.addf %181, %183 : vector<16x32xf32>
    %cst_96 = arith.constant dense<0.000000e+00> : vector<16x32xf32>
    %185 = tpu.matmul %110, %180, %cst_96 {dimension_numbers = #tpu.dot_dimension_numbers<[1], [0], [0], [1], [0, 0, 1, 1], [], []>} : vector<16x16xf32>, vector<16x32xf32>, vector<16x32xf32> -> vector<16x32xf32>
    %c672 = arith.constant 672 : index
    %c0_97 = arith.constant 0 : index
    %186 = vector.load %arg2[%c672, %c0_97] : memref<1272x32xf32, #tpu.memory_space<vmem>>, vector<32x32xf32>
    %cst_98 = arith.constant dense<0.000000e+00> : vector<16x32xf32>
    %187 = tpu.matmul %185, %186, %cst_98 {dimension_numbers = #tpu.dot_dimension_numbers<[1], [0], [0], [1], [0, 0, 1, 1], [], []>} : vector<16x32xf32>, vector<32x32xf32>, vector<16x32xf32> -> vector<16x32xf32>
    %188 = arith.addf %184, %187 : vector<16x32xf32>
    %cst_99 = arith.constant dense<0.000000e+00> : vector<16x32xf32>
    %189 = tpu.matmul %115, %180, %cst_99 {dimension_numbers = #tpu.dot_dimension_numbers<[1], [0], [0], [1], [0, 0, 1, 1], [], []>} : vector<16x16xf32>, vector<16x32xf32>, vector<16x32xf32> -> vector<16x32xf32>
    %c704 = arith.constant 704 : index
    %c0_100 = arith.constant 0 : index
    %190 = vector.load %arg2[%c704, %c0_100] : memref<1272x32xf32, #tpu.memory_space<vmem>>, vector<32x32xf32>
    %cst_101 = arith.constant dense<0.000000e+00> : vector<16x32xf32>
    %191 = tpu.matmul %189, %190, %cst_101 {dimension_numbers = #tpu.dot_dimension_numbers<[1], [0], [0], [1], [0, 0, 1, 1], [], []>} : vector<16x32xf32>, vector<32x32xf32>, vector<16x32xf32> -> vector<16x32xf32>
    %192 = arith.addf %188, %191 : vector<16x32xf32>
    %cst_102 = arith.constant dense<0.000000e+00> : vector<16x32xf32>
    %193 = tpu.matmul %120, %180, %cst_102 {dimension_numbers = #tpu.dot_dimension_numbers<[1], [0], [0], [1], [0, 0, 1, 1], [], []>} : vector<16x16xf32>, vector<16x32xf32>, vector<16x32xf32> -> vector<16x32xf32>
    %c736 = arith.constant 736 : index
    %c0_103 = arith.constant 0 : index
    %194 = vector.load %arg2[%c736, %c0_103] : memref<1272x32xf32, #tpu.memory_space<vmem>>, vector<32x32xf32>
    %cst_104 = arith.constant dense<0.000000e+00> : vector<16x32xf32>
    %195 = tpu.matmul %193, %194, %cst_104 {dimension_numbers = #tpu.dot_dimension_numbers<[1], [0], [0], [1], [0, 0, 1, 1], [], []>} : vector<16x32xf32>, vector<32x32xf32>, vector<16x32xf32> -> vector<16x32xf32>
    %196 = arith.addf %192, %195 : vector<16x32xf32>
    %cst_105 = arith.constant dense<0.000000e+00> : vector<16x32xf32>
    %197 = tpu.matmul %125, %180, %cst_105 {dimension_numbers = #tpu.dot_dimension_numbers<[1], [0], [0], [1], [0, 0, 1, 1], [], []>} : vector<16x16xf32>, vector<16x32xf32>, vector<16x32xf32> -> vector<16x32xf32>
    %c768 = arith.constant 768 : index
    %c0_106 = arith.constant 0 : index
    %198 = vector.load %arg2[%c768, %c0_106] : memref<1272x32xf32, #tpu.memory_space<vmem>>, vector<32x32xf32>
    %cst_107 = arith.constant dense<0.000000e+00> : vector<16x32xf32>
    %199 = tpu.matmul %197, %198, %cst_107 {dimension_numbers = #tpu.dot_dimension_numbers<[1], [0], [0], [1], [0, 0, 1, 1], [], []>} : vector<16x32xf32>, vector<32x32xf32>, vector<16x32xf32> -> vector<16x32xf32>
    %200 = arith.addf %196, %199 : vector<16x32xf32>
    %cst_108 = arith.constant dense<0.000000e+00> : vector<16x32xf32>
    %201 = tpu.matmul %130, %180, %cst_108 {dimension_numbers = #tpu.dot_dimension_numbers<[1], [0], [0], [1], [0, 0, 1, 1], [], []>} : vector<16x16xf32>, vector<16x32xf32>, vector<16x32xf32> -> vector<16x32xf32>
    %c800 = arith.constant 800 : index
    %c0_109 = arith.constant 0 : index
    %202 = vector.load %arg2[%c800, %c0_109] : memref<1272x32xf32, #tpu.memory_space<vmem>>, vector<32x32xf32>
    %cst_110 = arith.constant dense<0.000000e+00> : vector<16x32xf32>
    %203 = tpu.matmul %201, %202, %cst_110 {dimension_numbers = #tpu.dot_dimension_numbers<[1], [0], [0], [1], [0, 0, 1, 1], [], []>} : vector<16x32xf32>, vector<32x32xf32>, vector<16x32xf32> -> vector<16x32xf32>
    %204 = arith.addf %200, %203 : vector<16x32xf32>
    %205 = math.tanh %204 : vector<16x32xf32>
    %cst_111 = arith.constant 0.000000e+00 : f32
    %206 = vector.broadcast %cst_111 : f32 to vector<16x32xf32>
    %c1256 = arith.constant 1256 : index
    %c0_112 = arith.constant 0 : index
    %207 = vector.load %arg2[%c1256, %c0_112] : memref<1272x32xf32, #tpu.memory_space<vmem>>, vector<1x32xf32>
    %208 = vector.broadcast %207 : vector<1x32xf32> to vector<16x32xf32>
    %209 = arith.addf %206, %208 : vector<16x32xf32>
    %cst_113 = arith.constant dense<0.000000e+00> : vector<16x32xf32>
    %210 = tpu.matmul %110, %205, %cst_113 {dimension_numbers = #tpu.dot_dimension_numbers<[1], [0], [0], [1], [0, 0, 1, 1], [], []>} : vector<16x16xf32>, vector<16x32xf32>, vector<16x32xf32> -> vector<16x32xf32>
    %c832 = arith.constant 832 : index
    %c0_114 = arith.constant 0 : index
    %211 = vector.load %arg2[%c832, %c0_114] : memref<1272x32xf32, #tpu.memory_space<vmem>>, vector<32x32xf32>
    %cst_115 = arith.constant dense<0.000000e+00> : vector<16x32xf32>
    %212 = tpu.matmul %210, %211, %cst_115 {dimension_numbers = #tpu.dot_dimension_numbers<[1], [0], [0], [1], [0, 0, 1, 1], [], []>} : vector<16x32xf32>, vector<32x32xf32>, vector<16x32xf32> -> vector<16x32xf32>
    %213 = arith.addf %209, %212 : vector<16x32xf32>
    %cst_116 = arith.constant dense<0.000000e+00> : vector<16x32xf32>
    %214 = tpu.matmul %115, %205, %cst_116 {dimension_numbers = #tpu.dot_dimension_numbers<[1], [0], [0], [1], [0, 0, 1, 1], [], []>} : vector<16x16xf32>, vector<16x32xf32>, vector<16x32xf32> -> vector<16x32xf32>
    %c864 = arith.constant 864 : index
    %c0_117 = arith.constant 0 : index
    %215 = vector.load %arg2[%c864, %c0_117] : memref<1272x32xf32, #tpu.memory_space<vmem>>, vector<32x32xf32>
    %cst_118 = arith.constant dense<0.000000e+00> : vector<16x32xf32>
    %216 = tpu.matmul %214, %215, %cst_118 {dimension_numbers = #tpu.dot_dimension_numbers<[1], [0], [0], [1], [0, 0, 1, 1], [], []>} : vector<16x32xf32>, vector<32x32xf32>, vector<16x32xf32> -> vector<16x32xf32>
    %217 = arith.addf %213, %216 : vector<16x32xf32>
    %cst_119 = arith.constant dense<0.000000e+00> : vector<16x32xf32>
    %218 = tpu.matmul %120, %205, %cst_119 {dimension_numbers = #tpu.dot_dimension_numbers<[1], [0], [0], [1], [0, 0, 1, 1], [], []>} : vector<16x16xf32>, vector<16x32xf32>, vector<16x32xf32> -> vector<16x32xf32>
    %c896 = arith.constant 896 : index
    %c0_120 = arith.constant 0 : index
    %219 = vector.load %arg2[%c896, %c0_120] : memref<1272x32xf32, #tpu.memory_space<vmem>>, vector<32x32xf32>
    %cst_121 = arith.constant dense<0.000000e+00> : vector<16x32xf32>
    %220 = tpu.matmul %218, %219, %cst_121 {dimension_numbers = #tpu.dot_dimension_numbers<[1], [0], [0], [1], [0, 0, 1, 1], [], []>} : vector<16x32xf32>, vector<32x32xf32>, vector<16x32xf32> -> vector<16x32xf32>
    %221 = arith.addf %217, %220 : vector<16x32xf32>
    %cst_122 = arith.constant dense<0.000000e+00> : vector<16x32xf32>
    %222 = tpu.matmul %125, %205, %cst_122 {dimension_numbers = #tpu.dot_dimension_numbers<[1], [0], [0], [1], [0, 0, 1, 1], [], []>} : vector<16x16xf32>, vector<16x32xf32>, vector<16x32xf32> -> vector<16x32xf32>
    %c928 = arith.constant 928 : index
    %c0_123 = arith.constant 0 : index
    %223 = vector.load %arg2[%c928, %c0_123] : memref<1272x32xf32, #tpu.memory_space<vmem>>, vector<32x32xf32>
    %cst_124 = arith.constant dense<0.000000e+00> : vector<16x32xf32>
    %224 = tpu.matmul %222, %223, %cst_124 {dimension_numbers = #tpu.dot_dimension_numbers<[1], [0], [0], [1], [0, 0, 1, 1], [], []>} : vector<16x32xf32>, vector<32x32xf32>, vector<16x32xf32> -> vector<16x32xf32>
    %225 = arith.addf %221, %224 : vector<16x32xf32>
    %cst_125 = arith.constant dense<0.000000e+00> : vector<16x32xf32>
    %226 = tpu.matmul %130, %205, %cst_125 {dimension_numbers = #tpu.dot_dimension_numbers<[1], [0], [0], [1], [0, 0, 1, 1], [], []>} : vector<16x16xf32>, vector<16x32xf32>, vector<16x32xf32> -> vector<16x32xf32>
    %c960 = arith.constant 960 : index
    %c0_126 = arith.constant 0 : index
    %227 = vector.load %arg2[%c960, %c0_126] : memref<1272x32xf32, #tpu.memory_space<vmem>>, vector<32x32xf32>
    %cst_127 = arith.constant dense<0.000000e+00> : vector<16x32xf32>
    %228 = tpu.matmul %226, %227, %cst_127 {dimension_numbers = #tpu.dot_dimension_numbers<[1], [0], [0], [1], [0, 0, 1, 1], [], []>} : vector<16x32xf32>, vector<32x32xf32>, vector<16x32xf32> -> vector<16x32xf32>
    %229 = arith.addf %225, %228 : vector<16x32xf32>
    %230 = math.tanh %229 : vector<16x32xf32>
    %cst_128 = arith.constant 0.000000e+00 : f32
    %231 = vector.broadcast %cst_128 : f32 to vector<16x32xf32>
    %c1264 = arith.constant 1264 : index
    %c0_129 = arith.constant 0 : index
    %232 = vector.load %arg2[%c1264, %c0_129] : memref<1272x32xf32, #tpu.memory_space<vmem>>, vector<1x32xf32>
    %233 = vector.broadcast %232 : vector<1x32xf32> to vector<16x32xf32>
    %234 = arith.addf %231, %233 : vector<16x32xf32>
    %cst_130 = arith.constant dense<0.000000e+00> : vector<16x32xf32>
    %235 = tpu.matmul %110, %230, %cst_130 {dimension_numbers = #tpu.dot_dimension_numbers<[1], [0], [0], [1], [0, 0, 1, 1], [], []>} : vector<16x16xf32>, vector<16x32xf32>, vector<16x32xf32> -> vector<16x32xf32>
    %c992 = arith.constant 992 : index
    %c0_131 = arith.constant 0 : index
    %236 = vector.load %arg2[%c992, %c0_131] : memref<1272x32xf32, #tpu.memory_space<vmem>>, vector<32x32xf32>
    %cst_132 = arith.constant dense<0.000000e+00> : vector<16x32xf32>
    %237 = tpu.matmul %235, %236, %cst_132 {dimension_numbers = #tpu.dot_dimension_numbers<[1], [0], [0], [1], [0, 0, 1, 1], [], []>} : vector<16x32xf32>, vector<32x32xf32>, vector<16x32xf32> -> vector<16x32xf32>
    %238 = arith.addf %234, %237 : vector<16x32xf32>
    %cst_133 = arith.constant dense<0.000000e+00> : vector<16x32xf32>
    %239 = tpu.matmul %115, %230, %cst_133 {dimension_numbers = #tpu.dot_dimension_numbers<[1], [0], [0], [1], [0, 0, 1, 1], [], []>} : vector<16x16xf32>, vector<16x32xf32>, vector<16x32xf32> -> vector<16x32xf32>
    %c1024 = arith.constant 1024 : index
    %c0_134 = arith.constant 0 : index
    %240 = vector.load %arg2[%c1024, %c0_134] : memref<1272x32xf32, #tpu.memory_space<vmem>>, vector<32x32xf32>
    %cst_135 = arith.constant dense<0.000000e+00> : vector<16x32xf32>
    %241 = tpu.matmul %239, %240, %cst_135 {dimension_numbers = #tpu.dot_dimension_numbers<[1], [0], [0], [1], [0, 0, 1, 1], [], []>} : vector<16x32xf32>, vector<32x32xf32>, vector<16x32xf32> -> vector<16x32xf32>
    %242 = arith.addf %238, %241 : vector<16x32xf32>
    %cst_136 = arith.constant dense<0.000000e+00> : vector<16x32xf32>
    %243 = tpu.matmul %120, %230, %cst_136 {dimension_numbers = #tpu.dot_dimension_numbers<[1], [0], [0], [1], [0, 0, 1, 1], [], []>} : vector<16x16xf32>, vector<16x32xf32>, vector<16x32xf32> -> vector<16x32xf32>
    %c1056 = arith.constant 1056 : index
    %c0_137 = arith.constant 0 : index
    %244 = vector.load %arg2[%c1056, %c0_137] : memref<1272x32xf32, #tpu.memory_space<vmem>>, vector<32x32xf32>
    %cst_138 = arith.constant dense<0.000000e+00> : vector<16x32xf32>
    %245 = tpu.matmul %243, %244, %cst_138 {dimension_numbers = #tpu.dot_dimension_numbers<[1], [0], [0], [1], [0, 0, 1, 1], [], []>} : vector<16x32xf32>, vector<32x32xf32>, vector<16x32xf32> -> vector<16x32xf32>
    %246 = arith.addf %242, %245 : vector<16x32xf32>
    %cst_139 = arith.constant dense<0.000000e+00> : vector<16x32xf32>
    %247 = tpu.matmul %125, %230, %cst_139 {dimension_numbers = #tpu.dot_dimension_numbers<[1], [0], [0], [1], [0, 0, 1, 1], [], []>} : vector<16x16xf32>, vector<16x32xf32>, vector<16x32xf32> -> vector<16x32xf32>
    %c1088 = arith.constant 1088 : index
    %c0_140 = arith.constant 0 : index
    %248 = vector.load %arg2[%c1088, %c0_140] : memref<1272x32xf32, #tpu.memory_space<vmem>>, vector<32x32xf32>
    %cst_141 = arith.constant dense<0.000000e+00> : vector<16x32xf32>
    %249 = tpu.matmul %247, %248, %cst_141 {dimension_numbers = #tpu.dot_dimension_numbers<[1], [0], [0], [1], [0, 0, 1, 1], [], []>} : vector<16x32xf32>, vector<32x32xf32>, vector<16x32xf32> -> vector<16x32xf32>
    %250 = arith.addf %246, %249 : vector<16x32xf32>
    %cst_142 = arith.constant dense<0.000000e+00> : vector<16x32xf32>
    %251 = tpu.matmul %130, %230, %cst_142 {dimension_numbers = #tpu.dot_dimension_numbers<[1], [0], [0], [1], [0, 0, 1, 1], [], []>} : vector<16x16xf32>, vector<16x32xf32>, vector<16x32xf32> -> vector<16x32xf32>
    %c1120 = arith.constant 1120 : index
    %c0_143 = arith.constant 0 : index
    %252 = vector.load %arg2[%c1120, %c0_143] : memref<1272x32xf32, #tpu.memory_space<vmem>>, vector<32x32xf32>
    %cst_144 = arith.constant dense<0.000000e+00> : vector<16x32xf32>
    %253 = tpu.matmul %251, %252, %cst_144 {dimension_numbers = #tpu.dot_dimension_numbers<[1], [0], [0], [1], [0, 0, 1, 1], [], []>} : vector<16x32xf32>, vector<32x32xf32>, vector<16x32xf32> -> vector<16x32xf32>
    %254 = arith.addf %250, %253 : vector<16x32xf32>
    %255 = arith.addf %254, %103 : vector<16x32xf32>
    %c0_145 = arith.constant 0 : index
    %c0_146 = arith.constant 0 : index
    %c0_147 = arith.constant 0 : index
    %256 = vector.load %arg3[%c0_145, %c0_146, %c0_147] : memref<1x48x32xf32, #tpu.memory_space<vmem>>, vector<1x8x32xf32>
    %257 = vector.shape_cast %256 : vector<1x8x32xf32> to vector<8x32xf32>
    %258 = vector.shape_cast %94 : vector<8x32xf32> to vector<1x8x32xf32>
    tpu.vector_store %arg3[%c0_145, %c0_146, %c0_147], %258 {strides = array<i32>} : memref<1x48x32xf32, #tpu.memory_space<vmem>>, vector<1x8x32xf32>,
    %c0_148 = arith.constant 0 : index
    %c8_149 = arith.constant 8 : index
    %c0_150 = arith.constant 0 : index
    %259 = vector.load %arg3[%c0_148, %c8_149, %c0_150] : memref<1x48x32xf32, #tpu.memory_space<vmem>>, vector<1x16x32xf32>
    %260 = vector.shape_cast %259 : vector<1x16x32xf32> to vector<16x32xf32>
    %261 = vector.shape_cast %103 : vector<16x32xf32> to vector<1x16x32xf32>
    tpu.vector_store %arg3[%c0_148, %c8_149, %c0_150], %261 {strides = array<i32>} : memref<1x48x32xf32, #tpu.memory_space<vmem>>, vector<1x16x32xf32>,
    %c0_151 = arith.constant 0 : index
    %c24 = arith.constant 24 : index
    %c0_152 = arith.constant 0 : index
    %262 = vector.load %arg3[%c0_151, %c24, %c0_152] : memref<1x48x32xf32, #tpu.memory_space<vmem>>, vector<1x16x32xf32>
    %263 = vector.shape_cast %262 : vector<1x16x32xf32> to vector<16x32xf32>
    %264 = vector.shape_cast %255 : vector<16x32xf32> to vector<1x16x32xf32>
    tpu.vector_store %arg3[%c0_151, %c24, %c0_152], %264 {strides = array<i32>} : memref<1x48x32xf32, #tpu.memory_space<vmem>>, vector<1x16x32xf32>,
    %c0_153 = arith.constant 0 : index
    %c40_154 = arith.constant 40 : index
    %c0_155 = arith.constant 0 : index
    %265 = vector.load %arg3[%c0_153, %c40_154, %c0_155] : memref<1x48x32xf32, #tpu.memory_space<vmem>>, vector<1x4x32xf32>
    %266 = vector.shape_cast %265 : vector<1x4x32xf32> to vector<4x32xf32>
    %267 = vector.shape_cast %18 : vector<4x32xf32> to vector<1x4x32xf32>
    tpu.vector_store %arg3[%c0_153, %c40_154, %c0_155], %267 {strides = array<i32>} : memref<1x48x32xf32, #tpu.memory_space<vmem>>, vector<1x4x32xf32>,
    %c0_156 = arith.constant 0 : index
    %c44 = arith.constant 44 : index
    %c0_157 = arith.constant 0 : index
    %268 = vector.load %arg3[%c0_156, %c44, %c0_157] : memref<1x48x32xf32, #tpu.memory_space<vmem>>, vector<1x4x32xf32>
    %269 = vector.shape_cast %268 : vector<1x4x32xf32> to vector<4x32xf32>
    %270 = vector.shape_cast %23 : vector<4x32xf32> to vector<1x4x32xf32>
    tpu.vector_store %arg3[%c0_156, %c44, %c0_157], %270 {strides = array<i32>} : memref<1x48x32xf32, #tpu.memory_space<vmem>>, vector<1x4x32xf32>,
    return
  }
  func.func @transform_0(%arg0: i32) -> (i32, i32, i32) {
    %c0_i32 = arith.constant 0 : i32
    %c0_i32_0 = arith.constant 0 : i32
    %c0_i32_1 = arith.constant 0 : i32
    return %arg0, %c0_i32, %c0_i32_0 : i32, i32, i32
  }
  func.func @transform_1(%arg0: i32) -> (i32, i32) {
    %c0_i32 = arith.constant 0 : i32
    %c0_i32_0 = arith.constant 0 : i32
    %c0_i32_1 = arith.constant 0 : i32
    return %c0_i32, %c0_i32_0 : i32, i32
  }
  func.func @transform_2(%arg0: i32) -> (i32, i32, i32) {
    %c0_i32 = arith.constant 0 : i32
    %c0_i32_0 = arith.constant 0 : i32
    %c0_i32_1 = arith.constant 0 : i32
    return %arg0, %c0_i32, %c0_i32_0 : i32, i32, i32
  }
}

</mosaic_0001>

<llo_original>
// kernel: sub.2
$region0: #{sub.2}
  #allocation0 [shape = 's32[1]{0}', space=sflag, size = 0x4, scoped, tag = 'scoped memory for sub.2']
  %s0 = inlined_call_operand.vmem [shape: s32[2,4], index: 0, kind: input, shape index: {}]
  %s1 = inlined_call_operand.vmem [shape: s32[2,4], index: 1, kind: input, shape index: {}]
  %s2 = inlined_call_operand.vmem [shape: s32[2,4], index: 2, kind: output, shape index: {}]
  %v3 = vld [vmem:[%s0] sm:$0x3]
  %v4 = vld [vmem:[%s1] sm:$0x3]
  %5 = xla_tuple %v3, %v4
  %6 = xla_tuple %5
  %v7 = vsub.s32 %v3, %v4
  %8 = xla_tuple %v7
  %9 = vst [vmem:[%s2] sm:$0x3] %v7

// kernel: fitted_dt_forward.1
$region0: #{fitted_dt_forward.1}
  #allocation0 [shape = 'u32[]', space=smem, size = 0x4, offset = 0x4, fixed_abs, tag = 'smem constant byte address 0x4 - core index']
  #allocation1 [shape = 'u32[144,128]{1,0:T(1,128)}', space=vmem, size = 0x12000, scoped, tag = 'internal scratch']
  %s0 = inlined_call_operand.vmem [shape: f32[2,64,32], index: 0, kind: input, shape index: {}]
  %s1 = inlined_call_operand.vmem [shape: f32[1272,32], index: 1, kind: input, shape index: {}]
  %s2 = inlined_call_operand.vmem [shape: f32[2,48,32], index: 2, kind: output, shape index: {}]
  %s3 = sld [smem:[#allocation0]]
  $region41: #{fitted_dt_forward.1} parent=0
    _
  %s5 = ssub.s32 1, %s3
  %s6 = scalar_select 0, %s5, %s3
  loop: start=0, step=1, limit=4
  $region2: #{fitted_dt_forward.1} parent=0 // loop_pre_header
    _
  $region3: #{fitted_dt_forward.1} parent=0 // loop_header
    %s8 = sphi 0, %s12
    %p9 = scmp.ge.s32.totalorder %s8, 4
    %s18 = sphi 0, %s20
    %s21 = sphi 0, %s18
    %s22 = sphi 0, %s21
    %s38 = sphi 0, %s22
    %s42 = sphi 0, %s42
    %s44 = sphi 0, %s42
    %s45 = sphi 0, %s44
    %s59 = sphi 0, %s45
    %s65 = sphi 0, %s67
    %s68 = sphi 0, %s65
    %s69 = sphi 0, %s68
    %s85 = sphi 0, %s69
  $region4: #{fitted_dt_forward.1} parent=0 // loop_header_branch
    %11 = sbr.rel (%p9) target = $region8
  $region5: #{fitted_dt_forward.1} parent=0 // loop_body
    %s13 = ssub.s32 %s8, 1
    %s14 = ssub.s32 %s8, 2
    %s15 = sadd.s32 %s8, 1
    %s16 = ssub.s32 %s8, %s15
    %p17 = scmp.eq.s32.totalorder %s16, 0
    %s19 = sadd.s32 %s18, 1
    %s20 = scalar_select %p17, %s18, %s19
    %p23 = pneg %p17
    %p24 = scmp.eq.s32.totalorder %s8, 1
    %p25 = por %p23, %p24
    %p26 = scmp.ne.s32.totalorder %s18, %s21
    %p27 = scmp.eq.s32.totalorder %s8, 0
    %p28 = por %p26, %p27
    %p29 = scmp.ne.s32.totalorder %s18, %s21
    %p30 = scmp.eq.s32.totalorder %s13, 1
    %p31 = por %p29, %p30
    %p32 = scmp.ne.s32.totalorder %s21, %s22
    %p33 = scmp.eq.s32.totalorder %s13, 0
    %p34 = por %p32, %p33
    %p35 = scmp.ne.s32.totalorder %s21, %s22
    %p36 = scmp.eq.s32.totalorder %s14, 1
    %p37 = por %p35, %p36
    %p39 = scmp.ne.s32.totalorder %s22, %s38
    %p40 = scmp.eq.s32.totalorder %s14, 0
    %p41 = por %p39, %p40
    %s43 = sadd.s32 %s42, 1
    %p46 = scmp.eq.s32.totalorder %s8, 1
    %p47 = scmp.ne.s32.totalorder %s42, %s44
    %p48 = scmp.eq.s32.totalorder %s8, 0
    %p49 = por %p47, %p48
    %p50 = scmp.ne.s32.totalorder %s42, %s44
    %p51 = scmp.eq.s32.totalorder %s13, 1
    %p52 = por %p50, %p51
    %p53 = scmp.ne.s32.totalorder %s44, %s45
    %p54 = scmp.eq.s32.totalorder %s13, 0
    %p55 = por %p53, %p54
    %p56 = scmp.ne.s32.totalorder %s44, %s45
    %p57 = scmp.eq.s32.totalorder %s14, 1
    %p58 = por %p56, %p57
    %p60 = scmp.ne.s32.totalorder %s45, %s59
    %p61 = scmp.eq.s32.totalorder %s14, 0
    %p62 = por %p60, %p61
    %s63 = ssub.s32 %s8, %s15
    %p64 = scmp.eq.s32.totalorder %s63, 0
    %s66 = sadd.s32 %s65, 1
    %s67 = scalar_select %p64, %s65, %s66
    %p70 = pneg %p64
    %p71 = scmp.eq.s32.totalorder %s8, 1
    %p72 = por %p70, %p71
    %p73 = scmp.ne.s32.totalorder %s65, %s68
    %p74 = scmp.eq.s32.totalorder %s8, 0
    %p75 = por %p73, %p74
    %p76 = scmp.ne.s32.totalorder %s65, %s68
    %p77 = scmp.eq.s32.totalorder %s13, 1
    %p78 = por %p76, %p77
    %p79 = scmp.ne.s32.totalorder %s68, %s69
    %p80 = scmp.eq.s32.totalorder %s13, 0
    %p81 = por %p79, %p80
    %p82 = scmp.ne.s32.totalorder %s68, %s69
    %p83 = scmp.eq.s32.totalorder %s14, 1
    %p84 = por %p82, %p83
    %p86 = scmp.ne.s32.totalorder %s69, %s85
    %p87 = scmp.eq.s32.totalorder %s14, 0
    %p88 = por %p86, %p87
    %p89 = scmp.le.s32.totalorder 1, %s8
    %p90 = scmp.lt.s32.totalorder %s8, 3
    %p91 = pnand %p89, %p90
    %p92 = pneg %p91
    // Predicated region
    $region9: #{fitted_dt_forward.1} parent=5 // pred_check
      _
    $region10: #{fitted_dt_forward.1} parent=5 // pred_check_branch
      %94 = sbr.rel (%p91) target = $region12
    $region11: #{fitted_dt_forward.1} parent=5 // pred_region
      %s95 = ssub.s32 %s8, 1
      // Predicated region
      $region13: #{fitted_dt_forward.1} parent=11 // pred_check
        %p96 = pneg %p55
      $region14: #{fitted_dt_forward.1} parent=11 // pred_check_branch
        %98 = sbr.rel (%p96) target = $region16
      $region15: #{fitted_dt_forward.1} parent=11 // pred_region
        _
      $region16: #{fitted_dt_forward.1} parent=11 // pred_fallthru
        _
    $region12: #{fitted_dt_forward.1} parent=5 // pred_fallthru
      _
    %p99 = scmp.lt.s32.totalorder %s8, 2
    // Predicated region
    $region17: #{fitted_dt_forward.1} parent=5 // pred_check
      %p100 = pneg %p99
    $region18: #{fitted_dt_forward.1} parent=5 // pred_check_branch
      %102 = sbr.rel (%p100) target = $region20
    $region19: #{fitted_dt_forward.1} parent=5 // pred_region
      // Predicated region
      $region21: #{fitted_dt_forward.1} parent=19 // pred_check
        %p103 = pneg %p28
      $region22: #{fitted_dt_forward.1} parent=19 // pred_check_branch
        %105 = sbr.rel (%p103) target = $region24
      $region23: #{fitted_dt_forward.1} parent=19 // pred_region
        %p106 = scmp.lt.s32.totalorder %s8, 1
        %s107 = scalar_select %p106, %s8, 1
        %s108 = smul.addr %s107, 8
        %s109 = smul.addr %s108, 8
        %s110 = scalar_lea.vmem %s0, %s109
      $region24: #{fitted_dt_forward.1} parent=19 // pred_fallthru
        _
    $region20: #{fitted_dt_forward.1} parent=5 // pred_fallthru
      _
    %p111 = scmp.le.s32.totalorder 1, %s8
    %p112 = scmp.lt.s32.totalorder %s8, 3
    %p113 = pnand %p111, %p112
    %p114 = pneg %p113
    // Predicated region
    $region25: #{fitted_dt_forward.1} parent=5 // pred_check
      _
    $region26: #{fitted_dt_forward.1} parent=5 // pred_check_branch
      %116 = sbr.rel (%p113) target = $region28
    $region27: #{fitted_dt_forward.1} parent=5 // pred_region
      %s117 = ssub.s32 %s8, 1
      %p118 = scmp.lt.s32.totalorder %s13, 1
      %s119 = scalar_select %p118, %s13, 1
      %s120 = smul.addr %s119, 8
      %s121 = smul.addr %s120, 8
      %s122 = scalar_lea.vmem %s0, %s121
      %p123 = pneg %p34
      %p124 = pneg %p31
      %p125 = pneg %p55
      %p126 = pneg %p52
      %p127 = pneg %p81
      %p128 = pneg %p78
      %p129 = scmp.lt.s32.totalorder %s13, 1
      %s130 = scalar_select %p129, %s13, 1
      %s131 = smul.addr %s130, 6
      %s132 = smul.addr %s131, 8
      %s133 = scalar_lea.vmem %s2, %s132
      %p134 = scmp.lt.s32.totalorder %s13, 1
      %s135 = scalar_select %p134, %s13, 1
      %s136 = smul.addr %s135, 8
      %s137 = smul.addr %s136, 8
      %s138 = scalar_lea.vmem %s0, %s137
      %p139 = scmp.lt.s32.totalorder %s13, 1
      %s140 = scalar_select %p139, %s13, 1
      %s141 = smul.addr %s140, 6
      %s142 = smul.addr %s141, 8
      %s143 = scalar_lea.vmem %s2, %s142
      %v144 = vld [vmem:[%s138] sm:$0xff]
      %v145 = vld [vmem:[%s138 + $0x8] sm:$0xff]
      %v146 = vld [vmem:[%s138 + $0x10] sm:$0xff]
      %v147 = vld [vmem:[%s138 + $0x18] sm:$0xff]
      %v148 = vld [vmem:[%s138 + $0x20] sm:$0xff]
      %v149 = vld [vmem:[%s138 + $0x28] sm:$0xf]
      %v150 = vld [vmem:[%s138 + $0x30] sm:$0xf]
      %v151 = vld [vmem:[%s138 + $0x38] sm:$0x1]
      %v152 = vld [vmem:[%s1] sm:$0xff]
      %v153 = vld [vmem:[%s1 + $0x8] sm:$0xff]
      %v154 = vld [vmem:[%s1 + $0x10] sm:$0xff]
      %v155 = vld [vmem:[%s1 + $0x18] sm:$0xff]
      %v156 = vld [vmem:[%s1 + $0x480] sm:$0x1]
      %v157 = vlaneseq
      %v158 = vshrl.u32 %v157, 7
      %v159 = vsub.s32 0, %v158
      %v160 = vrot.slane %v156, %v159
      %vm161 = vcmask 261120
      %v163 = vsel %vm161, %v149, 0
      %165 = vmatprep.subr.mxu0 0.0
      %166 = vmatpush1.msra.mxu0 %v152
      %167 = vmatprep.subr.mxu0 0.0
      %168 = vmatpush1.msra.mxu0 %v153
      %169 = vmatprep.subr.mxu0 0.0
      %170 = vmatpush1.msra.mxu0 %v154
      %171 = vmatprep.subr.mxu0 0.0
      %172 = vmatpush1.msra.mxu0 %v155
      %173 = vmatprep.subr.mxu0 0.0
      %174 = vmatpush1.msra.mxu0 0.0
      %175 = vmatprep.subr.mxu0 0.0
      %176 = vmatpush1.msra.mxu0 0.0
      %177 = vmatprep.subr.mxu0 0.0
      %178 = vmatpush1.msra.mxu0 0.0
      %179 = vmatprep.subr.mxu0 0.0
      %180 = vmatpush1.msra.mxu0 0.0
      %181 = vmatprep.subr.mxu0 0.0
      %182 = vmatpush1.msra.mxu0 0.0
      %183 = vmatprep.subr.mxu0 0.0
      %184 = vmatpush1.msra.mxu0 0.0
      %185 = vmatprep.subr.mxu0 0.0
      %186 = vmatpush1.msra.mxu0 0.0
      %187 = vmatprep.subr.mxu0 0.0
      %188 = vmatpush1.msra.mxu0 0.0
      %189 = vmatprep.subr.mxu0 0.0
      %190 = vmatpush1.msra.mxu0 0.0
      %191 = vmatprep.subr.mxu0 0.0
      %192 = vmatpush1.msra.mxu0 0.0
      %193 = vmatprep.subr.mxu0 0.0
      %194 = vmatpush1.msra.mxu0 0.0
      %195 = vmatprep.subr.mxu0 0.0
      %196 = vmatpush1.msra.mxu0 0.0
      %197 = vmatprep.subr.mxu0 0.0
      %198 = vmatpush1.msra.mxu0 0.0
      %199 = vmatprep.subr.mxu0 0.0
      %200 = vmatpush1.msra.mxu0 0.0
      %201 = vmatprep.subr.mxu0 0.0
      %202 = vmatpush1.msra.mxu0 0.0
      %203 = vmatprep.subr.mxu0 0.0
      %204 = vmatpush1.msra.mxu0 0.0
      %205 = vmatprep.subr.mxu0 0.0
      %206 = vmatpush1.msra.mxu0 0.0
      %207 = vmatprep.subr.mxu0 0.0
      %208 = vmatpush1.msra.mxu0 0.0
      %209 = vmatprep.subr.mxu0 0.0
      %210 = vmatpush1.msra.mxu0 0.0
      %211 = vmatprep.subr.mxu0 0.0
      %212 = vmatpush1.msra.mxu0 0.0
      %213 = vmatprep.subr.mxu0 0.0
      %214 = vmatpush1.msra.mxu0 0.0
      %215 = vmatprep.subr.mxu0 0.0
      %216 = vmatpush1.msra.mxu0 0.0
      %217 = vmatprep.subr.mxu0 0.0
      %218 = vmatpush1.msra.mxu0 0.0
      %219 = vmatprep.subr.mxu0 0.0
      %220 = vmatpush1.msra.mxu0 0.0
      %221 = vmatprep.subr.mxu0 0.0
      %222 = vmatpush1.msra.mxu0 0.0
      %223 = vmatprep.subr.mxu0 0.0
      %224 = vmatpush1.msra.mxu0 0.0
      %225 = vmatprep.subr.mxu0 0.0
      %226 = vmatpush1.msra.mxu0 0.0
      %227 = vmatprep.subr.mxu0 0.0
      %228 = vmatpush1.msra.mxu0 0.0
      %229 = vmatprep.mubr.f32.mxu0 0.0
      %230 = vmatmul.mubr.f32.gmra.mrb[0].mxu0 %v163
      %v231 = vpop.f32.mrb[0].mxu0
      %v232 = vadd.f32 %v160, %v231
      %v233 = vpop.f32.mrb[0].mxu0
      %234 = vdwg.mxu0
      %v235 = vld [vmem:[%s1 + $0x20] sm:$0xff]
      %v236 = vld [vmem:[%s1 + $0x28] sm:$0xff]
      %v237 = vld [vmem:[%s1 + $0x30] sm:$0xff]
      %v238 = vld [vmem:[%s1 + $0x38] sm:$0xff]
      %v239 = vld [vmem:[%s1 + $0x488] sm:$0x1]
      %v240 = vlaneseq
      %v241 = vshrl.u32 %v240, 7
      %v242 = vsub.s32 0, %v241
      %v243 = vrot.slane %v239, %v242
      %v245 = vsel %vm161, %v150, 0
      %247 = vmatprep.subr.mxu0 0.0
      %248 = vmatpush1.msra.mxu0 %v235
      %249 = vmatprep.subr.mxu0 0.0
      %250 = vmatpush1.msra.mxu0 %v236
      %251 = vmatprep.subr.mxu0 0.0
      %252 = vmatpush1.msra.mxu0 %v237
      %253 = vmatprep.subr.mxu0 0.0
      %254 = vmatpush1.msra.mxu0 %v238
      %255 = vmatprep.subr.mxu0 0.0
      %256 = vmatpush1.msra.mxu0 0.0
      %257 = vmatprep.subr.mxu0 0.0
      %258 = vmatpush1.msra.mxu0 0.0
      %259 = vmatprep.subr.mxu0 0.0
      %260 = vmatpush1.msra.mxu0 0.0
      %261 = vmatprep.subr.mxu0 0.0
      %262 = vmatpush1.msra.mxu0 0.0
      %263 = vmatprep.subr.mxu0 0.0
      %264 = vmatpush1.msra.mxu0 0.0
      %265 = vmatprep.subr.mxu0 0.0
      %266 = vmatpush1.msra.mxu0 0.0
      %267 = vmatprep.subr.mxu0 0.0
      %268 = vmatpush1.msra.mxu0 0.0
      %269 = vmatprep.subr.mxu0 0.0
      %270 = vmatpush1.msra.mxu0 0.0
      %271 = vmatprep.subr.mxu0 0.0
      %272 = vmatpush1.msra.mxu0 0.0
      %273 = vmatprep.subr.mxu0 0.0
      %274 = vmatpush1.msra.mxu0 0.0
      %275 = vmatprep.subr.mxu0 0.0
      %276 = vmatpush1.msra.mxu0 0.0
      %277 = vmatprep.subr.mxu0 0.0
      %278 = vmatpush1.msra.mxu0 0.0
      %279 = vmatprep.subr.mxu0 0.0
      %280 = vmatpush1.msra.mxu0 0.0
      %281 = vmatprep.subr.mxu0 0.0
      %282 = vmatpush1.msra.mxu0 0.0
      %283 = vmatprep.subr.mxu0 0.0
      %284 = vmatpush1.msra.mxu0 0.0
      %285 = vmatprep.subr.mxu0 0.0
      %286 = vmatpush1.msra.mxu0 0.0
      %287 = vmatprep.subr.mxu0 0.0
      %288 = vmatpush1.msra.mxu0 0.0
      %289 = vmatprep.subr.mxu0 0.0
      %290 = vmatpush1.msra.mxu0 0.0
      %291 = vmatprep.subr.mxu0 0.0
      %292 = vmatpush1.msra.mxu0 0.0
      %293 = vmatprep.subr.mxu0 0.0
      %294 = vmatpush1.msra.mxu0 0.0
      %295 = vmatprep.subr.mxu0 0.0
      %296 = vmatpush1.msra.mxu0 0.0
      %297 = vmatprep.subr.mxu0 0.0
      %298 = vmatpush1.msra.mxu0 0.0
      %299 = vmatprep.subr.mxu0 0.0
      %300 = vmatpush1.msra.mxu0 0.0
      %301 = vmatprep.subr.mxu0 0.0
      %302 = vmatpush1.msra.mxu0 0.0
      %303 = vmatprep.subr.mxu0 0.0
      %304 = vmatpush1.msra.mxu0 0.0
      %305 = vmatprep.subr.mxu0 0.0
      %306 = vmatpush1.msra.mxu0 0.0
      %307 = vmatprep.subr.mxu0 0.0
      %308 = vmatpush1.msra.mxu0 0.0
      %309 = vmatprep.subr.mxu0 0.0
      %310 = vmatpush1.msra.mxu0 0.0
      %311 = vmatprep.mubr.f32.mxu0 0.0
      %312 = vmatmul.mubr.f32.gmra.mrb[0].mxu0 %v245
      %v313 = vpop.f32.mrb[0].mxu0
      %v314 = vadd.f32 %v243, %v313
      %v315 = vpop.f32.mrb[0].mxu0
      %316 = vdwg.mxu0
      %vm317 = vcmask 31744
      %v319 = vsel %vm317, %v145, 0
      %vm321 = vcmask 1043456
      %v323 = vsel %vm321, %v314, 0
      %325 = vmatprep.subr.mxu0 0.0
      %326 = vmatpush1.msra.mxu0 %v323
      %327 = vmatprep.subr.mxu0 0.0
      %328 = vmatpush1.msra.mxu0 0.0
      %329 = vmatprep.subr.mxu0 0.0
      %330 = vmatpush1.msra.mxu0 0.0
      %331 = vmatprep.subr.mxu0 0.0
      %332 = vmatpush1.msra.mxu0 0.0
      %333 = vmatprep.subr.mxu0 0.0
      %334 = vmatpush1.msra.mxu0 0.0
      %335 = vmatprep.subr.mxu0 0.0
      %336 = vmatpush1.msra.mxu0 0.0
      %337 = vmatprep.subr.mxu0 0.0
      %338 = vmatpush1.msra.mxu0 0.0
      %339 = vmatprep.subr.mxu0 0.0
      %340 = vmatpush1.msra.mxu0 0.0
      %341 = vmatprep.subr.mxu0 0.0
      %342 = vmatpush1.msra.mxu0 0.0
      %343 = vmatprep.subr.mxu0 0.0
      %344 = vmatpush1.msra.mxu0 0.0
      %345 = vmatprep.subr.mxu0 0.0
      %346 = vmatpush1.msra.mxu0 0.0
      %347 = vmatprep.subr.mxu0 0.0
      %348 = vmatpush1.msra.mxu0 0.0
      %349 = vmatprep.subr.mxu0 0.0
      %350 = vmatpush1.msra.mxu0 0.0
      %351 = vmatprep.subr.mxu0 0.0
      %352 = vmatpush1.msra.mxu0 0.0
      %353 = vmatprep.subr.mxu0 0.0
      %354 = vmatpush1.msra.mxu0 0.0
      %355 = vmatprep.subr.mxu0 0.0
      %356 = vmatpush1.msra.mxu0 0.0
      %357 = vmatprep.subr.mxu0 0.0
      %358 = vmatpush1.msra.mxu0 0.0
      %359 = vmatprep.subr.mxu0 0.0
      %360 = vmatpush1.msra.mxu0 0.0
      %361 = vmatprep.subr.mxu0 0.0
      %362 = vmatpush1.msra.mxu0 0.0
      %363 = vmatprep.subr.mxu0 0.0
      %364 = vmatpush1.msra.mxu0 0.0
      %365 = vmatprep.subr.mxu0 0.0
      %366 = vmatpush1.msra.mxu0 0.0
      %367 = vmatprep.subr.mxu0 0.0
      %368 = vmatpush1.msra.mxu0 0.0
      %369 = vmatprep.subr.mxu0 0.0
      %370 = vmatpush1.msra.mxu0 0.0
      %371 = vmatprep.subr.mxu0 0.0
      %372 = vmatpush1.msra.mxu0 0.0
      %373 = vmatprep.subr.mxu0 0.0
      %374 = vmatpush1.msra.mxu0 0.0
      %375 = vmatprep.subr.mxu0 0.0
      %376 = vmatpush1.msra.mxu0 0.0
      %377 = vmatprep.subr.mxu0 0.0
      %378 = vmatpush1.msra.mxu0 0.0
      %379 = vmatprep.subr.mxu0 0.0
      %380 = vmatpush1.msra.mxu0 0.0
      %381 = vmatprep.subr.mxu0 0.0
      %382 = vmatpush1.msra.mxu0 0.0
      %383 = vmatprep.subr.mxu0 0.0
      %384 = vmatpush1.msra.mxu0 0.0
      %385 = vmatprep.subr.mxu0 0.0
      %386 = vmatpush1.msra.mxu0 0.0
      %387 = vmatprep.subr.mxu0 0.0
      %388 = vmatpush1.msra.mxu0 0.0
      %389 = vmatprep.mubr.f32.mxu0 0.0
      %390 = vmatmul.mubr.f32.gmra.mrb[0].mxu0 %v319
      %v391 = vpop.f32.mrb[0].mxu0
      %v392 = vadd.f32 0.0, %v391
      %v393 = vpop.f32.mrb[0].mxu0
      %394 = vdwg.mxu0
      %v395 = vld [vmem:[%s1 + $0x40] sm:$0xff]
      %v396 = vld [vmem:[%s1 + $0x48] sm:$0xff]
      %v397 = vld [vmem:[%s1 + $0x50] sm:$0xff]
      %v398 = vld [vmem:[%s1 + $0x58] sm:$0xff]
      %v399 = vld [vmem:[%s1 + $0x490] sm:$0x1]
      %v400 = vlaneseq
      %v401 = vshrl.u32 %v400, 7
      %v402 = vsub.s32 0, %v401
      %v403 = vrot.slane %v399, %v402
      %v405 = vsel %vm161, %v144, 0
      %407 = vmatprep.subr.mxu0 0.0
      %408 = vmatpush1.msra.mxu0 %v395
      %409 = vmatprep.subr.mxu0 0.0
      %410 = vmatpush1.msra.mxu0 %v396
      %411 = vmatprep.subr.mxu0 0.0
      %412 = vmatpush1.msra.mxu0 %v397
      %413 = vmatprep.subr.mxu0 0.0
      %414 = vmatpush1.msra.mxu0 %v398
      %415 = vmatprep.subr.mxu0 0.0
      %416 = vmatpush1.msra.mxu0 0.0
      %417 = vmatprep.subr.mxu0 0.0
      %418 = vmatpush1.msra.mxu0 0.0
      %419 = vmatprep.subr.mxu0 0.0
      %420 = vmatpush1.msra.mxu0 0.0
      %421 = vmatprep.subr.mxu0 0.0
      %422 = vmatpush1.msra.mxu0 0.0
      %423 = vmatprep.subr.mxu0 0.0
      %424 = vmatpush1.msra.mxu0 0.0
      %425 = vmatprep.subr.mxu0 0.0
      %426 = vmatpush1.msra.mxu0 0.0
      %427 = vmatprep.subr.mxu0 0.0
      %428 = vmatpush1.msra.mxu0 0.0
      %429 = vmatprep.subr.mxu0 0.0
      %430 = vmatpush1.msra.mxu0 0.0
      %431 = vmatprep.subr.mxu0 0.0
      %432 = vmatpush1.msra.mxu0 0.0
      %433 = vmatprep.subr.mxu0 0.0
      %434 = vmatpush1.msra.mxu0 0.0
      %435 = vmatprep.subr.mxu0 0.0
      %436 = vmatpush1.msra.mxu0 0.0
      %437 = vmatprep.subr.mxu0 0.0
      %438 = vmatpush1.msra.mxu0 0.0
      %439 = vmatprep.subr.mxu0 0.0
      %440 = vmatpush1.msra.mxu0 0.0
      %441 = vmatprep.subr.mxu0 0.0
      %442 = vmatpush1.msra.mxu0 0.0
      %443 = vmatprep.subr.mxu0 0.0
      %444 = vmatpush1.msra.mxu0 0.0
      %445 = vmatprep.subr.mxu0 0.0
      %446 = vmatpush1.msra.mxu0 0.0
      %447 = vmatprep.subr.mxu0 0.0
      %448 = vmatpush1.msra.mxu0 0.0
      %449 = vmatprep.subr.mxu0 0.0
      %450 = vmatpush1.msra.mxu0 0.0
      %451 = vmatprep.subr.mxu0 0.0
      %452 = vmatpush1.msra.mxu0 0.0
      %453 = vmatprep.subr.mxu0 0.0
      %454 = vmatpush1.msra.mxu0 0.0
      %455 = vmatprep.subr.mxu0 0.0
      %456 = vmatpush1.msra.mxu0 0.0
      %457 = vmatprep.subr.mxu0 0.0
      %458 = vmatpush1.msra.mxu0 0.0
      %459 = vmatprep.subr.mxu0 0.0
      %460 = vmatpush1.msra.mxu0 0.0
      %461 = vmatprep.subr.mxu0 0.0
      %462 = vmatpush1.msra.mxu0 0.0
      %463 = vmatprep.subr.mxu0 0.0
      %464 = vmatpush1.msra.mxu0 0.0
      %465 = vmatprep.subr.mxu0 0.0
      %466 = vmatpush1.msra.mxu0 0.0
      %467 = vmatprep.subr.mxu0 0.0
      %468 = vmatpush1.msra.mxu0 0.0
      %469 = vmatprep.subr.mxu0 0.0
      %470 = vmatpush1.msra.mxu0 0.0
      %471 = vmatprep.mubr.f32.mxu0 0.0
      %472 = vmatmul.mubr.f32.gmra.mrb[0].mxu0 %v405
      %v473 = vpop.f32.mrb[0].mxu0
      %v474 = vadd.f32 %v403, %v473
      %v475 = vpop.f32.mrb[0].mxu0
      %476 = vdwg.mxu0
      %v477 = vld [vmem:[%s1 + $0x60] sm:$0xff]
      %v478 = vld [vmem:[%s1 + $0x68] sm:$0xff]
      %v479 = vld [vmem:[%s1 + $0x70] sm:$0xff]
      %v480 = vld [vmem:[%s1 + $0x78] sm:$0xff]
      %v481 = vld [vmem:[%s1 + $0x498] sm:$0x1]
      %v482 = vlaneseq
      %v483 = vshrl.u32 %v482, 7
      %v484 = vsub.s32 0, %v483
      %v485 = vrot.slane %v481, %v484
      %v487 = vsel %vm161, %v392, 0
      %489 = vmatprep.subr.mxu0 0.0
      %490 = vmatpush1.msra.mxu0 %v477
      %491 = vmatprep.subr.mxu0 0.0
      %492 = vmatpush1.msra.mxu0 %v478
      %493 = vmatprep.subr.mxu0 0.0
      %494 = vmatpush1.msra.mxu0 %v479
      %495 = vmatprep.subr.mxu0 0.0
      %496 = vmatpush1.msra.mxu0 %v480
      %497 = vmatprep.subr.mxu0 0.0
      %498 = vmatpush1.msra.mxu0 0.0
      %499 = vmatprep.subr.mxu0 0.0
      %500 = vmatpush1.msra.mxu0 0.0
      %501 = vmatprep.subr.mxu0 0.0
      %502 = vmatpush1.msra.mxu0 0.0
      %503 = vmatprep.subr.mxu0 0.0
      %504 = vmatpush1.msra.mxu0 0.0
      %505 = vmatprep.subr.mxu0 0.0
      %506 = vmatpush1.msra.mxu0 0.0
      %507 = vmatprep.subr.mxu0 0.0
      %508 = vmatpush1.msra.mxu0 0.0
      %509 = vmatprep.subr.mxu0 0.0
      %510 = vmatpush1.msra.mxu0 0.0
      %511 = vmatprep.subr.mxu0 0.0
      %512 = vmatpush1.msra.mxu0 0.0
      %513 = vmatprep.subr.mxu0 0.0
      %514 = vmatpush1.msra.mxu0 0.0
      %515 = vmatprep.subr.mxu0 0.0
      %516 = vmatpush1.msra.mxu0 0.0
      %517 = vmatprep.subr.mxu0 0.0
      %518 = vmatpush1.msra.mxu0 0.0
      %519 = vmatprep.subr.mxu0 0.0
      %520 = vmatpush1.msra.mxu0 0.0
      %521 = vmatprep.subr.mxu0 0.0
      %522 = vmatpush1.msra.mxu0 0.0
      %523 = vmatprep.subr.mxu0 0.0
      %524 = vmatpush1.msra.mxu0 0.0
      %525 = vmatprep.subr.mxu0 0.0
      %526 = vmatpush1.msra.mxu0 0.0
      %527 = vmatprep.subr.mxu0 0.0
      %528 = vmatpush1.msra.mxu0 0.0
      %529 = vmatprep.subr.mxu0 0.0
      %530 = vmatpush1.msra.mxu0 0.0
      %531 = vmatprep.subr.mxu0 0.0
      %532 = vmatpush1.msra.mxu0 0.0
      %533 = vmatprep.subr.mxu0 0.0
      %534 = vmatpush1.msra.mxu0 0.0
      %535 = vmatprep.subr.mxu0 0.0
      %536 = vmatpush1.msra.mxu0 0.0
      %537 = vmatprep.subr.mxu0 0.0
      %538 = vmatpush1.msra.mxu0 0.0
      %539 = vmatprep.subr.mxu0 0.0
      %540 = vmatpush1.msra.mxu0 0.0
      %541 = vmatprep.subr.mxu0 0.0
      %542 = vmatpush1.msra.mxu0 0.0
      %543 = vmatprep.subr.mxu0 0.0
      %544 = vmatpush1.msra.mxu0 0.0
      %545 = vmatprep.subr.mxu0 0.0
      %546 = vmatpush1.msra.mxu0 0.0
      %547 = vmatprep.subr.mxu0 0.0
      %548 = vmatpush1.msra.mxu0 0.0
      %549 = vmatprep.subr.mxu0 0.0
      %550 = vmatpush1.msra.mxu0 0.0
      %551 = vmatprep.subr.mxu0 0.0
      %552 = vmatpush1.msra.mxu0 0.0
      %553 = vmatprep.mubr.f32.mxu0 0.0
      %554 = vmatmul.mubr.f32.gmra.mrb[0].mxu0 %v487
      %v555 = vpop.f32.mrb[0].mxu0
      %v556 = vadd.f32 %v485, %v555
      %v557 = vpop.f32.mrb[0].mxu0
      %558 = vdwg.mxu0
      %v559 = vld [vmem:[%s1 + $0x80] sm:$0xff]
      %v560 = vld [vmem:[%s1 + $0x88] sm:$0xff]
      %v561 = vld [vmem:[%s1 + $0x90] sm:$0xff]
      %v562 = vld [vmem:[%s1 + $0x98] sm:$0xff]
      %v563 = vld [vmem:[%s1 + $0x4a0] sm:$0x1]
      %v564 = vlaneseq
      %v565 = vshrl.u32 %v564, 7
      %v566 = vsub.s32 0, %v565
      %v567 = vrot.slane %v563, %v566
      %568 = vmatprep.subr.mxu0 0.0
      %569 = vmatpush1.msra.mxu0 %v559
      %570 = vmatprep.subr.mxu0 0.0
      %571 = vmatpush1.msra.mxu0 %v560
      %572 = vmatprep.subr.mxu0 0.0
      %573 = vmatpush1.msra.mxu0 %v561
      %574 = vmatprep.subr.mxu0 0.0
      %575 = vmatpush1.msra.mxu0 %v562
      %576 = vmatprep.subr.mxu0 0.0
      %577 = vmatpush1.msra.mxu0 0.0
      %578 = vmatprep.subr.mxu0 0.0
      %579 = vmatpush1.msra.mxu0 0.0
      %580 = vmatprep.subr.mxu0 0.0
      %581 = vmatpush1.msra.mxu0 0.0
      %582 = vmatprep.subr.mxu0 0.0
      %583 = vmatpush1.msra.mxu0 0.0
      %584 = vmatprep.subr.mxu0 0.0
      %585 = vmatpush1.msra.mxu0 0.0
      %586 = vmatprep.subr.mxu0 0.0
      %587 = vmatpush1.msra.mxu0 0.0
      %588 = vmatprep.subr.mxu0 0.0
      %589 = vmatpush1.msra.mxu0 0.0
      %590 = vmatprep.subr.mxu0 0.0
      %591 = vmatpush1.msra.mxu0 0.0
      %592 = vmatprep.subr.mxu0 0.0
      %593 = vmatpush1.msra.mxu0 0.0
      %594 = vmatprep.subr.mxu0 0.0
      %595 = vmatpush1.msra.mxu0 0.0
      %596 = vmatprep.subr.mxu0 0.0
      %597 = vmatpush1.msra.mxu0 0.0
      %598 = vmatprep.subr.mxu0 0.0
      %599 = vmatpush1.msra.mxu0 0.0
      %600 = vmatprep.subr.mxu0 0.0
      %601 = vmatpush1.msra.mxu0 0.0
      %602 = vmatprep.subr.mxu0 0.0
      %603 = vmatpush1.msra.mxu0 0.0
      %604 = vmatprep.subr.mxu0 0.0
      %605 = vmatpush1.msra.mxu0 0.0
      %606 = vmatprep.subr.mxu0 0.0
      %607 = vmatpush1.msra.mxu0 0.0
      %608 = vmatprep.subr.mxu0 0.0
      %609 = vmatpush1.msra.mxu0 0.0
      %610 = vmatprep.subr.mxu0 0.0
      %611 = vmatpush1.msra.mxu0 0.0
      %612 = vmatprep.subr.mxu0 0.0
      %613 = vmatpush1.msra.mxu0 0.0
      %614 = vmatprep.subr.mxu0 0.0
      %615 = vmatpush1.msra.mxu0 0.0
      %616 = vmatprep.subr.mxu0 0.0
      %617 = vmatpush1.msra.mxu0 0.0
      %618 = vmatprep.subr.mxu0 0.0
      %619 = vmatpush1.msra.mxu0 0.0
      %620 = vmatprep.subr.mxu0 0.0
      %621 = vmatpush1.msra.mxu0 0.0
      %622 = vmatprep.subr.mxu0 0.0
      %623 = vmatpush1.msra.mxu0 0.0
      %624 = vmatprep.subr.mxu0 0.0
      %625 = vmatpush1.msra.mxu0 0.0
      %626 = vmatprep.subr.mxu0 0.0
      %627 = vmatpush1.msra.mxu0 0.0
      %628 = vmatprep.subr.mxu0 0.0
      %629 = vmatpush1.msra.mxu0 0.0
      %630 = vmatprep.subr.mxu0 0.0
      %631 = vmatpush1.msra.mxu0 0.0
      %632 = vmatprep.mubr.f32.mxu0 0.0
      %633 = vmatmul.mubr.f32.gmra.mrb[0].mxu0 %v487
      %v634 = vpop.f32.mrb[0].mxu0
      %v635 = vadd.f32 %v567, %v634
      %v636 = vpop.f32.mrb[0].mxu0
      %637 = vdwg.mxu0
      %v639 = vsel %vm161, %v474, 0
      %v642 = vsel %vm161, %v556, 0
      %644 = vmatprep.subr.mxu0 0.0
      %645 = vmatpush1.xpose.msra.mxu0 %v642
      %646 = vmatprep.subr.mxu0 0.0
      %647 = vmatpush1.xpose.msra.mxu0 0.0
      %648 = vmatprep.subr.mxu0 0.0
      %649 = vmatpush1.xpose.msra.mxu0 0.0
      %650 = vmatprep.subr.mxu0 0.0
      %651 = vmatpush1.xpose.msra.mxu0 0.0
      %652 = vmatprep.subr.mxu0 0.0
      %653 = vmatpush1.xpose.msra.mxu0 0.0
      %654 = vmatprep.subr.mxu0 0.0
      %655 = vmatpush1.xpose.msra.mxu0 0.0
      %656 = vmatprep.subr.mxu0 0.0
      %657 = vmatpush1.xpose.msra.mxu0 0.0
      %658 = vmatprep.subr.mxu0 0.0
      %659 = vmatpush1.xpose.msra.mxu0 0.0
      %660 = vmatprep.subr.mxu0 0.0
      %661 = vmatpush1.xpose.msra.mxu0 0.0
      %662 = vmatprep.subr.mxu0 0.0
      %663 = vmatpush1.xpose.msra.mxu0 0.0
      %664 = vmatprep.subr.mxu0 0.0
      %665 = vmatpush1.xpose.msra.mxu0 0.0
      %666 = vmatprep.subr.mxu0 0.0
      %667 = vmatpush1.xpose.msra.mxu0 0.0
      %668 = vmatprep.subr.mxu0 0.0
      %669 = vmatpush1.xpose.msra.mxu0 0.0
      %670 = vmatprep.subr.mxu0 0.0
      %671 = vmatpush1.xpose.msra.mxu0 0.0
      %672 = vmatprep.subr.mxu0 0.0
      %673 = vmatpush1.xpose.msra.mxu0 0.0
      %674 = vmatprep.subr.mxu0 0.0
      %675 = vmatpush1.xpose.msra.mxu0 0.0
      %676 = vmatprep.subr.mxu0 0.0
      %677 = vmatpush1.xpose.msra.mxu0 0.0
      %678 = vmatprep.subr.mxu0 0.0
      %679 = vmatpush1.xpose.msra.mxu0 0.0
      %680 = vmatprep.subr.mxu0 0.0
      %681 = vmatpush1.xpose.msra.mxu0 0.0
      %682 = vmatprep.subr.mxu0 0.0
      %683 = vmatpush1.xpose.msra.mxu0 0.0
      %684 = vmatprep.subr.mxu0 0.0
      %685 = vmatpush1.xpose.msra.mxu0 0.0
      %686 = vmatprep.subr.mxu0 0.0
      %687 = vmatpush1.xpose.msra.mxu0 0.0
      %688 = vmatprep.subr.mxu0 0.0
      %689 = vmatpush1.xpose.msra.mxu0 0.0
      %690 = vmatprep.subr.mxu0 0.0
      %691 = vmatpush1.xpose.msra.mxu0 0.0
      %692 = vmatprep.subr.mxu0 0.0
      %693 = vmatpush1.xpose.msra.mxu0 0.0
      %694 = vmatprep.subr.mxu0 0.0
      %695 = vmatpush1.xpose.msra.mxu0 0.0
      %696 = vmatprep.subr.mxu0 0.0
      %697 = vmatpush1.xpose.msra.mxu0 0.0
      %698 = vmatprep.subr.mxu0 0.0
      %699 = vmatpush1.xpose.msra.mxu0 0.0
      %700 = vmatprep.subr.mxu0 0.0
      %701 = vmatpush1.xpose.msra.mxu0 0.0
      %702 = vmatprep.subr.mxu0 0.0
      %703 = vmatpush1.xpose.msra.mxu0 0.0
      %704 = vmatprep.subr.mxu0 0.0
      %705 = vmatpush1.xpose.msra.mxu0 0.0
      %706 = vmatprep.subr.mxu0 0.0
      %707 = vmatpush1.xpose.msra.mxu0 0.0
      %708 = vmatprep.mubr.f32.mxu0 0.0
      %709 = vmatmul.mubr.f32.gmra.mrb[0].mxu0 %v639
      %v710 = vpop.f32.mrb[0].mxu0
      %v711 = vadd.f32 0.0, %v710
      %v712 = vpop.f32.mrb[0].mxu0
      %713 = vdwg.mxu0
      %v714 = vmul.f32 %v711, 0.17677669
      %v715 = vadd.f32 %v714, %v148
      %vm716 = vcmask 64512
      %v717 = vsel %vm716, %v715, -inf
      %718 = vmax.xlane.f32.xlu0 %v717
      %v719 = vpop.xlane.xlu0 %718
      %v720 = vsub.f32 %v715, %v719
      %v721 = vmul.f32 %v720, 1.442695
      %v722 = vpow.pop %v721
      %v723 = vsel %vm716, %v722, 0.0
      %724 = vadd.xlane.f32.xlu0 %v723
      %v725 = vpop.xlane.xlu0 %724
      %v726 = vrcp.pop %v725
      %v727 = vmul.f32 %v722, %v726
      %v729 = vsel %vm716, %v727, 0
      %731 = vmatprep.subr.mxu0 0.0
      %732 = vmatpush1.msra.mxu0 %v635
      %733 = vmatprep.subr.mxu0 0.0
      %734 = vmatpush1.msra.mxu0 0.0
      %735 = vmatprep.subr.mxu0 0.0
      %736 = vmatpush1.msra.mxu0 0.0
      %737 = vmatprep.subr.mxu0 0.0
      %738 = vmatpush1.msra.mxu0 0.0
      %739 = vmatprep.subr.mxu0 0.0
      %740 = vmatpush1.msra.mxu0 0.0
      %741 = vmatprep.subr.mxu0 0.0
      %742 = vmatpush1.msra.mxu0 0.0
      %743 = vmatprep.subr.mxu0 0.0
      %744 = vmatpush1.msra.mxu0 0.0
      %745 = vmatprep.subr.mxu0 0.0
      %746 = vmatpush1.msra.mxu0 0.0
      %747 = vmatprep.subr.mxu0 0.0
      %748 = vmatpush1.msra.mxu0 0.0
      %749 = vmatprep.subr.mxu0 0.0
      %750 = vmatpush1.msra.mxu0 0.0
      %751 = vmatprep.subr.mxu0 0.0
      %752 = vmatpush1.msra.mxu0 0.0
      %753 = vmatprep.subr.mxu0 0.0
      %754 = vmatpush1.msra.mxu0 0.0
      %755 = vmatprep.subr.mxu0 0.0
      %756 = vmatpush1.msra.mxu0 0.0
      %757 = vmatprep.subr.mxu0 0.0
      %758 = vmatpush1.msra.mxu0 0.0
      %759 = vmatprep.subr.mxu0 0.0
      %760 = vmatpush1.msra.mxu0 0.0
      %761 = vmatprep.subr.mxu0 0.0
      %762 = vmatpush1.msra.mxu0 0.0
      %763 = vmatprep.subr.mxu0 0.0
      %764 = vmatpush1.msra.mxu0 0.0
      %765 = vmatprep.subr.mxu0 0.0
      %766 = vmatpush1.msra.mxu0 0.0
      %767 = vmatprep.subr.mxu0 0.0
      %768 = vmatpush1.msra.mxu0 0.0
      %769 = vmatprep.subr.mxu0 0.0
      %770 = vmatpush1.msra.mxu0 0.0
      %771 = vmatprep.subr.mxu0 0.0
      %772 = vmatpush1.msra.mxu0 0.0
      %773 = vmatprep.subr.mxu0 0.0
      %774 = vmatpush1.msra.mxu0 0.0
      %775 = vmatprep.subr.mxu0 0.0
      %776 = vmatpush1.msra.mxu0 0.0
      %777 = vmatprep.subr.mxu0 0.0
      %778 = vmatpush1.msra.mxu0 0.0
      %779 = vmatprep.subr.mxu0 0.0
      %780 = vmatpush1.msra.mxu0 0.0
      %781 = vmatprep.subr.mxu0 0.0
      %782 = vmatpush1.msra.mxu0 0.0
      %783 = vmatprep.subr.mxu0 0.0
      %784 = vmatpush1.msra.mxu0 0.0
      %785 = vmatprep.subr.mxu0 0.0
      %786 = vmatpush1.msra.mxu0 0.0
      %787 = vmatprep.subr.mxu0 0.0
      %788 = vmatpush1.msra.mxu0 0.0
      %789 = vmatprep.subr.mxu0 0.0
      %790 = vmatpush1.msra.mxu0 0.0
      %791 = vmatprep.subr.mxu0 0.0
      %792 = vmatpush1.msra.mxu0 0.0
      %793 = vmatprep.subr.mxu0 0.0
      %794 = vmatpush1.msra.mxu0 0.0
      %795 = vmatprep.mubr.f32.mxu0 0.0
      %796 = vmatmul.mubr.f32.gmra.mrb[0].mxu0 %v729
      %v797 = vpop.f32.mrb[0].mxu0
      %v798 = vadd.f32 0.0, %v797
      %v799 = vpop.f32.mrb[0].mxu0
      %800 = vdwg.mxu0
      %v801 = vld [vmem:[%s1 + $0xa0] sm:$0xff]
      %v802 = vld [vmem:[%s1 + $0xa8] sm:$0xff]
      %v803 = vld [vmem:[%s1 + $0xb0] sm:$0xff]
      %v804 = vld [vmem:[%s1 + $0xb8] sm:$0xff]
      %v805 = vld [vmem:[%s1 + $0xc0] sm:$0xff]
      %v806 = vld [vmem:[%s1 + $0xc8] sm:$0xff]
      %v807 = vld [vmem:[%s1 + $0xd0] sm:$0xff]
      %v808 = vld [vmem:[%s1 + $0xd8] sm:$0xff]
      %v809 = vld [vmem:[%s1 + $0x4a8] sm:$0x1]
      %v810 = vlaneseq
      %v811 = vshrl.u32 %v810, 7
      %v812 = vsub.s32 0, %v811
      %v813 = vrot.slane %v809, %v812
      %814 = vmatprep.subr.mxu0 0.0
      %815 = vmatpush1.msra.mxu0 %v805
      %816 = vmatprep.subr.mxu0 0.0
      %817 = vmatpush1.msra.mxu0 %v806
      %818 = vmatprep.subr.mxu0 0.0
      %819 = vmatpush1.msra.mxu0 %v807
      %820 = vmatprep.subr.mxu0 0.0
      %821 = vmatpush1.msra.mxu0 %v808
      %822 = vmatprep.subr.mxu0 0.0
      %823 = vmatpush1.msra.mxu0 0.0
      %824 = vmatprep.subr.mxu0 0.0
      %825 = vmatpush1.msra.mxu0 0.0
      %826 = vmatprep.subr.mxu0 0.0
      %827 = vmatpush1.msra.mxu0 0.0
      %828 = vmatprep.subr.mxu0 0.0
      %829 = vmatpush1.msra.mxu0 0.0
      %830 = vmatprep.subr.mxu0 0.0
      %831 = vmatpush1.msra.mxu0 0.0
      %832 = vmatprep.subr.mxu0 0.0
      %833 = vmatpush1.msra.mxu0 0.0
      %834 = vmatprep.subr.mxu0 0.0
      %835 = vmatpush1.msra.mxu0 0.0
      %836 = vmatprep.subr.mxu0 0.0
      %837 = vmatpush1.msra.mxu0 0.0
      %838 = vmatprep.subr.mxu0 0.0
      %839 = vmatpush1.msra.mxu0 0.0
      %840 = vmatprep.subr.mxu0 0.0
      %841 = vmatpush1.msra.mxu0 0.0
      %842 = vmatprep.subr.mxu0 0.0
      %843 = vmatpush1.msra.mxu0 0.0
      %844 = vmatprep.subr.mxu0 0.0
      %845 = vmatpush1.msra.mxu0 0.0
      %846 = vmatprep.subr.mxu0 0.0
      %847 = vmatpush1.msra.mxu0 0.0
      %848 = vmatprep.subr.mxu0 0.0
      %849 = vmatpush1.msra.mxu0 0.0
      %850 = vmatprep.subr.mxu0 0.0
      %851 = vmatpush1.msra.mxu0 0.0
      %852 = vmatprep.subr.mxu0 0.0
      %853 = vmatpush1.msra.mxu0 0.0
      %854 = vmatprep.subr.mxu0 0.0
      %855 = vmatpush1.msra.mxu0 0.0
      %856 = vmatprep.subr.mxu0 0.0
      %857 = vmatpush1.msra.mxu0 0.0
      %858 = vmatprep.subr.mxu0 0.0
      %859 = vmatpush1.msra.mxu0 0.0
      %860 = vmatprep.subr.mxu0 0.0
      %861 = vmatpush1.msra.mxu0 0.0
      %862 = vmatprep.subr.mxu0 0.0
      %863 = vmatpush1.msra.mxu0 0.0
      %864 = vmatprep.subr.mxu0 0.0
      %865 = vmatpush1.msra.mxu0 0.0
      %866 = vmatprep.subr.mxu0 0.0
      %867 = vmatpush1.msra.mxu0 0.0
      %868 = vmatprep.subr.mxu0 0.0
      %869 = vmatpush1.msra.mxu0 0.0
      %870 = vmatprep.subr.mxu0 0.0
      %871 = vmatpush1.msra.mxu0 0.0
      %872 = vmatprep.subr.mxu0 0.0
      %873 = vmatpush1.msra.mxu0 0.0
      %874 = vmatprep.subr.mxu0 0.0
      %875 = vmatpush1.msra.mxu0 0.0
      %876 = vmatprep.subr.mxu0 0.0
      %877 = vmatpush1.msra.mxu0 0.0
      %878 = vmatprep.mubr.f32.mxu0 0.0
      %879 = vmatmul.mubr.f32.gmra.mrb[0].mxu0 %v405
      %v880 = vpop.f32.mrb[0].mxu0
      %v881 = vadd.f32 %v813, %v880
      %v882 = vpop.f32.mrb[0].mxu0
      %883 = vdwg.mxu0
      %v884 = vld [vmem:[%s1 + $0xe0] sm:$0xff]
      %v885 = vld [vmem:[%s1 + $0xe8] sm:$0xff]
      %v886 = vld [vmem:[%s1 + $0xf0] sm:$0xff]
      %v887 = vld [vmem:[%s1 + $0xf8] sm:$0xff]
      %v888 = vld [vmem:[%s1 + $0x4b0] sm:$0x1]
      %v889 = vlaneseq
      %v890 = vshrl.u32 %v889, 7
      %v891 = vsub.s32 0, %v890
      %v892 = vrot.slane %v888, %v891
      %893 = vmatprep.subr.mxu0 0.0
      %894 = vmatpush1.msra.mxu0 %v884
      %895 = vmatprep.subr.mxu0 0.0
      %896 = vmatpush1.msra.mxu0 %v885
      %897 = vmatprep.subr.mxu0 0.0
      %898 = vmatpush1.msra.mxu0 %v886
      %899 = vmatprep.subr.mxu0 0.0
      %900 = vmatpush1.msra.mxu0 %v887
      %901 = vmatprep.subr.mxu0 0.0
      %902 = vmatpush1.msra.mxu0 0.0
      %903 = vmatprep.subr.mxu0 0.0
      %904 = vmatpush1.msra.mxu0 0.0
      %905 = vmatprep.subr.mxu0 0.0
      %906 = vmatpush1.msra.mxu0 0.0
      %907 = vmatprep.subr.mxu0 0.0
      %908 = vmatpush1.msra.mxu0 0.0
      %909 = vmatprep.subr.mxu0 0.0
      %910 = vmatpush1.msra.mxu0 0.0
      %911 = vmatprep.subr.mxu0 0.0
      %912 = vmatpush1.msra.mxu0 0.0
      %913 = vmatprep.subr.mxu0 0.0
      %914 = vmatpush1.msra.mxu0 0.0
      %915 = vmatprep.subr.mxu0 0.0
      %916 = vmatpush1.msra.mxu0 0.0
      %917 = vmatprep.subr.mxu0 0.0
      %918 = vmatpush1.msra.mxu0 0.0
      %919 = vmatprep.subr.mxu0 0.0
      %920 = vmatpush1.msra.mxu0 0.0
      %921 = vmatprep.subr.mxu0 0.0
      %922 = vmatpush1.msra.mxu0 0.0
      %923 = vmatprep.subr.mxu0 0.0
      %924 = vmatpush1.msra.mxu0 0.0
      %925 = vmatprep.subr.mxu0 0.0
      %926 = vmatpush1.msra.mxu0 0.0
      %927 = vmatprep.subr.mxu0 0.0
      %928 = vmatpush1.msra.mxu0 0.0
      %929 = vmatprep.subr.mxu0 0.0
      %930 = vmatpush1.msra.mxu0 0.0
      %931 = vmatprep.subr.mxu0 0.0
      %932 = vmatpush1.msra.mxu0 0.0
      %933 = vmatprep.subr.mxu0 0.0
      %934 = vmatpush1.msra.mxu0 0.0
      %935 = vmatprep.subr.mxu0 0.0
      %936 = vmatpush1.msra.mxu0 0.0
      %937 = vmatprep.subr.mxu0 0.0
      %938 = vmatpush1.msra.mxu0 0.0
      %939 = vmatprep.subr.mxu0 0.0
      %940 = vmatpush1.msra.mxu0 0.0
      %941 = vmatprep.subr.mxu0 0.0
      %942 = vmatpush1.msra.mxu0 0.0
      %943 = vmatprep.subr.mxu0 0.0
      %944 = vmatpush1.msra.mxu0 0.0
      %945 = vmatprep.subr.mxu0 0.0
      %946 = vmatpush1.msra.mxu0 0.0
      %947 = vmatprep.subr.mxu0 0.0
      %948 = vmatpush1.msra.mxu0 0.0
      %949 = vmatprep.subr.mxu0 0.0
      %950 = vmatpush1.msra.mxu0 0.0
      %951 = vmatprep.subr.mxu0 0.0
      %952 = vmatpush1.msra.mxu0 0.0
      %953 = vmatprep.subr.mxu0 0.0
      %954 = vmatpush1.msra.mxu0 0.0
      %955 = vmatprep.subr.mxu0 0.0
      %956 = vmatpush1.msra.mxu0 0.0
      %957 = vmatprep.mubr.f32.mxu0 0.0
      %958 = vmatmul.mubr.f32.gmra.mrb[0].mxu0 %v487
      %v959 = vpop.f32.mrb[0].mxu0
      %v960 = vadd.f32 %v892, %v959
      %v961 = vpop.f32.mrb[0].mxu0
      %962 = vdwg.mxu0
      %v963 = vld [vmem:[%s1 + $0x100] sm:$0xff]
      %v964 = vld [vmem:[%s1 + $0x108] sm:$0xff]
      %v965 = vld [vmem:[%s1 + $0x110] sm:$0xff]
      %v966 = vld [vmem:[%s1 + $0x118] sm:$0xff]
      %v967 = vld [vmem:[%s1 + $0x4b8] sm:$0x1]
      %v968 = vlaneseq
      %v969 = vshrl.u32 %v968, 7
      %v970 = vsub.s32 0, %v969
      %v971 = vrot.slane %v967, %v970
      %972 = vmatprep.subr.mxu0 0.0
      %973 = vmatpush1.msra.mxu0 %v963
      %974 = vmatprep.subr.mxu0 0.0
      %975 = vmatpush1.msra.mxu0 %v964
      %976 = vmatprep.subr.mxu0 0.0
      %977 = vmatpush1.msra.mxu0 %v965
      %978 = vmatprep.subr.mxu0 0.0
      %979 = vmatpush1.msra.mxu0 %v966
      %980 = vmatprep.subr.mxu0 0.0
      %981 = vmatpush1.msra.mxu0 0.0
      %982 = vmatprep.subr.mxu0 0.0
      %983 = vmatpush1.msra.mxu0 0.0
      %984 = vmatprep.subr.mxu0 0.0
      %985 = vmatpush1.msra.mxu0 0.0
      %986 = vmatprep.subr.mxu0 0.0
      %987 = vmatpush1.msra.mxu0 0.0
      %988 = vmatprep.subr.mxu0 0.0
      %989 = vmatpush1.msra.mxu0 0.0
      %990 = vmatprep.subr.mxu0 0.0
      %991 = vmatpush1.msra.mxu0 0.0
      %992 = vmatprep.subr.mxu0 0.0
      %993 = vmatpush1.msra.mxu0 0.0
      %994 = vmatprep.subr.mxu0 0.0
      %995 = vmatpush1.msra.mxu0 0.0
      %996 = vmatprep.subr.mxu0 0.0
      %997 = vmatpush1.msra.mxu0 0.0
      %998 = vmatprep.subr.mxu0 0.0
      %999 = vmatpush1.msra.mxu0 0.0
      %1000 = vmatprep.subr.mxu0 0.0
      %1001 = vmatpush1.msra.mxu0 0.0
      %1002 = vmatprep.subr.mxu0 0.0
      %1003 = vmatpush1.msra.mxu0 0.0
      %1004 = vmatprep.subr.mxu0 0.0
      %1005 = vmatpush1.msra.mxu0 0.0
      %1006 = vmatprep.subr.mxu0 0.0
      %1007 = vmatpush1.msra.mxu0 0.0
      %1008 = vmatprep.subr.mxu0 0.0
      %1009 = vmatpush1.msra.mxu0 0.0
      %1010 = vmatprep.subr.mxu0 0.0
      %1011 = vmatpush1.msra.mxu0 0.0
      %1012 = vmatprep.subr.mxu0 0.0
      %1013 = vmatpush1.msra.mxu0 0.0
      %1014 = vmatprep.subr.mxu0 0.0
      %1015 = vmatpush1.msra.mxu0 0.0
      %1016 = vmatprep.subr.mxu0 0.0
      %1017 = vmatpush1.msra.mxu0 0.0
      %1018 = vmatprep.subr.mxu0 0.0
      %1019 = vmatpush1.msra.mxu0 0.0
      %1020 = vmatprep.subr.mxu0 0.0
      %1021 = vmatpush1.msra.mxu0 0.0
      %1022 = vmatprep.subr.mxu0 0.0
      %1023 = vmatpush1.msra.mxu0 0.0
      %1024 = vmatprep.subr.mxu0 0.0
      %1025 = vmatpush1.msra.mxu0 0.0
      %1026 = vmatprep.subr.mxu0 0.0
      %1027 = vmatpush1.msra.mxu0 0.0
      %1028 = vmatprep.subr.mxu0 0.0
      %1029 = vmatpush1.msra.mxu0 0.0
      %1030 = vmatprep.subr.mxu0 0.0
      %1031 = vmatpush1.msra.mxu0 0.0
      %1032 = vmatprep.subr.mxu0 0.0
      %1033 = vmatpush1.msra.mxu0 0.0
      %1034 = vmatprep.subr.mxu0 0.0
      %1035 = vmatpush1.msra.mxu0 0.0
      %1036 = vmatprep.mubr.f32.mxu0 0.0
      %1037 = vmatmul.mubr.f32.gmra.mrb[0].mxu0 %v487
      %v1038 = vpop.f32.mrb[0].mxu0
      %v1039 = vadd.f32 %v971, %v1038
      %v1040 = vpop.f32.mrb[0].mxu0
      %1041 = vdwg.mxu0
      %v1043 = vsel %vm161, %v881, 0
      %v1046 = vsel %vm161, %v960, 0
      %1048 = vmatprep.subr.mxu0 0.0
      %1049 = vmatpush1.xpose.msra.mxu0 %v1046
      %1050 = vmatprep.subr.mxu0 0.0
      %1051 = vmatpush1.xpose.msra.mxu0 0.0
      %1052 = vmatprep.subr.mxu0 0.0
      %1053 = vmatpush1.xpose.msra.mxu0 0.0
      %1054 = vmatprep.subr.mxu0 0.0
      %1055 = vmatpush1.xpose.msra.mxu0 0.0
      %1056 = vmatprep.subr.mxu0 0.0
      %1057 = vmatpush1.xpose.msra.mxu0 0.0
      %1058 = vmatprep.subr.mxu0 0.0
      %1059 = vmatpush1.xpose.msra.mxu0 0.0
      %1060 = vmatprep.subr.mxu0 0.0
      %1061 = vmatpush1.xpose.msra.mxu0 0.0
      %1062 = vmatprep.subr.mxu0 0.0
      %1063 = vmatpush1.xpose.msra.mxu0 0.0
      %1064 = vmatprep.subr.mxu0 0.0
      %1065 = vmatpush1.xpose.msra.mxu0 0.0
      %1066 = vmatprep.subr.mxu0 0.0
      %1067 = vmatpush1.xpose.msra.mxu0 0.0
      %1068 = vmatprep.subr.mxu0 0.0
      %1069 = vmatpush1.xpose.msra.mxu0 0.0
      %1070 = vmatprep.subr.mxu0 0.0
      %1071 = vmatpush1.xpose.msra.mxu0 0.0
      %1072 = vmatprep.subr.mxu0 0.0
      %1073 = vmatpush1.xpose.msra.mxu0 0.0
      %1074 = vmatprep.subr.mxu0 0.0
      %1075 = vmatpush1.xpose.msra.mxu0 0.0
      %1076 = vmatprep.subr.mxu0 0.0
      %1077 = vmatpush1.xpose.msra.mxu0 0.0
      %1078 = vmatprep.subr.mxu0 0.0
      %1079 = vmatpush1.xpose.msra.mxu0 0.0
      %1080 = vmatprep.subr.mxu0 0.0
      %1081 = vmatpush1.xpose.msra.mxu0 0.0
      %1082 = vmatprep.subr.mxu0 0.0
      %1083 = vmatpush1.xpose.msra.mxu0 0.0
      %1084 = vmatprep.subr.mxu0 0.0
      %1085 = vmatpush1.xpose.msra.mxu0 0.0
      %1086 = vmatprep.subr.mxu0 0.0
      %1087 = vmatpush1.xpose.msra.mxu0 0.0
      %1088 = vmatprep.subr.mxu0 0.0
      %1089 = vmatpush1.xpose.msra.mxu0 0.0
      %1090 = vmatprep.subr.mxu0 0.0
      %1091 = vmatpush1.xpose.msra.mxu0 0.0
      %1092 = vmatprep.subr.mxu0 0.0
      %1093 = vmatpush1.xpose.msra.mxu0 0.0
      %1094 = vmatprep.subr.mxu0 0.0
      %1095 = vmatpush1.xpose.msra.mxu0 0.0
      %1096 = vmatprep.subr.mxu0 0.0
      %1097 = vmatpush1.xpose.msra.mxu0 0.0
      %1098 = vmatprep.subr.mxu0 0.0
      %1099 = vmatpush1.xpose.msra.mxu0 0.0
      %1100 = vmatprep.subr.mxu0 0.0
      %1101 = vmatpush1.xpose.msra.mxu0 0.0
      %1102 = vmatprep.subr.mxu0 0.0
      %1103 = vmatpush1.xpose.msra.mxu0 0.0
      %1104 = vmatprep.subr.mxu0 0.0
      %1105 = vmatpush1.xpose.msra.mxu0 0.0
      %1106 = vmatprep.subr.mxu0 0.0
      %1107 = vmatpush1.xpose.msra.mxu0 0.0
      %1108 = vmatprep.subr.mxu0 0.0
      %1109 = vmatpush1.xpose.msra.mxu0 0.0
      %1110 = vmatprep.subr.mxu0 0.0
      %1111 = vmatpush1.xpose.msra.mxu0 0.0
      %1112 = vmatprep.mubr.f32.mxu0 0.0
      %1113 = vmatmul.mubr.f32.gmra.mrb[0].mxu0 %v1043
      %v1114 = vpop.f32.mrb[0].mxu0
      %v1115 = vadd.f32 0.0, %v1114
      %v1116 = vpop.f32.mrb[0].mxu0
      %1117 = vdwg.mxu0
      %v1118 = vmul.f32 %v1115, 0.17677669
      %v1119 = vadd.f32 %v1118, %v148
      %v1120 = vsel %vm716, %v1119, -inf
      %1121 = vmax.xlane.f32.xlu0 %v1120
      %v1122 = vpop.xlane.xlu0 %1121
      %v1123 = vsub.f32 %v1119, %v1122
      %v1124 = vmul.f32 %v1123, 1.442695
      %v1125 = vpow.pop %v1124
      %v1126 = vsel %vm716, %v1125, 0.0
      %1127 = vadd.xlane.f32.xlu0 %v1126
      %v1128 = vpop.xlane.xlu0 %1127
      %v1129 = vrcp.pop %v1128
      %v1130 = vmul.f32 %v1125, %v1129
      %v1132 = vsel %vm716, %v1130, 0
      %1134 = vmatprep.subr.mxu0 0.0
      %1135 = vmatpush1.msra.mxu0 %v1039
      %1136 = vmatprep.subr.mxu0 0.0
      %1137 = vmatpush1.msra.mxu0 0.0
      %1138 = vmatprep.subr.mxu0 0.0
      %1139 = vmatpush1.msra.mxu0 0.0
      %1140 = vmatprep.subr.mxu0 0.0
      %1141 = vmatpush1.msra.mxu0 0.0
      %1142 = vmatprep.subr.mxu0 0.0
      %1143 = vmatpush1.msra.mxu0 0.0
      %1144 = vmatprep.subr.mxu0 0.0
      %1145 = vmatpush1.msra.mxu0 0.0
      %1146 = vmatprep.subr.mxu0 0.0
      %1147 = vmatpush1.msra.mxu0 0.0
      %1148 = vmatprep.subr.mxu0 0.0
      %1149 = vmatpush1.msra.mxu0 0.0
      %1150 = vmatprep.subr.mxu0 0.0
      %1151 = vmatpush1.msra.mxu0 0.0
      %1152 = vmatprep.subr.mxu0 0.0
      %1153 = vmatpush1.msra.mxu0 0.0
      %1154 = vmatprep.subr.mxu0 0.0
      %1155 = vmatpush1.msra.mxu0 0.0
      %1156 = vmatprep.subr.mxu0 0.0
      %1157 = vmatpush1.msra.mxu0 0.0
      %1158 = vmatprep.subr.mxu0 0.0
      %1159 = vmatpush1.msra.mxu0 0.0
      %1160 = vmatprep.subr.mxu0 0.0
      %1161 = vmatpush1.msra.mxu0 0.0
      %1162 = vmatprep.subr.mxu0 0.0
      %1163 = vmatpush1.msra.mxu0 0.0
      %1164 = vmatprep.subr.mxu0 0.0
      %1165 = vmatpush1.msra.mxu0 0.0
      %1166 = vmatprep.subr.mxu0 0.0
      %1167 = vmatpush1.msra.mxu0 0.0
      %1168 = vmatprep.subr.mxu0 0.0
      %1169 = vmatpush1.msra.mxu0 0.0
      %1170 = vmatprep.subr.mxu0 0.0
      %1171 = vmatpush1.msra.mxu0 0.0
      %1172 = vmatprep.subr.mxu0 0.0
      %1173 = vmatpush1.msra.mxu0 0.0
      %1174 = vmatprep.subr.mxu0 0.0
      %1175 = vmatpush1.msra.mxu0 0.0
      %1176 = vmatprep.subr.mxu0 0.0
      %1177 = vmatpush1.msra.mxu0 0.0
      %1178 = vmatprep.subr.mxu0 0.0
      %1179 = vmatpush1.msra.mxu0 0.0
      %1180 = vmatprep.subr.mxu0 0.0
      %1181 = vmatpush1.msra.mxu0 0.0
      %1182 = vmatprep.subr.mxu0 0.0
      %1183 = vmatpush1.msra.mxu0 0.0
      %1184 = vmatprep.subr.mxu0 0.0
      %1185 = vmatpush1.msra.mxu0 0.0
      %1186 = vmatprep.subr.mxu0 0.0
      %1187 = vmatpush1.msra.mxu0 0.0
      %1188 = vmatprep.subr.mxu0 0.0
      %1189 = vmatpush1.msra.mxu0 0.0
      %1190 = vmatprep.subr.mxu0 0.0
      %1191 = vmatpush1.msra.mxu0 0.0
      %1192 = vmatprep.subr.mxu0 0.0
      %1193 = vmatpush1.msra.mxu0 0.0
      %1194 = vmatprep.subr.mxu0 0.0
      %1195 = vmatpush1.msra.mxu0 0.0
      %1196 = vmatprep.subr.mxu0 0.0
      %1197 = vmatpush1.msra.mxu0 0.0
      %1198 = vmatprep.mubr.f32.mxu0 0.0
      %1199 = vmatmul.mubr.f32.gmra.mrb[0].mxu0 %v1132
      %v1200 = vpop.f32.mrb[0].mxu0
      %v1201 = vadd.f32 0.0, %v1200
      %v1202 = vpop.f32.mrb[0].mxu0
      %1203 = vdwg.mxu0
      %v1204 = vld [vmem:[%s1 + $0x120] sm:$0xff]
      %v1205 = vld [vmem:[%s1 + $0x128] sm:$0xff]
      %v1206 = vld [vmem:[%s1 + $0x130] sm:$0xff]
      %v1207 = vld [vmem:[%s1 + $0x138] sm:$0xff]
      %v1209 = vsel %vm161, %v1201, 0
      %1211 = vmatprep.subr.mxu0 0.0
      %1212 = vmatpush1.msra.mxu0 %v1204
      %1213 = vmatprep.subr.mxu0 0.0
      %1214 = vmatpush1.msra.mxu0 %v1205
      %1215 = vmatprep.subr.mxu0 0.0
      %1216 = vmatpush1.msra.mxu0 %v1206
      %1217 = vmatprep.subr.mxu0 0.0
      %1218 = vmatpush1.msra.mxu0 %v1207
      %1219 = vmatprep.subr.mxu0 0.0
      %1220 = vmatpush1.msra.mxu0 0.0
      %1221 = vmatprep.subr.mxu0 0.0
      %1222 = vmatpush1.msra.mxu0 0.0
      %1223 = vmatprep.subr.mxu0 0.0
      %1224 = vmatpush1.msra.mxu0 0.0
      %1225 = vmatprep.subr.mxu0 0.0
      %1226 = vmatpush1.msra.mxu0 0.0
      %1227 = vmatprep.subr.mxu0 0.0
      %1228 = vmatpush1.msra.mxu0 0.0
      %1229 = vmatprep.subr.mxu0 0.0
      %1230 = vmatpush1.msra.mxu0 0.0
      %1231 = vmatprep.subr.mxu0 0.0
      %1232 = vmatpush1.msra.mxu0 0.0
      %1233 = vmatprep.subr.mxu0 0.0
      %1234 = vmatpush1.msra.mxu0 0.0
      %1235 = vmatprep.subr.mxu0 0.0
      %1236 = vmatpush1.msra.mxu0 0.0
      %1237 = vmatprep.subr.mxu0 0.0
      %1238 = vmatpush1.msra.mxu0 0.0
      %1239 = vmatprep.subr.mxu0 0.0
      %1240 = vmatpush1.msra.mxu0 0.0
      %1241 = vmatprep.subr.mxu0 0.0
      %1242 = vmatpush1.msra.mxu0 0.0
      %1243 = vmatprep.subr.mxu0 0.0
      %1244 = vmatpush1.msra.mxu0 0.0
      %1245 = vmatprep.subr.mxu0 0.0
      %1246 = vmatpush1.msra.mxu0 0.0
      %1247 = vmatprep.subr.mxu0 0.0
      %1248 = vmatpush1.msra.mxu0 0.0
      %1249 = vmatprep.subr.mxu0 0.0
      %1250 = vmatpush1.msra.mxu0 0.0
      %1251 = vmatprep.subr.mxu0 0.0
      %1252 = vmatpush1.msra.mxu0 0.0
      %1253 = vmatprep.subr.mxu0 0.0
      %1254 = vmatpush1.msra.mxu0 0.0
      %1255 = vmatprep.subr.mxu0 0.0
      %1256 = vmatpush1.msra.mxu0 0.0
      %1257 = vmatprep.subr.mxu0 0.0
      %1258 = vmatpush1.msra.mxu0 0.0
      %1259 = vmatprep.subr.mxu0 0.0
      %1260 = vmatpush1.msra.mxu0 0.0
      %1261 = vmatprep.subr.mxu0 0.0
      %1262 = vmatpush1.msra.mxu0 0.0
      %1263 = vmatprep.subr.mxu0 0.0
      %1264 = vmatpush1.msra.mxu0 0.0
      %1265 = vmatprep.subr.mxu0 0.0
      %1266 = vmatpush1.msra.mxu0 0.0
      %1267 = vmatprep.subr.mxu0 0.0
      %1268 = vmatpush1.msra.mxu0 0.0
      %1269 = vmatprep.subr.mxu0 0.0
      %1270 = vmatpush1.msra.mxu0 0.0
      %1271 = vmatprep.subr.mxu0 0.0
      %1272 = vmatpush1.msra.mxu0 0.0
      %1273 = vmatprep.subr.mxu0 0.0
      %1274 = vmatpush1.msra.mxu0 0.0
      %1275 = vmatprep.mubr.f32.mxu0 0.0
      %1276 = vmatmul.mubr.f32.gmra.mrb[0].mxu0 %v1209
      %v1277 = vpop.f32.mrb[0].mxu0
      %v1278 = vadd.f32 0.0, %v1277
      %v1279 = vpop.f32.mrb[0].mxu0
      %1280 = vdwg.mxu0
      %v1282 = vsel %vm161, %v798, 0
      %1284 = vmatprep.subr.mxu0 0.0
      %1285 = vmatpush1.msra.mxu0 %v801
      %1286 = vmatprep.subr.mxu0 0.0
      %1287 = vmatpush1.msra.mxu0 %v802
      %1288 = vmatprep.subr.mxu0 0.0
      %1289 = vmatpush1.msra.mxu0 %v803
      %1290 = vmatprep.subr.mxu0 0.0
      %1291 = vmatpush1.msra.mxu0 %v804
      %1292 = vmatprep.subr.mxu0 0.0
      %1293 = vmatpush1.msra.mxu0 0.0
      %1294 = vmatprep.subr.mxu0 0.0
      %1295 = vmatpush1.msra.mxu0 0.0
      %1296 = vmatprep.subr.mxu0 0.0
      %1297 = vmatpush1.msra.mxu0 0.0
      %1298 = vmatprep.subr.mxu0 0.0
      %1299 = vmatpush1.msra.mxu0 0.0
      %1300 = vmatprep.subr.mxu0 0.0
      %1301 = vmatpush1.msra.mxu0 0.0
      %1302 = vmatprep.subr.mxu0 0.0
      %1303 = vmatpush1.msra.mxu0 0.0
      %1304 = vmatprep.subr.mxu0 0.0
      %1305 = vmatpush1.msra.mxu0 0.0
      %1306 = vmatprep.subr.mxu0 0.0
      %1307 = vmatpush1.msra.mxu0 0.0
      %1308 = vmatprep.subr.mxu0 0.0
      %1309 = vmatpush1.msra.mxu0 0.0
      %1310 = vmatprep.subr.mxu0 0.0
      %1311 = vmatpush1.msra.mxu0 0.0
      %1312 = vmatprep.subr.mxu0 0.0
      %1313 = vmatpush1.msra.mxu0 0.0
      %1314 = vmatprep.subr.mxu0 0.0
      %1315 = vmatpush1.msra.mxu0 0.0
      %1316 = vmatprep.subr.mxu0 0.0
      %1317 = vmatpush1.msra.mxu0 0.0
      %1318 = vmatprep.subr.mxu0 0.0
      %1319 = vmatpush1.msra.mxu0 0.0
      %1320 = vmatprep.subr.mxu0 0.0
      %1321 = vmatpush1.msra.mxu0 0.0
      %1322 = vmatprep.subr.mxu0 0.0
      %1323 = vmatpush1.msra.mxu0 0.0
      %1324 = vmatprep.subr.mxu0 0.0
      %1325 = vmatpush1.msra.mxu0 0.0
      %1326 = vmatprep.subr.mxu0 0.0
      %1327 = vmatpush1.msra.mxu0 0.0
      %1328 = vmatprep.subr.mxu0 0.0
      %1329 = vmatpush1.msra.mxu0 0.0
      %1330 = vmatprep.subr.mxu0 0.0
      %1331 = vmatpush1.msra.mxu0 0.0
      %1332 = vmatprep.subr.mxu0 0.0
      %1333 = vmatpush1.msra.mxu0 0.0
      %1334 = vmatprep.subr.mxu0 0.0
      %1335 = vmatpush1.msra.mxu0 0.0
      %1336 = vmatprep.subr.mxu0 0.0
      %1337 = vmatpush1.msra.mxu0 0.0
      %1338 = vmatprep.subr.mxu0 0.0
      %1339 = vmatpush1.msra.mxu0 0.0
      %1340 = vmatprep.subr.mxu0 0.0
      %1341 = vmatpush1.msra.mxu0 0.0
      %1342 = vmatprep.subr.mxu0 0.0
      %1343 = vmatpush1.msra.mxu0 0.0
      %1344 = vmatprep.subr.mxu0 0.0
      %1345 = vmatpush1.msra.mxu0 0.0
      %1346 = vmatprep.subr.mxu0 0.0
      %1347 = vmatpush1.msra.mxu0 0.0
      %1348 = vmatprep.mubr.f32.mxu0 0.0
      %1349 = vmatmul.mubr.f32.gmra.mrb[0].mxu0 %v1282
      %v1350 = vpop.f32.mrb[0].mxu0
      %v1351 = vadd.f32 %v1278, %v1350
      %v1352 = vpop.f32.mrb[0].mxu0
      %1353 = vdwg.mxu0
      %v1354 = vld [vmem:[%s1 + $0x4c0] sm:$0x1]
      %v1355 = vlaneseq
      %v1356 = vshrl.u32 %v1355, 7
      %v1357 = vsub.s32 0, %v1356
      %v1358 = vrot.slane %v1354, %v1357
      %v1359 = vadd.f32 %v1351, %v1358
      %v1360 = vadd.f32 %v144, %v1359
      %v1361 = vlaneseq
      %v1362 = vshrl.u32 %v1361, 7
      %v1363 = vsub.s32 0, %v1362
      %v1364 = vrot.slane %v151, %v1363
      %v1365 = vadd.f32 %v1360, %v1364
      %v1367 = vsel %vm716, %v146, 0
      %v1370 = vsel %vm716, %v147, 0
      %1372 = vmatprep.subr.mxu0 0.0
      %1373 = vmatpush1.msra.mxu0 %v1365
      %1374 = vmatprep.subr.mxu0 0.0
      %1375 = vmatpush1.msra.mxu0 0.0
      %1376 = vmatprep.subr.mxu0 0.0
      %1377 = vmatpush1.msra.mxu0 0.0
      %1378 = vmatprep.subr.mxu0 0.0
      %1379 = vmatpush1.msra.mxu0 0.0
      %1380 = vmatprep.subr.mxu0 0.0
      %1381 = vmatpush1.msra.mxu0 0.0
      %1382 = vmatprep.subr.mxu0 0.0
      %1383 = vmatpush1.msra.mxu0 0.0
      %1384 = vmatprep.subr.mxu0 0.0
      %1385 = vmatpush1.msra.mxu0 0.0
      %1386 = vmatprep.subr.mxu0 0.0
      %1387 = vmatpush1.msra.mxu0 0.0
      %1388 = vmatprep.subr.mxu0 0.0
      %1389 = vmatpush1.msra.mxu0 0.0
      %1390 = vmatprep.subr.mxu0 0.0
      %1391 = vmatpush1.msra.mxu0 0.0
      %1392 = vmatprep.subr.mxu0 0.0
      %1393 = vmatpush1.msra.mxu0 0.0
      %1394 = vmatprep.subr.mxu0 0.0
      %1395 = vmatpush1.msra.mxu0 0.0
      %1396 = vmatprep.subr.mxu0 0.0
      %1397 = vmatpush1.msra.mxu0 0.0
      %1398 = vmatprep.subr.mxu0 0.0
      %1399 = vmatpush1.msra.mxu0 0.0
      %1400 = vmatprep.subr.mxu0 0.0
      %1401 = vmatpush1.msra.mxu0 0.0
      %1402 = vmatprep.subr.mxu0 0.0
      %1403 = vmatpush1.msra.mxu0 0.0
      %1404 = vmatprep.subr.mxu0 0.0
      %1405 = vmatpush1.msra.mxu0 0.0
      %1406 = vmatprep.subr.mxu0 0.0
      %1407 = vmatpush1.msra.mxu0 0.0
      %1408 = vmatprep.subr.mxu0 0.0
      %1409 = vmatpush1.msra.mxu0 0.0
      %1410 = vmatprep.subr.mxu0 0.0
      %1411 = vmatpush1.msra.mxu0 0.0
      %1412 = vmatprep.subr.mxu0 0.0
      %1413 = vmatpush1.msra.mxu0 0.0
      %1414 = vmatprep.subr.mxu0 0.0
      %1415 = vmatpush1.msra.mxu0 0.0
      %1416 = vmatprep.subr.mxu0 0.0
      %1417 = vmatpush1.msra.mxu0 0.0
      %1418 = vmatprep.subr.mxu0 0.0
      %1419 = vmatpush1.msra.mxu0 0.0
      %1420 = vmatprep.subr.mxu0 0.0
      %1421 = vmatpush1.msra.mxu0 0.0
      %1422 = vmatprep.subr.mxu0 0.0
      %1423 = vmatpush1.msra.mxu0 0.0
      %1424 = vmatprep.subr.mxu0 0.0
      %1425 = vmatpush1.msra.mxu0 0.0
      %1426 = vmatprep.subr.mxu0 0.0
      %1427 = vmatpush1.msra.mxu0 0.0
      %1428 = vmatprep.subr.mxu0 0.0
      %1429 = vmatpush1.msra.mxu0 0.0
      %1430 = vmatprep.subr.mxu0 0.0
      %1431 = vmatpush1.msra.mxu0 0.0
      %1432 = vmatprep.subr.mxu0 0.0
      %1433 = vmatpush1.msra.mxu0 0.0
      %1434 = vmatprep.subr.mxu0 0.0
      %1435 = vmatpush1.msra.mxu0 0.0
      %1436 = vmatprep.mubr.f32.mxu0 0.0
      %1437 = vmatmul.mubr.f32.gmra.mrb[0].mxu0 %v1367
      %v1438 = vpop.f32.mrb[0].mxu0
      %v1439 = vadd.f32 0.0, %v1438
      %v1440 = vpop.f32.mrb[0].mxu0
      %1441 = vmatprep.mubr.f32.mxu0 0.0
      %1442 = vmatmul.mubr.f32.gmra.mrb[0].mxu0 %v1370
      %v1443 = vpop.f32.mrb[0].mxu0
      %v1444 = vadd.f32 0.0, %v1443
      %v1445 = vpop.f32.mrb[0].mxu0
      %1446 = vdwg.mxu0
      %v1447 = vld [vmem:[%s1 + $0x140] sm:$0xff]
      %v1448 = vld [vmem:[%s1 + $0x148] sm:$0xff]
      %v1449 = vld [vmem:[%s1 + $0x150] sm:$0xff]
      %v1450 = vld [vmem:[%s1 + $0x158] sm:$0xff]
      %v1451 = vld [vmem:[%s1 + $0x4c8] sm:$0x1]
      %v1452 = vlaneseq
      %v1453 = vshrl.u32 %v1452, 7
      %v1454 = vsub.s32 0, %v1453
      %v1455 = vrot.slane %v1451, %v1454
      %v1457 = vsel %vm161, %v1439, 0
      %v1460 = vsel %vm161, %v1444, 0
      %1462 = vmatprep.subr.mxu0 0.0
      %1463 = vmatpush1.msra.mxu0 %v1447
      %1464 = vmatprep.subr.mxu0 0.0
      %1465 = vmatpush1.msra.mxu0 %v1448
      %1466 = vmatprep.subr.mxu0 0.0
      %1467 = vmatpush1.msra.mxu0 %v1449
      %1468 = vmatprep.subr.mxu0 0.0
      %1469 = vmatpush1.msra.mxu0 %v1450
      %1470 = vmatprep.subr.mxu0 0.0
      %1471 = vmatpush1.msra.mxu0 0.0
      %1472 = vmatprep.subr.mxu0 0.0
      %1473 = vmatpush1.msra.mxu0 0.0
      %1474 = vmatprep.subr.mxu0 0.0
      %1475 = vmatpush1.msra.mxu0 0.0
      %1476 = vmatprep.subr.mxu0 0.0
      %1477 = vmatpush1.msra.mxu0 0.0
      %1478 = vmatprep.subr.mxu0 0.0
      %1479 = vmatpush1.msra.mxu0 0.0
      %1480 = vmatprep.subr.mxu0 0.0
      %1481 = vmatpush1.msra.mxu0 0.0
      %1482 = vmatprep.subr.mxu0 0.0
      %1483 = vmatpush1.msra.mxu0 0.0
      %1484 = vmatprep.subr.mxu0 0.0
      %1485 = vmatpush1.msra.mxu0 0.0
      %1486 = vmatprep.subr.mxu0 0.0
      %1487 = vmatpush1.msra.mxu0 0.0
      %1488 = vmatprep.subr.mxu0 0.0
      %1489 = vmatpush1.msra.mxu0 0.0
      %1490 = vmatprep.subr.mxu0 0.0
      %1491 = vmatpush1.msra.mxu0 0.0
      %1492 = vmatprep.subr.mxu0 0.0
      %1493 = vmatpush1.msra.mxu0 0.0
      %1494 = vmatprep.subr.mxu0 0.0
      %1495 = vmatpush1.msra.mxu0 0.0
      %1496 = vmatprep.subr.mxu0 0.0
      %1497 = vmatpush1.msra.mxu0 0.0
      %1498 = vmatprep.subr.mxu0 0.0
      %1499 = vmatpush1.msra.mxu0 0.0
      %1500 = vmatprep.subr.mxu0 0.0
      %1501 = vmatpush1.msra.mxu0 0.0
      %1502 = vmatprep.subr.mxu0 0.0
      %1503 = vmatpush1.msra.mxu0 0.0
      %1504 = vmatprep.subr.mxu0 0.0
      %1505 = vmatpush1.msra.mxu0 0.0
      %1506 = vmatprep.subr.mxu0 0.0
      %1507 = vmatpush1.msra.mxu0 0.0
      %1508 = vmatprep.subr.mxu0 0.0
      %1509 = vmatpush1.msra.mxu0 0.0
      %1510 = vmatprep.subr.mxu0 0.0
      %1511 = vmatpush1.msra.mxu0 0.0
      %1512 = vmatprep.subr.mxu0 0.0
      %1513 = vmatpush1.msra.mxu0 0.0
      %1514 = vmatprep.subr.mxu0 0.0
      %1515 = vmatpush1.msra.mxu0 0.0
      %1516 = vmatprep.subr.mxu0 0.0
      %1517 = vmatpush1.msra.mxu0 0.0
      %1518 = vmatprep.subr.mxu0 0.0
      %1519 = vmatpush1.msra.mxu0 0.0
      %1520 = vmatprep.subr.mxu0 0.0
      %1521 = vmatpush1.msra.mxu0 0.0
      %1522 = vmatprep.subr.mxu0 0.0
      %1523 = vmatpush1.msra.mxu0 0.0
      %1524 = vmatprep.subr.mxu0 0.0
      %1525 = vmatpush1.msra.mxu0 0.0
      %1526 = vmatprep.mubr.f32.mxu0 0.0
      %1527 = vmatmul.mubr.f32.gmra.mrb[0].mxu0 %v1457
      %v1528 = vpop.f32.mrb[0].mxu0
      %v1529 = vadd.f32 %v1455, %v1528
      %v1530 = vpop.f32.mrb[0].mxu0
      %1531 = vmatprep.mubr.f32.mxu0 0.0
      %1532 = vmatmul.mubr.f32.gmra.mrb[0].mxu0 %v1460
      %v1533 = vpop.f32.mrb[0].mxu0
      %v1534 = vadd.f32 %v1455, %v1533
      %v1535 = vpop.f32.mrb[0].mxu0
      %1536 = vdwg.mxu0
      %v1537 = vlaneseq
      %v1538 = vshrl.u32 %v1537, 7
      %v1539 = vadd.s32 %v1538, 8
      %v1540 = vlaneseq
      %v1541 = vand.u32 %v1540, 127
      %v1542 = vadd.s32 %v1538, 4294967294
      %v1543 = vadd.s32 %v1539, 4294967294
      %vm1544 = vcmp.eq.s32.totalorder %v1541, %v1542
      %vm1545 = vcmp.eq.s32.totalorder %v1541, %v1543
      %v1546 = vsel %vm1544, 1, 0
      %v1547 = vsel %vm1545, 1, 0
      %v1548 = vcvt.s32.f32 %v1546
      %v1549 = vcvt.s32.f32 %v1547
      %v1550 = vadd.s32 %v1538, 4294967295
      %v1551 = vadd.s32 %v1539, 4294967295
      %vm1552 = vcmp.eq.s32.totalorder %v1541, %v1550
      %vm1553 = vcmp.eq.s32.totalorder %v1541, %v1551
      %v1554 = vsel %vm1552, 1, 0
      %v1555 = vsel %vm1553, 1, 0
      %v1556 = vcvt.s32.f32 %v1554
      %v1557 = vcvt.s32.f32 %v1555
      %vm1558 = vcmp.eq.s32.totalorder %v1541, %v1538
      %vm1559 = vcmp.eq.s32.totalorder %v1541, %v1539
      %v1560 = vsel %vm1558, 1, 0
      %v1561 = vsel %vm1559, 1, 0
      %v1562 = vcvt.s32.f32 %v1560
      %v1563 = vcvt.s32.f32 %v1561
      %v1564 = vadd.s32 %v1538, 1
      %v1565 = vadd.s32 %v1539, 1
      %vm1566 = vcmp.eq.s32.totalorder %v1541, %v1564
      %vm1567 = vcmp.eq.s32.totalorder %v1541, %v1565
      %v1568 = vsel %vm1566, 1, 0
      %v1569 = vsel %vm1567, 1, 0
      %v1570 = vcvt.s32.f32 %v1568
      %v1571 = vcvt.s32.f32 %v1569
      %v1572 = vadd.s32 %v1538, 2
      %v1573 = vadd.s32 %v1539, 2
      %vm1574 = vcmp.eq.s32.totalorder %v1541, %v1572
      %vm1575 = vcmp.eq.s32.totalorder %v1541, %v1573
      %v1576 = vsel %vm1574, 1, 0
      %v1577 = vsel %vm1575, 1, 0
      %v1578 = vcvt.s32.f32 %v1576
      %v1579 = vcvt.s32.f32 %v1577
      %v1580 = vld [vmem:[%s1 + $0x4d0] sm:$0x1]
      %v1581 = vlaneseq
      %v1582 = vshrl.u32 %v1581, 7
      %v1583 = vsub.s32 0, %v1582
      %v1584 = vrot.slane %v1580, %v1583
      %v1585 = vadd.f32 %v1584, 0.0
      %vm1586 = vcmask 130048
      %v1588 = vsel %vm1586, %v1548, 0
      %v1591 = vsel %vm1586, %v1549, 0
      %1593 = vmatprep.subr.mxu0 0.0
      %1594 = vmatpush1.msra.mxu0 %v1529
      %1595 = vmatprep.subr.mxu0 0.0
      %1596 = vmatpush1.msra.mxu0 %v1534
      %1597 = vmatprep.subr.mxu0 0.0
      %1598 = vmatpush1.msra.mxu0 0.0
      %1599 = vmatprep.subr.mxu0 0.0
      %1600 = vmatpush1.msra.mxu0 0.0
      %1601 = vmatprep.subr.mxu0 0.0
      %1602 = vmatpush1.msra.mxu0 0.0
      %1603 = vmatprep.subr.mxu0 0.0
      %1604 = vmatpush1.msra.mxu0 0.0
      %1605 = vmatprep.subr.mxu0 0.0
      %1606 = vmatpush1.msra.mxu0 0.0
      %1607 = vmatprep.subr.mxu0 0.0
      %1608 = vmatpush1.msra.mxu0 0.0
      %1609 = vmatprep.subr.mxu0 0.0
      %1610 = vmatpush1.msra.mxu0 0.0
      %1611 = vmatprep.subr.mxu0 0.0
      %1612 = vmatpush1.msra.mxu0 0.0
      %1613 = vmatprep.subr.mxu0 0.0
      %1614 = vmatpush1.msra.mxu0 0.0
      %1615 = vmatprep.subr.mxu0 0.0
      %1616 = vmatpush1.msra.mxu0 0.0
      %1617 = vmatprep.subr.mxu0 0.0
      %1618 = vmatpush1.msra.mxu0 0.0
      %1619 = vmatprep.subr.mxu0 0.0
      %1620 = vmatpush1.msra.mxu0 0.0
      %1621 = vmatprep.subr.mxu0 0.0
      %1622 = vmatpush1.msra.mxu0 0.0
      %1623 = vmatprep.subr.mxu0 0.0
      %1624 = vmatpush1.msra.mxu0 0.0
      %1625 = vmatprep.subr.mxu0 0.0
      %1626 = vmatpush1.msra.mxu0 0.0
      %1627 = vmatprep.subr.mxu0 0.0
      %1628 = vmatpush1.msra.mxu0 0.0
      %1629 = vmatprep.subr.mxu0 0.0
      %1630 = vmatpush1.msra.mxu0 0.0
      %1631 = vmatprep.subr.mxu0 0.0
      %1632 = vmatpush1.msra.mxu0 0.0
      %1633 = vmatprep.subr.mxu0 0.0
      %1634 = vmatpush1.msra.mxu0 0.0
      %1635 = vmatprep.subr.mxu0 0.0
      %1636 = vmatpush1.msra.mxu0 0.0
      %1637 = vmatprep.subr.mxu0 0.0
      %1638 = vmatpush1.msra.mxu0 0.0
      %1639 = vmatprep.subr.mxu0 0.0
      %1640 = vmatpush1.msra.mxu0 0.0
      %1641 = vmatprep.subr.mxu0 0.0
      %1642 = vmatpush1.msra.mxu0 0.0
      %1643 = vmatprep.subr.mxu0 0.0
      %1644 = vmatpush1.msra.mxu0 0.0
      %1645 = vmatprep.subr.mxu0 0.0
      %1646 = vmatpush1.msra.mxu0 0.0
      %1647 = vmatprep.subr.mxu0 0.0
      %1648 = vmatpush1.msra.mxu0 0.0
      %1649 = vmatprep.subr.mxu0 0.0
      %1650 = vmatpush1.msra.mxu0 0.0
      %1651 = vmatprep.subr.mxu0 0.0
      %1652 = vmatpush1.msra.mxu0 0.0
      %1653 = vmatprep.subr.mxu0 0.0
      %1654 = vmatpush1.msra.mxu0 0.0
      %1655 = vmatprep.subr.mxu0 0.0
      %1656 = vmatpush1.msra.mxu0 0.0
      %1657 = vmatprep.mubr.f32.mxu0 0.0
      %1658 = vmatmul.mubr.f32.gmra.mrb[0].mxu0 %v1588
      %v1659 = vpop.f32.mrb[0].mxu0
      %v1660 = vadd.f32 0.0, %v1659
      %v1661 = vpop.f32.mrb[0].mxu0
      %1662 = vmatprep.mubr.f32.mxu0 0.0
      %1663 = vmatmul.mubr.f32.gmra.mrb[0].mxu0 %v1591
      %v1664 = vpop.f32.mrb[0].mxu0
      %v1665 = vadd.f32 0.0, %v1664
      %v1666 = vpop.f32.mrb[0].mxu0
      %1667 = vdwg.mxu0
      %v1668 = vld [vmem:[%s1 + $0x160] sm:$0xff]
      %v1669 = vld [vmem:[%s1 + $0x168] sm:$0xff]
      %v1670 = vld [vmem:[%s1 + $0x170] sm:$0xff]
      %v1671 = vld [vmem:[%s1 + $0x178] sm:$0xff]
      %v1673 = vsel %vm161, %v1660, 0
      %v1676 = vsel %vm161, %v1665, 0
      %1678 = vmatprep.subr.mxu0 0.0
      %1679 = vmatpush1.msra.mxu0 %v1668
      %1680 = vmatprep.subr.mxu0 0.0
      %1681 = vmatpush1.msra.mxu0 %v1669
      %1682 = vmatprep.subr.mxu0 0.0
      %1683 = vmatpush1.msra.mxu0 %v1670
      %1684 = vmatprep.subr.mxu0 0.0
      %1685 = vmatpush1.msra.mxu0 %v1671
      %1686 = vmatprep.subr.mxu0 0.0
      %1687 = vmatpush1.msra.mxu0 0.0
      %1688 = vmatprep.subr.mxu0 0.0
      %1689 = vmatpush1.msra.mxu0 0.0
      %1690 = vmatprep.subr.mxu0 0.0
      %1691 = vmatpush1.msra.mxu0 0.0
      %1692 = vmatprep.subr.mxu0 0.0
      %1693 = vmatpush1.msra.mxu0 0.0
      %1694 = vmatprep.subr.mxu0 0.0
      %1695 = vmatpush1.msra.mxu0 0.0
      %1696 = vmatprep.subr.mxu0 0.0
      %1697 = vmatpush1.msra.mxu0 0.0
      %1698 = vmatprep.subr.mxu0 0.0
      %1699 = vmatpush1.msra.mxu0 0.0
      %1700 = vmatprep.subr.mxu0 0.0
      %1701 = vmatpush1.msra.mxu0 0.0
      %1702 = vmatprep.subr.mxu0 0.0
      %1703 = vmatpush1.msra.mxu0 0.0
      %1704 = vmatprep.subr.mxu0 0.0
      %1705 = vmatpush1.msra.mxu0 0.0
      %1706 = vmatprep.subr.mxu0 0.0
      %1707 = vmatpush1.msra.mxu0 0.0
      %1708 = vmatprep.subr.mxu0 0.0
      %1709 = vmatpush1.msra.mxu0 0.0
      %1710 = vmatprep.subr.mxu0 0.0
      %1711 = vmatpush1.msra.mxu0 0.0
      %1712 = vmatprep.subr.mxu0 0.0
      %1713 = vmatpush1.msra.mxu0 0.0
      %1714 = vmatprep.subr.mxu0 0.0
      %1715 = vmatpush1.msra.mxu0 0.0
      %1716 = vmatprep.subr.mxu0 0.0
      %1717 = vmatpush1.msra.mxu0 0.0
      %1718 = vmatprep.subr.mxu0 0.0
      %1719 = vmatpush1.msra.mxu0 0.0
      %1720 = vmatprep.subr.mxu0 0.0
      %1721 = vmatpush1.msra.mxu0 0.0
      %1722 = vmatprep.subr.mxu0 0.0
      %1723 = vmatpush1.msra.mxu0 0.0
      %1724 = vmatprep.subr.mxu0 0.0
      %1725 = vmatpush1.msra.mxu0 0.0
      %1726 = vmatprep.subr.mxu0 0.0
      %1727 = vmatpush1.msra.mxu0 0.0
      %1728 = vmatprep.subr.mxu0 0.0
      %1729 = vmatpush1.msra.mxu0 0.0
      %1730 = vmatprep.subr.mxu0 0.0
      %1731 = vmatpush1.msra.mxu0 0.0
      %1732 = vmatprep.subr.mxu0 0.0
      %1733 = vmatpush1.msra.mxu0 0.0
      %1734 = vmatprep.subr.mxu0 0.0
      %1735 = vmatpush1.msra.mxu0 0.0
      %1736 = vmatprep.subr.mxu0 0.0
      %1737 = vmatpush1.msra.mxu0 0.0
      %1738 = vmatprep.subr.mxu0 0.0
      %1739 = vmatpush1.msra.mxu0 0.0
      %1740 = vmatprep.subr.mxu0 0.0
      %1741 = vmatpush1.msra.mxu0 0.0
      %1742 = vmatprep.mubr.f32.mxu0 0.0
      %1743 = vmatmul.mubr.f32.gmra.mrb[0].mxu0 %v1673
      %v1744 = vpop.f32.mrb[0].mxu0
      %v1745 = vadd.f32 0.0, %v1744
      %v1746 = vpop.f32.mrb[0].mxu0
      %1747 = vmatprep.mubr.f32.mxu0 0.0
      %1748 = vmatmul.mubr.f32.gmra.mrb[0].mxu0 %v1676
      %v1749 = vpop.f32.mrb[0].mxu0
      %v1750 = vadd.f32 0.0, %v1749
      %v1751 = vpop.f32.mrb[0].mxu0
      %1752 = vdwg.mxu0
      %v1753 = vadd.f32 %v1585, %v1745
      %v1754 = vadd.f32 %v1585, %v1750
      %v1756 = vsel %vm1586, %v1556, 0
      %v1759 = vsel %vm1586, %v1557, 0
      %1761 = vmatprep.subr.mxu0 0.0
      %1762 = vmatpush1.msra.mxu0 %v1529
      %1763 = vmatprep.subr.mxu0 0.0
      %1764 = vmatpush1.msra.mxu0 %v1534
      %1765 = vmatprep.subr.mxu0 0.0
      %1766 = vmatpush1.msra.mxu0 0.0
      %1767 = vmatprep.subr.mxu0 0.0
      %1768 = vmatpush1.msra.mxu0 0.0
      %1769 = vmatprep.subr.mxu0 0.0
      %1770 = vmatpush1.msra.mxu0 0.0
      %1771 = vmatprep.subr.mxu0 0.0
      %1772 = vmatpush1.msra.mxu0 0.0
      %1773 = vmatprep.subr.mxu0 0.0
      %1774 = vmatpush1.msra.mxu0 0.0
      %1775 = vmatprep.subr.mxu0 0.0
      %1776 = vmatpush1.msra.mxu0 0.0
      %1777 = vmatprep.subr.mxu0 0.0
      %1778 = vmatpush1.msra.mxu0 0.0
      %1779 = vmatprep.subr.mxu0 0.0
      %1780 = vmatpush1.msra.mxu0 0.0
      %1781 = vmatprep.subr.mxu0 0.0
      %1782 = vmatpush1.msra.mxu0 0.0
      %1783 = vmatprep.subr.mxu0 0.0
      %1784 = vmatpush1.msra.mxu0 0.0
      %1785 = vmatprep.subr.mxu0 0.0
      %1786 = vmatpush1.msra.mxu0 0.0
      %1787 = vmatprep.subr.mxu0 0.0
      %1788 = vmatpush1.msra.mxu0 0.0
      %1789 = vmatprep.subr.mxu0 0.0
      %1790 = vmatpush1.msra.mxu0 0.0
      %1791 = vmatprep.subr.mxu0 0.0
      %1792 = vmatpush1.msra.mxu0 0.0
      %1793 = vmatprep.subr.mxu0 0.0
      %1794 = vmatpush1.msra.mxu0 0.0
      %1795 = vmatprep.subr.mxu0 0.0
      %1796 = vmatpush1.msra.mxu0 0.0
      %1797 = vmatprep.subr.mxu0 0.0
      %1798 = vmatpush1.msra.mxu0 0.0
      %1799 = vmatprep.subr.mxu0 0.0
      %1800 = vmatpush1.msra.mxu0 0.0
      %1801 = vmatprep.subr.mxu0 0.0
      %1802 = vmatpush1.msra.mxu0 0.0
      %1803 = vmatprep.subr.mxu0 0.0
      %1804 = vmatpush1.msra.mxu0 0.0
      %1805 = vmatprep.subr.mxu0 0.0
      %1806 = vmatpush1.msra.mxu0 0.0
      %1807 = vmatprep.subr.mxu0 0.0
      %1808 = vmatpush1.msra.mxu0 0.0
      %1809 = vmatprep.subr.mxu0 0.0
      %1810 = vmatpush1.msra.mxu0 0.0
      %1811 = vmatprep.subr.mxu0 0.0
      %1812 = vmatpush1.msra.mxu0 0.0
      %1813 = vmatprep.subr.mxu0 0.0
      %1814 = vmatpush1.msra.mxu0 0.0
      %1815 = vmatprep.subr.mxu0 0.0
      %1816 = vmatpush1.msra.mxu0 0.0
      %1817 = vmatprep.subr.mxu0 0.0
      %1818 = vmatpush1.msra.mxu0 0.0
      %1819 = vmatprep.subr.mxu0 0.0
      %1820 = vmatpush1.msra.mxu0 0.0
      %1821 = vmatprep.subr.mxu0 0.0
      %1822 = vmatpush1.msra.mxu0 0.0
      %1823 = vmatprep.subr.mxu0 0.0
      %1824 = vmatpush1.msra.mxu0 0.0
      %1825 = vmatprep.mubr.f32.mxu0 0.0
      %1826 = vmatmul.mubr.f32.gmra.mrb[0].mxu0 %v1756
      %v1827 = vpop.f32.mrb[0].mxu0
      %v1828 = vadd.f32 0.0, %v1827
      %v1829 = vpop.f32.mrb[0].mxu0
      %1830 = vmatprep.mubr.f32.mxu0 0.0
      %1831 = vmatmul.mubr.f32.gmra.mrb[0].mxu0 %v1759
      %v1832 = vpop.f32.mrb[0].mxu0
      %v1833 = vadd.f32 0.0, %v1832
      %v1834 = vpop.f32.mrb[0].mxu0
      %1835 = vdwg.mxu0
      %v1836 = vld [vmem:[%s1 + $0x180] sm:$0xff]
      %v1837 = vld [vmem:[%s1 + $0x188] sm:$0xff]
      %v1838 = vld [vmem:[%s1 + $0x190] sm:$0xff]
      %v1839 = vld [vmem:[%s1 + $0x198] sm:$0xff]
      %v1841 = vsel %vm161, %v1828, 0
      %v1844 = vsel %vm161, %v1833, 0
      %1846 = vmatprep.subr.mxu0 0.0
      %1847 = vmatpush1.msra.mxu0 %v1836
      %1848 = vmatprep.subr.mxu0 0.0
      %1849 = vmatpush1.msra.mxu0 %v1837
      %1850 = vmatprep.subr.mxu0 0.0
      %1851 = vmatpush1.msra.mxu0 %v1838
      %1852 = vmatprep.subr.mxu0 0.0
      %1853 = vmatpush1.msra.mxu0 %v1839
      %1854 = vmatprep.subr.mxu0 0.0
      %1855 = vmatpush1.msra.mxu0 0.0
      %1856 = vmatprep.subr.mxu0 0.0
      %1857 = vmatpush1.msra.mxu0 0.0
      %1858 = vmatprep.subr.mxu0 0.0
      %1859 = vmatpush1.msra.mxu0 0.0
      %1860 = vmatprep.subr.mxu0 0.0
      %1861 = vmatpush1.msra.mxu0 0.0
      %1862 = vmatprep.subr.mxu0 0.0
      %1863 = vmatpush1.msra.mxu0 0.0
      %1864 = vmatprep.subr.mxu0 0.0
      %1865 = vmatpush1.msra.mxu0 0.0
      %1866 = vmatprep.subr.mxu0 0.0
      %1867 = vmatpush1.msra.mxu0 0.0
      %1868 = vmatprep.subr.mxu0 0.0
      %1869 = vmatpush1.msra.mxu0 0.0
      %1870 = vmatprep.subr.mxu0 0.0
      %1871 = vmatpush1.msra.mxu0 0.0
      %1872 = vmatprep.subr.mxu0 0.0
      %1873 = vmatpush1.msra.mxu0 0.0
      %1874 = vmatprep.subr.mxu0 0.0
      %1875 = vmatpush1.msra.mxu0 0.0
      %1876 = vmatprep.subr.mxu0 0.0
      %1877 = vmatpush1.msra.mxu0 0.0
      %1878 = vmatprep.subr.mxu0 0.0
      %1879 = vmatpush1.msra.mxu0 0.0
      %1880 = vmatprep.subr.mxu0 0.0
      %1881 = vmatpush1.msra.mxu0 0.0
      %1882 = vmatprep.subr.mxu0 0.0
      %1883 = vmatpush1.msra.mxu0 0.0
      %1884 = vmatprep.subr.mxu0 0.0
      %1885 = vmatpush1.msra.mxu0 0.0
      %1886 = vmatprep.subr.mxu0 0.0
      %1887 = vmatpush1.msra.mxu0 0.0
      %1888 = vmatprep.subr.mxu0 0.0
      %1889 = vmatpush1.msra.mxu0 0.0
      %1890 = vmatprep.subr.mxu0 0.0
      %1891 = vmatpush1.msra.mxu0 0.0
      %1892 = vmatprep.subr.mxu0 0.0
      %1893 = vmatpush1.msra.mxu0 0.0
      %1894 = vmatprep.subr.mxu0 0.0
      %1895 = vmatpush1.msra.mxu0 0.0
      %1896 = vmatprep.subr.mxu0 0.0
      %1897 = vmatpush1.msra.mxu0 0.0
      %1898 = vmatprep.subr.mxu0 0.0
      %1899 = vmatpush1.msra.mxu0 0.0
      %1900 = vmatprep.subr.mxu0 0.0
      %1901 = vmatpush1.msra.mxu0 0.0
      %1902 = vmatprep.subr.mxu0 0.0
      %1903 = vmatpush1.msra.mxu0 0.0
      %1904 = vmatprep.subr.mxu0 0.0
      %1905 = vmatpush1.msra.mxu0 0.0
      %1906 = vmatprep.subr.mxu0 0.0
      %1907 = vmatpush1.msra.mxu0 0.0
      %1908 = vmatprep.subr.mxu0 0.0
      %1909 = vmatpush1.msra.mxu0 0.0
      %1910 = vmatprep.mubr.f32.mxu0 0.0
      %1911 = vmatmul.mubr.f32.gmra.mrb[0].mxu0 %v1841
      %v1912 = vpop.f32.mrb[0].mxu0
      %v1913 = vadd.f32 0.0, %v1912
      %v1914 = vpop.f32.mrb[0].mxu0
      %1915 = vmatprep.mubr.f32.mxu0 0.0
      %1916 = vmatmul.mubr.f32.gmra.mrb[0].mxu0 %v1844
      %v1917 = vpop.f32.mrb[0].mxu0
      %v1918 = vadd.f32 0.0, %v1917
      %v1919 = vpop.f32.mrb[0].mxu0
      %1920 = vdwg.mxu0
      %v1921 = vadd.f32 %v1753, %v1913
      %v1922 = vadd.f32 %v1754, %v1918
      %v1924 = vsel %vm1586, %v1562, 0
      %v1927 = vsel %vm1586, %v1563, 0
      %1929 = vmatprep.subr.mxu0 0.0
      %1930 = vmatpush1.msra.mxu0 %v1529
      %1931 = vmatprep.subr.mxu0 0.0
      %1932 = vmatpush1.msra.mxu0 %v1534
      %1933 = vmatprep.subr.mxu0 0.0
      %1934 = vmatpush1.msra.mxu0 0.0
      %1935 = vmatprep.subr.mxu0 0.0
      %1936 = vmatpush1.msra.mxu0 0.0
      %1937 = vmatprep.subr.mxu0 0.0
      %1938 = vmatpush1.msra.mxu0 0.0
      %1939 = vmatprep.subr.mxu0 0.0
      %1940 = vmatpush1.msra.mxu0 0.0
      %1941 = vmatprep.subr.mxu0 0.0
      %1942 = vmatpush1.msra.mxu0 0.0
      %1943 = vmatprep.subr.mxu0 0.0
      %1944 = vmatpush1.msra.mxu0 0.0
      %1945 = vmatprep.subr.mxu0 0.0
      %1946 = vmatpush1.msra.mxu0 0.0
      %1947 = vmatprep.subr.mxu0 0.0
      %1948 = vmatpush1.msra.mxu0 0.0
      %1949 = vmatprep.subr.mxu0 0.0
      %1950 = vmatpush1.msra.mxu0 0.0
      %1951 = vmatprep.subr.mxu0 0.0
      %1952 = vmatpush1.msra.mxu0 0.0
      %1953 = vmatprep.subr.mxu0 0.0
      %1954 = vmatpush1.msra.mxu0 0.0
      %1955 = vmatprep.subr.mxu0 0.0
      %1956 = vmatpush1.msra.mxu0 0.0
      %1957 = vmatprep.subr.mxu0 0.0
      %1958 = vmatpush1.msra.mxu0 0.0
      %1959 = vmatprep.subr.mxu0 0.0
      %1960 = vmatpush1.msra.mxu0 0.0
      %1961 = vmatprep.subr.mxu0 0.0
      %1962 = vmatpush1.msra.mxu0 0.0
      %1963 = vmatprep.subr.mxu0 0.0
      %1964 = vmatpush1.msra.mxu0 0.0
      %1965 = vmatprep.subr.mxu0 0.0
      %1966 = vmatpush1.msra.mxu0 0.0
      %1967 = vmatprep.subr.mxu0 0.0
      %1968 = vmatpush1.msra.mxu0 0.0
      %1969 = vmatprep.subr.mxu0 0.0
      %1970 = vmatpush1.msra.mxu0 0.0
      %1971 = vmatprep.subr.mxu0 0.0
      %1972 = vmatpush1.msra.mxu0 0.0
      %1973 = vmatprep.subr.mxu0 0.0
      %1974 = vmatpush1.msra.mxu0 0.0
      %1975 = vmatprep.subr.mxu0 0.0
      %1976 = vmatpush1.msra.mxu0 0.0
      %1977 = vmatprep.subr.mxu0 0.0
      %1978 = vmatpush1.msra.mxu0 0.0
      %1979 = vmatprep.subr.mxu0 0.0
      %1980 = vmatpush1.msra.mxu0 0.0
      %1981 = vmatprep.subr.mxu0 0.0
      %1982 = vmatpush1.msra.mxu0 0.0
      %1983 = vmatprep.subr.mxu0 0.0
      %1984 = vmatpush1.msra.mxu0 0.0
      %1985 = vmatprep.subr.mxu0 0.0
      %1986 = vmatpush1.msra.mxu0 0.0
      %1987 = vmatprep.subr.mxu0 0.0
      %1988 = vmatpush1.msra.mxu0 0.0
      %1989 = vmatprep.subr.mxu0 0.0
      %1990 = vmatpush1.msra.mxu0 0.0
      %1991 = vmatprep.subr.mxu0 0.0
      %1992 = vmatpush1.msra.mxu0 0.0
      %1993 = vmatprep.mubr.f32.mxu0 0.0
      %1994 = vmatmul.mubr.f32.gmra.mrb[0].mxu0 %v1924
      %v1995 = vpop.f32.mrb[0].mxu0
      %v1996 = vadd.f32 0.0, %v1995
      %v1997 = vpop.f32.mrb[0].mxu0
      %1998 = vmatprep.mubr.f32.mxu0 0.0
      %1999 = vmatmul.mubr.f32.gmra.mrb[0].mxu0 %v1927
      %v2000 = vpop.f32.mrb[0].mxu0
      %v2001 = vadd.f32 0.0, %v2000
      %v2002 = vpop.f32.mrb[0].mxu0
      %2003 = vdwg.mxu0
      %v2004 = vld [vmem:[%s1 + $0x1a0] sm:$0xff]
      %v2005 = vld [vmem:[%s1 + $0x1a8] sm:$0xff]
      %v2006 = vld [vmem:[%s1 + $0x1b0] sm:$0xff]
      %v2007 = vld [vmem:[%s1 + $0x1b8] sm:$0xff]
      %v2009 = vsel %vm161, %v1996, 0
      %v2012 = vsel %vm161, %v2001, 0
      %2014 = vmatprep.subr.mxu0 0.0
      %2015 = vmatpush1.msra.mxu0 %v2004
      %2016 = vmatprep.subr.mxu0 0.0
      %2017 = vmatpush1.msra.mxu0 %v2005
      %2018 = vmatprep.subr.mxu0 0.0
      %2019 = vmatpush1.msra.mxu0 %v2006
      %2020 = vmatprep.subr.mxu0 0.0
      %2021 = vmatpush1.msra.mxu0 %v2007
      %2022 = vmatprep.subr.mxu0 0.0
      %2023 = vmatpush1.msra.mxu0 0.0
      %2024 = vmatprep.subr.mxu0 0.0
      %2025 = vmatpush1.msra.mxu0 0.0
      %2026 = vmatprep.subr.mxu0 0.0
      %2027 = vmatpush1.msra.mxu0 0.0
      %2028 = vmatprep.subr.mxu0 0.0
      %2029 = vmatpush1.msra.mxu0 0.0
      %2030 = vmatprep.subr.mxu0 0.0
      %2031 = vmatpush1.msra.mxu0 0.0
      %2032 = vmatprep.subr.mxu0 0.0
      %2033 = vmatpush1.msra.mxu0 0.0
      %2034 = vmatprep.subr.mxu0 0.0
      %2035 = vmatpush1.msra.mxu0 0.0
      %2036 = vmatprep.subr.mxu0 0.0
      %2037 = vmatpush1.msra.mxu0 0.0
      %2038 = vmatprep.subr.mxu0 0.0
      %2039 = vmatpush1.msra.mxu0 0.0
      %2040 = vmatprep.subr.mxu0 0.0
      %2041 = vmatpush1.msra.mxu0 0.0
      %2042 = vmatprep.subr.mxu0 0.0
      %2043 = vmatpush1.msra.mxu0 0.0
      %2044 = vmatprep.subr.mxu0 0.0
      %2045 = vmatpush1.msra.mxu0 0.0
      %2046 = vmatprep.subr.mxu0 0.0
      %2047 = vmatpush1.msra.mxu0 0.0
      %2048 = vmatprep.subr.mxu0 0.0
      %2049 = vmatpush1.msra.mxu0 0.0
      %2050 = vmatprep.subr.mxu0 0.0
      %2051 = vmatpush1.msra.mxu0 0.0
      %2052 = vmatprep.subr.mxu0 0.0
      %2053 = vmatpush1.msra.mxu0 0.0
      %2054 = vmatprep.subr.mxu0 0.0
      %2055 = vmatpush1.msra.mxu0 0.0
      %2056 = vmatprep.subr.mxu0 0.0
      %2057 = vmatpush1.msra.mxu0 0.0
      %2058 = vmatprep.subr.mxu0 0.0
      %2059 = vmatpush1.msra.mxu0 0.0
      %2060 = vmatprep.subr.mxu0 0.0
      %2061 = vmatpush1.msra.mxu0 0.0
      %2062 = vmatprep.subr.mxu0 0.0
      %2063 = vmatpush1.msra.mxu0 0.0
      %2064 = vmatprep.subr.mxu0 0.0
      %2065 = vmatpush1.msra.mxu0 0.0
      %2066 = vmatprep.subr.mxu0 0.0
      %2067 = vmatpush1.msra.mxu0 0.0
      %2068 = vmatprep.subr.mxu0 0.0
      %2069 = vmatpush1.msra.mxu0 0.0
      %2070 = vmatprep.subr.mxu0 0.0
      %2071 = vmatpush1.msra.mxu0 0.0
      %2072 = vmatprep.subr.mxu0 0.0
      %2073 = vmatpush1.msra.mxu0 0.0
      %2074 = vmatprep.subr.mxu0 0.0
      %2075 = vmatpush1.msra.mxu0 0.0
      %2076 = vmatprep.subr.mxu0 0.0
      %2077 = vmatpush1.msra.mxu0 0.0
      %2078 = vmatprep.mubr.f32.mxu0 0.0
      %2079 = vmatmul.mubr.f32.gmra.mrb[0].mxu0 %v2009
      %v2080 = vpop.f32.mrb[0].mxu0
      %v2081 = vadd.f32 0.0, %v2080
      %v2082 = vpop.f32.mrb[0].mxu0
      %2083 = vmatprep.mubr.f32.mxu0 0.0
      %2084 = vmatmul.mubr.f32.gmra.mrb[0].mxu0 %v2012
      %v2085 = vpop.f32.mrb[0].mxu0
      %v2086 = vadd.f32 0.0, %v2085
      %v2087 = vpop.f32.mrb[0].mxu0
      %2088 = vdwg.mxu0
      %v2089 = vadd.f32 %v1921, %v2081
      %v2090 = vadd.f32 %v1922, %v2086
      %v2092 = vsel %vm1586, %v1570, 0
      %v2095 = vsel %vm1586, %v1571, 0
      %2097 = vmatprep.subr.mxu0 0.0
      %2098 = vmatpush1.msra.mxu0 %v1529
      %2099 = vmatprep.subr.mxu0 0.0
      %2100 = vmatpush1.msra.mxu0 %v1534
      %2101 = vmatprep.subr.mxu0 0.0
      %2102 = vmatpush1.msra.mxu0 0.0
      %2103 = vmatprep.subr.mxu0 0.0
      %2104 = vmatpush1.msra.mxu0 0.0
      %2105 = vmatprep.subr.mxu0 0.0
      %2106 = vmatpush1.msra.mxu0 0.0
      %2107 = vmatprep.subr.mxu0 0.0
      %2108 = vmatpush1.msra.mxu0 0.0
      %2109 = vmatprep.subr.mxu0 0.0
      %2110 = vmatpush1.msra.mxu0 0.0
      %2111 = vmatprep.subr.mxu0 0.0
      %2112 = vmatpush1.msra.mxu0 0.0
      %2113 = vmatprep.subr.mxu0 0.0
      %2114 = vmatpush1.msra.mxu0 0.0
      %2115 = vmatprep.subr.mxu0 0.0
      %2116 = vmatpush1.msra.mxu0 0.0
      %2117 = vmatprep.subr.mxu0 0.0
      %2118 = vmatpush1.msra.mxu0 0.0
      %2119 = vmatprep.subr.mxu0 0.0
      %2120 = vmatpush1.msra.mxu0 0.0
      %2121 = vmatprep.subr.mxu0 0.0
      %2122 = vmatpush1.msra.mxu0 0.0
      %2123 = vmatprep.subr.mxu0 0.0
      %2124 = vmatpush1.msra.mxu0 0.0
      %2125 = vmatprep.subr.mxu0 0.0
      %2126 = vmatpush1.msra.mxu0 0.0
      %2127 = vmatprep.subr.mxu0 0.0
      %2128 = vmatpush1.msra.mxu0 0.0
      %2129 = vmatprep.subr.mxu0 0.0
      %2130 = vmatpush1.msra.mxu0 0.0
      %2131 = vmatprep.subr.mxu0 0.0
      %2132 = vmatpush1.msra.mxu0 0.0
      %2133 = vmatprep.subr.mxu0 0.0
      %2134 = vmatpush1.msra.mxu0 0.0
      %2135 = vmatprep.subr.mxu0 0.0
      %2136 = vmatpush1.msra.mxu0 0.0
      %2137 = vmatprep.subr.mxu0 0.0
      %2138 = vmatpush1.msra.mxu0 0.0
      %2139 = vmatprep.subr.mxu0 0.0
      %2140 = vmatpush1.msra.mxu0 0.0
      %2141 = vmatprep.subr.mxu0 0.0
      %2142 = vmatpush1.msra.mxu0 0.0
      %2143 = vmatprep.subr.mxu0 0.0
      %2144 = vmatpush1.msra.mxu0 0.0
      %2145 = vmatprep.subr.mxu0 0.0
      %2146 = vmatpush1.msra.mxu0 0.0
      %2147 = vmatprep.subr.mxu0 0.0
      %2148 = vmatpush1.msra.mxu0 0.0
      %2149 = vmatprep.subr.mxu0 0.0
      %2150 = vmatpush1.msra.mxu0 0.0
      %2151 = vmatprep.subr.mxu0 0.0
      %2152 = vmatpush1.msra.mxu0 0.0
      %2153 = vmatprep.subr.mxu0 0.0
      %2154 = vmatpush1.msra.mxu0 0.0
      %2155 = vmatprep.subr.mxu0 0.0
      %2156 = vmatpush1.msra.mxu0 0.0
      %2157 = vmatprep.subr.mxu0 0.0
      %2158 = vmatpush1.msra.mxu0 0.0
      %2159 = vmatprep.subr.mxu0 0.0
      %2160 = vmatpush1.msra.mxu0 0.0
      %2161 = vmatprep.mubr.f32.mxu0 0.0
      %2162 = vmatmul.mubr.f32.gmra.mrb[0].mxu0 %v2092
      %v2163 = vpop.f32.mrb[0].mxu0
      %v2164 = vadd.f32 0.0, %v2163
      %v2165 = vpop.f32.mrb[0].mxu0
      %2166 = vmatprep.mubr.f32.mxu0 0.0
      %2167 = vmatmul.mubr.f32.gmra.mrb[0].mxu0 %v2095
      %v2168 = vpop.f32.mrb[0].mxu0
      %v2169 = vadd.f32 0.0, %v2168
      %v2170 = vpop.f32.mrb[0].mxu0
      %2171 = vdwg.mxu0
      %v2172 = vld [vmem:[%s1 + $0x1c0] sm:$0xff]
      %v2173 = vld [vmem:[%s1 + $0x1c8] sm:$0xff]
      %v2174 = vld [vmem:[%s1 + $0x1d0] sm:$0xff]
      %v2175 = vld [vmem:[%s1 + $0x1d8] sm:$0xff]
      %v2177 = vsel %vm161, %v2164, 0
      %v2180 = vsel %vm161, %v2169, 0
      %2182 = vmatprep.subr.mxu0 0.0
      %2183 = vmatpush1.msra.mxu0 %v2172
      %2184 = vmatprep.subr.mxu0 0.0
      %2185 = vmatpush1.msra.mxu0 %v2173
      %2186 = vmatprep.subr.mxu0 0.0
      %2187 = vmatpush1.msra.mxu0 %v2174
      %2188 = vmatprep.subr.mxu0 0.0
      %2189 = vmatpush1.msra.mxu0 %v2175
      %2190 = vmatprep.subr.mxu0 0.0
      %2191 = vmatpush1.msra.mxu0 0.0
      %2192 = vmatprep.subr.mxu0 0.0
      %2193 = vmatpush1.msra.mxu0 0.0
      %2194 = vmatprep.subr.mxu0 0.0
      %2195 = vmatpush1.msra.mxu0 0.0
      %2196 = vmatprep.subr.mxu0 0.0
      %2197 = vmatpush1.msra.mxu0 0.0
      %2198 = vmatprep.subr.mxu0 0.0
      %2199 = vmatpush1.msra.mxu0 0.0
      %2200 = vmatprep.subr.mxu0 0.0
      %2201 = vmatpush1.msra.mxu0 0.0
      %2202 = vmatprep.subr.mxu0 0.0
      %2203 = vmatpush1.msra.mxu0 0.0
      %2204 = vmatprep.subr.mxu0 0.0
      %2205 = vmatpush1.msra.mxu0 0.0
      %2206 = vmatprep.subr.mxu0 0.0
      %2207 = vmatpush1.msra.mxu0 0.0
      %2208 = vmatprep.subr.mxu0 0.0
      %2209 = vmatpush1.msra.mxu0 0.0
      %2210 = vmatprep.subr.mxu0 0.0
      %2211 = vmatpush1.msra.mxu0 0.0
      %2212 = vmatprep.subr.mxu0 0.0
      %2213 = vmatpush1.msra.mxu0 0.0
      %2214 = vmatprep.subr.mxu0 0.0
      %2215 = vmatpush1.msra.mxu0 0.0
      %2216 = vmatprep.subr.mxu0 0.0
      %2217 = vmatpush1.msra.mxu0 0.0
      %2218 = vmatprep.subr.mxu0 0.0
      %2219 = vmatpush1.msra.mxu0 0.0
      %2220 = vmatprep.subr.mxu0 0.0
      %2221 = vmatpush1.msra.mxu0 0.0
      %2222 = vmatprep.subr.mxu0 0.0
      %2223 = vmatpush1.msra.mxu0 0.0
      %2224 = vmatprep.subr.mxu0 0.0
      %2225 = vmatpush1.msra.mxu0 0.0
      %2226 = vmatprep.subr.mxu0 0.0
      %2227 = vmatpush1.msra.mxu0 0.0
      %2228 = vmatprep.subr.mxu0 0.0
      %2229 = vmatpush1.msra.mxu0 0.0
      %2230 = vmatprep.subr.mxu0 0.0
      %2231 = vmatpush1.msra.mxu0 0.0
      %2232 = vmatprep.subr.mxu0 0.0
      %2233 = vmatpush1.msra.mxu0 0.0
      %2234 = vmatprep.subr.mxu0 0.0
      %2235 = vmatpush1.msra.mxu0 0.0
      %2236 = vmatprep.subr.mxu0 0.0
      %2237 = vmatpush1.msra.mxu0 0.0
      %2238 = vmatprep.subr.mxu0 0.0
      %2239 = vmatpush1.msra.mxu0 0.0
      %2240 = vmatprep.subr.mxu0 0.0
      %2241 = vmatpush1.msra.mxu0 0.0
      %2242 = vmatprep.subr.mxu0 0.0
      %2243 = vmatpush1.msra.mxu0 0.0
      %2244 = vmatprep.subr.mxu0 0.0
      %2245 = vmatpush1.msra.mxu0 0.0
      %2246 = vmatprep.mubr.f32.mxu0 0.0
      %2247 = vmatmul.mubr.f32.gmra.mrb[0].mxu0 %v2177
      %v2248 = vpop.f32.mrb[0].mxu0
      %v2249 = vadd.f32 0.0, %v2248
      %v2250 = vpop.f32.mrb[0].mxu0
      %2251 = vmatprep.mubr.f32.mxu0 0.0
      %2252 = vmatmul.mubr.f32.gmra.mrb[0].mxu0 %v2180
      %v2253 = vpop.f32.mrb[0].mxu0
      %v2254 = vadd.f32 0.0, %v2253
      %v2255 = vpop.f32.mrb[0].mxu0
      %2256 = vdwg.mxu0
      %v2257 = vadd.f32 %v2089, %v2249
      %v2258 = vadd.f32 %v2090, %v2254
      %v2260 = vsel %vm1586, %v1578, 0
      %v2263 = vsel %vm1586, %v1579, 0
      %2265 = vmatprep.subr.mxu0 0.0
      %2266 = vmatpush1.msra.mxu0 %v1529
      %2267 = vmatprep.subr.mxu0 0.0
      %2268 = vmatpush1.msra.mxu0 %v1534
      %2269 = vmatprep.subr.mxu0 0.0
      %2270 = vmatpush1.msra.mxu0 0.0
      %2271 = vmatprep.subr.mxu0 0.0
      %2272 = vmatpush1.msra.mxu0 0.0
      %2273 = vmatprep.subr.mxu0 0.0
      %2274 = vmatpush1.msra.mxu0 0.0
      %2275 = vmatprep.subr.mxu0 0.0
      %2276 = vmatpush1.msra.mxu0 0.0
      %2277 = vmatprep.subr.mxu0 0.0
      %2278 = vmatpush1.msra.mxu0 0.0
      %2279 = vmatprep.subr.mxu0 0.0
      %2280 = vmatpush1.msra.mxu0 0.0
      %2281 = vmatprep.subr.mxu0 0.0
      %2282 = vmatpush1.msra.mxu0 0.0
      %2283 = vmatprep.subr.mxu0 0.0
      %2284 = vmatpush1.msra.mxu0 0.0
      %2285 = vmatprep.subr.mxu0 0.0
      %2286 = vmatpush1.msra.mxu0 0.0
      %2287 = vmatprep.subr.mxu0 0.0
      %2288 = vmatpush1.msra.mxu0 0.0
      %2289 = vmatprep.subr.mxu0 0.0
      %2290 = vmatpush1.msra.mxu0 0.0
      %2291 = vmatprep.subr.mxu0 0.0
      %2292 = vmatpush1.msra.mxu0 0.0
      %2293 = vmatprep.subr.mxu0 0.0
      %2294 = vmatpush1.msra.mxu0 0.0
      %2295 = vmatprep.subr.mxu0 0.0
      %2296 = vmatpush1.msra.mxu0 0.0
      %2297 = vmatprep.subr.mxu0 0.0
      %2298 = vmatpush1.msra.mxu0 0.0
      %2299 = vmatprep.subr.mxu0 0.0
      %2300 = vmatpush1.msra.mxu0 0.0
      %2301 = vmatprep.subr.mxu0 0.0
      %2302 = vmatpush1.msra.mxu0 0.0
      %2303 = vmatprep.subr.mxu0 0.0
      %2304 = vmatpush1.msra.mxu0 0.0
      %2305 = vmatprep.subr.mxu0 0.0
      %2306 = vmatpush1.msra.mxu0 0.0
      %2307 = vmatprep.subr.mxu0 0.0
      %2308 = vmatpush1.msra.mxu0 0.0
      %2309 = vmatprep.subr.mxu0 0.0
      %2310 = vmatpush1.msra.mxu0 0.0
      %2311 = vmatprep.subr.mxu0 0.0
      %2312 = vmatpush1.msra.mxu0 0.0
      %2313 = vmatprep.subr.mxu0 0.0
      %2314 = vmatpush1.msra.mxu0 0.0
      %2315 = vmatprep.subr.mxu0 0.0
      %2316 = vmatpush1.msra.mxu0 0.0
      %2317 = vmatprep.subr.mxu0 0.0
      %2318 = vmatpush1.msra.mxu0 0.0
      %2319 = vmatprep.subr.mxu0 0.0
      %2320 = vmatpush1.msra.mxu0 0.0
      %2321 = vmatprep.subr.mxu0 0.0
      %2322 = vmatpush1.msra.mxu0 0.0
      %2323 = vmatprep.subr.mxu0 0.0
      %2324 = vmatpush1.msra.mxu0 0.0
      %2325 = vmatprep.subr.mxu0 0.0
      %2326 = vmatpush1.msra.mxu0 0.0
      %2327 = vmatprep.subr.mxu0 0.0
      %2328 = vmatpush1.msra.mxu0 0.0
      %2329 = vmatprep.mubr.f32.mxu0 0.0
      %2330 = vmatmul.mubr.f32.gmra.mrb[0].mxu0 %v2260
      %v2331 = vpop.f32.mrb[0].mxu0
      %v2332 = vadd.f32 0.0, %v2331
      %v2333 = vpop.f32.mrb[0].mxu0
      %2334 = vmatprep.mubr.f32.mxu0 0.0
      %2335 = vmatmul.mubr.f32.gmra.mrb[0].mxu0 %v2263
      %v2336 = vpop.f32.mrb[0].mxu0
      %v2337 = vadd.f32 0.0, %v2336
      %v2338 = vpop.f32.mrb[0].mxu0
      %2339 = vdwg.mxu0
      %v2340 = vld [vmem:[%s1 + $0x1e0] sm:$0xff]
      %v2341 = vld [vmem:[%s1 + $0x1e8] sm:$0xff]
      %v2342 = vld [vmem:[%s1 + $0x1f0] sm:$0xff]
      %v2343 = vld [vmem:[%s1 + $0x1f8] sm:$0xff]
      %v2345 = vsel %vm161, %v2332, 0
      %v2348 = vsel %vm161, %v2337, 0
      %2350 = vmatprep.subr.mxu0 0.0
      %2351 = vmatpush1.msra.mxu0 %v2340
      %2352 = vmatprep.subr.mxu0 0.0
      %2353 = vmatpush1.msra.mxu0 %v2341
      %2354 = vmatprep.subr.mxu0 0.0
      %2355 = vmatpush1.msra.mxu0 %v2342
      %2356 = vmatprep.subr.mxu0 0.0
      %2357 = vmatpush1.msra.mxu0 %v2343
      %2358 = vmatprep.subr.mxu0 0.0
      %2359 = vmatpush1.msra.mxu0 0.0
      %2360 = vmatprep.subr.mxu0 0.0
      %2361 = vmatpush1.msra.mxu0 0.0
      %2362 = vmatprep.subr.mxu0 0.0
      %2363 = vmatpush1.msra.mxu0 0.0
      %2364 = vmatprep.subr.mxu0 0.0
      %2365 = vmatpush1.msra.mxu0 0.0
      %2366 = vmatprep.subr.mxu0 0.0
      %2367 = vmatpush1.msra.mxu0 0.0
      %2368 = vmatprep.subr.mxu0 0.0
      %2369 = vmatpush1.msra.mxu0 0.0
      %2370 = vmatprep.subr.mxu0 0.0
      %2371 = vmatpush1.msra.mxu0 0.0
      %2372 = vmatprep.subr.mxu0 0.0
      %2373 = vmatpush1.msra.mxu0 0.0
      %2374 = vmatprep.subr.mxu0 0.0
      %2375 = vmatpush1.msra.mxu0 0.0
      %2376 = vmatprep.subr.mxu0 0.0
      %2377 = vmatpush1.msra.mxu0 0.0
      %2378 = vmatprep.subr.mxu0 0.0
      %2379 = vmatpush1.msra.mxu0 0.0
      %2380 = vmatprep.subr.mxu0 0.0
      %2381 = vmatpush1.msra.mxu0 0.0
      %2382 = vmatprep.subr.mxu0 0.0
      %2383 = vmatpush1.msra.mxu0 0.0
      %2384 = vmatprep.subr.mxu0 0.0
      %2385 = vmatpush1.msra.mxu0 0.0
      %2386 = vmatprep.subr.mxu0 0.0
      %2387 = vmatpush1.msra.mxu0 0.0
      %2388 = vmatprep.subr.mxu0 0.0
      %2389 = vmatpush1.msra.mxu0 0.0
      %2390 = vmatprep.subr.mxu0 0.0
      %2391 = vmatpush1.msra.mxu0 0.0
      %2392 = vmatprep.subr.mxu0 0.0
      %2393 = vmatpush1.msra.mxu0 0.0
      %2394 = vmatprep.subr.mxu0 0.0
      %2395 = vmatpush1.msra.mxu0 0.0
      %2396 = vmatprep.subr.mxu0 0.0
      %2397 = vmatpush1.msra.mxu0 0.0
      %2398 = vmatprep.subr.mxu0 0.0
      %2399 = vmatpush1.msra.mxu0 0.0
      %2400 = vmatprep.subr.mxu0 0.0
      %2401 = vmatpush1.msra.mxu0 0.0
      %2402 = vmatprep.subr.mxu0 0.0
      %2403 = vmatpush1.msra.mxu0 0.0
      %2404 = vmatprep.subr.mxu0 0.0
      %2405 = vmatpush1.msra.mxu0 0.0
      %2406 = vmatprep.subr.mxu0 0.0
      %2407 = vmatpush1.msra.mxu0 0.0
      %2408 = vmatprep.subr.mxu0 0.0
      %2409 = vmatpush1.msra.mxu0 0.0
      %2410 = vmatprep.subr.mxu0 0.0
      %2411 = vmatpush1.msra.mxu0 0.0
      %2412 = vmatprep.subr.mxu0 0.0
      %2413 = vmatpush1.msra.mxu0 0.0
      %2414 = vmatprep.mubr.f32.mxu0 0.0
      %2415 = vmatmul.mubr.f32.gmra.mrb[0].mxu0 %v2345
      %v2416 = vpop.f32.mrb[0].mxu0
      %v2417 = vadd.f32 0.0, %v2416
      %v2418 = vpop.f32.mrb[0].mxu0
      %2419 = vmatprep.mubr.f32.mxu0 0.0
      %2420 = vmatmul.mubr.f32.gmra.mrb[0].mxu0 %v2348
      %v2421 = vpop.f32.mrb[0].mxu0
      %v2422 = vadd.f32 0.0, %v2421
      %v2423 = vpop.f32.mrb[0].mxu0
      %2424 = vdwg.mxu0
      %v2425 = vadd.f32 %v2257, %v2417
      %v2426 = vadd.f32 %v2258, %v2422
      %v2427 = vtanh.pop %v2425
      %v2428 = vtanh.pop %v2426
      %v2429 = vld [vmem:[%s1 + $0x4d8] sm:$0x1]
      %v2430 = vlaneseq
      %v2431 = vshrl.u32 %v2430, 7
      %v2432 = vsub.s32 0, %v2431
      %v2433 = vrot.slane %v2429, %v2432
      %v2434 = vadd.f32 %v2433, 0.0
      %2435 = vmatprep.subr.mxu0 0.0
      %2436 = vmatpush1.msra.mxu0 %v2427
      %2437 = vmatprep.subr.mxu0 0.0
      %2438 = vmatpush1.msra.mxu0 %v2428
      %2439 = vmatprep.subr.mxu0 0.0
      %2440 = vmatpush1.msra.mxu0 0.0
      %2441 = vmatprep.subr.mxu0 0.0
      %2442 = vmatpush1.msra.mxu0 0.0
      %2443 = vmatprep.subr.mxu0 0.0
      %2444 = vmatpush1.msra.mxu0 0.0
      %2445 = vmatprep.subr.mxu0 0.0
      %2446 = vmatpush1.msra.mxu0 0.0
      %2447 = vmatprep.subr.mxu0 0.0
      %2448 = vmatpush1.msra.mxu0 0.0
      %2449 = vmatprep.subr.mxu0 0.0
      %2450 = vmatpush1.msra.mxu0 0.0
      %2451 = vmatprep.subr.mxu0 0.0
      %2452 = vmatpush1.msra.mxu0 0.0
      %2453 = vmatprep.subr.mxu0 0.0
      %2454 = vmatpush1.msra.mxu0 0.0
      %2455 = vmatprep.subr.mxu0 0.0
      %2456 = vmatpush1.msra.mxu0 0.0
      %2457 = vmatprep.subr.mxu0 0.0
      %2458 = vmatpush1.msra.mxu0 0.0
      %2459 = vmatprep.subr.mxu0 0.0
      %2460 = vmatpush1.msra.mxu0 0.0
      %2461 = vmatprep.subr.mxu0 0.0
      %2462 = vmatpush1.msra.mxu0 0.0
      %2463 = vmatprep.subr.mxu0 0.0
      %2464 = vmatpush1.msra.mxu0 0.0
      %2465 = vmatprep.subr.mxu0 0.0
      %2466 = vmatpush1.msra.mxu0 0.0
      %2467 = vmatprep.subr.mxu0 0.0
      %2468 = vmatpush1.msra.mxu0 0.0
      %2469 = vmatprep.subr.mxu0 0.0
      %2470 = vmatpush1.msra.mxu0 0.0
      %2471 = vmatprep.subr.mxu0 0.0
      %2472 = vmatpush1.msra.mxu0 0.0
      %2473 = vmatprep.subr.mxu0 0.0
      %2474 = vmatpush1.msra.mxu0 0.0
      %2475 = vmatprep.subr.mxu0 0.0
      %2476 = vmatpush1.msra.mxu0 0.0
      %2477 = vmatprep.subr.mxu0 0.0
      %2478 = vmatpush1.msra.mxu0 0.0
      %2479 = vmatprep.subr.mxu0 0.0
      %2480 = vmatpush1.msra.mxu0 0.0
      %2481 = vmatprep.subr.mxu0 0.0
      %2482 = vmatpush1.msra.mxu0 0.0
      %2483 = vmatprep.subr.mxu0 0.0
      %2484 = vmatpush1.msra.mxu0 0.0
      %2485 = vmatprep.subr.mxu0 0.0
      %2486 = vmatpush1.msra.mxu0 0.0
      %2487 = vmatprep.subr.mxu0 0.0
      %2488 = vmatpush1.msra.mxu0 0.0
      %2489 = vmatprep.subr.mxu0 0.0
      %2490 = vmatpush1.msra.mxu0 0.0
      %2491 = vmatprep.subr.mxu0 0.0
      %2492 = vmatpush1.msra.mxu0 0.0
      %2493 = vmatprep.subr.mxu0 0.0
      %2494 = vmatpush1.msra.mxu0 0.0
      %2495 = vmatprep.subr.mxu0 0.0
      %2496 = vmatpush1.msra.mxu0 0.0
      %2497 = vmatprep.subr.mxu0 0.0
      %2498 = vmatpush1.msra.mxu0 0.0
      %2499 = vmatprep.mubr.f32.mxu0 0.0
      %2500 = vmatmul.mubr.f32.gmra.mrb[0].mxu0 %v1588
      %v2501 = vpop.f32.mrb[0].mxu0
      %v2502 = vadd.f32 0.0, %v2501
      %v2503 = vpop.f32.mrb[0].mxu0
      %2504 = vmatprep.mubr.f32.mxu0 0.0
      %2505 = vmatmul.mubr.f32.gmra.mrb[0].mxu0 %v1591
      %v2506 = vpop.f32.mrb[0].mxu0
      %v2507 = vadd.f32 0.0, %v2506
      %v2508 = vpop.f32.mrb[0].mxu0
      %2509 = vdwg.mxu0
      %v2510 = vld [vmem:[%s1 + $0x200] sm:$0xff]
      %v2511 = vld [vmem:[%s1 + $0x208] sm:$0xff]
      %v2512 = vld [vmem:[%s1 + $0x210] sm:$0xff]
      %v2513 = vld [vmem:[%s1 + $0x218] sm:$0xff]
      %v2515 = vsel %vm161, %v2502, 0
      %v2518 = vsel %vm161, %v2507, 0
      %2520 = vmatprep.subr.mxu0 0.0
      %2521 = vmatpush1.msra.mxu0 %v2510
      %2522 = vmatprep.subr.mxu0 0.0
      %2523 = vmatpush1.msra.mxu0 %v2511
      %2524 = vmatprep.subr.mxu0 0.0
      %2525 = vmatpush1.msra.mxu0 %v2512
      %2526 = vmatprep.subr.mxu0 0.0
      %2527 = vmatpush1.msra.mxu0 %v2513
      %2528 = vmatprep.subr.mxu0 0.0
      %2529 = vmatpush1.msra.mxu0 0.0
      %2530 = vmatprep.subr.mxu0 0.0
      %2531 = vmatpush1.msra.mxu0 0.0
      %2532 = vmatprep.subr.mxu0 0.0
      %2533 = vmatpush1.msra.mxu0 0.0
      %2534 = vmatprep.subr.mxu0 0.0
      %2535 = vmatpush1.msra.mxu0 0.0
      %2536 = vmatprep.subr.mxu0 0.0
      %2537 = vmatpush1.msra.mxu0 0.0
      %2538 = vmatprep.subr.mxu0 0.0
      %2539 = vmatpush1.msra.mxu0 0.0
      %2540 = vmatprep.subr.mxu0 0.0
      %2541 = vmatpush1.msra.mxu0 0.0
      %2542 = vmatprep.subr.mxu0 0.0
      %2543 = vmatpush1.msra.mxu0 0.0
      %2544 = vmatprep.subr.mxu0 0.0
      %2545 = vmatpush1.msra.mxu0 0.0
      %2546 = vmatprep.subr.mxu0 0.0
      %2547 = vmatpush1.msra.mxu0 0.0
      %2548 = vmatprep.subr.mxu0 0.0
      %2549 = vmatpush1.msra.mxu0 0.0
      %2550 = vmatprep.subr.mxu0 0.0
      %2551 = vmatpush1.msra.mxu0 0.0
      %2552 = vmatprep.subr.mxu0 0.0
      %2553 = vmatpush1.msra.mxu0 0.0
      %2554 = vmatprep.subr.mxu0 0.0
      %2555 = vmatpush1.msra.mxu0 0.0
      %2556 = vmatprep.subr.mxu0 0.0
      %2557 = vmatpush1.msra.mxu0 0.0
      %2558 = vmatprep.subr.mxu0 0.0
      %2559 = vmatpush1.msra.mxu0 0.0
      %2560 = vmatprep.subr.mxu0 0.0
      %2561 = vmatpush1.msra.mxu0 0.0
      %2562 = vmatprep.subr.mxu0 0.0
      %2563 = vmatpush1.msra.mxu0 0.0
      %2564 = vmatprep.subr.mxu0 0.0
      %2565 = vmatpush1.msra.mxu0 0.0
      %2566 = vmatprep.subr.mxu0 0.0
      %2567 = vmatpush1.msra.mxu0 0.0
      %2568 = vmatprep.subr.mxu0 0.0
      %2569 = vmatpush1.msra.mxu0 0.0
      %2570 = vmatprep.subr.mxu0 0.0
      %2571 = vmatpush1.msra.mxu0 0.0
      %2572 = vmatprep.subr.mxu0 0.0
      %2573 = vmatpush1.msra.mxu0 0.0
      %2574 = vmatprep.subr.mxu0 0.0
      %2575 = vmatpush1.msra.mxu0 0.0
      %2576 = vmatprep.subr.mxu0 0.0
      %2577 = vmatpush1.msra.mxu0 0.0
      %2578 = vmatprep.subr.mxu0 0.0
      %2579 = vmatpush1.msra.mxu0 0.0
      %2580 = vmatprep.subr.mxu0 0.0
      %2581 = vmatpush1.msra.mxu0 0.0
      %2582 = vmatprep.subr.mxu0 0.0
      %2583 = vmatpush1.msra.mxu0 0.0
      %2584 = vmatprep.mubr.f32.mxu0 0.0
      %2585 = vmatmul.mubr.f32.gmra.mrb[0].mxu0 %v2515
      %v2586 = vpop.f32.mrb[0].mxu0
      %v2587 = vadd.f32 0.0, %v2586
      %v2588 = vpop.f32.mrb[0].mxu0
      %2589 = vmatprep.mubr.f32.mxu0 0.0
      %2590 = vmatmul.mubr.f32.gmra.mrb[0].mxu0 %v2518
      %v2591 = vpop.f32.mrb[0].mxu0
      %v2592 = vadd.f32 0.0, %v2591
      %v2593 = vpop.f32.mrb[0].mxu0
      %2594 = vdwg.mxu0
      %v2595 = vadd.f32 %v2434, %v2587
      %v2596 = vadd.f32 %v2434, %v2592
      %2597 = vmatprep.subr.mxu0 0.0
      %2598 = vmatpush1.msra.mxu0 %v2427
      %2599 = vmatprep.subr.mxu0 0.0
      %2600 = vmatpush1.msra.mxu0 %v2428
      %2601 = vmatprep.subr.mxu0 0.0
      %2602 = vmatpush1.msra.mxu0 0.0
      %2603 = vmatprep.subr.mxu0 0.0
      %2604 = vmatpush1.msra.mxu0 0.0
      %2605 = vmatprep.subr.mxu0 0.0
      %2606 = vmatpush1.msra.mxu0 0.0
      %2607 = vmatprep.subr.mxu0 0.0
      %2608 = vmatpush1.msra.mxu0 0.0
      %2609 = vmatprep.subr.mxu0 0.0
      %2610 = vmatpush1.msra.mxu0 0.0
      %2611 = vmatprep.subr.mxu0 0.0
      %2612 = vmatpush1.msra.mxu0 0.0
      %2613 = vmatprep.subr.mxu0 0.0
      %2614 = vmatpush1.msra.mxu0 0.0
      %2615 = vmatprep.subr.mxu0 0.0
      %2616 = vmatpush1.msra.mxu0 0.0
      %2617 = vmatprep.subr.mxu0 0.0
      %2618 = vmatpush1.msra.mxu0 0.0
      %2619 = vmatprep.subr.mxu0 0.0
      %2620 = vmatpush1.msra.mxu0 0.0
      %2621 = vmatprep.subr.mxu0 0.0
      %2622 = vmatpush1.msra.mxu0 0.0
      %2623 = vmatprep.subr.mxu0 0.0
      %2624 = vmatpush1.msra.mxu0 0.0
      %2625 = vmatprep.subr.mxu0 0.0
      %2626 = vmatpush1.msra.mxu0 0.0
      %2627 = vmatprep.subr.mxu0 0.0
      %2628 = vmatpush1.msra.mxu0 0.0
      %2629 = vmatprep.subr.mxu0 0.0
      %2630 = vmatpush1.msra.mxu0 0.0
      %2631 = vmatprep.subr.mxu0 0.0
      %2632 = vmatpush1.msra.mxu0 0.0
      %2633 = vmatprep.subr.mxu0 0.0
      %2634 = vmatpush1.msra.mxu0 0.0
      %2635 = vmatprep.subr.mxu0 0.0
      %2636 = vmatpush1.msra.mxu0 0.0
      %2637 = vmatprep.subr.mxu0 0.0
      %2638 = vmatpush1.msra.mxu0 0.0
      %2639 = vmatprep.subr.mxu0 0.0
      %2640 = vmatpush1.msra.mxu0 0.0
      %2641 = vmatprep.subr.mxu0 0.0
      %2642 = vmatpush1.msra.mxu0 0.0
      %2643 = vmatprep.subr.mxu0 0.0
      %2644 = vmatpush1.msra.mxu0 0.0
      %2645 = vmatprep.subr.mxu0 0.0
      %2646 = vmatpush1.msra.mxu0 0.0
      %2647 = vmatprep.subr.mxu0 0.0
      %2648 = vmatpush1.msra.mxu0 0.0
      %2649 = vmatprep.subr.mxu0 0.0
      %2650 = vmatpush1.msra.mxu0 0.0
      %2651 = vmatprep.subr.mxu0 0.0
      %2652 = vmatpush1.msra.mxu0 0.0
      %2653 = vmatprep.subr.mxu0 0.0
      %2654 = vmatpush1.msra.mxu0 0.0
      %2655 = vmatprep.subr.mxu0 0.0
      %2656 = vmatpush1.msra.mxu0 0.0
      %2657 = vmatprep.subr.mxu0 0.0
      %2658 = vmatpush1.msra.mxu0 0.0
      %2659 = vmatprep.subr.mxu0 0.0
      %2660 = vmatpush1.msra.mxu0 0.0
      %2661 = vmatprep.mubr.f32.mxu0 0.0
      %2662 = vmatmul.mubr.f32.gmra.mrb[0].mxu0 %v1756
      %v2663 = vpop.f32.mrb[0].mxu0
      %v2664 = vadd.f32 0.0, %v2663
      %v2665 = vpop.f32.mrb[0].mxu0
      %2666 = vmatprep.mubr.f32.mxu0 0.0
      %2667 = vmatmul.mubr.f32.gmra.mrb[0].mxu0 %v1759
      %v2668 = vpop.f32.mrb[0].mxu0
      %v2669 = vadd.f32 0.0, %v2668
      %v2670 = vpop.f32.mrb[0].mxu0
      %2671 = vdwg.mxu0
      %v2672 = vld [vmem:[%s1 + $0x220] sm:$0xff]
      %v2673 = vld [vmem:[%s1 + $0x228] sm:$0xff]
      %v2674 = vld [vmem:[%s1 + $0x230] sm:$0xff]
      %v2675 = vld [vmem:[%s1 + $0x238] sm:$0xff]
      %v2677 = vsel %vm161, %v2664, 0
      %v2680 = vsel %vm161, %v2669, 0
      %2682 = vmatprep.subr.mxu0 0.0
      %2683 = vmatpush1.msra.mxu0 %v2672
      %2684 = vmatprep.subr.mxu0 0.0
      %2685 = vmatpush1.msra.mxu0 %v2673
      %2686 = vmatprep.subr.mxu0 0.0
      %2687 = vmatpush1.msra.mxu0 %v2674
      %2688 = vmatprep.subr.mxu0 0.0
      %2689 = vmatpush1.msra.mxu0 %v2675
      %2690 = vmatprep.subr.mxu0 0.0
      %2691 = vmatpush1.msra.mxu0 0.0
      %2692 = vmatprep.subr.mxu0 0.0
      %2693 = vmatpush1.msra.mxu0 0.0
      %2694 = vmatprep.subr.mxu0 0.0
      %2695 = vmatpush1.msra.mxu0 0.0
      %2696 = vmatprep.subr.mxu0 0.0
      %2697 = vmatpush1.msra.mxu0 0.0
      %2698 = vmatprep.subr.mxu0 0.0
      %2699 = vmatpush1.msra.mxu0 0.0
      %2700 = vmatprep.subr.mxu0 0.0
      %2701 = vmatpush1.msra.mxu0 0.0
      %2702 = vmatprep.subr.mxu0 0.0
      %2703 = vmatpush1.msra.mxu0 0.0
      %2704 = vmatprep.subr.mxu0 0.0
      %2705 = vmatpush1.msra.mxu0 0.0
      %2706 = vmatprep.subr.mxu0 0.0
      %2707 = vmatpush1.msra.mxu0 0.0
      %2708 = vmatprep.subr.mxu0 0.0
      %2709 = vmatpush1.msra.mxu0 0.0
      %2710 = vmatprep.subr.mxu0 0.0
      %2711 = vmatpush1.msra.mxu0 0.0
      %2712 = vmatprep.subr.mxu0 0.0
      %2713 = vmatpush1.msra.mxu0 0.0
      %2714 = vmatprep.subr.mxu0 0.0
      %2715 = vmatpush1.msra.mxu0 0.0
      %2716 = vmatprep.subr.mxu0 0.0
      %2717 = vmatpush1.msra.mxu0 0.0
      %2718 = vmatprep.subr.mxu0 0.0
      %2719 = vmatpush1.msra.mxu0 0.0
      %2720 = vmatprep.subr.mxu0 0.0
      %2721 = vmatpush1.msra.mxu0 0.0
      %2722 = vmatprep.subr.mxu0 0.0
      %2723 = vmatpush1.msra.mxu0 0.0
      %2724 = vmatprep.subr.mxu0 0.0
      %2725 = vmatpush1.msra.mxu0 0.0
      %2726 = vmatprep.subr.mxu0 0.0
      %2727 = vmatpush1.msra.mxu0 0.0
      %2728 = vmatprep.subr.mxu0 0.0
      %2729 = vmatpush1.msra.mxu0 0.0
      %2730 = vmatprep.subr.mxu0 0.0
      %2731 = vmatpush1.msra.mxu0 0.0
      %2732 = vmatprep.subr.mxu0 0.0
      %2733 = vmatpush1.msra.mxu0 0.0
      %2734 = vmatprep.subr.mxu0 0.0
      %2735 = vmatpush1.msra.mxu0 0.0
      %2736 = vmatprep.subr.mxu0 0.0
      %2737 = vmatpush1.msra.mxu0 0.0
      %2738 = vmatprep.subr.mxu0 0.0
      %2739 = vmatpush1.msra.mxu0 0.0
      %2740 = vmatprep.subr.mxu0 0.0
      %2741 = vmatpush1.msra.mxu0 0.0
      %2742 = vmatprep.subr.mxu0 0.0
      %2743 = vmatpush1.msra.mxu0 0.0
      %2744 = vmatprep.subr.mxu0 0.0
      %2745 = vmatpush1.msra.mxu0 0.0
      %2746 = vmatprep.mubr.f32.mxu0 0.0
      %2747 = vmatmul.mubr.f32.gmra.mrb[0].mxu0 %v2677
      %v2748 = vpop.f32.mrb[0].mxu0
      %v2749 = vadd.f32 0.0, %v2748
      %v2750 = vpop.f32.mrb[0].mxu0
      %2751 = vmatprep.mubr.f32.mxu0 0.0
      %2752 = vmatmul.mubr.f32.gmra.mrb[0].mxu0 %v2680
      %v2753 = vpop.f32.mrb[0].mxu0
      %v2754 = vadd.f32 0.0, %v2753
      %v2755 = vpop.f32.mrb[0].mxu0
      %2756 = vdwg.mxu0
      %v2757 = vadd.f32 %v2595, %v2749
      %v2758 = vadd.f32 %v2596, %v2754
      %2759 = vmatprep.subr.mxu0 0.0
      %2760 = vmatpush1.msra.mxu0 %v2427
      %2761 = vmatprep.subr.mxu0 0.0
      %2762 = vmatpush1.msra.mxu0 %v2428
      %2763 = vmatprep.subr.mxu0 0.0
      %2764 = vmatpush1.msra.mxu0 0.0
      %2765 = vmatprep.subr.mxu0 0.0
      %2766 = vmatpush1.msra.mxu0 0.0
      %2767 = vmatprep.subr.mxu0 0.0
      %2768 = vmatpush1.msra.mxu0 0.0
      %2769 = vmatprep.subr.mxu0 0.0
      %2770 = vmatpush1.msra.mxu0 0.0
      %2771 = vmatprep.subr.mxu0 0.0
      %2772 = vmatpush1.msra.mxu0 0.0
      %2773 = vmatprep.subr.mxu0 0.0
      %2774 = vmatpush1.msra.mxu0 0.0
      %2775 = vmatprep.subr.mxu0 0.0
      %2776 = vmatpush1.msra.mxu0 0.0
      %2777 = vmatprep.subr.mxu0 0.0
      %2778 = vmatpush1.msra.mxu0 0.0
      %2779 = vmatprep.subr.mxu0 0.0
      %2780 = vmatpush1.msra.mxu0 0.0
      %2781 = vmatprep.subr.mxu0 0.0
      %2782 = vmatpush1.msra.mxu0 0.0
      %2783 = vmatprep.subr.mxu0 0.0
      %2784 = vmatpush1.msra.mxu0 0.0
      %2785 = vmatprep.subr.mxu0 0.0
      %2786 = vmatpush1.msra.mxu0 0.0
      %2787 = vmatprep.subr.mxu0 0.0
      %2788 = vmatpush1.msra.mxu0 0.0
      %2789 = vmatprep.subr.mxu0 0.0
      %2790 = vmatpush1.msra.mxu0 0.0
      %2791 = vmatprep.subr.mxu0 0.0
      %2792 = vmatpush1.msra.mxu0 0.0
      %2793 = vmatprep.subr.mxu0 0.0
      %2794 = vmatpush1.msra.mxu0 0.0
      %2795 = vmatprep.subr.mxu0 0.0
      %2796 = vmatpush1.msra.mxu0 0.0
      %2797 = vmatprep.subr.mxu0 0.0
      %2798 = vmatpush1.msra.mxu0 0.0
      %2799 = vmatprep.subr.mxu0 0.0
      %2800 = vmatpush1.msra.mxu0 0.0
      %2801 = vmatprep.subr.mxu0 0.0
      %2802 = vmatpush1.msra.mxu0 0.0
      %2803 = vmatprep.subr.mxu0 0.0
      %2804 = vmatpush1.msra.mxu0 0.0
      %2805 = vmatprep.subr.mxu0 0.0
      %2806 = vmatpush1.msra.mxu0 0.0
      %2807 = vmatprep.subr.mxu0 0.0
      %2808 = vmatpush1.msra.mxu0 0.0
      %2809 = vmatprep.subr.mxu0 0.0
      %2810 = vmatpush1.msra.mxu0 0.0
      %2811 = vmatprep.subr.mxu0 0.0
      %2812 = vmatpush1.msra.mxu0 0.0
      %2813 = vmatprep.subr.mxu0 0.0
      %2814 = vmatpush1.msra.mxu0 0.0
      %2815 = vmatprep.subr.mxu0 0.0
      %2816 = vmatpush1.msra.mxu0 0.0
      %2817 = vmatprep.subr.mxu0 0.0
      %2818 = vmatpush1.msra.mxu0 0.0
      %2819 = vmatprep.subr.mxu0 0.0
      %2820 = vmatpush1.msra.mxu0 0.0
      %2821 = vmatprep.subr.mxu0 0.0
      %2822 = vmatpush1.msra.mxu0 0.0
      %2823 = vmatprep.mubr.f32.mxu0 0.0
      %2824 = vmatmul.mubr.f32.gmra.mrb[0].mxu0 %v1924
      %v2825 = vpop.f32.mrb[0].mxu0
      %v2826 = vadd.f32 0.0, %v2825
      %v2827 = vpop.f32.mrb[0].mxu0
      %2828 = vmatprep.mubr.f32.mxu0 0.0
      %2829 = vmatmul.mubr.f32.gmra.mrb[0].mxu0 %v1927
      %v2830 = vpop.f32.mrb[0].mxu0
      %v2831 = vadd.f32 0.0, %v2830
      %v2832 = vpop.f32.mrb[0].mxu0
      %2833 = vdwg.mxu0
      %v2834 = vld [vmem:[%s1 + $0x240] sm:$0xff]
      %v2835 = vld [vmem:[%s1 + $0x248] sm:$0xff]
      %v2836 = vld [vmem:[%s1 + $0x250] sm:$0xff]
      %v2837 = vld [vmem:[%s1 + $0x258] sm:$0xff]
      %v2839 = vsel %vm161, %v2826, 0
      %v2842 = vsel %vm161, %v2831, 0
      %2844 = vmatprep.subr.mxu0 0.0
      %2845 = vmatpush1.msra.mxu0 %v2834
      %2846 = vmatprep.subr.mxu0 0.0
      %2847 = vmatpush1.msra.mxu0 %v2835
      %2848 = vmatprep.subr.mxu0 0.0
      %2849 = vmatpush1.msra.mxu0 %v2836
      %2850 = vmatprep.subr.mxu0 0.0
      %2851 = vmatpush1.msra.mxu0 %v2837
      %2852 = vmatprep.subr.mxu0 0.0
      %2853 = vmatpush1.msra.mxu0 0.0
      %2854 = vmatprep.subr.mxu0 0.0
      %2855 = vmatpush1.msra.mxu0 0.0
      %2856 = vmatprep.subr.mxu0 0.0
      %2857 = vmatpush1.msra.mxu0 0.0
      %2858 = vmatprep.subr.mxu0 0.0
      %2859 = vmatpush1.msra.mxu0 0.0
      %2860 = vmatprep.subr.mxu0 0.0
      %2861 = vmatpush1.msra.mxu0 0.0
      %2862 = vmatprep.subr.mxu0 0.0
      %2863 = vmatpush1.msra.mxu0 0.0
      %2864 = vmatprep.subr.mxu0 0.0
      %2865 = vmatpush1.msra.mxu0 0.0
      %2866 = vmatprep.subr.mxu0 0.0
      %2867 = vmatpush1.msra.mxu0 0.0
      %2868 = vmatprep.subr.mxu0 0.0
      %2869 = vmatpush1.msra.mxu0 0.0
      %2870 = vmatprep.subr.mxu0 0.0
      %2871 = vmatpush1.msra.mxu0 0.0
      %2872 = vmatprep.subr.mxu0 0.0
      %2873 = vmatpush1.msra.mxu0 0.0
      %2874 = vmatprep.subr.mxu0 0.0
      %2875 = vmatpush1.msra.mxu0 0.0
      %2876 = vmatprep.subr.mxu0 0.0
      %2877 = vmatpush1.msra.mxu0 0.0
      %2878 = vmatprep.subr.mxu0 0.0
      %2879 = vmatpush1.msra.mxu0 0.0
      %2880 = vmatprep.subr.mxu0 0.0
      %2881 = vmatpush1.msra.mxu0 0.0
      %2882 = vmatprep.subr.mxu0 0.0
      %2883 = vmatpush1.msra.mxu0 0.0
      %2884 = vmatprep.subr.mxu0 0.0
      %2885 = vmatpush1.msra.mxu0 0.0
      %2886 = vmatprep.subr.mxu0 0.0
      %2887 = vmatpush1.msra.mxu0 0.0
      %2888 = vmatprep.subr.mxu0 0.0
      %2889 = vmatpush1.msra.mxu0 0.0
      %2890 = vmatprep.subr.mxu0 0.0
      %2891 = vmatpush1.msra.mxu0 0.0
      %2892 = vmatprep.subr.mxu0 0.0
      %2893 = vmatpush1.msra.mxu0 0.0
      %2894 = vmatprep.subr.mxu0 0.0
      %2895 = vmatpush1.msra.mxu0 0.0
      %2896 = vmatprep.subr.mxu0 0.0
      %2897 = vmatpush1.msra.mxu0 0.0
      %2898 = vmatprep.subr.mxu0 0.0
      %2899 = vmatpush1.msra.mxu0 0.0
      %2900 = vmatprep.subr.mxu0 0.0
      %2901 = vmatpush1.msra.mxu0 0.0
      %2902 = vmatprep.subr.mxu0 0.0
      %2903 = vmatpush1.msra.mxu0 0.0
      %2904 = vmatprep.subr.mxu0 0.0
      %2905 = vmatpush1.msra.mxu0 0.0
      %2906 = vmatprep.subr.mxu0 0.0
      %2907 = vmatpush1.msra.mxu0 0.0
      %2908 = vmatprep.mubr.f32.mxu0 0.0
      %2909 = vmatmul.mubr.f32.gmra.mrb[0].mxu0 %v2839
      %v2910 = vpop.f32.mrb[0].mxu0
      %v2911 = vadd.f32 0.0, %v2910
      %v2912 = vpop.f32.mrb[0].mxu0
      %2913 = vmatprep.mubr.f32.mxu0 0.0
      %2914 = vmatmul.mubr.f32.gmra.mrb[0].mxu0 %v2842
      %v2915 = vpop.f32.mrb[0].mxu0
      %v2916 = vadd.f32 0.0, %v2915
      %v2917 = vpop.f32.mrb[0].mxu0
      %2918 = vdwg.mxu0
      %v2919 = vadd.f32 %v2757, %v2911
      %v2920 = vadd.f32 %v2758, %v2916
      %2921 = vmatprep.subr.mxu0 0.0
      %2922 = vmatpush1.msra.mxu0 %v2427
      %2923 = vmatprep.subr.mxu0 0.0
      %2924 = vmatpush1.msra.mxu0 %v2428
      %2925 = vmatprep.subr.mxu0 0.0
      %2926 = vmatpush1.msra.mxu0 0.0
      %2927 = vmatprep.subr.mxu0 0.0
      %2928 = vmatpush1.msra.mxu0 0.0
      %2929 = vmatprep.subr.mxu0 0.0
      %2930 = vmatpush1.msra.mxu0 0.0
      %2931 = vmatprep.subr.mxu0 0.0
      %2932 = vmatpush1.msra.mxu0 0.0
      %2933 = vmatprep.subr.mxu0 0.0
      %2934 = vmatpush1.msra.mxu0 0.0
      %2935 = vmatprep.subr.mxu0 0.0
      %2936 = vmatpush1.msra.mxu0 0.0
      %2937 = vmatprep.subr.mxu0 0.0
      %2938 = vmatpush1.msra.mxu0 0.0
      %2939 = vmatprep.subr.mxu0 0.0
      %2940 = vmatpush1.msra.mxu0 0.0
      %2941 = vmatprep.subr.mxu0 0.0
      %2942 = vmatpush1.msra.mxu0 0.0
      %2943 = vmatprep.subr.mxu0 0.0
      %2944 = vmatpush1.msra.mxu0 0.0
      %2945 = vmatprep.subr.mxu0 0.0
      %2946 = vmatpush1.msra.mxu0 0.0
      %2947 = vmatprep.subr.mxu0 0.0
      %2948 = vmatpush1.msra.mxu0 0.0
      %2949 = vmatprep.subr.mxu0 0.0
      %2950 = vmatpush1.msra.mxu0 0.0
      %2951 = vmatprep.subr.mxu0 0.0
      %2952 = vmatpush1.msra.mxu0 0.0
      %2953 = vmatprep.subr.mxu0 0.0
      %2954 = vmatpush1.msra.mxu0 0.0
      %2955 = vmatprep.subr.mxu0 0.0
      %2956 = vmatpush1.msra.mxu0 0.0
      %2957 = vmatprep.subr.mxu0 0.0
      %2958 = vmatpush1.msra.mxu0 0.0
      %2959 = vmatprep.subr.mxu0 0.0
      %2960 = vmatpush1.msra.mxu0 0.0
      %2961 = vmatprep.subr.mxu0 0.0
      %2962 = vmatpush1.msra.mxu0 0.0
      %2963 = vmatprep.subr.mxu0 0.0
      %2964 = vmatpush1.msra.mxu0 0.0
      %2965 = vmatprep.subr.mxu0 0.0
      %2966 = vmatpush1.msra.mxu0 0.0
      %2967 = vmatprep.subr.mxu0 0.0
      %2968 = vmatpush1.msra.mxu0 0.0
      %2969 = vmatprep.subr.mxu0 0.0
      %2970 = vmatpush1.msra.mxu0 0.0
      %2971 = vmatprep.subr.mxu0 0.0
      %2972 = vmatpush1.msra.mxu0 0.0
      %2973 = vmatprep.subr.mxu0 0.0
      %2974 = vmatpush1.msra.mxu0 0.0
      %2975 = vmatprep.subr.mxu0 0.0
      %2976 = vmatpush1.msra.mxu0 0.0
      %2977 = vmatprep.subr.mxu0 0.0
      %2978 = vmatpush1.msra.mxu0 0.0
      %2979 = vmatprep.subr.mxu0 0.0
      %2980 = vmatpush1.msra.mxu0 0.0
      %2981 = vmatprep.subr.mxu0 0.0
      %2982 = vmatpush1.msra.mxu0 0.0
      %2983 = vmatprep.subr.mxu0 0.0
      %2984 = vmatpush1.msra.mxu0 0.0
      %2985 = vmatprep.mubr.f32.mxu0 0.0
      %2986 = vmatmul.mubr.f32.gmra.mrb[0].mxu0 %v2092
      %v2987 = vpop.f32.mrb[0].mxu0
      %v2988 = vadd.f32 0.0, %v2987
      %v2989 = vpop.f32.mrb[0].mxu0
      %2990 = vmatprep.mubr.f32.mxu0 0.0
      %2991 = vmatmul.mubr.f32.gmra.mrb[0].mxu0 %v2095
      %v2992 = vpop.f32.mrb[0].mxu0
      %v2993 = vadd.f32 0.0, %v2992
      %v2994 = vpop.f32.mrb[0].mxu0
      %2995 = vdwg.mxu0
      %v2996 = vld [vmem:[%s1 + $0x260] sm:$0xff]
      %v2997 = vld [vmem:[%s1 + $0x268] sm:$0xff]
      %v2998 = vld [vmem:[%s1 + $0x270] sm:$0xff]
      %v2999 = vld [vmem:[%s1 + $0x278] sm:$0xff]
      %v3001 = vsel %vm161, %v2988, 0
      %v3004 = vsel %vm161, %v2993, 0
      %3006 = vmatprep.subr.mxu0 0.0
      %3007 = vmatpush1.msra.mxu0 %v2996
      %3008 = vmatprep.subr.mxu0 0.0
      %3009 = vmatpush1.msra.mxu0 %v2997
      %3010 = vmatprep.subr.mxu0 0.0
      %3011 = vmatpush1.msra.mxu0 %v2998
      %3012 = vmatprep.subr.mxu0 0.0
      %3013 = vmatpush1.msra.mxu0 %v2999
      %3014 = vmatprep.subr.mxu0 0.0
      %3015 = vmatpush1.msra.mxu0 0.0
      %3016 = vmatprep.subr.mxu0 0.0
      %3017 = vmatpush1.msra.mxu0 0.0
      %3018 = vmatprep.subr.mxu0 0.0
      %3019 = vmatpush1.msra.mxu0 0.0
      %3020 = vmatprep.subr.mxu0 0.0
      %3021 = vmatpush1.msra.mxu0 0.0
      %3022 = vmatprep.subr.mxu0 0.0
      %3023 = vmatpush1.msra.mxu0 0.0
      %3024 = vmatprep.subr.mxu0 0.0
      %3025 = vmatpush1.msra.mxu0 0.0
      %3026 = vmatprep.subr.mxu0 0.0
      %3027 = vmatpush1.msra.mxu0 0.0
      %3028 = vmatprep.subr.mxu0 0.0
      %3029 = vmatpush1.msra.mxu0 0.0
      %3030 = vmatprep.subr.mxu0 0.0
      %3031 = vmatpush1.msra.mxu0 0.0
      %3032 = vmatprep.subr.mxu0 0.0
      %3033 = vmatpush1.msra.mxu0 0.0
      %3034 = vmatprep.subr.mxu0 0.0
      %3035 = vmatpush1.msra.mxu0 0.0
      %3036 = vmatprep.subr.mxu0 0.0
      %3037 = vmatpush1.msra.mxu0 0.0
      %3038 = vmatprep.subr.mxu0 0.0
      %3039 = vmatpush1.msra.mxu0 0.0
      %3040 = vmatprep.subr.mxu0 0.0
      %3041 = vmatpush1.msra.mxu0 0.0
      %3042 = vmatprep.subr.mxu0 0.0
      %3043 = vmatpush1.msra.mxu0 0.0
      %3044 = vmatprep.subr.mxu0 0.0
      %3045 = vmatpush1.msra.mxu0 0.0
      %3046 = vmatprep.subr.mxu0 0.0
      %3047 = vmatpush1.msra.mxu0 0.0
      %3048 = vmatprep.subr.mxu0 0.0
      %3049 = vmatpush1.msra.mxu0 0.0
      %3050 = vmatprep.subr.mxu0 0.0
      %3051 = vmatpush1.msra.mxu0 0.0
      %3052 = vmatprep.subr.mxu0 0.0
      %3053 = vmatpush1.msra.mxu0 0.0
      %3054 = vmatprep.subr.mxu0 0.0
      %3055 = vmatpush1.msra.mxu0 0.0
      %3056 = vmatprep.subr.mxu0 0.0
      %3057 = vmatpush1.msra.mxu0 0.0
      %3058 = vmatprep.subr.mxu0 0.0
      %3059 = vmatpush1.msra.mxu0 0.0
      %3060 = vmatprep.subr.mxu0 0.0
      %3061 = vmatpush1.msra.mxu0 0.0
      %3062 = vmatprep.subr.mxu0 0.0
      %3063 = vmatpush1.msra.mxu0 0.0
      %3064 = vmatprep.subr.mxu0 0.0
      %3065 = vmatpush1.msra.mxu0 0.0
      %3066 = vmatprep.subr.mxu0 0.0
      %3067 = vmatpush1.msra.mxu0 0.0
      %3068 = vmatprep.subr.mxu0 0.0
      %3069 = vmatpush1.msra.mxu0 0.0
      %3070 = vmatprep.mubr.f32.mxu0 0.0
      %3071 = vmatmul.mubr.f32.gmra.mrb[0].mxu0 %v3001
      %v3072 = vpop.f32.mrb[0].mxu0
      %v3073 = vadd.f32 0.0, %v3072
      %v3074 = vpop.f32.mrb[0].mxu0
      %3075 = vmatprep.mubr.f32.mxu0 0.0
      %3076 = vmatmul.mubr.f32.gmra.mrb[0].mxu0 %v3004
      %v3077 = vpop.f32.mrb[0].mxu0
      %v3078 = vadd.f32 0.0, %v3077
      %v3079 = vpop.f32.mrb[0].mxu0
      %3080 = vdwg.mxu0
      %v3081 = vadd.f32 %v2919, %v3073
      %v3082 = vadd.f32 %v2920, %v3078
      %3083 = vmatprep.subr.mxu0 0.0
      %3084 = vmatpush1.msra.mxu0 %v2427
      %3085 = vmatprep.subr.mxu0 0.0
      %3086 = vmatpush1.msra.mxu0 %v2428
      %3087 = vmatprep.subr.mxu0 0.0
      %3088 = vmatpush1.msra.mxu0 0.0
      %3089 = vmatprep.subr.mxu0 0.0
      %3090 = vmatpush1.msra.mxu0 0.0
      %3091 = vmatprep.subr.mxu0 0.0
      %3092 = vmatpush1.msra.mxu0 0.0
      %3093 = vmatprep.subr.mxu0 0.0
      %3094 = vmatpush1.msra.mxu0 0.0
      %3095 = vmatprep.subr.mxu0 0.0
      %3096 = vmatpush1.msra.mxu0 0.0
      %3097 = vmatprep.subr.mxu0 0.0
      %3098 = vmatpush1.msra.mxu0 0.0
      %3099 = vmatprep.subr.mxu0 0.0
      %3100 = vmatpush1.msra.mxu0 0.0
      %3101 = vmatprep.subr.mxu0 0.0
      %3102 = vmatpush1.msra.mxu0 0.0
      %3103 = vmatprep.subr.mxu0 0.0
      %3104 = vmatpush1.msra.mxu0 0.0
      %3105 = vmatprep.subr.mxu0 0.0
      %3106 = vmatpush1.msra.mxu0 0.0
      %3107 = vmatprep.subr.mxu0 0.0
      %3108 = vmatpush1.msra.mxu0 0.0
      %3109 = vmatprep.subr.mxu0 0.0
      %3110 = vmatpush1.msra.mxu0 0.0
      %3111 = vmatprep.subr.mxu0 0.0
      %3112 = vmatpush1.msra.mxu0 0.0
      %3113 = vmatprep.subr.mxu0 0.0
      %3114 = vmatpush1.msra.mxu0 0.0
      %3115 = vmatprep.subr.mxu0 0.0
      %3116 = vmatpush1.msra.mxu0 0.0
      %3117 = vmatprep.subr.mxu0 0.0
      %3118 = vmatpush1.msra.mxu0 0.0
      %3119 = vmatprep.subr.mxu0 0.0
      %3120 = vmatpush1.msra.mxu0 0.0
      %3121 = vmatprep.subr.mxu0 0.0
      %3122 = vmatpush1.msra.mxu0 0.0
      %3123 = vmatprep.subr.mxu0 0.0
      %3124 = vmatpush1.msra.mxu0 0.0
      %3125 = vmatprep.subr.mxu0 0.0
      %3126 = vmatpush1.msra.mxu0 0.0
      %3127 = vmatprep.subr.mxu0 0.0
      %3128 = vmatpush1.msra.mxu0 0.0
      %3129 = vmatprep.subr.mxu0 0.0
      %3130 = vmatpush1.msra.mxu0 0.0
      %3131 = vmatprep.subr.mxu0 0.0
      %3132 = vmatpush1.msra.mxu0 0.0
      %3133 = vmatprep.subr.mxu0 0.0
      %3134 = vmatpush1.msra.mxu0 0.0
      %3135 = vmatprep.subr.mxu0 0.0
      %3136 = vmatpush1.msra.mxu0 0.0
      %3137 = vmatprep.subr.mxu0 0.0
      %3138 = vmatpush1.msra.mxu0 0.0
      %3139 = vmatprep.subr.mxu0 0.0
      %3140 = vmatpush1.msra.mxu0 0.0
      %3141 = vmatprep.subr.mxu0 0.0
      %3142 = vmatpush1.msra.mxu0 0.0
      %3143 = vmatprep.subr.mxu0 0.0
      %3144 = vmatpush1.msra.mxu0 0.0
      %3145 = vmatprep.subr.mxu0 0.0
      %3146 = vmatpush1.msra.mxu0 0.0
      %3147 = vmatprep.mubr.f32.mxu0 0.0
      %3148 = vmatmul.mubr.f32.gmra.mrb[0].mxu0 %v2260
      %v3149 = vpop.f32.mrb[0].mxu0
      %v3150 = vadd.f32 0.0, %v3149
      %v3151 = vpop.f32.mrb[0].mxu0
      %3152 = vmatprep.mubr.f32.mxu0 0.0
      %3153 = vmatmul.mubr.f32.gmra.mrb[0].mxu0 %v2263
      %v3154 = vpop.f32.mrb[0].mxu0
      %v3155 = vadd.f32 0.0, %v3154
      %v3156 = vpop.f32.mrb[0].mxu0
      %3157 = vdwg.mxu0
      %v3158 = vld [vmem:[%s1 + $0x280] sm:$0xff]
      %v3159 = vld [vmem:[%s1 + $0x288] sm:$0xff]
      %v3160 = vld [vmem:[%s1 + $0x290] sm:$0xff]
      %v3161 = vld [vmem:[%s1 + $0x298] sm:$0xff]
      %v3163 = vsel %vm161, %v3150, 0
      %v3166 = vsel %vm161, %v3155, 0
      %3168 = vmatprep.subr.mxu0 0.0
      %3169 = vmatpush1.msra.mxu0 %v3158
      %3170 = vmatprep.subr.mxu0 0.0
      %3171 = vmatpush1.msra.mxu0 %v3159
      %3172 = vmatprep.subr.mxu0 0.0
      %3173 = vmatpush1.msra.mxu0 %v3160
      %3174 = vmatprep.subr.mxu0 0.0
      %3175 = vmatpush1.msra.mxu0 %v3161
      %3176 = vmatprep.subr.mxu0 0.0
      %3177 = vmatpush1.msra.mxu0 0.0
      %3178 = vmatprep.subr.mxu0 0.0
      %3179 = vmatpush1.msra.mxu0 0.0
      %3180 = vmatprep.subr.mxu0 0.0
      %3181 = vmatpush1.msra.mxu0 0.0
      %3182 = vmatprep.subr.mxu0 0.0
      %3183 = vmatpush1.msra.mxu0 0.0
      %3184 = vmatprep.subr.mxu0 0.0
      %3185 = vmatpush1.msra.mxu0 0.0
      %3186 = vmatprep.subr.mxu0 0.0
      %3187 = vmatpush1.msra.mxu0 0.0
      %3188 = vmatprep.subr.mxu0 0.0
      %3189 = vmatpush1.msra.mxu0 0.0
      %3190 = vmatprep.subr.mxu0 0.0
      %3191 = vmatpush1.msra.mxu0 0.0
      %3192 = vmatprep.subr.mxu0 0.0
      %3193 = vmatpush1.msra.mxu0 0.0
      %3194 = vmatprep.subr.mxu0 0.0
      %3195 = vmatpush1.msra.mxu0 0.0
      %3196 = vmatprep.subr.mxu0 0.0
      %3197 = vmatpush1.msra.mxu0 0.0
      %3198 = vmatprep.subr.mxu0 0.0
      %3199 = vmatpush1.msra.mxu0 0.0
      %3200 = vmatprep.subr.mxu0 0.0
      %3201 = vmatpush1.msra.mxu0 0.0
      %3202 = vmatprep.subr.mxu0 0.0
      %3203 = vmatpush1.msra.mxu0 0.0
      %3204 = vmatprep.subr.mxu0 0.0
      %3205 = vmatpush1.msra.mxu0 0.0
      %3206 = vmatprep.subr.mxu0 0.0
      %3207 = vmatpush1.msra.mxu0 0.0
      %3208 = vmatprep.subr.mxu0 0.0
      %3209 = vmatpush1.msra.mxu0 0.0
      %3210 = vmatprep.subr.mxu0 0.0
      %3211 = vmatpush1.msra.mxu0 0.0
      %3212 = vmatprep.subr.mxu0 0.0
      %3213 = vmatpush1.msra.mxu0 0.0
      %3214 = vmatprep.subr.mxu0 0.0
      %3215 = vmatpush1.msra.mxu0 0.0
      %3216 = vmatprep.subr.mxu0 0.0
      %3217 = vmatpush1.msra.mxu0 0.0
      %3218 = vmatprep.subr.mxu0 0.0
      %3219 = vmatpush1.msra.mxu0 0.0
      %3220 = vmatprep.subr.mxu0 0.0
      %3221 = vmatpush1.msra.mxu0 0.0
      %3222 = vmatprep.subr.mxu0 0.0
      %3223 = vmatpush1.msra.mxu0 0.0
      %3224 = vmatprep.subr.mxu0 0.0
      %3225 = vmatpush1.msra.mxu0 0.0
      %3226 = vmatprep.subr.mxu0 0.0
      %3227 = vmatpush1.msra.mxu0 0.0
      %3228 = vmatprep.subr.mxu0 0.0
      %3229 = vmatpush1.msra.mxu0 0.0
      %3230 = vmatprep.subr.mxu0 0.0
      %3231 = vmatpush1.msra.mxu0 0.0
      %3232 = vmatprep.mubr.f32.mxu0 0.0
      %3233 = vmatmul.mubr.f32.gmra.mrb[0].mxu0 %v3163
      %v3234 = vpop.f32.mrb[0].mxu0
      %v3235 = vadd.f32 0.0, %v3234
      %v3236 = vpop.f32.mrb[0].mxu0
      %3237 = vmatprep.mubr.f32.mxu0 0.0
      %3238 = vmatmul.mubr.f32.gmra.mrb[0].mxu0 %v3166
      %v3239 = vpop.f32.mrb[0].mxu0
      %v3240 = vadd.f32 0.0, %v3239
      %v3241 = vpop.f32.mrb[0].mxu0
      %3242 = vdwg.mxu0
      %v3243 = vadd.f32 %v3081, %v3235
      %v3244 = vadd.f32 %v3082, %v3240
      %v3245 = vtanh.pop %v3243
      %v3246 = vtanh.pop %v3244
      %v3247 = vld [vmem:[%s1 + $0x4e0] sm:$0x1]
      %v3248 = vlaneseq
      %v3249 = vshrl.u32 %v3248, 7
      %v3250 = vsub.s32 0, %v3249
      %v3251 = vrot.slane %v3247, %v3250
      %v3252 = vadd.f32 %v3251, 0.0
      %3253 = vmatprep.subr.mxu0 0.0
      %3254 = vmatpush1.msra.mxu0 %v3245
      %3255 = vmatprep.subr.mxu0 0.0
      %3256 = vmatpush1.msra.mxu0 %v3246
      %3257 = vmatprep.subr.mxu0 0.0
      %3258 = vmatpush1.msra.mxu0 0.0
      %3259 = vmatprep.subr.mxu0 0.0
      %3260 = vmatpush1.msra.mxu0 0.0
      %3261 = vmatprep.subr.mxu0 0.0
      %3262 = vmatpush1.msra.mxu0 0.0
      %3263 = vmatprep.subr.mxu0 0.0
      %3264 = vmatpush1.msra.mxu0 0.0
      %3265 = vmatprep.subr.mxu0 0.0
      %3266 = vmatpush1.msra.mxu0 0.0
      %3267 = vmatprep.subr.mxu0 0.0
      %3268 = vmatpush1.msra.mxu0 0.0
      %3269 = vmatprep.subr.mxu0 0.0
      %3270 = vmatpush1.msra.mxu0 0.0
      %3271 = vmatprep.subr.mxu0 0.0
      %3272 = vmatpush1.msra.mxu0 0.0
      %3273 = vmatprep.subr.mxu0 0.0
      %3274 = vmatpush1.msra.mxu0 0.0
      %3275 = vmatprep.subr.mxu0 0.0
      %3276 = vmatpush1.msra.mxu0 0.0
      %3277 = vmatprep.subr.mxu0 0.0
      %3278 = vmatpush1.msra.mxu0 0.0
      %3279 = vmatprep.subr.mxu0 0.0
      %3280 = vmatpush1.msra.mxu0 0.0
      %3281 = vmatprep.subr.mxu0 0.0
      %3282 = vmatpush1.msra.mxu0 0.0
      %3283 = vmatprep.subr.mxu0 0.0
      %3284 = vmatpush1.msra.mxu0 0.0
      %3285 = vmatprep.subr.mxu0 0.0
      %3286 = vmatpush1.msra.mxu0 0.0
      %3287 = vmatprep.subr.mxu0 0.0
      %3288 = vmatpush1.msra.mxu0 0.0
      %3289 = vmatprep.subr.mxu0 0.0
      %3290 = vmatpush1.msra.mxu0 0.0
      %3291 = vmatprep.subr.mxu0 0.0
      %3292 = vmatpush1.msra.mxu0 0.0
      %3293 = vmatprep.subr.mxu0 0.0
      %3294 = vmatpush1.msra.mxu0 0.0
      %3295 = vmatprep.subr.mxu0 0.0
      %3296 = vmatpush1.msra.mxu0 0.0
      %3297 = vmatprep.subr.mxu0 0.0
      %3298 = vmatpush1.msra.mxu0 0.0
      %3299 = vmatprep.subr.mxu0 0.0
      %3300 = vmatpush1.msra.mxu0 0.0
      %3301 = vmatprep.subr.mxu0 0.0
      %3302 = vmatpush1.msra.mxu0 0.0
      %3303 = vmatprep.subr.mxu0 0.0
      %3304 = vmatpush1.msra.mxu0 0.0
      %3305 = vmatprep.subr.mxu0 0.0
      %3306 = vmatpush1.msra.mxu0 0.0
      %3307 = vmatprep.subr.mxu0 0.0
      %3308 = vmatpush1.msra.mxu0 0.0
      %3309 = vmatprep.subr.mxu0 0.0
      %3310 = vmatpush1.msra.mxu0 0.0
      %3311 = vmatprep.subr.mxu0 0.0
      %3312 = vmatpush1.msra.mxu0 0.0
      %3313 = vmatprep.subr.mxu0 0.0
      %3314 = vmatpush1.msra.mxu0 0.0
      %3315 = vmatprep.subr.mxu0 0.0
      %3316 = vmatpush1.msra.mxu0 0.0
      %3317 = vmatprep.mubr.f32.mxu0 0.0
      %3318 = vmatmul.mubr.f32.gmra.mrb[0].mxu0 %v1588
      %v3319 = vpop.f32.mrb[0].mxu0
      %v3320 = vadd.f32 0.0, %v3319
      %v3321 = vpop.f32.mrb[0].mxu0
      %3322 = vmatprep.mubr.f32.mxu0 0.0
      %3323 = vmatmul.mubr.f32.gmra.mrb[0].mxu0 %v1591
      %v3324 = vpop.f32.mrb[0].mxu0
      %v3325 = vadd.f32 0.0, %v3324
      %v3326 = vpop.f32.mrb[0].mxu0
      %3327 = vdwg.mxu0
      %v3328 = vld [vmem:[%s1 + $0x2a0] sm:$0xff]
      %v3329 = vld [vmem:[%s1 + $0x2a8] sm:$0xff]
      %v3330 = vld [vmem:[%s1 + $0x2b0] sm:$0xff]
      %v3331 = vld [vmem:[%s1 + $0x2b8] sm:$0xff]
      %v3333 = vsel %vm161, %v3320, 0
      %v3336 = vsel %vm161, %v3325, 0
      %3338 = vmatprep.subr.mxu0 0.0
      %3339 = vmatpush1.msra.mxu0 %v3328
      %3340 = vmatprep.subr.mxu0 0.0
      %3341 = vmatpush1.msra.mxu0 %v3329
      %3342 = vmatprep.subr.mxu0 0.0
      %3343 = vmatpush1.msra.mxu0 %v3330
      %3344 = vmatprep.subr.mxu0 0.0
      %3345 = vmatpush1.msra.mxu0 %v3331
      %3346 = vmatprep.subr.mxu0 0.0
      %3347 = vmatpush1.msra.mxu0 0.0
      %3348 = vmatprep.subr.mxu0 0.0
      %3349 = vmatpush1.msra.mxu0 0.0
      %3350 = vmatprep.subr.mxu0 0.0
      %3351 = vmatpush1.msra.mxu0 0.0
      %3352 = vmatprep.subr.mxu0 0.0
      %3353 = vmatpush1.msra.mxu0 0.0
      %3354 = vmatprep.subr.mxu0 0.0
      %3355 = vmatpush1.msra.mxu0 0.0
      %3356 = vmatprep.subr.mxu0 0.0
      %3357 = vmatpush1.msra.mxu0 0.0
      %3358 = vmatprep.subr.mxu0 0.0
      %3359 = vmatpush1.msra.mxu0 0.0
      %3360 = vmatprep.subr.mxu0 0.0
      %3361 = vmatpush1.msra.mxu0 0.0
      %3362 = vmatprep.subr.mxu0 0.0
      %3363 = vmatpush1.msra.mxu0 0.0
      %3364 = vmatprep.subr.mxu0 0.0
      %3365 = vmatpush1.msra.mxu0 0.0
      %3366 = vmatprep.subr.mxu0 0.0
      %3367 = vmatpush1.msra.mxu0 0.0
      %3368 = vmatprep.subr.mxu0 0.0
      %3369 = vmatpush1.msra.mxu0 0.0
      %3370 = vmatprep.subr.mxu0 0.0
      %3371 = vmatpush1.msra.mxu0 0.0
      %3372 = vmatprep.subr.mxu0 0.0
      %3373 = vmatpush1.msra.mxu0 0.0
      %3374 = vmatprep.subr.mxu0 0.0
      %3375 = vmatpush1.msra.mxu0 0.0
      %3376 = vmatprep.subr.mxu0 0.0
      %3377 = vmatpush1.msra.mxu0 0.0
      %3378 = vmatprep.subr.mxu0 0.0
      %3379 = vmatpush1.msra.mxu0 0.0
      %3380 = vmatprep.subr.mxu0 0.0
      %3381 = vmatpush1.msra.mxu0 0.0
      %3382 = vmatprep.subr.mxu0 0.0
      %3383 = vmatpush1.msra.mxu0 0.0
      %3384 = vmatprep.subr.mxu0 0.0
      %3385 = vmatpush1.msra.mxu0 0.0
      %3386 = vmatprep.subr.mxu0 0.0
      %3387 = vmatpush1.msra.mxu0 0.0
      %3388 = vmatprep.subr.mxu0 0.0
      %3389 = vmatpush1.msra.mxu0 0.0
      %3390 = vmatprep.subr.mxu0 0.0
      %3391 = vmatpush1.msra.mxu0 0.0
      %3392 = vmatprep.subr.mxu0 0.0
      %3393 = vmatpush1.msra.mxu0 0.0
      %3394 = vmatprep.subr.mxu0 0.0
      %3395 = vmatpush1.msra.mxu0 0.0
      %3396 = vmatprep.subr.mxu0 0.0
      %3397 = vmatpush1.msra.mxu0 0.0
      %3398 = vmatprep.subr.mxu0 0.0
      %3399 = vmatpush1.msra.mxu0 0.0
      %3400 = vmatprep.subr.mxu0 0.0
      %3401 = vmatpush1.msra.mxu0 0.0
      %3402 = vmatprep.mubr.f32.mxu0 0.0
      %3403 = vmatmul.mubr.f32.gmra.mrb[0].mxu0 %v3333
      %v3404 = vpop.f32.mrb[0].mxu0
      %v3405 = vadd.f32 0.0, %v3404
      %v3406 = vpop.f32.mrb[0].mxu0
      %3407 = vmatprep.mubr.f32.mxu0 0.0
      %3408 = vmatmul.mubr.f32.gmra.mrb[0].mxu0 %v3336
      %v3409 = vpop.f32.mrb[0].mxu0
      %v3410 = vadd.f32 0.0, %v3409
      %v3411 = vpop.f32.mrb[0].mxu0
      %3412 = vdwg.mxu0
      %v3413 = vadd.f32 %v3252, %v3405
      %v3414 = vadd.f32 %v3252, %v3410
      %3415 = vmatprep.subr.mxu0 0.0
      %3416 = vmatpush1.msra.mxu0 %v3245
      %3417 = vmatprep.subr.mxu0 0.0
      %3418 = vmatpush1.msra.mxu0 %v3246
      %3419 = vmatprep.subr.mxu0 0.0
      %3420 = vmatpush1.msra.mxu0 0.0
      %3421 = vmatprep.subr.mxu0 0.0
      %3422 = vmatpush1.msra.mxu0 0.0
      %3423 = vmatprep.subr.mxu0 0.0
      %3424 = vmatpush1.msra.mxu0 0.0
      %3425 = vmatprep.subr.mxu0 0.0
      %3426 = vmatpush1.msra.mxu0 0.0
      %3427 = vmatprep.subr.mxu0 0.0
      %3428 = vmatpush1.msra.mxu0 0.0
      %3429 = vmatprep.subr.mxu0 0.0
      %3430 = vmatpush1.msra.mxu0 0.0
      %3431 = vmatprep.subr.mxu0 0.0
      %3432 = vmatpush1.msra.mxu0 0.0
      %3433 = vmatprep.subr.mxu0 0.0
      %3434 = vmatpush1.msra.mxu0 0.0
      %3435 = vmatprep.subr.mxu0 0.0
      %3436 = vmatpush1.msra.mxu0 0.0
      %3437 = vmatprep.subr.mxu0 0.0
      %3438 = vmatpush1.msra.mxu0 0.0
      %3439 = vmatprep.subr.mxu0 0.0
      %3440 = vmatpush1.msra.mxu0 0.0
      %3441 = vmatprep.subr.mxu0 0.0
      %3442 = vmatpush1.msra.mxu0 0.0
      %3443 = vmatprep.subr.mxu0 0.0
      %3444 = vmatpush1.msra.mxu0 0.0
      %3445 = vmatprep.subr.mxu0 0.0
      %3446 = vmatpush1.msra.mxu0 0.0
      %3447 = vmatprep.subr.mxu0 0.0
      %3448 = vmatpush1.msra.mxu0 0.0
      %3449 = vmatprep.subr.mxu0 0.0
      %3450 = vmatpush1.msra.mxu0 0.0
      %3451 = vmatprep.subr.mxu0 0.0
      %3452 = vmatpush1.msra.mxu0 0.0
      %3453 = vmatprep.subr.mxu0 0.0
      %3454 = vmatpush1.msra.mxu0 0.0
      %3455 = vmatprep.subr.mxu0 0.0
      %3456 = vmatpush1.msra.mxu0 0.0
      %3457 = vmatprep.subr.mxu0 0.0
      %3458 = vmatpush1.msra.mxu0 0.0
      %3459 = vmatprep.subr.mxu0 0.0
      %3460 = vmatpush1.msra.mxu0 0.0
      %3461 = vmatprep.subr.mxu0 0.0
      %3462 = vmatpush1.msra.mxu0 0.0
      %3463 = vmatprep.subr.mxu0 0.0
      %3464 = vmatpush1.msra.mxu0 0.0
      %3465 = vmatprep.subr.mxu0 0.0
      %3466 = vmatpush1.msra.mxu0 0.0
      %3467 = vmatprep.subr.mxu0 0.0
      %3468 = vmatpush1.msra.mxu0 0.0
      %3469 = vmatprep.subr.mxu0 0.0
      %3470 = vmatpush1.msra.mxu0 0.0
      %3471 = vmatprep.subr.mxu0 0.0
      %3472 = vmatpush1.msra.mxu0 0.0
      %3473 = vmatprep.subr.mxu0 0.0
      %3474 = vmatpush1.msra.mxu0 0.0
      %3475 = vmatprep.subr.mxu0 0.0
      %3476 = vmatpush1.msra.mxu0 0.0
      %3477 = vmatprep.subr.mxu0 0.0
      %3478 = vmatpush1.msra.mxu0 0.0
      %3479 = vmatprep.mubr.f32.mxu0 0.0
      %3480 = vmatmul.mubr.f32.gmra.mrb[0].mxu0 %v1756
      %v3481 = vpop.f32.mrb[0].mxu0
      %v3482 = vadd.f32 0.0, %v3481
      %v3483 = vpop.f32.mrb[0].mxu0
      %3484 = vmatprep.mubr.f32.mxu0 0.0
      %3485 = vmatmul.mubr.f32.gmra.mrb[0].mxu0 %v1759
      %v3486 = vpop.f32.mrb[0].mxu0
      %v3487 = vadd.f32 0.0, %v3486
      %v3488 = vpop.f32.mrb[0].mxu0
      %3489 = vdwg.mxu0
      %v3490 = vld [vmem:[%s1 + $0x2c0] sm:$0xff]
      %v3491 = vld [vmem:[%s1 + $0x2c8] sm:$0xff]
      %v3492 = vld [vmem:[%s1 + $0x2d0] sm:$0xff]
      %v3493 = vld [vmem:[%s1 + $0x2d8] sm:$0xff]
      %v3495 = vsel %vm161, %v3482, 0
      %v3498 = vsel %vm161, %v3487, 0
      %3500 = vmatprep.subr.mxu0 0.0
      %3501 = vmatpush1.msra.mxu0 %v3490
      %3502 = vmatprep.subr.mxu0 0.0
      %3503 = vmatpush1.msra.mxu0 %v3491
      %3504 = vmatprep.subr.mxu0 0.0
      %3505 = vmatpush1.msra.mxu0 %v3492
      %3506 = vmatprep.subr.mxu0 0.0
      %3507 = vmatpush1.msra.mxu0 %v3493
      %3508 = vmatprep.subr.mxu0 0.0
      %3509 = vmatpush1.msra.mxu0 0.0
      %3510 = vmatprep.subr.mxu0 0.0
      %3511 = vmatpush1.msra.mxu0 0.0
      %3512 = vmatprep.subr.mxu0 0.0
      %3513 = vmatpush1.msra.mxu0 0.0
      %3514 = vmatprep.subr.mxu0 0.0
      %3515 = vmatpush1.msra.mxu0 0.0
      %3516 = vmatprep.subr.mxu0 0.0
      %3517 = vmatpush1.msra.mxu0 0.0
      %3518 = vmatprep.subr.mxu0 0.0
      %3519 = vmatpush1.msra.mxu0 0.0
      %3520 = vmatprep.subr.mxu0 0.0
      %3521 = vmatpush1.msra.mxu0 0.0
      %3522 = vmatprep.subr.mxu0 0.0
      %3523 = vmatpush1.msra.mxu0 0.0
      %3524 = vmatprep.subr.mxu0 0.0
      %3525 = vmatpush1.msra.mxu0 0.0
      %3526 = vmatprep.subr.mxu0 0.0
      %3527 = vmatpush1.msra.mxu0 0.0
      %3528 = vmatprep.subr.mxu0 0.0
      %3529 = vmatpush1.msra.mxu0 0.0
      %3530 = vmatprep.subr.mxu0 0.0
      %3531 = vmatpush1.msra.mxu0 0.0
      %3532 = vmatprep.subr.mxu0 0.0
      %3533 = vmatpush1.msra.mxu0 0.0
      %3534 = vmatprep.subr.mxu0 0.0
      %3535 = vmatpush1.msra.mxu0 0.0
      %3536 = vmatprep.subr.mxu0 0.0
      %3537 = vmatpush1.msra.mxu0 0.0
      %3538 = vmatprep.subr.mxu0 0.0
      %3539 = vmatpush1.msra.mxu0 0.0
      %3540 = vmatprep.subr.mxu0 0.0
      %3541 = vmatpush1.msra.mxu0 0.0
      %3542 = vmatprep.subr.mxu0 0.0
      %3543 = vmatpush1.msra.mxu0 0.0
      %3544 = vmatprep.subr.mxu0 0.0
      %3545 = vmatpush1.msra.mxu0 0.0
      %3546 = vmatprep.subr.mxu0 0.0
      %3547 = vmatpush1.msra.mxu0 0.0
      %3548 = vmatprep.subr.mxu0 0.0
      %3549 = vmatpush1.msra.mxu0 0.0
      %3550 = vmatprep.subr.mxu0 0.0
      %3551 = vmatpush1.msra.mxu0 0.0
      %3552 = vmatprep.subr.mxu0 0.0
      %3553 = vmatpush1.msra.mxu0 0.0
      %3554 = vmatprep.subr.mxu0 0.0
      %3555 = vmatpush1.msra.mxu0 0.0
      %3556 = vmatprep.subr.mxu0 0.0
      %3557 = vmatpush1.msra.mxu0 0.0
      %3558 = vmatprep.subr.mxu0 0.0
      %3559 = vmatpush1.msra.mxu0 0.0
      %3560 = vmatprep.subr.mxu0 0.0
      %3561 = vmatpush1.msra.mxu0 0.0
      %3562 = vmatprep.subr.mxu0 0.0
      %3563 = vmatpush1.msra.mxu0 0.0
      %3564 = vmatprep.mubr.f32.mxu0 0.0
      %3565 = vmatmul.mubr.f32.gmra.mrb[0].mxu0 %v3495
      %v3566 = vpop.f32.mrb[0].mxu0
      %v3567 = vadd.f32 0.0, %v3566
      %v3568 = vpop.f32.mrb[0].mxu0
      %3569 = vmatprep.mubr.f32.mxu0 0.0
      %3570 = vmatmul.mubr.f32.gmra.mrb[0].mxu0 %v3498
      %v3571 = vpop.f32.mrb[0].mxu0
      %v3572 = vadd.f32 0.0, %v3571
      %v3573 = vpop.f32.mrb[0].mxu0
      %3574 = vdwg.mxu0
      %v3575 = vadd.f32 %v3413, %v3567
      %v3576 = vadd.f32 %v3414, %v3572
      %3577 = vmatprep.subr.mxu0 0.0
      %3578 = vmatpush1.msra.mxu0 %v3245
      %3579 = vmatprep.subr.mxu0 0.0
      %3580 = vmatpush1.msra.mxu0 %v3246
      %3581 = vmatprep.subr.mxu0 0.0
      %3582 = vmatpush1.msra.mxu0 0.0
      %3583 = vmatprep.subr.mxu0 0.0
      %3584 = vmatpush1.msra.mxu0 0.0
      %3585 = vmatprep.subr.mxu0 0.0
      %3586 = vmatpush1.msra.mxu0 0.0
      %3587 = vmatprep.subr.mxu0 0.0
      %3588 = vmatpush1.msra.mxu0 0.0
      %3589 = vmatprep.subr.mxu0 0.0
      %3590 = vmatpush1.msra.mxu0 0.0
      %3591 = vmatprep.subr.mxu0 0.0
      %3592 = vmatpush1.msra.mxu0 0.0
      %3593 = vmatprep.subr.mxu0 0.0
      %3594 = vmatpush1.msra.mxu0 0.0
      %3595 = vmatprep.subr.mxu0 0.0
      %3596 = vmatpush1.msra.mxu0 0.0
      %3597 = vmatprep.subr.mxu0 0.0
      %3598 = vmatpush1.msra.mxu0 0.0
      %3599 = vmatprep.subr.mxu0 0.0
      %3600 = vmatpush1.msra.mxu0 0.0
      %3601 = vmatprep.subr.mxu0 0.0
      %3602 = vmatpush1.msra.mxu0 0.0
      %3603 = vmatprep.subr.mxu0 0.0
      %3604 = vmatpush1.msra.mxu0 0.0
      %3605 = vmatprep.subr.mxu0 0.0
      %3606 = vmatpush1.msra.mxu0 0.0
      %3607 = vmatprep.subr.mxu0 0.0
      %3608 = vmatpush1.msra.mxu0 0.0
      %3609 = vmatprep.subr.mxu0 0.0
      %3610 = vmatpush1.msra.mxu0 0.0
      %3611 = vmatprep.subr.mxu0 0.0
      %3612 = vmatpush1.msra.mxu0 0.0
      %3613 = vmatprep.subr.mxu0 0.0
      %3614 = vmatpush1.msra.mxu0 0.0
      %3615 = vmatprep.subr.mxu0 0.0
      %3616 = vmatpush1.msra.mxu0 0.0
      %3617 = vmatprep.subr.mxu0 0.0
      %3618 = vmatpush1.msra.mxu0 0.0
      %3619 = vmatprep.subr.mxu0 0.0
      %3620 = vmatpush1.msra.mxu0 0.0
      %3621 = vmatprep.subr.mxu0 0.0
      %3622 = vmatpush1.msra.mxu0 0.0
      %3623 = vmatprep.subr.mxu0 0.0
      %3624 = vmatpush1.msra.mxu0 0.0
      %3625 = vmatprep.subr.mxu0 0.0
      %3626 = vmatpush1.msra.mxu0 0.0
      %3627 = vmatprep.subr.mxu0 0.0
      %3628 = vmatpush1.msra.mxu0 0.0
      %3629 = vmatprep.subr.mxu0 0.0
      %3630 = vmatpush1.msra.mxu0 0.0
      %3631 = vmatprep.subr.mxu0 0.0
      %3632 = vmatpush1.msra.mxu0 0.0
      %3633 = vmatprep.subr.mxu0 0.0
      %3634 = vmatpush1.msra.mxu0 0.0
      %3635 = vmatprep.subr.mxu0 0.0
      %3636 = vmatpush1.msra.mxu0 0.0
      %3637 = vmatprep.subr.mxu0 0.0
      %3638 = vmatpush1.msra.mxu0 0.0
      %3639 = vmatprep.subr.mxu0 0.0
      %3640 = vmatpush1.msra.mxu0 0.0
      %3641 = vmatprep.mubr.f32.mxu0 0.0
      %3642 = vmatmul.mubr.f32.gmra.mrb[0].mxu0 %v1924
      %v3643 = vpop.f32.mrb[0].mxu0
      %v3644 = vadd.f32 0.0, %v3643
      %v3645 = vpop.f32.mrb[0].mxu0
      %3646 = vmatprep.mubr.f32.mxu0 0.0
      %3647 = vmatmul.mubr.f32.gmra.mrb[0].mxu0 %v1927
      %v3648 = vpop.f32.mrb[0].mxu0
      %v3649 = vadd.f32 0.0, %v3648
      %v3650 = vpop.f32.mrb[0].mxu0
      %3651 = vdwg.mxu0
      %v3652 = vld [vmem:[%s1 + $0x2e0] sm:$0xff]
      %v3653 = vld [vmem:[%s1 + $0x2e8] sm:$0xff]
      %v3654 = vld [vmem:[%s1 + $0x2f0] sm:$0xff]
      %v3655 = vld [vmem:[%s1 + $0x2f8] sm:$0xff]
      %v3657 = vsel %vm161, %v3644, 0
      %v3660 = vsel %vm161, %v3649, 0
      %3662 = vmatprep.subr.mxu0 0.0
      %3663 = vmatpush1.msra.mxu0 %v3652
      %3664 = vmatprep.subr.mxu0 0.0
      %3665 = vmatpush1.msra.mxu0 %v3653
      %3666 = vmatprep.subr.mxu0 0.0
      %3667 = vmatpush1.msra.mxu0 %v3654
      %3668 = vmatprep.subr.mxu0 0.0
      %3669 = vmatpush1.msra.mxu0 %v3655
      %3670 = vmatprep.subr.mxu0 0.0
      %3671 = vmatpush1.msra.mxu0 0.0
      %3672 = vmatprep.subr.mxu0 0.0
      %3673 = vmatpush1.msra.mxu0 0.0
      %3674 = vmatprep.subr.mxu0 0.0
      %3675 = vmatpush1.msra.mxu0 0.0
      %3676 = vmatprep.subr.mxu0 0.0
      %3677 = vmatpush1.msra.mxu0 0.0
      %3678 = vmatprep.subr.mxu0 0.0
      %3679 = vmatpush1.msra.mxu0 0.0
      %3680 = vmatprep.subr.mxu0 0.0
      %3681 = vmatpush1.msra.mxu0 0.0
      %3682 = vmatprep.subr.mxu0 0.0
      %3683 = vmatpush1.msra.mxu0 0.0
      %3684 = vmatprep.subr.mxu0 0.0
      %3685 = vmatpush1.msra.mxu0 0.0
      %3686 = vmatprep.subr.mxu0 0.0
      %3687 = vmatpush1.msra.mxu0 0.0
      %3688 = vmatprep.subr.mxu0 0.0
      %3689 = vmatpush1.msra.mxu0 0.0
      %3690 = vmatprep.subr.mxu0 0.0
      %3691 = vmatpush1.msra.mxu0 0.0
      %3692 = vmatprep.subr.mxu0 0.0
      %3693 = vmatpush1.msra.mxu0 0.0
      %3694 = vmatprep.subr.mxu0 0.0
      %3695 = vmatpush1.msra.mxu0 0.0
      %3696 = vmatprep.subr.mxu0 0.0
      %3697 = vmatpush1.msra.mxu0 0.0
      %3698 = vmatprep.subr.mxu0 0.0
      %3699 = vmatpush1.msra.mxu0 0.0
      %3700 = vmatprep.subr.mxu0 0.0
      %3701 = vmatpush1.msra.mxu0 0.0
      %3702 = vmatprep.subr.mxu0 0.0
      %3703 = vmatpush1.msra.mxu0 0.0
      %3704 = vmatprep.subr.mxu0 0.0
      %3705 = vmatpush1.msra.mxu0 0.0
      %3706 = vmatprep.subr.mxu0 0.0
      %3707 = vmatpush1.msra.mxu0 0.0
      %3708 = vmatprep.subr.mxu0 0.0
      %3709 = vmatpush1.msra.mxu0 0.0
      %3710 = vmatprep.subr.mxu0 0.0
      %3711 = vmatpush1.msra.mxu0 0.0
      %3712 = vmatprep.subr.mxu0 0.0
      %3713 = vmatpush1.msra.mxu0 0.0
      %3714 = vmatprep.subr.mxu0 0.0
      %3715 = vmatpush1.msra.mxu0 0.0
      %3716 = vmatprep.subr.mxu0 0.0
      %3717 = vmatpush1.msra.mxu0 0.0
      %3718 = vmatprep.subr.mxu0 0.0
      %3719 = vmatpush1.msra.mxu0 0.0
      %3720 = vmatprep.subr.mxu0 0.0
      %3721 = vmatpush1.msra.mxu0 0.0
      %3722 = vmatprep.subr.mxu0 0.0
      %3723 = vmatpush1.msra.mxu0 0.0
      %3724 = vmatprep.subr.mxu0 0.0
      %3725 = vmatpush1.msra.mxu0 0.0
      %3726 = vmatprep.mubr.f32.mxu0 0.0
      %3727 = vmatmul.mubr.f32.gmra.mrb[0].mxu0 %v3657
      %v3728 = vpop.f32.mrb[0].mxu0
      %v3729 = vadd.f32 0.0, %v3728
      %v3730 = vpop.f32.mrb[0].mxu0
      %3731 = vmatprep.mubr.f32.mxu0 0.0
      %3732 = vmatmul.mubr.f32.gmra.mrb[0].mxu0 %v3660
      %v3733 = vpop.f32.mrb[0].mxu0
      %v3734 = vadd.f32 0.0, %v3733
      %v3735 = vpop.f32.mrb[0].mxu0
      %3736 = vdwg.mxu0
      %v3737 = vadd.f32 %v3575, %v3729
      %v3738 = vadd.f32 %v3576, %v3734
      %3739 = vmatprep.subr.mxu0 0.0
      %3740 = vmatpush1.msra.mxu0 %v3245
      %3741 = vmatprep.subr.mxu0 0.0
      %3742 = vmatpush1.msra.mxu0 %v3246
      %3743 = vmatprep.subr.mxu0 0.0
      %3744 = vmatpush1.msra.mxu0 0.0
      %3745 = vmatprep.subr.mxu0 0.0
      %3746 = vmatpush1.msra.mxu0 0.0
      %3747 = vmatprep.subr.mxu0 0.0
      %3748 = vmatpush1.msra.mxu0 0.0
      %3749 = vmatprep.subr.mxu0 0.0
      %3750 = vmatpush1.msra.mxu0 0.0
      %3751 = vmatprep.subr.mxu0 0.0
      %3752 = vmatpush1.msra.mxu0 0.0
      %3753 = vmatprep.subr.mxu0 0.0
      %3754 = vmatpush1.msra.mxu0 0.0
      %3755 = vmatprep.subr.mxu0 0.0
      %3756 = vmatpush1.msra.mxu0 0.0
      %3757 = vmatprep.subr.mxu0 0.0
      %3758 = vmatpush1.msra.mxu0 0.0
      %3759 = vmatprep.subr.mxu0 0.0
      %3760 = vmatpush1.msra.mxu0 0.0
      %3761 = vmatprep.subr.mxu0 0.0
      %3762 = vmatpush1.msra.mxu0 0.0
      %3763 = vmatprep.subr.mxu0 0.0
      %3764 = vmatpush1.msra.mxu0 0.0
      %3765 = vmatprep.subr.mxu0 0.0
      %3766 = vmatpush1.msra.mxu0 0.0
      %3767 = vmatprep.subr.mxu0 0.0
      %3768 = vmatpush1.msra.mxu0 0.0
      %3769 = vmatprep.subr.mxu0 0.0
      %3770 = vmatpush1.msra.mxu0 0.0
      %3771 = vmatprep.subr.mxu0 0.0
      %3772 = vmatpush1.msra.mxu0 0.0
      %3773 = vmatprep.subr.mxu0 0.0
      %3774 = vmatpush1.msra.mxu0 0.0
      %3775 = vmatprep.subr.mxu0 0.0
      %3776 = vmatpush1.msra.mxu0 0.0
      %3777 = vmatprep.subr.mxu0 0.0
      %3778 = vmatpush1.msra.mxu0 0.0
      %3779 = vmatprep.subr.mxu0 0.0
      %3780 = vmatpush1.msra.mxu0 0.0
      %3781 = vmatprep.subr.mxu0 0.0
      %3782 = vmatpush1.msra.mxu0 0.0
      %3783 = vmatprep.subr.mxu0 0.0
      %3784 = vmatpush1.msra.mxu0 0.0
      %3785 = vmatprep.subr.mxu0 0.0
      %3786 = vmatpush1.msra.mxu0 0.0
      %3787 = vmatprep.subr.mxu0 0.0
      %3788 = vmatpush1.msra.mxu0 0.0
      %3789 = vmatprep.subr.mxu0 0.0
      %3790 = vmatpush1.msra.mxu0 0.0
      %3791 = vmatprep.subr.mxu0 0.0
      %3792 = vmatpush1.msra.mxu0 0.0
      %3793 = vmatprep.subr.mxu0 0.0
      %3794 = vmatpush1.msra.mxu0 0.0
      %3795 = vmatprep.subr.mxu0 0.0
      %3796 = vmatpush1.msra.mxu0 0.0
      %3797 = vmatprep.subr.mxu0 0.0
      %3798 = vmatpush1.msra.mxu0 0.0
      %3799 = vmatprep.subr.mxu0 0.0
      %3800 = vmatpush1.msra.mxu0 0.0
      %3801 = vmatprep.subr.mxu0 0.0
      %3802 = vmatpush1.msra.mxu0 0.0
      %3803 = vmatprep.mubr.f32.mxu0 0.0
      %3804 = vmatmul.mubr.f32.gmra.mrb[0].mxu0 %v2092
      %v3805 = vpop.f32.mrb[0].mxu0
      %v3806 = vadd.f32 0.0, %v3805
      %v3807 = vpop.f32.mrb[0].mxu0
      %3808 = vmatprep.mubr.f32.mxu0 0.0
      %3809 = vmatmul.mubr.f32.gmra.mrb[0].mxu0 %v2095
      %v3810 = vpop.f32.mrb[0].mxu0
      %v3811 = vadd.f32 0.0, %v3810
      %v3812 = vpop.f32.mrb[0].mxu0
      %3813 = vdwg.mxu0
      %v3814 = vld [vmem:[%s1 + $0x300] sm:$0xff]
      %v3815 = vld [vmem:[%s1 + $0x308] sm:$0xff]
      %v3816 = vld [vmem:[%s1 + $0x310] sm:$0xff]
      %v3817 = vld [vmem:[%s1 + $0x318] sm:$0xff]
      %v3819 = vsel %vm161, %v3806, 0
      %v3822 = vsel %vm161, %v3811, 0
      %3824 = vmatprep.subr.mxu0 0.0
      %3825 = vmatpush1.msra.mxu0 %v3814
      %3826 = vmatprep.subr.mxu0 0.0
      %3827 = vmatpush1.msra.mxu0 %v3815
      %3828 = vmatprep.subr.mxu0 0.0
      %3829 = vmatpush1.msra.mxu0 %v3816
      %3830 = vmatprep.subr.mxu0 0.0
      %3831 = vmatpush1.msra.mxu0 %v3817
      %3832 = vmatprep.subr.mxu0 0.0
      %3833 = vmatpush1.msra.mxu0 0.0
      %3834 = vmatprep.subr.mxu0 0.0
      %3835 = vmatpush1.msra.mxu0 0.0
      %3836 = vmatprep.subr.mxu0 0.0
      %3837 = vmatpush1.msra.mxu0 0.0
      %3838 = vmatprep.subr.mxu0 0.0
      %3839 = vmatpush1.msra.mxu0 0.0
      %3840 = vmatprep.subr.mxu0 0.0
      %3841 = vmatpush1.msra.mxu0 0.0
      %3842 = vmatprep.subr.mxu0 0.0
      %3843 = vmatpush1.msra.mxu0 0.0
      %3844 = vmatprep.subr.mxu0 0.0
      %3845 = vmatpush1.msra.mxu0 0.0
      %3846 = vmatprep.subr.mxu0 0.0
      %3847 = vmatpush1.msra.mxu0 0.0
      %3848 = vmatprep.subr.mxu0 0.0
      %3849 = vmatpush1.msra.mxu0 0.0
      %3850 = vmatprep.subr.mxu0 0.0
      %3851 = vmatpush1.msra.mxu0 0.0
      %3852 = vmatprep.subr.mxu0 0.0
      %3853 = vmatpush1.msra.mxu0 0.0
      %3854 = vmatprep.subr.mxu0 0.0
      %3855 = vmatpush1.msra.mxu0 0.0
      %3856 = vmatprep.subr.mxu0 0.0
      %3857 = vmatpush1.msra.mxu0 0.0
      %3858 = vmatprep.subr.mxu0 0.0
      %3859 = vmatpush1.msra.mxu0 0.0
      %3860 = vmatprep.subr.mxu0 0.0
      %3861 = vmatpush1.msra.mxu0 0.0
      %3862 = vmatprep.subr.mxu0 0.0
      %3863 = vmatpush1.msra.mxu0 0.0
      %3864 = vmatprep.subr.mxu0 0.0
      %3865 = vmatpush1.msra.mxu0 0.0
      %3866 = vmatprep.subr.mxu0 0.0
      %3867 = vmatpush1.msra.mxu0 0.0
      %3868 = vmatprep.subr.mxu0 0.0
      %3869 = vmatpush1.msra.mxu0 0.0
      %3870 = vmatprep.subr.mxu0 0.0
      %3871 = vmatpush1.msra.mxu0 0.0
      %3872 = vmatprep.subr.mxu0 0.0
      %3873 = vmatpush1.msra.mxu0 0.0
      %3874 = vmatprep.subr.mxu0 0.0
      %3875 = vmatpush1.msra.mxu0 0.0
      %3876 = vmatprep.subr.mxu0 0.0
      %3877 = vmatpush1.msra.mxu0 0.0
      %3878 = vmatprep.subr.mxu0 0.0
      %3879 = vmatpush1.msra.mxu0 0.0
      %3880 = vmatprep.subr.mxu0 0.0
      %3881 = vmatpush1.msra.mxu0 0.0
      %3882 = vmatprep.subr.mxu0 0.0
      %3883 = vmatpush1.msra.mxu0 0.0
      %3884 = vmatprep.subr.mxu0 0.0
      %3885 = vmatpush1.msra.mxu0 0.0
      %3886 = vmatprep.subr.mxu0 0.0
      %3887 = vmatpush1.msra.mxu0 0.0
      %3888 = vmatprep.mubr.f32.mxu0 0.0
      %3889 = vmatmul.mubr.f32.gmra.mrb[0].mxu0 %v3819
      %v3890 = vpop.f32.mrb[0].mxu0
      %v3891 = vadd.f32 0.0, %v3890
      %v3892 = vpop.f32.mrb[0].mxu0
      %3893 = vmatprep.mubr.f32.mxu0 0.0
      %3894 = vmatmul.mubr.f32.gmra.mrb[0].mxu0 %v3822
      %v3895 = vpop.f32.mrb[0].mxu0
      %v3896 = vadd.f32 0.0, %v3895
      %v3897 = vpop.f32.mrb[0].mxu0
      %3898 = vdwg.mxu0
      %v3899 = vadd.f32 %v3737, %v3891
      %v3900 = vadd.f32 %v3738, %v3896
      %3901 = vmatprep.subr.mxu0 0.0
      %3902 = vmatpush1.msra.mxu0 %v3245
      %3903 = vmatprep.subr.mxu0 0.0
      %3904 = vmatpush1.msra.mxu0 %v3246
      %3905 = vmatprep.subr.mxu0 0.0
      %3906 = vmatpush1.msra.mxu0 0.0
      %3907 = vmatprep.subr.mxu0 0.0
      %3908 = vmatpush1.msra.mxu0 0.0
      %3909 = vmatprep.subr.mxu0 0.0
      %3910 = vmatpush1.msra.mxu0 0.0
      %3911 = vmatprep.subr.mxu0 0.0
      %3912 = vmatpush1.msra.mxu0 0.0
      %3913 = vmatprep.subr.mxu0 0.0
      %3914 = vmatpush1.msra.mxu0 0.0
      %3915 = vmatprep.subr.mxu0 0.0
      %3916 = vmatpush1.msra.mxu0 0.0
      %3917 = vmatprep.subr.mxu0 0.0
      %3918 = vmatpush1.msra.mxu0 0.0
      %3919 = vmatprep.subr.mxu0 0.0
      %3920 = vmatpush1.msra.mxu0 0.0
      %3921 = vmatprep.subr.mxu0 0.0
      %3922 = vmatpush1.msra.mxu0 0.0
      %3923 = vmatprep.subr.mxu0 0.0
      %3924 = vmatpush1.msra.mxu0 0.0
      %3925 = vmatprep.subr.mxu0 0.0
      %3926 = vmatpush1.msra.mxu0 0.0
      %3927 = vmatprep.subr.mxu0 0.0
      %3928 = vmatpush1.msra.mxu0 0.0
      %3929 = vmatprep.subr.mxu0 0.0
      %3930 = vmatpush1.msra.mxu0 0.0
      %3931 = vmatprep.subr.mxu0 0.0
      %3932 = vmatpush1.msra.mxu0 0.0
      %3933 = vmatprep.subr.mxu0 0.0
      %3934 = vmatpush1.msra.mxu0 0.0
      %3935 = vmatprep.subr.mxu0 0.0
      %3936 = vmatpush1.msra.mxu0 0.0
      %3937 = vmatprep.subr.mxu0 0.0
      %3938 = vmatpush1.msra.mxu0 0.0
      %3939 = vmatprep.subr.mxu0 0.0
      %3940 = vmatpush1.msra.mxu0 0.0
      %3941 = vmatprep.subr.mxu0 0.0
      %3942 = vmatpush1.msra.mxu0 0.0
      %3943 = vmatprep.subr.mxu0 0.0
      %3944 = vmatpush1.msra.mxu0 0.0
      %3945 = vmatprep.subr.mxu0 0.0
      %3946 = vmatpush1.msra.mxu0 0.0
      %3947 = vmatprep.subr.mxu0 0.0
      %3948 = vmatpush1.msra.mxu0 0.0
      %3949 = vmatprep.subr.mxu0 0.0
      %3950 = vmatpush1.msra.mxu0 0.0
      %3951 = vmatprep.subr.mxu0 0.0
      %3952 = vmatpush1.msra.mxu0 0.0
      %3953 = vmatprep.subr.mxu0 0.0
      %3954 = vmatpush1.msra.mxu0 0.0
      %3955 = vmatprep.subr.mxu0 0.0
      %3956 = vmatpush1.msra.mxu0 0.0
      %3957 = vmatprep.subr.mxu0 0.0
      %3958 = vmatpush1.msra.mxu0 0.0
      %3959 = vmatprep.subr.mxu0 0.0
      %3960 = vmatpush1.msra.mxu0 0.0
      %3961 = vmatprep.subr.mxu0 0.0
      %3962 = vmatpush1.msra.mxu0 0.0
      %3963 = vmatprep.subr.mxu0 0.0
      %3964 = vmatpush1.msra.mxu0 0.0
      %3965 = vmatprep.mubr.f32.mxu0 0.0
      %3966 = vmatmul.mubr.f32.gmra.mrb[0].mxu0 %v2260
      %v3967 = vpop.f32.mrb[0].mxu0
      %v3968 = vadd.f32 0.0, %v3967
      %v3969 = vpop.f32.mrb[0].mxu0
      %3970 = vmatprep.mubr.f32.mxu0 0.0
      %3971 = vmatmul.mubr.f32.gmra.mrb[0].mxu0 %v2263
      %v3972 = vpop.f32.mrb[0].mxu0
      %v3973 = vadd.f32 0.0, %v3972
      %v3974 = vpop.f32.mrb[0].mxu0
      %3975 = vdwg.mxu0
      %v3976 = vld [vmem:[%s1 + $0x320] sm:$0xff]
      %v3977 = vld [vmem:[%s1 + $0x328] sm:$0xff]
      %v3978 = vld [vmem:[%s1 + $0x330] sm:$0xff]
      %v3979 = vld [vmem:[%s1 + $0x338] sm:$0xff]
      %v3981 = vsel %vm161, %v3968, 0
      %v3984 = vsel %vm161, %v3973, 0
      %3986 = vmatprep.subr.mxu0 0.0
      %3987 = vmatpush1.msra.mxu0 %v3976
      %3988 = vmatprep.subr.mxu0 0.0
      %3989 = vmatpush1.msra.mxu0 %v3977
      %3990 = vmatprep.subr.mxu0 0.0
      %3991 = vmatpush1.msra.mxu0 %v3978
      %3992 = vmatprep.subr.mxu0 0.0
      %3993 = vmatpush1.msra.mxu0 %v3979
      %3994 = vmatprep.subr.mxu0 0.0
      %3995 = vmatpush1.msra.mxu0 0.0
      %3996 = vmatprep.subr.mxu0 0.0
      %3997 = vmatpush1.msra.mxu0 0.0
      %3998 = vmatprep.subr.mxu0 0.0
      %3999 = vmatpush1.msra.mxu0 0.0
      %4000 = vmatprep.subr.mxu0 0.0
      %4001 = vmatpush1.msra.mxu0 0.0
      %4002 = vmatprep.subr.mxu0 0.0
      %4003 = vmatpush1.msra.mxu0 0.0
      %4004 = vmatprep.subr.mxu0 0.0
      %4005 = vmatpush1.msra.mxu0 0.0
      %4006 = vmatprep.subr.mxu0 0.0
      %4007 = vmatpush1.msra.mxu0 0.0
      %4008 = vmatprep.subr.mxu0 0.0
      %4009 = vmatpush1.msra.mxu0 0.0
      %4010 = vmatprep.subr.mxu0 0.0
      %4011 = vmatpush1.msra.mxu0 0.0
      %4012 = vmatprep.subr.mxu0 0.0
      %4013 = vmatpush1.msra.mxu0 0.0
      %4014 = vmatprep.subr.mxu0 0.0
      %4015 = vmatpush1.msra.mxu0 0.0
      %4016 = vmatprep.subr.mxu0 0.0
      %4017 = vmatpush1.msra.mxu0 0.0
      %4018 = vmatprep.subr.mxu0 0.0
      %4019 = vmatpush1.msra.mxu0 0.0
      %4020 = vmatprep.subr.mxu0 0.0
      %4021 = vmatpush1.msra.mxu0 0.0
      %4022 = vmatprep.subr.mxu0 0.0
      %4023 = vmatpush1.msra.mxu0 0.0
      %4024 = vmatprep.subr.mxu0 0.0
      %4025 = vmatpush1.msra.mxu0 0.0
      %4026 = vmatprep.subr.mxu0 0.0
      %4027 = vmatpush1.msra.mxu0 0.0
      %4028 = vmatprep.subr.mxu0 0.0
      %4029 = vmatpush1.msra.mxu0 0.0
      %4030 = vmatprep.subr.mxu0 0.0
      %4031 = vmatpush1.msra.mxu0 0.0
      %4032 = vmatprep.subr.mxu0 0.0
      %4033 = vmatpush1.msra.mxu0 0.0
      %4034 = vmatprep.subr.mxu0 0.0
      %4035 = vmatpush1.msra.mxu0 0.0
      %4036 = vmatprep.subr.mxu0 0.0
      %4037 = vmatpush1.msra.mxu0 0.0
      %4038 = vmatprep.subr.mxu0 0.0
      %4039 = vmatpush1.msra.mxu0 0.0
      %4040 = vmatprep.subr.mxu0 0.0
      %4041 = vmatpush1.msra.mxu0 0.0
      %4042 = vmatprep.subr.mxu0 0.0
      %4043 = vmatpush1.msra.mxu0 0.0
      %4044 = vmatprep.subr.mxu0 0.0
      %4045 = vmatpush1.msra.mxu0 0.0
      %4046 = vmatprep.subr.mxu0 0.0
      %4047 = vmatpush1.msra.mxu0 0.0
      %4048 = vmatprep.subr.mxu0 0.0
      %4049 = vmatpush1.msra.mxu0 0.0
      %4050 = vmatprep.mubr.f32.mxu0 0.0
      %4051 = vmatmul.mubr.f32.gmra.mrb[0].mxu0 %v3981
      %v4052 = vpop.f32.mrb[0].mxu0
      %v4053 = vadd.f32 0.0, %v4052
      %v4054 = vpop.f32.mrb[0].mxu0
      %4055 = vmatprep.mubr.f32.mxu0 0.0
      %4056 = vmatmul.mubr.f32.gmra.mrb[0].mxu0 %v3984
      %v4057 = vpop.f32.mrb[0].mxu0
      %v4058 = vadd.f32 0.0, %v4057
      %v4059 = vpop.f32.mrb[0].mxu0
      %4060 = vdwg.mxu0
      %v4061 = vadd.f32 %v3899, %v4053
      %v4062 = vadd.f32 %v3900, %v4058
      %v4063 = vtanh.pop %v4061
      %v4064 = vtanh.pop %v4062
      %v4065 = vld [vmem:[%s1 + $0x4e8] sm:$0x1]
      %v4066 = vlaneseq
      %v4067 = vshrl.u32 %v4066, 7
      %v4068 = vsub.s32 0, %v4067
      %v4069 = vrot.slane %v4065, %v4068
      %v4070 = vadd.f32 %v4069, 0.0
      %4071 = vmatprep.subr.mxu0 0.0
      %4072 = vmatpush1.msra.mxu0 %v4063
      %4073 = vmatprep.subr.mxu0 0.0
      %4074 = vmatpush1.msra.mxu0 %v4064
      %4075 = vmatprep.subr.mxu0 0.0
      %4076 = vmatpush1.msra.mxu0 0.0
      %4077 = vmatprep.subr.mxu0 0.0
      %4078 = vmatpush1.msra.mxu0 0.0
      %4079 = vmatprep.subr.mxu0 0.0
      %4080 = vmatpush1.msra.mxu0 0.0
      %4081 = vmatprep.subr.mxu0 0.0
      %4082 = vmatpush1.msra.mxu0 0.0
      %4083 = vmatprep.subr.mxu0 0.0
      %4084 = vmatpush1.msra.mxu0 0.0
      %4085 = vmatprep.subr.mxu0 0.0
      %4086 = vmatpush1.msra.mxu0 0.0
      %4087 = vmatprep.subr.mxu0 0.0
      %4088 = vmatpush1.msra.mxu0 0.0
      %4089 = vmatprep.subr.mxu0 0.0
      %4090 = vmatpush1.msra.mxu0 0.0
      %4091 = vmatprep.subr.mxu0 0.0
      %4092 = vmatpush1.msra.mxu0 0.0
      %4093 = vmatprep.subr.mxu0 0.0
      %4094 = vmatpush1.msra.mxu0 0.0
      %4095 = vmatprep.subr.mxu0 0.0
      %4096 = vmatpush1.msra.mxu0 0.0
      %4097 = vmatprep.subr.mxu0 0.0
      %4098 = vmatpush1.msra.mxu0 0.0
      %4099 = vmatprep.subr.mxu0 0.0
      %4100 = vmatpush1.msra.mxu0 0.0
      %4101 = vmatprep.subr.mxu0 0.0
      %4102 = vmatpush1.msra.mxu0 0.0
      %4103 = vmatprep.subr.mxu0 0.0
      %4104 = vmatpush1.msra.mxu0 0.0
      %4105 = vmatprep.subr.mxu0 0.0
      %4106 = vmatpush1.msra.mxu0 0.0
      %4107 = vmatprep.subr.mxu0 0.0
      %4108 = vmatpush1.msra.mxu0 0.0
      %4109 = vmatprep.subr.mxu0 0.0
      %4110 = vmatpush1.msra.mxu0 0.0
      %4111 = vmatprep.subr.mxu0 0.0
      %4112 = vmatpush1.msra.mxu0 0.0
      %4113 = vmatprep.subr.mxu0 0.0
      %4114 = vmatpush1.msra.mxu0 0.0
      %4115 = vmatprep.subr.mxu0 0.0
      %4116 = vmatpush1.msra.mxu0 0.0
      %4117 = vmatprep.subr.mxu0 0.0
      %4118 = vmatpush1.msra.mxu0 0.0
      %4119 = vmatprep.subr.mxu0 0.0
      %4120 = vmatpush1.msra.mxu0 0.0
      %4121 = vmatprep.subr.mxu0 0.0
      %4122 = vmatpush1.msra.mxu0 0.0
      %4123 = vmatprep.subr.mxu0 0.0
      %4124 = vmatpush1.msra.mxu0 0.0
      %4125 = vmatprep.subr.mxu0 0.0
      %4126 = vmatpush1.msra.mxu0 0.0
      %4127 = vmatprep.subr.mxu0 0.0
      %4128 = vmatpush1.msra.mxu0 0.0
      %4129 = vmatprep.subr.mxu0 0.0
      %4130 = vmatpush1.msra.mxu0 0.0
      %4131 = vmatprep.subr.mxu0 0.0
      %4132 = vmatpush1.msra.mxu0 0.0
      %4133 = vmatprep.subr.mxu0 0.0
      %4134 = vmatpush1.msra.mxu0 0.0
      %4135 = vmatprep.mubr.f32.mxu0 0.0
      %4136 = vmatmul.mubr.f32.gmra.mrb[0].mxu0 %v1588
      %v4137 = vpop.f32.mrb[0].mxu0
      %v4138 = vadd.f32 0.0, %v4137
      %v4139 = vpop.f32.mrb[0].mxu0
      %4140 = vmatprep.mubr.f32.mxu0 0.0
      %4141 = vmatmul.mubr.f32.gmra.mrb[0].mxu0 %v1591
      %v4142 = vpop.f32.mrb[0].mxu0
      %v4143 = vadd.f32 0.0, %v4142
      %v4144 = vpop.f32.mrb[0].mxu0
      %4145 = vdwg.mxu0
      %v4146 = vld [vmem:[%s1 + $0x340] sm:$0xff]
      %v4147 = vld [vmem:[%s1 + $0x348] sm:$0xff]
      %v4148 = vld [vmem:[%s1 + $0x350] sm:$0xff]
      %v4149 = vld [vmem:[%s1 + $0x358] sm:$0xff]
      %v4151 = vsel %vm161, %v4138, 0
      %v4154 = vsel %vm161, %v4143, 0
      %4156 = vmatprep.subr.mxu0 0.0
      %4157 = vmatpush1.msra.mxu0 %v4146
      %4158 = vmatprep.subr.mxu0 0.0
      %4159 = vmatpush1.msra.mxu0 %v4147
      %4160 = vmatprep.subr.mxu0 0.0
      %4161 = vmatpush1.msra.mxu0 %v4148
      %4162 = vmatprep.subr.mxu0 0.0
      %4163 = vmatpush1.msra.mxu0 %v4149
      %4164 = vmatprep.subr.mxu0 0.0
      %4165 = vmatpush1.msra.mxu0 0.0
      %4166 = vmatprep.subr.mxu0 0.0
      %4167 = vmatpush1.msra.mxu0 0.0
      %4168 = vmatprep.subr.mxu0 0.0
      %4169 = vmatpush1.msra.mxu0 0.0
      %4170 = vmatprep.subr.mxu0 0.0
      %4171 = vmatpush1.msra.mxu0 0.0
      %4172 = vmatprep.subr.mxu0 0.0
      %4173 = vmatpush1.msra.mxu0 0.0
      %4174 = vmatprep.subr.mxu0 0.0
      %4175 = vmatpush1.msra.mxu0 0.0
      %4176 = vmatprep.subr.mxu0 0.0
      %4177 = vmatpush1.msra.mxu0 0.0
      %4178 = vmatprep.subr.mxu0 0.0
      %4179 = vmatpush1.msra.mxu0 0.0
      %4180 = vmatprep.subr.mxu0 0.0
      %4181 = vmatpush1.msra.mxu0 0.0
      %4182 = vmatprep.subr.mxu0 0.0
      %4183 = vmatpush1.msra.mxu0 0.0
      %4184 = vmatprep.subr.mxu0 0.0
      %4185 = vmatpush1.msra.mxu0 0.0
      %4186 = vmatprep.subr.mxu0 0.0
      %4187 = vmatpush1.msra.mxu0 0.0
      %4188 = vmatprep.subr.mxu0 0.0
      %4189 = vmatpush1.msra.mxu0 0.0
      %4190 = vmatprep.subr.mxu0 0.0
      %4191 = vmatpush1.msra.mxu0 0.0
      %4192 = vmatprep.subr.mxu0 0.0
      %4193 = vmatpush1.msra.mxu0 0.0
      %4194 = vmatprep.subr.mxu0 0.0
      %4195 = vmatpush1.msra.mxu0 0.0
      %4196 = vmatprep.subr.mxu0 0.0
      %4197 = vmatpush1.msra.mxu0 0.0
      %4198 = vmatprep.subr.mxu0 0.0
      %4199 = vmatpush1.msra.mxu0 0.0
      %4200 = vmatprep.subr.mxu0 0.0
      %4201 = vmatpush1.msra.mxu0 0.0
      %4202 = vmatprep.subr.mxu0 0.0
      %4203 = vmatpush1.msra.mxu0 0.0
      %4204 = vmatprep.subr.mxu0 0.0
      %4205 = vmatpush1.msra.mxu0 0.0
      %4206 = vmatprep.subr.mxu0 0.0
      %4207 = vmatpush1.msra.mxu0 0.0
      %4208 = vmatprep.subr.mxu0 0.0
      %4209 = vmatpush1.msra.mxu0 0.0
      %4210 = vmatprep.subr.mxu0 0.0
      %4211 = vmatpush1.msra.mxu0 0.0
      %4212 = vmatprep.subr.mxu0 0.0
      %4213 = vmatpush1.msra.mxu0 0.0
      %4214 = vmatprep.subr.mxu0 0.0
      %4215 = vmatpush1.msra.mxu0 0.0
      %4216 = vmatprep.subr.mxu0 0.0
      %4217 = vmatpush1.msra.mxu0 0.0
      %4218 = vmatprep.subr.mxu0 0.0
      %4219 = vmatpush1.msra.mxu0 0.0
      %4220 = vmatprep.mubr.f32.mxu0 0.0
      %4221 = vmatmul.mubr.f32.gmra.mrb[0].mxu0 %v4151
      %v4222 = vpop.f32.mrb[0].mxu0
      %v4223 = vadd.f32 0.0, %v4222
      %v4224 = vpop.f32.mrb[0].mxu0
      %4225 = vmatprep.mubr.f32.mxu0 0.0
      %4226 = vmatmul.mubr.f32.gmra.mrb[0].mxu0 %v4154
      %v4227 = vpop.f32.mrb[0].mxu0
      %v4228 = vadd.f32 0.0, %v4227
      %v4229 = vpop.f32.mrb[0].mxu0
      %4230 = vdwg.mxu0
      %v4231 = vadd.f32 %v4070, %v4223
      %v4232 = vadd.f32 %v4070, %v4228
      %4233 = vmatprep.subr.mxu0 0.0
      %4234 = vmatpush1.msra.mxu0 %v4063
      %4235 = vmatprep.subr.mxu0 0.0
      %4236 = vmatpush1.msra.mxu0 %v4064
      %4237 = vmatprep.subr.mxu0 0.0
      %4238 = vmatpush1.msra.mxu0 0.0
      %4239 = vmatprep.subr.mxu0 0.0
      %4240 = vmatpush1.msra.mxu0 0.0
      %4241 = vmatprep.subr.mxu0 0.0
      %4242 = vmatpush1.msra.mxu0 0.0
      %4243 = vmatprep.subr.mxu0 0.0
      %4244 = vmatpush1.msra.mxu0 0.0
      %4245 = vmatprep.subr.mxu0 0.0
      %4246 = vmatpush1.msra.mxu0 0.0
      %4247 = vmatprep.subr.mxu0 0.0
      %4248 = vmatpush1.msra.mxu0 0.0
      %4249 = vmatprep.subr.mxu0 0.0
      %4250 = vmatpush1.msra.mxu0 0.0
      %4251 = vmatprep.subr.mxu0 0.0
      %4252 = vmatpush1.msra.mxu0 0.0
      %4253 = vmatprep.subr.mxu0 0.0
      %4254 = vmatpush1.msra.mxu0 0.0
      %4255 = vmatprep.subr.mxu0 0.0
      %4256 = vmatpush1.msra.mxu0 0.0
      %4257 = vmatprep.subr.mxu0 0.0
      %4258 = vmatpush1.msra.mxu0 0.0
      %4259 = vmatprep.subr.mxu0 0.0
      %4260 = vmatpush1.msra.mxu0 0.0
      %4261 = vmatprep.subr.mxu0 0.0
      %4262 = vmatpush1.msra.mxu0 0.0
      %4263 = vmatprep.subr.mxu0 0.0
      %4264 = vmatpush1.msra.mxu0 0.0
      %4265 = vmatprep.subr.mxu0 0.0
      %4266 = vmatpush1.msra.mxu0 0.0
      %4267 = vmatprep.subr.mxu0 0.0
      %4268 = vmatpush1.msra.mxu0 0.0
      %4269 = vmatprep.subr.mxu0 0.0
      %4270 = vmatpush1.msra.mxu0 0.0
      %4271 = vmatprep.subr.mxu0 0.0
      %4272 = vmatpush1.msra.mxu0 0.0
      %4273 = vmatprep.subr.mxu0 0.0
      %4274 = vmatpush1.msra.mxu0 0.0
      %4275 = vmatprep.subr.mxu0 0.0
      %4276 = vmatpush1.msra.mxu0 0.0
      %4277 = vmatprep.subr.mxu0 0.0
      %4278 = vmatpush1.msra.mxu0 0.0
      %4279 = vmatprep.subr.mxu0 0.0
      %4280 = vmatpush1.msra.mxu0 0.0
      %4281 = vmatprep.subr.mxu0 0.0
      %4282 = vmatpush1.msra.mxu0 0.0
      %4283 = vmatprep.subr.mxu0 0.0
      %4284 = vmatpush1.msra.mxu0 0.0
      %4285 = vmatprep.subr.mxu0 0.0
      %4286 = vmatpush1.msra.mxu0 0.0
      %4287 = vmatprep.subr.mxu0 0.0
      %4288 = vmatpush1.msra.mxu0 0.0
      %4289 = vmatprep.subr.mxu0 0.0
      %4290 = vmatpush1.msra.mxu0 0.0
      %4291 = vmatprep.subr.mxu0 0.0
      %4292 = vmatpush1.msra.mxu0 0.0
      %4293 = vmatprep.subr.mxu0 0.0
      %4294 = vmatpush1.msra.mxu0 0.0
      %4295 = vmatprep.subr.mxu0 0.0
      %4296 = vmatpush1.msra.mxu0 0.0
      %4297 = vmatprep.mubr.f32.mxu0 0.0
      %4298 = vmatmul.mubr.f32.gmra.mrb[0].mxu0 %v1756
      %v4299 = vpop.f32.mrb[0].mxu0
      %v4300 = vadd.f32 0.0, %v4299
      %v4301 = vpop.f32.mrb[0].mxu0
      %4302 = vmatprep.mubr.f32.mxu0 0.0
      %4303 = vmatmul.mubr.f32.gmra.mrb[0].mxu0 %v1759
      %v4304 = vpop.f32.mrb[0].mxu0
      %v4305 = vadd.f32 0.0, %v4304
      %v4306 = vpop.f32.mrb[0].mxu0
      %4307 = vdwg.mxu0
      %v4308 = vld [vmem:[%s1 + $0x360] sm:$0xff]
      %v4309 = vld [vmem:[%s1 + $0x368] sm:$0xff]
      %v4310 = vld [vmem:[%s1 + $0x370] sm:$0xff]
      %v4311 = vld [vmem:[%s1 + $0x378] sm:$0xff]
      %v4313 = vsel %vm161, %v4300, 0
      %v4316 = vsel %vm161, %v4305, 0
      %4318 = vmatprep.subr.mxu0 0.0
      %4319 = vmatpush1.msra.mxu0 %v4308
      %4320 = vmatprep.subr.mxu0 0.0
      %4321 = vmatpush1.msra.mxu0 %v4309
      %4322 = vmatprep.subr.mxu0 0.0
      %4323 = vmatpush1.msra.mxu0 %v4310
      %4324 = vmatprep.subr.mxu0 0.0
      %4325 = vmatpush1.msra.mxu0 %v4311
      %4326 = vmatprep.subr.mxu0 0.0
      %4327 = vmatpush1.msra.mxu0 0.0
      %4328 = vmatprep.subr.mxu0 0.0
      %4329 = vmatpush1.msra.mxu0 0.0
      %4330 = vmatprep.subr.mxu0 0.0
      %4331 = vmatpush1.msra.mxu0 0.0
      %4332 = vmatprep.subr.mxu0 0.0
      %4333 = vmatpush1.msra.mxu0 0.0
      %4334 = vmatprep.subr.mxu0 0.0
      %4335 = vmatpush1.msra.mxu0 0.0
      %4336 = vmatprep.subr.mxu0 0.0
      %4337 = vmatpush1.msra.mxu0 0.0
      %4338 = vmatprep.subr.mxu0 0.0
      %4339 = vmatpush1.msra.mxu0 0.0
      %4340 = vmatprep.subr.mxu0 0.0
      %4341 = vmatpush1.msra.mxu0 0.0
      %4342 = vmatprep.subr.mxu0 0.0
      %4343 = vmatpush1.msra.mxu0 0.0
      %4344 = vmatprep.subr.mxu0 0.0
      %4345 = vmatpush1.msra.mxu0 0.0
      %4346 = vmatprep.subr.mxu0 0.0
      %4347 = vmatpush1.msra.mxu0 0.0
      %4348 = vmatprep.subr.mxu0 0.0
      %4349 = vmatpush1.msra.mxu0 0.0
      %4350 = vmatprep.subr.mxu0 0.0
      %4351 = vmatpush1.msra.mxu0 0.0
      %4352 = vmatprep.subr.mxu0 0.0
      %4353 = vmatpush1.msra.mxu0 0.0
      %4354 = vmatprep.subr.mxu0 0.0
      %4355 = vmatpush1.msra.mxu0 0.0
      %4356 = vmatprep.subr.mxu0 0.0
      %4357 = vmatpush1.msra.mxu0 0.0
      %4358 = vmatprep.subr.mxu0 0.0
      %4359 = vmatpush1.msra.mxu0 0.0
      %4360 = vmatprep.subr.mxu0 0.0
      %4361 = vmatpush1.msra.mxu0 0.0
      %4362 = vmatprep.subr.mxu0 0.0
      %4363 = vmatpush1.msra.mxu0 0.0
      %4364 = vmatprep.subr.mxu0 0.0
      %4365 = vmatpush1.msra.mxu0 0.0
      %4366 = vmatprep.subr.mxu0 0.0
      %4367 = vmatpush1.msra.mxu0 0.0
      %4368 = vmatprep.subr.mxu0 0.0
      %4369 = vmatpush1.msra.mxu0 0.0
      %4370 = vmatprep.subr.mxu0 0.0
      %4371 = vmatpush1.msra.mxu0 0.0
      %4372 = vmatprep.subr.mxu0 0.0
      %4373 = vmatpush1.msra.mxu0 0.0
      %4374 = vmatprep.subr.mxu0 0.0
      %4375 = vmatpush1.msra.mxu0 0.0
      %4376 = vmatprep.subr.mxu0 0.0
      %4377 = vmatpush1.msra.mxu0 0.0
      %4378 = vmatprep.subr.mxu0 0.0
      %4379 = vmatpush1.msra.mxu0 0.0
      %4380 = vmatprep.subr.mxu0 0.0
      %4381 = vmatpush1.msra.mxu0 0.0
      %4382 = vmatprep.mubr.f32.mxu0 0.0
      %4383 = vmatmul.mubr.f32.gmra.mrb[0].mxu0 %v4313
      %v4384 = vpop.f32.mrb[0].mxu0
      %v4385 = vadd.f32 0.0, %v4384
      %v4386 = vpop.f32.mrb[0].mxu0
      %4387 = vmatprep.mubr.f32.mxu0 0.0
      %4388 = vmatmul.mubr.f32.gmra.mrb[0].mxu0 %v4316
      %v4389 = vpop.f32.mrb[0].mxu0
      %v4390 = vadd.f32 0.0, %v4389
      %v4391 = vpop.f32.mrb[0].mxu0
      %4392 = vdwg.mxu0
      %v4393 = vadd.f32 %v4231, %v4385
      %v4394 = vadd.f32 %v4232, %v4390
      %4395 = vmatprep.subr.mxu0 0.0
      %4396 = vmatpush1.msra.mxu0 %v4063
      %4397 = vmatprep.subr.mxu0 0.0
      %4398 = vmatpush1.msra.mxu0 %v4064
      %4399 = vmatprep.subr.mxu0 0.0
      %4400 = vmatpush1.msra.mxu0 0.0
      %4401 = vmatprep.subr.mxu0 0.0
      %4402 = vmatpush1.msra.mxu0 0.0
      %4403 = vmatprep.subr.mxu0 0.0
      %4404 = vmatpush1.msra.mxu0 0.0
      %4405 = vmatprep.subr.mxu0 0.0
      %4406 = vmatpush1.msra.mxu0 0.0
      %4407 = vmatprep.subr.mxu0 0.0
      %4408 = vmatpush1.msra.mxu0 0.0
      %4409 = vmatprep.subr.mxu0 0.0
      %4410 = vmatpush1.msra.mxu0 0.0
      %4411 = vmatprep.subr.mxu0 0.0
      %4412 = vmatpush1.msra.mxu0 0.0
      %4413 = vmatprep.subr.mxu0 0.0
      %4414 = vmatpush1.msra.mxu0 0.0
      %4415 = vmatprep.subr.mxu0 0.0
      %4416 = vmatpush1.msra.mxu0 0.0
      %4417 = vmatprep.subr.mxu0 0.0
      %4418 = vmatpush1.msra.mxu0 0.0
      %4419 = vmatprep.subr.mxu0 0.0
      %4420 = vmatpush1.msra.mxu0 0.0
      %4421 = vmatprep.subr.mxu0 0.0
      %4422 = vmatpush1.msra.mxu0 0.0
      %4423 = vmatprep.subr.mxu0 0.0
      %4424 = vmatpush1.msra.mxu0 0.0
      %4425 = vmatprep.subr.mxu0 0.0
      %4426 = vmatpush1.msra.mxu0 0.0
      %4427 = vmatprep.subr.mxu0 0.0
      %4428 = vmatpush1.msra.mxu0 0.0
      %4429 = vmatprep.subr.mxu0 0.0
      %4430 = vmatpush1.msra.mxu0 0.0
      %4431 = vmatprep.subr.mxu0 0.0
      %4432 = vmatpush1.msra.mxu0 0.0
      %4433 = vmatprep.subr.mxu0 0.0
      %4434 = vmatpush1.msra.mxu0 0.0
      %4435 = vmatprep.subr.mxu0 0.0
      %4436 = vmatpush1.msra.mxu0 0.0
      %4437 = vmatprep.subr.mxu0 0.0
      %4438 = vmatpush1.msra.mxu0 0.0
      %4439 = vmatprep.subr.mxu0 0.0
      %4440 = vmatpush1.msra.mxu0 0.0
      %4441 = vmatprep.subr.mxu0 0.0
      %4442 = vmatpush1.msra.mxu0 0.0
      %4443 = vmatprep.subr.mxu0 0.0
      %4444 = vmatpush1.msra.mxu0 0.0
      %4445 = vmatprep.subr.mxu0 0.0
      %4446 = vmatpush1.msra.mxu0 0.0
      %4447 = vmatprep.subr.mxu0 0.0
      %4448 = vmatpush1.msra.mxu0 0.0
      %4449 = vmatprep.subr.mxu0 0.0
      %4450 = vmatpush1.msra.mxu0 0.0
      %4451 = vmatprep.subr.mxu0 0.0
      %4452 = vmatpush1.msra.mxu0 0.0
      %4453 = vmatprep.subr.mxu0 0.0
      %4454 = vmatpush1.msra.mxu0 0.0
      %4455 = vmatprep.subr.mxu0 0.0
      %4456 = vmatpush1.msra.mxu0 0.0
      %4457 = vmatprep.subr.mxu0 0.0
      %4458 = vmatpush1.msra.mxu0 0.0
      %4459 = vmatprep.mubr.f32.mxu0 0.0
      %4460 = vmatmul.mubr.f32.gmra.mrb[0].mxu0 %v1924
      %v4461 = vpop.f32.mrb[0].mxu0
      %v4462 = vadd.f32 0.0, %v4461
      %v4463 = vpop.f32.mrb[0].mxu0
      %4464 = vmatprep.mubr.f32.mxu0 0.0
      %4465 = vmatmul.mubr.f32.gmra.mrb[0].mxu0 %v1927
      %v4466 = vpop.f32.mrb[0].mxu0
      %v4467 = vadd.f32 0.0, %v4466
      %v4468 = vpop.f32.mrb[0].mxu0
      %4469 = vdwg.mxu0
      %v4470 = vld [vmem:[%s1 + $0x380] sm:$0xff]
      %v4471 = vld [vmem:[%s1 + $0x388] sm:$0xff]
      %v4472 = vld [vmem:[%s1 + $0x390] sm:$0xff]
      %v4473 = vld [vmem:[%s1 + $0x398] sm:$0xff]
      %v4475 = vsel %vm161, %v4462, 0
      %v4478 = vsel %vm161, %v4467, 0
      %4480 = vmatprep.subr.mxu0 0.0
      %4481 = vmatpush1.msra.mxu0 %v4470
      %4482 = vmatprep.subr.mxu0 0.0
      %4483 = vmatpush1.msra.mxu0 %v4471
      %4484 = vmatprep.subr.mxu0 0.0
      %4485 = vmatpush1.msra.mxu0 %v4472
      %4486 = vmatprep.subr.mxu0 0.0
      %4487 = vmatpush1.msra.mxu0 %v4473
      %4488 = vmatprep.subr.mxu0 0.0
      %4489 = vmatpush1.msra.mxu0 0.0
      %4490 = vmatprep.subr.mxu0 0.0
      %4491 = vmatpush1.msra.mxu0 0.0
      %4492 = vmatprep.subr.mxu0 0.0
      %4493 = vmatpush1.msra.mxu0 0.0
      %4494 = vmatprep.subr.mxu0 0.0
      %4495 = vmatpush1.msra.mxu0 0.0
      %4496 = vmatprep.subr.mxu0 0.0
      %4497 = vmatpush1.msra.mxu0 0.0
      %4498 = vmatprep.subr.mxu0 0.0
      %4499 = vmatpush1.msra.mxu0 0.0
      %4500 = vmatprep.subr.mxu0 0.0
      %4501 = vmatpush1.msra.mxu0 0.0
      %4502 = vmatprep.subr.mxu0 0.0
      %4503 = vmatpush1.msra.mxu0 0.0
      %4504 = vmatprep.subr.mxu0 0.0
      %4505 = vmatpush1.msra.mxu0 0.0
      %4506 = vmatprep.subr.mxu0 0.0
      %4507 = vmatpush1.msra.mxu0 0.0
      %4508 = vmatprep.subr.mxu0 0.0
      %4509 = vmatpush1.msra.mxu0 0.0
      %4510 = vmatprep.subr.mxu0 0.0
      %4511 = vmatpush1.msra.mxu0 0.0
      %4512 = vmatprep.subr.mxu0 0.0
      %4513 = vmatpush1.msra.mxu0 0.0
      %4514 = vmatprep.subr.mxu0 0.0
      %4515 = vmatpush1.msra.mxu0 0.0
      %4516 = vmatprep.subr.mxu0 0.0
      %4517 = vmatpush1.msra.mxu0 0.0
      %4518 = vmatprep.subr.mxu0 0.0
      %4519 = vmatpush1.msra.mxu0 0.0
      %4520 = vmatprep.subr.mxu0 0.0
      %4521 = vmatpush1.msra.mxu0 0.0
      %4522 = vmatprep.subr.mxu0 0.0
      %4523 = vmatpush1.msra.mxu0 0.0
      %4524 = vmatprep.subr.mxu0 0.0
      %4525 = vmatpush1.msra.mxu0 0.0
      %4526 = vmatprep.subr.mxu0 0.0
      %4527 = vmatpush1.msra.mxu0 0.0
      %4528 = vmatprep.subr.mxu0 0.0
      %4529 = vmatpush1.msra.mxu0 0.0
      %4530 = vmatprep.subr.mxu0 0.0
      %4531 = vmatpush1.msra.mxu0 0.0
      %4532 = vmatprep.subr.mxu0 0.0
      %4533 = vmatpush1.msra.mxu0 0.0
      %4534 = vmatprep.subr.mxu0 0.0
      %4535 = vmatpush1.msra.mxu0 0.0
      %4536 = vmatprep.subr.mxu0 0.0
      %4537 = vmatpush1.msra.mxu0 0.0
      %4538 = vmatprep.subr.mxu0 0.0
      %4539 = vmatpush1.msra.mxu0 0.0
      %4540 = vmatprep.subr.mxu0 0.0
      %4541 = vmatpush1.msra.mxu0 0.0
      %4542 = vmatprep.subr.mxu0 0.0
      %4543 = vmatpush1.msra.mxu0 0.0
      %4544 = vmatprep.mubr.f32.mxu0 0.0
      %4545 = vmatmul.mubr.f32.gmra.mrb[0].mxu0 %v4475
      %v4546 = vpop.f32.mrb[0].mxu0
      %v4547 = vadd.f32 0.0, %v4546
      %v4548 = vpop.f32.mrb[0].mxu0
      %4549 = vmatprep.mubr.f32.mxu0 0.0
      %4550 = vmatmul.mubr.f32.gmra.mrb[0].mxu0 %v4478
      %v4551 = vpop.f32.mrb[0].mxu0
      %v4552 = vadd.f32 0.0, %v4551
      %v4553 = vpop.f32.mrb[0].mxu0
      %4554 = vdwg.mxu0
      %v4555 = vadd.f32 %v4393, %v4547
      %v4556 = vadd.f32 %v4394, %v4552
      %4557 = vmatprep.subr.mxu0 0.0
      %4558 = vmatpush1.msra.mxu0 %v4063
      %4559 = vmatprep.subr.mxu0 0.0
      %4560 = vmatpush1.msra.mxu0 %v4064
      %4561 = vmatprep.subr.mxu0 0.0
      %4562 = vmatpush1.msra.mxu0 0.0
      %4563 = vmatprep.subr.mxu0 0.0
      %4564 = vmatpush1.msra.mxu0 0.0
      %4565 = vmatprep.subr.mxu0 0.0
      %4566 = vmatpush1.msra.mxu0 0.0
      %4567 = vmatprep.subr.mxu0 0.0
      %4568 = vmatpush1.msra.mxu0 0.0
      %4569 = vmatprep.subr.mxu0 0.0
      %4570 = vmatpush1.msra.mxu0 0.0
      %4571 = vmatprep.subr.mxu0 0.0
      %4572 = vmatpush1.msra.mxu0 0.0
      %4573 = vmatprep.subr.mxu0 0.0
      %4574 = vmatpush1.msra.mxu0 0.0
      %4575 = vmatprep.subr.mxu0 0.0
      %4576 = vmatpush1.msra.mxu0 0.0
      %4577 = vmatprep.subr.mxu0 0.0
      %4578 = vmatpush1.msra.mxu0 0.0
      %4579 = vmatprep.subr.mxu0 0.0
      %4580 = vmatpush1.msra.mxu0 0.0
      %4581 = vmatprep.subr.mxu0 0.0
      %4582 = vmatpush1.msra.mxu0 0.0
      %4583 = vmatprep.subr.mxu0 0.0
      %4584 = vmatpush1.msra.mxu0 0.0
      %4585 = vmatprep.subr.mxu0 0.0
      %4586 = vmatpush1.msra.mxu0 0.0
      %4587 = vmatprep.subr.mxu0 0.0
      %4588 = vmatpush1.msra.mxu0 0.0
      %4589 = vmatprep.subr.mxu0 0.0
      %4590 = vmatpush1.msra.mxu0 0.0
      %4591 = vmatprep.subr.mxu0 0.0
      %4592 = vmatpush1.msra.mxu0 0.0
      %4593 = vmatprep.subr.mxu0 0.0
      %4594 = vmatpush1.msra.mxu0 0.0
      %4595 = vmatprep.subr.mxu0 0.0
      %4596 = vmatpush1.msra.mxu0 0.0
      %4597 = vmatprep.subr.mxu0 0.0
      %4598 = vmatpush1.msra.mxu0 0.0
      %4599 = vmatprep.subr.mxu0 0.0
      %4600 = vmatpush1.msra.mxu0 0.0
      %4601 = vmatprep.subr.mxu0 0.0
      %4602 = vmatpush1.msra.mxu0 0.0
      %4603 = vmatprep.subr.mxu0 0.0
      %4604 = vmatpush1.msra.mxu0 0.0
      %4605 = vmatprep.subr.mxu0 0.0
      %4606 = vmatpush1.msra.mxu0 0.0
      %4607 = vmatprep.subr.mxu0 0.0
      %4608 = vmatpush1.msra.mxu0 0.0
      %4609 = vmatprep.subr.mxu0 0.0
      %4610 = vmatpush1.msra.mxu0 0.0
      %4611 = vmatprep.subr.mxu0 0.0
      %4612 = vmatpush1.msra.mxu0 0.0
      %4613 = vmatprep.subr.mxu0 0.0
      %4614 = vmatpush1.msra.mxu0 0.0
      %4615 = vmatprep.subr.mxu0 0.0
      %4616 = vmatpush1.msra.mxu0 0.0
      %4617 = vmatprep.subr.mxu0 0.0
      %4618 = vmatpush1.msra.mxu0 0.0
      %4619 = vmatprep.subr.mxu0 0.0
      %4620 = vmatpush1.msra.mxu0 0.0
      %4621 = vmatprep.mubr.f32.mxu0 0.0
      %4622 = vmatmul.mubr.f32.gmra.mrb[0].mxu0 %v2092
      %v4623 = vpop.f32.mrb[0].mxu0
      %v4624 = vadd.f32 0.0, %v4623
      %v4625 = vpop.f32.mrb[0].mxu0
      %4626 = vmatprep.mubr.f32.mxu0 0.0
      %4627 = vmatmul.mubr.f32.gmra.mrb[0].mxu0 %v2095
      %v4628 = vpop.f32.mrb[0].mxu0
      %v4629 = vadd.f32 0.0, %v4628
      %v4630 = vpop.f32.mrb[0].mxu0
      %4631 = vdwg.mxu0
      %v4632 = vld [vmem:[%s1 + $0x3a0] sm:$0xff]
      %v4633 = vld [vmem:[%s1 + $0x3a8] sm:$0xff]
      %v4634 = vld [vmem:[%s1 + $0x3b0] sm:$0xff]
      %v4635 = vld [vmem:[%s1 + $0x3b8] sm:$0xff]
      %v4637 = vsel %vm161, %v4624, 0
      %v4640 = vsel %vm161, %v4629, 0
      %4642 = vmatprep.subr.mxu0 0.0
      %4643 = vmatpush1.msra.mxu0 %v4632
      %4644 = vmatprep.subr.mxu0 0.0
      %4645 = vmatpush1.msra.mxu0 %v4633
      %4646 = vmatprep.subr.mxu0 0.0
      %4647 = vmatpush1.msra.mxu0 %v4634
      %4648 = vmatprep.subr.mxu0 0.0
      %4649 = vmatpush1.msra.mxu0 %v4635
      %4650 = vmatprep.subr.mxu0 0.0
      %4651 = vmatpush1.msra.mxu0 0.0
      %4652 = vmatprep.subr.mxu0 0.0
      %4653 = vmatpush1.msra.mxu0 0.0
      %4654 = vmatprep.subr.mxu0 0.0
      %4655 = vmatpush1.msra.mxu0 0.0
      %4656 = vmatprep.subr.mxu0 0.0
      %4657 = vmatpush1.msra.mxu0 0.0
      %4658 = vmatprep.subr.mxu0 0.0
      %4659 = vmatpush1.msra.mxu0 0.0
      %4660 = vmatprep.subr.mxu0 0.0
      %4661 = vmatpush1.msra.mxu0 0.0
      %4662 = vmatprep.subr.mxu0 0.0
      %4663 = vmatpush1.msra.mxu0 0.0
      %4664 = vmatprep.subr.mxu0 0.0
      %4665 = vmatpush1.msra.mxu0 0.0
      %4666 = vmatprep.subr.mxu0 0.0
      %4667 = vmatpush1.msra.mxu0 0.0
      %4668 = vmatprep.subr.mxu0 0.0
      %4669 = vmatpush1.msra.mxu0 0.0
      %4670 = vmatprep.subr.mxu0 0.0
      %4671 = vmatpush1.msra.mxu0 0.0
      %4672 = vmatprep.subr.mxu0 0.0
      %4673 = vmatpush1.msra.mxu0 0.0
      %4674 = vmatprep.subr.mxu0 0.0
      %4675 = vmatpush1.msra.mxu0 0.0
      %4676 = vmatprep.subr.mxu0 0.0
      %4677 = vmatpush1.msra.mxu0 0.0
      %4678 = vmatprep.subr.mxu0 0.0
      %4679 = vmatpush1.msra.mxu0 0.0
      %4680 = vmatprep.subr.mxu0 0.0
      %4681 = vmatpush1.msra.mxu0 0.0
      %4682 = vmatprep.subr.mxu0 0.0
      %4683 = vmatpush1.msra.mxu0 0.0
      %4684 = vmatprep.subr.mxu0 0.0
      %4685 = vmatpush1.msra.mxu0 0.0
      %4686 = vmatprep.subr.mxu0 0.0
      %4687 = vmatpush1.msra.mxu0 0.0
      %4688 = vmatprep.subr.mxu0 0.0
      %4689 = vmatpush1.msra.mxu0 0.0
      %4690 = vmatprep.subr.mxu0 0.0
      %4691 = vmatpush1.msra.mxu0 0.0
      %4692 = vmatprep.subr.mxu0 0.0
      %4693 = vmatpush1.msra.mxu0 0.0
      %4694 = vmatprep.subr.mxu0 0.0
      %4695 = vmatpush1.msra.mxu0 0.0
      %4696 = vmatprep.subr.mxu0 0.0
      %4697 = vmatpush1.msra.mxu0 0.0
      %4698 = vmatprep.subr.mxu0 0.0
      %4699 = vmatpush1.msra.mxu0 0.0
      %4700 = vmatprep.subr.mxu0 0.0
      %4701 = vmatpush1.msra.mxu0 0.0
      %4702 = vmatprep.subr.mxu0 0.0
      %4703 = vmatpush1.msra.mxu0 0.0
      %4704 = vmatprep.subr.mxu0 0.0
      %4705 = vmatpush1.msra.mxu0 0.0
      %4706 = vmatprep.mubr.f32.mxu0 0.0
      %4707 = vmatmul.mubr.f32.gmra.mrb[0].mxu0 %v4637
      %v4708 = vpop.f32.mrb[0].mxu0
      %v4709 = vadd.f32 0.0, %v4708
      %v4710 = vpop.f32.mrb[0].mxu0
      %4711 = vmatprep.mubr.f32.mxu0 0.0
      %4712 = vmatmul.mubr.f32.gmra.mrb[0].mxu0 %v4640
      %v4713 = vpop.f32.mrb[0].mxu0
      %v4714 = vadd.f32 0.0, %v4713
      %v4715 = vpop.f32.mrb[0].mxu0
      %4716 = vdwg.mxu0
      %v4717 = vadd.f32 %v4555, %v4709
      %v4718 = vadd.f32 %v4556, %v4714
      %4719 = vmatprep.subr.mxu0 0.0
      %4720 = vmatpush1.msra.mxu0 %v4063
      %4721 = vmatprep.subr.mxu0 0.0
      %4722 = vmatpush1.msra.mxu0 %v4064
      %4723 = vmatprep.subr.mxu0 0.0
      %4724 = vmatpush1.msra.mxu0 0.0
      %4725 = vmatprep.subr.mxu0 0.0
      %4726 = vmatpush1.msra.mxu0 0.0
      %4727 = vmatprep.subr.mxu0 0.0
      %4728 = vmatpush1.msra.mxu0 0.0
      %4729 = vmatprep.subr.mxu0 0.0
      %4730 = vmatpush1.msra.mxu0 0.0
      %4731 = vmatprep.subr.mxu0 0.0
      %4732 = vmatpush1.msra.mxu0 0.0
      %4733 = vmatprep.subr.mxu0 0.0
      %4734 = vmatpush1.msra.mxu0 0.0
      %4735 = vmatprep.subr.mxu0 0.0
      %4736 = vmatpush1.msra.mxu0 0.0
      %4737 = vmatprep.subr.mxu0 0.0
      %4738 = vmatpush1.msra.mxu0 0.0
      %4739 = vmatprep.subr.mxu0 0.0
      %4740 = vmatpush1.msra.mxu0 0.0
      %4741 = vmatprep.subr.mxu0 0.0
      %4742 = vmatpush1.msra.mxu0 0.0
      %4743 = vmatprep.subr.mxu0 0.0
      %4744 = vmatpush1.msra.mxu0 0.0
      %4745 = vmatprep.subr.mxu0 0.0
      %4746 = vmatpush1.msra.mxu0 0.0
      %4747 = vmatprep.subr.mxu0 0.0
      %4748 = vmatpush1.msra.mxu0 0.0
      %4749 = vmatprep.subr.mxu0 0.0
      %4750 = vmatpush1.msra.mxu0 0.0
      %4751 = vmatprep.subr.mxu0 0.0
      %4752 = vmatpush1.msra.mxu0 0.0
      %4753 = vmatprep.subr.mxu0 0.0
      %4754 = vmatpush1.msra.mxu0 0.0
      %4755 = vmatprep.subr.mxu0 0.0
      %4756 = vmatpush1.msra.mxu0 0.0
      %4757 = vmatprep.subr.mxu0 0.0
      %4758 = vmatpush1.msra.mxu0 0.0
      %4759 = vmatprep.subr.mxu0 0.0
      %4760 = vmatpush1.msra.mxu0 0.0
      %4761 = vmatprep.subr.mxu0 0.0
      %4762 = vmatpush1.msra.mxu0 0.0
      %4763 = vmatprep.subr.mxu0 0.0
      %4764 = vmatpush1.msra.mxu0 0.0
      %4765 = vmatprep.subr.mxu0 0.0
      %4766 = vmatpush1.msra.mxu0 0.0
      %4767 = vmatprep.subr.mxu0 0.0
      %4768 = vmatpush1.msra.mxu0 0.0
      %4769 = vmatprep.subr.mxu0 0.0
      %4770 = vmatpush1.msra.mxu0 0.0
      %4771 = vmatprep.subr.mxu0 0.0
      %4772 = vmatpush1.msra.mxu0 0.0
      %4773 = vmatprep.subr.mxu0 0.0
      %4774 = vmatpush1.msra.mxu0 0.0
      %4775 = vmatprep.subr.mxu0 0.0
      %4776 = vmatpush1.msra.mxu0 0.0
      %4777 = vmatprep.subr.mxu0 0.0
      %4778 = vmatpush1.msra.mxu0 0.0
      %4779 = vmatprep.subr.mxu0 0.0
      %4780 = vmatpush1.msra.mxu0 0.0
      %4781 = vmatprep.subr.mxu0 0.0
      %4782 = vmatpush1.msra.mxu0 0.0
      %4783 = vmatprep.mubr.f32.mxu0 0.0
      %4784 = vmatmul.mubr.f32.gmra.mrb[0].mxu0 %v2260
      %v4785 = vpop.f32.mrb[0].mxu0
      %v4786 = vadd.f32 0.0, %v4785
      %v4787 = vpop.f32.mrb[0].mxu0
      %4788 = vmatprep.mubr.f32.mxu0 0.0
      %4789 = vmatmul.mubr.f32.gmra.mrb[0].mxu0 %v2263
      %v4790 = vpop.f32.mrb[0].mxu0
      %v4791 = vadd.f32 0.0, %v4790
      %v4792 = vpop.f32.mrb[0].mxu0
      %4793 = vdwg.mxu0
      %v4794 = vld [vmem:[%s1 + $0x3c0] sm:$0xff]
      %v4795 = vld [vmem:[%s1 + $0x3c8] sm:$0xff]
      %v4796 = vld [vmem:[%s1 + $0x3d0] sm:$0xff]
      %v4797 = vld [vmem:[%s1 + $0x3d8] sm:$0xff]
      %v4799 = vsel %vm161, %v4786, 0
      %v4802 = vsel %vm161, %v4791, 0
      %4804 = vmatprep.subr.mxu0 0.0
      %4805 = vmatpush1.msra.mxu0 %v4794
      %4806 = vmatprep.subr.mxu0 0.0
      %4807 = vmatpush1.msra.mxu0 %v4795
      %4808 = vmatprep.subr.mxu0 0.0
      %4809 = vmatpush1.msra.mxu0 %v4796
      %4810 = vmatprep.subr.mxu0 0.0
      %4811 = vmatpush1.msra.mxu0 %v4797
      %4812 = vmatprep.subr.mxu0 0.0
      %4813 = vmatpush1.msra.mxu0 0.0
      %4814 = vmatprep.subr.mxu0 0.0
      %4815 = vmatpush1.msra.mxu0 0.0
      %4816 = vmatprep.subr.mxu0 0.0
      %4817 = vmatpush1.msra.mxu0 0.0
      %4818 = vmatprep.subr.mxu0 0.0
      %4819 = vmatpush1.msra.mxu0 0.0
      %4820 = vmatprep.subr.mxu0 0.0
      %4821 = vmatpush1.msra.mxu0 0.0
      %4822 = vmatprep.subr.mxu0 0.0
      %4823 = vmatpush1.msra.mxu0 0.0
      %4824 = vmatprep.subr.mxu0 0.0
      %4825 = vmatpush1.msra.mxu0 0.0
      %4826 = vmatprep.subr.mxu0 0.0
      %4827 = vmatpush1.msra.mxu0 0.0
      %4828 = vmatprep.subr.mxu0 0.0
      %4829 = vmatpush1.msra.mxu0 0.0
      %4830 = vmatprep.subr.mxu0 0.0
      %4831 = vmatpush1.msra.mxu0 0.0
      %4832 = vmatprep.subr.mxu0 0.0
      %4833 = vmatpush1.msra.mxu0 0.0
      %4834 = vmatprep.subr.mxu0 0.0
      %4835 = vmatpush1.msra.mxu0 0.0
      %4836 = vmatprep.subr.mxu0 0.0
      %4837 = vmatpush1.msra.mxu0 0.0
      %4838 = vmatprep.subr.mxu0 0.0
      %4839 = vmatpush1.msra.mxu0 0.0
      %4840 = vmatprep.subr.mxu0 0.0
      %4841 = vmatpush1.msra.mxu0 0.0
      %4842 = vmatprep.subr.mxu0 0.0
      %4843 = vmatpush1.msra.mxu0 0.0
      %4844 = vmatprep.subr.mxu0 0.0
      %4845 = vmatpush1.msra.mxu0 0.0
      %4846 = vmatprep.subr.mxu0 0.0
      %4847 = vmatpush1.msra.mxu0 0.0
      %4848 = vmatprep.subr.mxu0 0.0
      %4849 = vmatpush1.msra.mxu0 0.0
      %4850 = vmatprep.subr.mxu0 0.0
      %4851 = vmatpush1.msra.mxu0 0.0
      %4852 = vmatprep.subr.mxu0 0.0
      %4853 = vmatpush1.msra.mxu0 0.0
      %4854 = vmatprep.subr.mxu0 0.0
      %4855 = vmatpush1.msra.mxu0 0.0
      %4856 = vmatprep.subr.mxu0 0.0
      %4857 = vmatpush1.msra.mxu0 0.0
      %4858 = vmatprep.subr.mxu0 0.0
      %4859 = vmatpush1.msra.mxu0 0.0
      %4860 = vmatprep.subr.mxu0 0.0
      %4861 = vmatpush1.msra.mxu0 0.0
      %4862 = vmatprep.subr.mxu0 0.0
      %4863 = vmatpush1.msra.mxu0 0.0
      %4864 = vmatprep.subr.mxu0 0.0
      %4865 = vmatpush1.msra.mxu0 0.0
      %4866 = vmatprep.subr.mxu0 0.0
      %4867 = vmatpush1.msra.mxu0 0.0
      %4868 = vmatprep.mubr.f32.mxu0 0.0
      %4869 = vmatmul.mubr.f32.gmra.mrb[0].mxu0 %v4799
      %v4870 = vpop.f32.mrb[0].mxu0
      %v4871 = vadd.f32 0.0, %v4870
      %v4872 = vpop.f32.mrb[0].mxu0
      %4873 = vmatprep.mubr.f32.mxu0 0.0
      %4874 = vmatmul.mubr.f32.gmra.mrb[0].mxu0 %v4802
      %v4875 = vpop.f32.mrb[0].mxu0
      %v4876 = vadd.f32 0.0, %v4875
      %v4877 = vpop.f32.mrb[0].mxu0
      %4878 = vdwg.mxu0
      %v4879 = vadd.f32 %v4717, %v4871
      %v4880 = vadd.f32 %v4718, %v4876
      %v4881 = vtanh.pop %v4879
      %v4882 = vtanh.pop %v4880
      %v4883 = vld [vmem:[%s1 + $0x4f0] sm:$0x1]
      %v4884 = vlaneseq
      %v4885 = vshrl.u32 %v4884, 7
      %v4886 = vsub.s32 0, %v4885
      %v4887 = vrot.slane %v4883, %v4886
      %v4888 = vadd.f32 %v4887, 0.0
      %4889 = vmatprep.subr.mxu0 0.0
      %4890 = vmatpush1.msra.mxu0 %v4881
      %4891 = vmatprep.subr.mxu0 0.0
      %4892 = vmatpush1.msra.mxu0 %v4882
      %4893 = vmatprep.subr.mxu0 0.0
      %4894 = vmatpush1.msra.mxu0 0.0
      %4895 = vmatprep.subr.mxu0 0.0
      %4896 = vmatpush1.msra.mxu0 0.0
      %4897 = vmatprep.subr.mxu0 0.0
      %4898 = vmatpush1.msra.mxu0 0.0
      %4899 = vmatprep.subr.mxu0 0.0
      %4900 = vmatpush1.msra.mxu0 0.0
      %4901 = vmatprep.subr.mxu0 0.0
      %4902 = vmatpush1.msra.mxu0 0.0
      %4903 = vmatprep.subr.mxu0 0.0
      %4904 = vmatpush1.msra.mxu0 0.0
      %4905 = vmatprep.subr.mxu0 0.0
      %4906 = vmatpush1.msra.mxu0 0.0
      %4907 = vmatprep.subr.mxu0 0.0
      %4908 = vmatpush1.msra.mxu0 0.0
      %4909 = vmatprep.subr.mxu0 0.0
      %4910 = vmatpush1.msra.mxu0 0.0
      %4911 = vmatprep.subr.mxu0 0.0
      %4912 = vmatpush1.msra.mxu0 0.0
      %4913 = vmatprep.subr.mxu0 0.0
      %4914 = vmatpush1.msra.mxu0 0.0
      %4915 = vmatprep.subr.mxu0 0.0
      %4916 = vmatpush1.msra.mxu0 0.0
      %4917 = vmatprep.subr.mxu0 0.0
      %4918 = vmatpush1.msra.mxu0 0.0
      %4919 = vmatprep.subr.mxu0 0.0
      %4920 = vmatpush1.msra.mxu0 0.0
      %4921 = vmatprep.subr.mxu0 0.0
      %4922 = vmatpush1.msra.mxu0 0.0
      %4923 = vmatprep.subr.mxu0 0.0
      %4924 = vmatpush1.msra.mxu0 0.0
      %4925 = vmatprep.subr.mxu0 0.0
      %4926 = vmatpush1.msra.mxu0 0.0
      %4927 = vmatprep.subr.mxu0 0.0
      %4928 = vmatpush1.msra.mxu0 0.0
      %4929 = vmatprep.subr.mxu0 0.0
      %4930 = vmatpush1.msra.mxu0 0.0
      %4931 = vmatprep.subr.mxu0 0.0
      %4932 = vmatpush1.msra.mxu0 0.0
      %4933 = vmatprep.subr.mxu0 0.0
      %4934 = vmatpush1.msra.mxu0 0.0
      %4935 = vmatprep.subr.mxu0 0.0
      %4936 = vmatpush1.msra.mxu0 0.0
      %4937 = vmatprep.subr.mxu0 0.0
      %4938 = vmatpush1.msra.mxu0 0.0
      %4939 = vmatprep.subr.mxu0 0.0
      %4940 = vmatpush1.msra.mxu0 0.0
      %4941 = vmatprep.subr.mxu0 0.0
      %4942 = vmatpush1.msra.mxu0 0.0
      %4943 = vmatprep.subr.mxu0 0.0
      %4944 = vmatpush1.msra.mxu0 0.0
      %4945 = vmatprep.subr.mxu0 0.0
      %4946 = vmatpush1.msra.mxu0 0.0
      %4947 = vmatprep.subr.mxu0 0.0
      %4948 = vmatpush1.msra.mxu0 0.0
      %4949 = vmatprep.subr.mxu0 0.0
      %4950 = vmatpush1.msra.mxu0 0.0
      %4951 = vmatprep.subr.mxu0 0.0
      %4952 = vmatpush1.msra.mxu0 0.0
      %4953 = vmatprep.mubr.f32.mxu0 0.0
      %4954 = vmatmul.mubr.f32.gmra.mrb[0].mxu0 %v1588
      %v4955 = vpop.f32.mrb[0].mxu0
      %v4956 = vadd.f32 0.0, %v4955
      %v4957 = vpop.f32.mrb[0].mxu0
      %4958 = vmatprep.mubr.f32.mxu0 0.0
      %4959 = vmatmul.mubr.f32.gmra.mrb[0].mxu0 %v1591
      %v4960 = vpop.f32.mrb[0].mxu0
      %v4961 = vadd.f32 0.0, %v4960
      %v4962 = vpop.f32.mrb[0].mxu0
      %4963 = vdwg.mxu0
      %v4964 = vld [vmem:[%s1 + $0x3e0] sm:$0xff]
      %v4965 = vld [vmem:[%s1 + $0x3e8] sm:$0xff]
      %v4966 = vld [vmem:[%s1 + $0x3f0] sm:$0xff]
      %v4967 = vld [vmem:[%s1 + $0x3f8] sm:$0xff]
      %v4969 = vsel %vm161, %v4956, 0
      %v4972 = vsel %vm161, %v4961, 0
      %4974 = vmatprep.subr.mxu0 0.0
      %4975 = vmatpush1.msra.mxu0 %v4964
      %4976 = vmatprep.subr.mxu0 0.0
      %4977 = vmatpush1.msra.mxu0 %v4965
      %4978 = vmatprep.subr.mxu0 0.0
      %4979 = vmatpush1.msra.mxu0 %v4966
      %4980 = vmatprep.subr.mxu0 0.0
      %4981 = vmatpush1.msra.mxu0 %v4967
      %4982 = vmatprep.subr.mxu0 0.0
      %4983 = vmatpush1.msra.mxu0 0.0
      %4984 = vmatprep.subr.mxu0 0.0
      %4985 = vmatpush1.msra.mxu0 0.0
      %4986 = vmatprep.subr.mxu0 0.0
      %4987 = vmatpush1.msra.mxu0 0.0
      %4988 = vmatprep.subr.mxu0 0.0
      %4989 = vmatpush1.msra.mxu0 0.0
      %4990 = vmatprep.subr.mxu0 0.0
      %4991 = vmatpush1.msra.mxu0 0.0
      %4992 = vmatprep.subr.mxu0 0.0
      %4993 = vmatpush1.msra.mxu0 0.0
      %4994 = vmatprep.subr.mxu0 0.0
      %4995 = vmatpush1.msra.mxu0 0.0
      %4996 = vmatprep.subr.mxu0 0.0
      %4997 = vmatpush1.msra.mxu0 0.0
      %4998 = vmatprep.subr.mxu0 0.0
      %4999 = vmatpush1.msra.mxu0 0.0
      %5000 = vmatprep.subr.mxu0 0.0
      %5001 = vmatpush1.msra.mxu0 0.0
      %5002 = vmatprep.subr.mxu0 0.0
      %5003 = vmatpush1.msra.mxu0 0.0
      %5004 = vmatprep.subr.mxu0 0.0
      %5005 = vmatpush1.msra.mxu0 0.0
      %5006 = vmatprep.subr.mxu0 0.0
      %5007 = vmatpush1.msra.mxu0 0.0
      %5008 = vmatprep.subr.mxu0 0.0
      %5009 = vmatpush1.msra.mxu0 0.0
      %5010 = vmatprep.subr.mxu0 0.0
      %5011 = vmatpush1.msra.mxu0 0.0
      %5012 = vmatprep.subr.mxu0 0.0
      %5013 = vmatpush1.msra.mxu0 0.0
      %5014 = vmatprep.subr.mxu0 0.0
      %5015 = vmatpush1.msra.mxu0 0.0
      %5016 = vmatprep.subr.mxu0 0.0
      %5017 = vmatpush1.msra.mxu0 0.0
      %5018 = vmatprep.subr.mxu0 0.0
      %5019 = vmatpush1.msra.mxu0 0.0
      %5020 = vmatprep.subr.mxu0 0.0
      %5021 = vmatpush1.msra.mxu0 0.0
      %5022 = vmatprep.subr.mxu0 0.0
      %5023 = vmatpush1.msra.mxu0 0.0
      %5024 = vmatprep.subr.mxu0 0.0
      %5025 = vmatpush1.msra.mxu0 0.0
      %5026 = vmatprep.subr.mxu0 0.0
      %5027 = vmatpush1.msra.mxu0 0.0
      %5028 = vmatprep.subr.mxu0 0.0
      %5029 = vmatpush1.msra.mxu0 0.0
      %5030 = vmatprep.subr.mxu0 0.0
      %5031 = vmatpush1.msra.mxu0 0.0
      %5032 = vmatprep.subr.mxu0 0.0
      %5033 = vmatpush1.msra.mxu0 0.0
      %5034 = vmatprep.subr.mxu0 0.0
      %5035 = vmatpush1.msra.mxu0 0.0
      %5036 = vmatprep.subr.mxu0 0.0
      %5037 = vmatpush1.msra.mxu0 0.0
      %5038 = vmatprep.mubr.f32.mxu0 0.0
      %5039 = vmatmul.mubr.f32.gmra.mrb[0].mxu0 %v4969
      %v5040 = vpop.f32.mrb[0].mxu0
      %v5041 = vadd.f32 0.0, %v5040
      %v5042 = vpop.f32.mrb[0].mxu0
      %5043 = vmatprep.mubr.f32.mxu0 0.0
      %5044 = vmatmul.mubr.f32.gmra.mrb[0].mxu0 %v4972
      %v5045 = vpop.f32.mrb[0].mxu0
      %v5046 = vadd.f32 0.0, %v5045
      %v5047 = vpop.f32.mrb[0].mxu0
      %5048 = vdwg.mxu0
      %v5049 = vadd.f32 %v4888, %v5041
      %v5050 = vadd.f32 %v4888, %v5046
      %5051 = vmatprep.subr.mxu0 0.0
      %5052 = vmatpush1.msra.mxu0 %v4881
      %5053 = vmatprep.subr.mxu0 0.0
      %5054 = vmatpush1.msra.mxu0 %v4882
      %5055 = vmatprep.subr.mxu0 0.0
      %5056 = vmatpush1.msra.mxu0 0.0
      %5057 = vmatprep.subr.mxu0 0.0
      %5058 = vmatpush1.msra.mxu0 0.0
      %5059 = vmatprep.subr.mxu0 0.0
      %5060 = vmatpush1.msra.mxu0 0.0
      %5061 = vmatprep.subr.mxu0 0.0
      %5062 = vmatpush1.msra.mxu0 0.0
      %5063 = vmatprep.subr.mxu0 0.0
      %5064 = vmatpush1.msra.mxu0 0.0
      %5065 = vmatprep.subr.mxu0 0.0
      %5066 = vmatpush1.msra.mxu0 0.0
      %5067 = vmatprep.subr.mxu0 0.0
      %5068 = vmatpush1.msra.mxu0 0.0
      %5069 = vmatprep.subr.mxu0 0.0
      %5070 = vmatpush1.msra.mxu0 0.0
      %5071 = vmatprep.subr.mxu0 0.0
      %5072 = vmatpush1.msra.mxu0 0.0
      %5073 = vmatprep.subr.mxu0 0.0
      %5074 = vmatpush1.msra.mxu0 0.0
      %5075 = vmatprep.subr.mxu0 0.0
      %5076 = vmatpush1.msra.mxu0 0.0
      %5077 = vmatprep.subr.mxu0 0.0
      %5078 = vmatpush1.msra.mxu0 0.0
      %5079 = vmatprep.subr.mxu0 0.0
      %5080 = vmatpush1.msra.mxu0 0.0
      %5081 = vmatprep.subr.mxu0 0.0
      %5082 = vmatpush1.msra.mxu0 0.0
      %5083 = vmatprep.subr.mxu0 0.0
      %5084 = vmatpush1.msra.mxu0 0.0
      %5085 = vmatprep.subr.mxu0 0.0
      %5086 = vmatpush1.msra.mxu0 0.0
      %5087 = vmatprep.subr.mxu0 0.0
      %5088 = vmatpush1.msra.mxu0 0.0
      %5089 = vmatprep.subr.mxu0 0.0
      %5090 = vmatpush1.msra.mxu0 0.0
      %5091 = vmatprep.subr.mxu0 0.0
      %5092 = vmatpush1.msra.mxu0 0.0
      %5093 = vmatprep.subr.mxu0 0.0
      %5094 = vmatpush1.msra.mxu0 0.0
      %5095 = vmatprep.subr.mxu0 0.0
      %5096 = vmatpush1.msra.mxu0 0.0
      %5097 = vmatprep.subr.mxu0 0.0
      %5098 = vmatpush1.msra.mxu0 0.0
      %5099 = vmatprep.subr.mxu0 0.0
      %5100 = vmatpush1.msra.mxu0 0.0
      %5101 = vmatprep.subr.mxu0 0.0
      %5102 = vmatpush1.msra.mxu0 0.0
      %5103 = vmatprep.subr.mxu0 0.0
      %5104 = vmatpush1.msra.mxu0 0.0
      %5105 = vmatprep.subr.mxu0 0.0
      %5106 = vmatpush1.msra.mxu0 0.0
      %5107 = vmatprep.subr.mxu0 0.0
      %5108 = vmatpush1.msra.mxu0 0.0
      %5109 = vmatprep.subr.mxu0 0.0
      %5110 = vmatpush1.msra.mxu0 0.0
      %5111 = vmatprep.subr.mxu0 0.0
      %5112 = vmatpush1.msra.mxu0 0.0
      %5113 = vmatprep.subr.mxu0 0.0
      %5114 = vmatpush1.msra.mxu0 0.0
      %5115 = vmatprep.mubr.f32.mxu0 0.0
      %5116 = vmatmul.mubr.f32.gmra.mrb[0].mxu0 %v1756
      %v5117 = vpop.f32.mrb[0].mxu0
      %v5118 = vadd.f32 0.0, %v5117
      %v5119 = vpop.f32.mrb[0].mxu0
      %5120 = vmatprep.mubr.f32.mxu0 0.0
      %5121 = vmatmul.mubr.f32.gmra.mrb[0].mxu0 %v1759
      %v5122 = vpop.f32.mrb[0].mxu0
      %v5123 = vadd.f32 0.0, %v5122
      %v5124 = vpop.f32.mrb[0].mxu0
      %5125 = vdwg.mxu0
      %v5126 = vld [vmem:[%s1 + $0x400] sm:$0xff]
      %v5127 = vld [vmem:[%s1 + $0x408] sm:$0xff]
      %v5128 = vld [vmem:[%s1 + $0x410] sm:$0xff]
      %v5129 = vld [vmem:[%s1 + $0x418] sm:$0xff]
      %v5131 = vsel %vm161, %v5118, 0
      %v5134 = vsel %vm161, %v5123, 0
      %5136 = vmatprep.subr.mxu0 0.0
      %5137 = vmatpush1.msra.mxu0 %v5126
      %5138 = vmatprep.subr.mxu0 0.0
      %5139 = vmatpush1.msra.mxu0 %v5127
      %5140 = vmatprep.subr.mxu0 0.0
      %5141 = vmatpush1.msra.mxu0 %v5128
      %5142 = vmatprep.subr.mxu0 0.0
      %5143 = vmatpush1.msra.mxu0 %v5129
      %5144 = vmatprep.subr.mxu0 0.0
      %5145 = vmatpush1.msra.mxu0 0.0
      %5146 = vmatprep.subr.mxu0 0.0
      %5147 = vmatpush1.msra.mxu0 0.0
      %5148 = vmatprep.subr.mxu0 0.0
      %5149 = vmatpush1.msra.mxu0 0.0
      %5150 = vmatprep.subr.mxu0 0.0
      %5151 = vmatpush1.msra.mxu0 0.0
      %5152 = vmatprep.subr.mxu0 0.0
      %5153 = vmatpush1.msra.mxu0 0.0
      %5154 = vmatprep.subr.mxu0 0.0
      %5155 = vmatpush1.msra.mxu0 0.0
      %5156 = vmatprep.subr.mxu0 0.0
      %5157 = vmatpush1.msra.mxu0 0.0
      %5158 = vmatprep.subr.mxu0 0.0
      %5159 = vmatpush1.msra.mxu0 0.0
      %5160 = vmatprep.subr.mxu0 0.0
      %5161 = vmatpush1.msra.mxu0 0.0
      %5162 = vmatprep.subr.mxu0 0.0
      %5163 = vmatpush1.msra.mxu0 0.0
      %5164 = vmatprep.subr.mxu0 0.0
      %5165 = vmatpush1.msra.mxu0 0.0
      %5166 = vmatprep.subr.mxu0 0.0
      %5167 = vmatpush1.msra.mxu0 0.0
      %5168 = vmatprep.subr.mxu0 0.0
      %5169 = vmatpush1.msra.mxu0 0.0
      %5170 = vmatprep.subr.mxu0 0.0
      %5171 = vmatpush1.msra.mxu0 0.0
      %5172 = vmatprep.subr.mxu0 0.0
      %5173 = vmatpush1.msra.mxu0 0.0
      %5174 = vmatprep.subr.mxu0 0.0
      %5175 = vmatpush1.msra.mxu0 0.0
      %5176 = vmatprep.subr.mxu0 0.0
      %5177 = vmatpush1.msra.mxu0 0.0
      %5178 = vmatprep.subr.mxu0 0.0
      %5179 = vmatpush1.msra.mxu0 0.0
      %5180 = vmatprep.subr.mxu0 0.0
      %5181 = vmatpush1.msra.mxu0 0.0
      %5182 = vmatprep.subr.mxu0 0.0
      %5183 = vmatpush1.msra.mxu0 0.0
      %5184 = vmatprep.subr.mxu0 0.0
      %5185 = vmatpush1.msra.mxu0 0.0
      %5186 = vmatprep.subr.mxu0 0.0
      %5187 = vmatpush1.msra.mxu0 0.0
      %5188 = vmatprep.subr.mxu0 0.0
      %5189 = vmatpush1.msra.mxu0 0.0
      %5190 = vmatprep.subr.mxu0 0.0
      %5191 = vmatpush1.msra.mxu0 0.0
      %5192 = vmatprep.subr.mxu0 0.0
      %5193 = vmatpush1.msra.mxu0 0.0
      %5194 = vmatprep.subr.mxu0 0.0
      %5195 = vmatpush1.msra.mxu0 0.0
      %5196 = vmatprep.subr.mxu0 0.0
      %5197 = vmatpush1.msra.mxu0 0.0
      %5198 = vmatprep.subr.mxu0 0.0
      %5199 = vmatpush1.msra.mxu0 0.0
      %5200 = vmatprep.mubr.f32.mxu0 0.0
      %5201 = vmatmul.mubr.f32.gmra.mrb[0].mxu0 %v5131
      %v5202 = vpop.f32.mrb[0].mxu0
      %v5203 = vadd.f32 0.0, %v5202
      %v5204 = vpop.f32.mrb[0].mxu0
      %5205 = vmatprep.mubr.f32.mxu0 0.0
      %5206 = vmatmul.mubr.f32.gmra.mrb[0].mxu0 %v5134
      %v5207 = vpop.f32.mrb[0].mxu0
      %v5208 = vadd.f32 0.0, %v5207
      %v5209 = vpop.f32.mrb[0].mxu0
      %5210 = vdwg.mxu0
      %v5211 = vadd.f32 %v5049, %v5203
      %v5212 = vadd.f32 %v5050, %v5208
      %5213 = vmatprep.subr.mxu0 0.0
      %5214 = vmatpush1.msra.mxu0 %v4881
      %5215 = vmatprep.subr.mxu0 0.0
      %5216 = vmatpush1.msra.mxu0 %v4882
      %5217 = vmatprep.subr.mxu0 0.0
      %5218 = vmatpush1.msra.mxu0 0.0
      %5219 = vmatprep.subr.mxu0 0.0
      %5220 = vmatpush1.msra.mxu0 0.0
      %5221 = vmatprep.subr.mxu0 0.0
      %5222 = vmatpush1.msra.mxu0 0.0
      %5223 = vmatprep.subr.mxu0 0.0
      %5224 = vmatpush1.msra.mxu0 0.0
      %5225 = vmatprep.subr.mxu0 0.0
      %5226 = vmatpush1.msra.mxu0 0.0
      %5227 = vmatprep.subr.mxu0 0.0
      %5228 = vmatpush1.msra.mxu0 0.0
      %5229 = vmatprep.subr.mxu0 0.0
      %5230 = vmatpush1.msra.mxu0 0.0
      %5231 = vmatprep.subr.mxu0 0.0
      %5232 = vmatpush1.msra.mxu0 0.0
      %5233 = vmatprep.subr.mxu0 0.0
      %5234 = vmatpush1.msra.mxu0 0.0
      %5235 = vmatprep.subr.mxu0 0.0
      %5236 = vmatpush1.msra.mxu0 0.0
      %5237 = vmatprep.subr.mxu0 0.0
      %5238 = vmatpush1.msra.mxu0 0.0
      %5239 = vmatprep.subr.mxu0 0.0
      %5240 = vmatpush1.msra.mxu0 0.0
      %5241 = vmatprep.subr.mxu0 0.0
      %5242 = vmatpush1.msra.mxu0 0.0
      %5243 = vmatprep.subr.mxu0 0.0
      %5244 = vmatpush1.msra.mxu0 0.0
      %5245 = vmatprep.subr.mxu0 0.0
      %5246 = vmatpush1.msra.mxu0 0.0
      %5247 = vmatprep.subr.mxu0 0.0
      %5248 = vmatpush1.msra.mxu0 0.0
      %5249 = vmatprep.subr.mxu0 0.0
      %5250 = vmatpush1.msra.mxu0 0.0
      %5251 = vmatprep.subr.mxu0 0.0
      %5252 = vmatpush1.msra.mxu0 0.0
      %5253 = vmatprep.subr.mxu0 0.0
      %5254 = vmatpush1.msra.mxu0 0.0
      %5255 = vmatprep.subr.mxu0 0.0
      %5256 = vmatpush1.msra.mxu0 0.0
      %5257 = vmatprep.subr.mxu0 0.0
      %5258 = vmatpush1.msra.mxu0 0.0
      %5259 = vmatprep.subr.mxu0 0.0
      %5260 = vmatpush1.msra.mxu0 0.0
      %5261 = vmatprep.subr.mxu0 0.0
      %5262 = vmatpush1.msra.mxu0 0.0
      %5263 = vmatprep.subr.mxu0 0.0
      %5264 = vmatpush1.msra.mxu0 0.0
      %5265 = vmatprep.subr.mxu0 0.0
      %5266 = vmatpush1.msra.mxu0 0.0
      %5267 = vmatprep.subr.mxu0 0.0
      %5268 = vmatpush1.msra.mxu0 0.0
      %5269 = vmatprep.subr.mxu0 0.0
      %5270 = vmatpush1.msra.mxu0 0.0
      %5271 = vmatprep.subr.mxu0 0.0
      %5272 = vmatpush1.msra.mxu0 0.0
      %5273 = vmatprep.subr.mxu0 0.0
      %5274 = vmatpush1.msra.mxu0 0.0
      %5275 = vmatprep.subr.mxu0 0.0
      %5276 = vmatpush1.msra.mxu0 0.0
      %5277 = vmatprep.mubr.f32.mxu0 0.0
      %5278 = vmatmul.mubr.f32.gmra.mrb[0].mxu0 %v1924
      %v5279 = vpop.f32.mrb[0].mxu0
      %v5280 = vadd.f32 0.0, %v5279
      %v5281 = vpop.f32.mrb[0].mxu0
      %5282 = vmatprep.mubr.f32.mxu0 0.0
      %5283 = vmatmul.mubr.f32.gmra.mrb[0].mxu0 %v1927
      %v5284 = vpop.f32.mrb[0].mxu0
      %v5285 = vadd.f32 0.0, %v5284
      %v5286 = vpop.f32.mrb[0].mxu0
      %5287 = vdwg.mxu0
      %v5288 = vld [vmem:[%s1 + $0x420] sm:$0xff]
      %v5289 = vld [vmem:[%s1 + $0x428] sm:$0xff]
      %v5290 = vld [vmem:[%s1 + $0x430] sm:$0xff]
      %v5291 = vld [vmem:[%s1 + $0x438] sm:$0xff]
      %v5293 = vsel %vm161, %v5280, 0
      %v5296 = vsel %vm161, %v5285, 0
      %5298 = vmatprep.subr.mxu0 0.0
      %5299 = vmatpush1.msra.mxu0 %v5288
      %5300 = vmatprep.subr.mxu0 0.0
      %5301 = vmatpush1.msra.mxu0 %v5289
      %5302 = vmatprep.subr.mxu0 0.0
      %5303 = vmatpush1.msra.mxu0 %v5290
      %5304 = vmatprep.subr.mxu0 0.0
      %5305 = vmatpush1.msra.mxu0 %v5291
      %5306 = vmatprep.subr.mxu0 0.0
      %5307 = vmatpush1.msra.mxu0 0.0
      %5308 = vmatprep.subr.mxu0 0.0
      %5309 = vmatpush1.msra.mxu0 0.0
      %5310 = vmatprep.subr.mxu0 0.0
      %5311 = vmatpush1.msra.mxu0 0.0
      %5312 = vmatprep.subr.mxu0 0.0
      %5313 = vmatpush1.msra.mxu0 0.0
      %5314 = vmatprep.subr.mxu0 0.0
      %5315 = vmatpush1.msra.mxu0 0.0
      %5316 = vmatprep.subr.mxu0 0.0
      %5317 = vmatpush1.msra.mxu0 0.0
      %5318 = vmatprep.subr.mxu0 0.0
      %5319 = vmatpush1.msra.mxu0 0.0
      %5320 = vmatprep.subr.mxu0 0.0
      %5321 = vmatpush1.msra.mxu0 0.0
      %5322 = vmatprep.subr.mxu0 0.0
      %5323 = vmatpush1.msra.mxu0 0.0
      %5324 = vmatprep.subr.mxu0 0.0
      %5325 = vmatpush1.msra.mxu0 0.0
      %5326 = vmatprep.subr.mxu0 0.0
      %5327 = vmatpush1.msra.mxu0 0.0
      %5328 = vmatprep.subr.mxu0 0.0
      %5329 = vmatpush1.msra.mxu0 0.0
      %5330 = vmatprep.subr.mxu0 0.0
      %5331 = vmatpush1.msra.mxu0 0.0
      %5332 = vmatprep.subr.mxu0 0.0
      %5333 = vmatpush1.msra.mxu0 0.0
      %5334 = vmatprep.subr.mxu0 0.0
      %5335 = vmatpush1.msra.mxu0 0.0
      %5336 = vmatprep.subr.mxu0 0.0
      %5337 = vmatpush1.msra.mxu0 0.0
      %5338 = vmatprep.subr.mxu0 0.0
      %5339 = vmatpush1.msra.mxu0 0.0
      %5340 = vmatprep.subr.mxu0 0.0
      %5341 = vmatpush1.msra.mxu0 0.0
      %5342 = vmatprep.subr.mxu0 0.0
      %5343 = vmatpush1.msra.mxu0 0.0
      %5344 = vmatprep.subr.mxu0 0.0
      %5345 = vmatpush1.msra.mxu0 0.0
      %5346 = vmatprep.subr.mxu0 0.0
      %5347 = vmatpush1.msra.mxu0 0.0
      %5348 = vmatprep.subr.mxu0 0.0
      %5349 = vmatpush1.msra.mxu0 0.0
      %5350 = vmatprep.subr.mxu0 0.0
      %5351 = vmatpush1.msra.mxu0 0.0
      %5352 = vmatprep.subr.mxu0 0.0
      %5353 = vmatpush1.msra.mxu0 0.0
      %5354 = vmatprep.subr.mxu0 0.0
      %5355 = vmatpush1.msra.mxu0 0.0
      %5356 = vmatprep.subr.mxu0 0.0
      %5357 = vmatpush1.msra.mxu0 0.0
      %5358 = vmatprep.subr.mxu0 0.0
      %5359 = vmatpush1.msra.mxu0 0.0
      %5360 = vmatprep.subr.mxu0 0.0
      %5361 = vmatpush1.msra.mxu0 0.0
      %5362 = vmatprep.mubr.f32.mxu0 0.0
      %5363 = vmatmul.mubr.f32.gmra.mrb[0].mxu0 %v5293
      %v5364 = vpop.f32.mrb[0].mxu0
      %v5365 = vadd.f32 0.0, %v5364
      %v5366 = vpop.f32.mrb[0].mxu0
      %5367 = vmatprep.mubr.f32.mxu0 0.0
      %5368 = vmatmul.mubr.f32.gmra.mrb[0].mxu0 %v5296
      %v5369 = vpop.f32.mrb[0].mxu0
      %v5370 = vadd.f32 0.0, %v5369
      %v5371 = vpop.f32.mrb[0].mxu0
      %5372 = vdwg.mxu0
      %v5373 = vadd.f32 %v5211, %v5365
      %v5374 = vadd.f32 %v5212, %v5370
      %5375 = vmatprep.subr.mxu0 0.0
      %5376 = vmatpush1.msra.mxu0 %v4881
      %5377 = vmatprep.subr.mxu0 0.0
      %5378 = vmatpush1.msra.mxu0 %v4882
      %5379 = vmatprep.subr.mxu0 0.0
      %5380 = vmatpush1.msra.mxu0 0.0
      %5381 = vmatprep.subr.mxu0 0.0
      %5382 = vmatpush1.msra.mxu0 0.0
      %5383 = vmatprep.subr.mxu0 0.0
      %5384 = vmatpush1.msra.mxu0 0.0
      %5385 = vmatprep.subr.mxu0 0.0
      %5386 = vmatpush1.msra.mxu0 0.0
      %5387 = vmatprep.subr.mxu0 0.0
      %5388 = vmatpush1.msra.mxu0 0.0
      %5389 = vmatprep.subr.mxu0 0.0
      %5390 = vmatpush1.msra.mxu0 0.0
      %5391 = vmatprep.subr.mxu0 0.0
      %5392 = vmatpush1.msra.mxu0 0.0
      %5393 = vmatprep.subr.mxu0 0.0
      %5394 = vmatpush1.msra.mxu0 0.0
      %5395 = vmatprep.subr.mxu0 0.0
      %5396 = vmatpush1.msra.mxu0 0.0
      %5397 = vmatprep.subr.mxu0 0.0
      %5398 = vmatpush1.msra.mxu0 0.0
      %5399 = vmatprep.subr.mxu0 0.0
      %5400 = vmatpush1.msra.mxu0 0.0
      %5401 = vmatprep.subr.mxu0 0.0
      %5402 = vmatpush1.msra.mxu0 0.0
      %5403 = vmatprep.subr.mxu0 0.0
      %5404 = vmatpush1.msra.mxu0 0.0
      %5405 = vmatprep.subr.mxu0 0.0
      %5406 = vmatpush1.msra.mxu0 0.0
      %5407 = vmatprep.subr.mxu0 0.0
      %5408 = vmatpush1.msra.mxu0 0.0
      %5409 = vmatprep.subr.mxu0 0.0
      %5410 = vmatpush1.msra.mxu0 0.0
      %5411 = vmatprep.subr.mxu0 0.0
      %5412 = vmatpush1.msra.mxu0 0.0
      %5413 = vmatprep.subr.mxu0 0.0
      %5414 = vmatpush1.msra.mxu0 0.0
      %5415 = vmatprep.subr.mxu0 0.0
      %5416 = vmatpush1.msra.mxu0 0.0
      %5417 = vmatprep.subr.mxu0 0.0
      %5418 = vmatpush1.msra.mxu0 0.0
      %5419 = vmatprep.subr.mxu0 0.0
      %5420 = vmatpush1.msra.mxu0 0.0
      %5421 = vmatprep.subr.mxu0 0.0
      %5422 = vmatpush1.msra.mxu0 0.0
      %5423 = vmatprep.subr.mxu0 0.0
      %5424 = vmatpush1.msra.mxu0 0.0
      %5425 = vmatprep.subr.mxu0 0.0
      %5426 = vmatpush1.msra.mxu0 0.0
      %5427 = vmatprep.subr.mxu0 0.0
      %5428 = vmatpush1.msra.mxu0 0.0
      %5429 = vmatprep.subr.mxu0 0.0
      %5430 = vmatpush1.msra.mxu0 0.0
      %5431 = vmatprep.subr.mxu0 0.0
      %5432 = vmatpush1.msra.mxu0 0.0
      %5433 = vmatprep.subr.mxu0 0.0
      %5434 = vmatpush1.msra.mxu0 0.0
      %5435 = vmatprep.subr.mxu0 0.0
      %5436 = vmatpush1.msra.mxu0 0.0
      %5437 = vmatprep.subr.mxu0 0.0
      %5438 = vmatpush1.msra.mxu0 0.0
      %5439 = vmatprep.mubr.f32.mxu0 0.0
      %5440 = vmatmul.mubr.f32.gmra.mrb[0].mxu0 %v2092
      %v5441 = vpop.f32.mrb[0].mxu0
      %v5442 = vadd.f32 0.0, %v5441
      %v5443 = vpop.f32.mrb[0].mxu0
      %5444 = vmatprep.mubr.f32.mxu0 0.0
      %5445 = vmatmul.mubr.f32.gmra.mrb[0].mxu0 %v2095
      %v5446 = vpop.f32.mrb[0].mxu0
      %v5447 = vadd.f32 0.0, %v5446
      %v5448 = vpop.f32.mrb[0].mxu0
      %5449 = vdwg.mxu0
      %v5450 = vld [vmem:[%s1 + $0x440] sm:$0xff]
      %v5451 = vld [vmem:[%s1 + $0x448] sm:$0xff]
      %v5452 = vld [vmem:[%s1 + $0x450] sm:$0xff]
      %v5453 = vld [vmem:[%s1 + $0x458] sm:$0xff]
      %v5455 = vsel %vm161, %v5442, 0
      %v5458 = vsel %vm161, %v5447, 0
      %5460 = vmatprep.subr.mxu0 0.0
      %5461 = vmatpush1.msra.mxu0 %v5450
      %5462 = vmatprep.subr.mxu0 0.0
      %5463 = vmatpush1.msra.mxu0 %v5451
      %5464 = vmatprep.subr.mxu0 0.0
      %5465 = vmatpush1.msra.mxu0 %v5452
      %5466 = vmatprep.subr.mxu0 0.0
      %5467 = vmatpush1.msra.mxu0 %v5453
      %5468 = vmatprep.subr.mxu0 0.0
      %5469 = vmatpush1.msra.mxu0 0.0
      %5470 = vmatprep.subr.mxu0 0.0
      %5471 = vmatpush1.msra.mxu0 0.0
      %5472 = vmatprep.subr.mxu0 0.0
      %5473 = vmatpush1.msra.mxu0 0.0
      %5474 = vmatprep.subr.mxu0 0.0
      %5475 = vmatpush1.msra.mxu0 0.0
      %5476 = vmatprep.subr.mxu0 0.0
      %5477 = vmatpush1.msra.mxu0 0.0
      %5478 = vmatprep.subr.mxu0 0.0
      %5479 = vmatpush1.msra.mxu0 0.0
      %5480 = vmatprep.subr.mxu0 0.0
      %5481 = vmatpush1.msra.mxu0 0.0
      %5482 = vmatprep.subr.mxu0 0.0
      %5483 = vmatpush1.msra.mxu0 0.0
      %5484 = vmatprep.subr.mxu0 0.0
      %5485 = vmatpush1.msra.mxu0 0.0
      %5486 = vmatprep.subr.mxu0 0.0
      %5487 = vmatpush1.msra.mxu0 0.0
      %5488 = vmatprep.subr.mxu0 0.0
      %5489 = vmatpush1.msra.mxu0 0.0
      %5490 = vmatprep.subr.mxu0 0.0
      %5491 = vmatpush1.msra.mxu0 0.0
      %5492 = vmatprep.subr.mxu0 0.0
      %5493 = vmatpush1.msra.mxu0 0.0
      %5494 = vmatprep.subr.mxu0 0.0
      %5495 = vmatpush1.msra.mxu0 0.0
      %5496 = vmatprep.subr.mxu0 0.0
      %5497 = vmatpush1.msra.mxu0 0.0
      %5498 = vmatprep.subr.mxu0 0.0
      %5499 = vmatpush1.msra.mxu0 0.0
      %5500 = vmatprep.subr.mxu0 0.0
      %5501 = vmatpush1.msra.mxu0 0.0
      %5502 = vmatprep.subr.mxu0 0.0
      %5503 = vmatpush1.msra.mxu0 0.0
      %5504 = vmatprep.subr.mxu0 0.0
      %5505 = vmatpush1.msra.mxu0 0.0
      %5506 = vmatprep.subr.mxu0 0.0
      %5507 = vmatpush1.msra.mxu0 0.0
      %5508 = vmatprep.subr.mxu0 0.0
      %5509 = vmatpush1.msra.mxu0 0.0
      %5510 = vmatprep.subr.mxu0 0.0
      %5511 = vmatpush1.msra.mxu0 0.0
      %5512 = vmatprep.subr.mxu0 0.0
      %5513 = vmatpush1.msra.mxu0 0.0
      %5514 = vmatprep.subr.mxu0 0.0
      %5515 = vmatpush1.msra.mxu0 0.0
      %5516 = vmatprep.subr.mxu0 0.0
      %5517 = vmatpush1.msra.mxu0 0.0
      %5518 = vmatprep.subr.mxu0 0.0
      %5519 = vmatpush1.msra.mxu0 0.0
      %5520 = vmatprep.subr.mxu0 0.0
      %5521 = vmatpush1.msra.mxu0 0.0
      %5522 = vmatprep.subr.mxu0 0.0
      %5523 = vmatpush1.msra.mxu0 0.0
      %5524 = vmatprep.mubr.f32.mxu0 0.0
      %5525 = vmatmul.mubr.f32.gmra.mrb[0].mxu0 %v5455
      %v5526 = vpop.f32.mrb[0].mxu0
      %v5527 = vadd.f32 0.0, %v5526
      %v5528 = vpop.f32.mrb[0].mxu0
      %5529 = vmatprep.mubr.f32.mxu0 0.0
      %5530 = vmatmul.mubr.f32.gmra.mrb[0].mxu0 %v5458
      %v5531 = vpop.f32.mrb[0].mxu0
      %v5532 = vadd.f32 0.0, %v5531
      %v5533 = vpop.f32.mrb[0].mxu0
      %5534 = vdwg.mxu0
      %v5535 = vadd.f32 %v5373, %v5527
      %v5536 = vadd.f32 %v5374, %v5532
      %5537 = vmatprep.subr.mxu0 0.0
      %5538 = vmatpush1.msra.mxu0 %v4881
      %5539 = vmatprep.subr.mxu0 0.0
      %5540 = vmatpush1.msra.mxu0 %v4882
      %5541 = vmatprep.subr.mxu0 0.0
      %5542 = vmatpush1.msra.mxu0 0.0
      %5543 = vmatprep.subr.mxu0 0.0
      %5544 = vmatpush1.msra.mxu0 0.0
      %5545 = vmatprep.subr.mxu0 0.0
      %5546 = vmatpush1.msra.mxu0 0.0
      %5547 = vmatprep.subr.mxu0 0.0
      %5548 = vmatpush1.msra.mxu0 0.0
      %5549 = vmatprep.subr.mxu0 0.0
      %5550 = vmatpush1.msra.mxu0 0.0
      %5551 = vmatprep.subr.mxu0 0.0
      %5552 = vmatpush1.msra.mxu0 0.0
      %5553 = vmatprep.subr.mxu0 0.0
      %5554 = vmatpush1.msra.mxu0 0.0
      %5555 = vmatprep.subr.mxu0 0.0
      %5556 = vmatpush1.msra.mxu0 0.0
      %5557 = vmatprep.subr.mxu0 0.0
      %5558 = vmatpush1.msra.mxu0 0.0
      %5559 = vmatprep.subr.mxu0 0.0
      %5560 = vmatpush1.msra.mxu0 0.0
      %5561 = vmatprep.subr.mxu0 0.0
      %5562 = vmatpush1.msra.mxu0 0.0
      %5563 = vmatprep.subr.mxu0 0.0
      %5564 = vmatpush1.msra.mxu0 0.0
      %5565 = vmatprep.subr.mxu0 0.0
      %5566 = vmatpush1.msra.mxu0 0.0
      %5567 = vmatprep.subr.mxu0 0.0
      %5568 = vmatpush1.msra.mxu0 0.0
      %5569 = vmatprep.subr.mxu0 0.0
      %5570 = vmatpush1.msra.mxu0 0.0
      %5571 = vmatprep.subr.mxu0 0.0
      %5572 = vmatpush1.msra.mxu0 0.0
      %5573 = vmatprep.subr.mxu0 0.0
      %5574 = vmatpush1.msra.mxu0 0.0
      %5575 = vmatprep.subr.mxu0 0.0
      %5576 = vmatpush1.msra.mxu0 0.0
      %5577 = vmatprep.subr.mxu0 0.0
      %5578 = vmatpush1.msra.mxu0 0.0
      %5579 = vmatprep.subr.mxu0 0.0
      %5580 = vmatpush1.msra.mxu0 0.0
      %5581 = vmatprep.subr.mxu0 0.0
      %5582 = vmatpush1.msra.mxu0 0.0
      %5583 = vmatprep.subr.mxu0 0.0
      %5584 = vmatpush1.msra.mxu0 0.0
      %5585 = vmatprep.subr.mxu0 0.0
      %5586 = vmatpush1.msra.mxu0 0.0
      %5587 = vmatprep.subr.mxu0 0.0
      %5588 = vmatpush1.msra.mxu0 0.0
      %5589 = vmatprep.subr.mxu0 0.0
      %5590 = vmatpush1.msra.mxu0 0.0
      %5591 = vmatprep.subr.mxu0 0.0
      %5592 = vmatpush1.msra.mxu0 0.0
      %5593 = vmatprep.subr.mxu0 0.0
      %5594 = vmatpush1.msra.mxu0 0.0
      %5595 = vmatprep.subr.mxu0 0.0
      %5596 = vmatpush1.msra.mxu0 0.0
      %5597 = vmatprep.subr.mxu0 0.0
      %5598 = vmatpush1.msra.mxu0 0.0
      %5599 = vmatprep.subr.mxu0 0.0
      %5600 = vmatpush1.msra.mxu0 0.0
      %5601 = vmatprep.mubr.f32.mxu0 0.0
      %5602 = vmatmul.mubr.f32.gmra.mrb[0].mxu0 %v2260
      %v5603 = vpop.f32.mrb[0].mxu0
      %v5604 = vadd.f32 0.0, %v5603
      %v5605 = vpop.f32.mrb[0].mxu0
      %5606 = vmatprep.mubr.f32.mxu0 0.0
      %5607 = vmatmul.mubr.f32.gmra.mrb[0].mxu0 %v2263
      %v5608 = vpop.f32.mrb[0].mxu0
      %v5609 = vadd.f32 0.0, %v5608
      %v5610 = vpop.f32.mrb[0].mxu0
      %5611 = vdwg.mxu0
      %v5612 = vld [vmem:[%s1 + $0x460] sm:$0xff]
      %v5613 = vld [vmem:[%s1 + $0x468] sm:$0xff]
      %v5614 = vld [vmem:[%s1 + $0x470] sm:$0xff]
      %v5615 = vld [vmem:[%s1 + $0x478] sm:$0xff]
      %v5617 = vsel %vm161, %v5604, 0
      %v5620 = vsel %vm161, %v5609, 0
      %5622 = vmatprep.subr.mxu0 0.0
      %5623 = vmatpush1.msra.mxu0 %v5612
      %5624 = vmatprep.subr.mxu0 0.0
      %5625 = vmatpush1.msra.mxu0 %v5613
      %5626 = vmatprep.subr.mxu0 0.0
      %5627 = vmatpush1.msra.mxu0 %v5614
      %5628 = vmatprep.subr.mxu0 0.0
      %5629 = vmatpush1.msra.mxu0 %v5615
      %5630 = vmatprep.subr.mxu0 0.0
      %5631 = vmatpush1.msra.mxu0 0.0
      %5632 = vmatprep.subr.mxu0 0.0
      %5633 = vmatpush1.msra.mxu0 0.0
      %5634 = vmatprep.subr.mxu0 0.0
      %5635 = vmatpush1.msra.mxu0 0.0
      %5636 = vmatprep.subr.mxu0 0.0
      %5637 = vmatpush1.msra.mxu0 0.0
      %5638 = vmatprep.subr.mxu0 0.0
      %5639 = vmatpush1.msra.mxu0 0.0
      %5640 = vmatprep.subr.mxu0 0.0
      %5641 = vmatpush1.msra.mxu0 0.0
      %5642 = vmatprep.subr.mxu0 0.0
      %5643 = vmatpush1.msra.mxu0 0.0
      %5644 = vmatprep.subr.mxu0 0.0
      %5645 = vmatpush1.msra.mxu0 0.0
      %5646 = vmatprep.subr.mxu0 0.0
      %5647 = vmatpush1.msra.mxu0 0.0
      %5648 = vmatprep.subr.mxu0 0.0
      %5649 = vmatpush1.msra.mxu0 0.0
      %5650 = vmatprep.subr.mxu0 0.0
      %5651 = vmatpush1.msra.mxu0 0.0
      %5652 = vmatprep.subr.mxu0 0.0
      %5653 = vmatpush1.msra.mxu0 0.0
      %5654 = vmatprep.subr.mxu0 0.0
      %5655 = vmatpush1.msra.mxu0 0.0
      %5656 = vmatprep.subr.mxu0 0.0
      %5657 = vmatpush1.msra.mxu0 0.0
      %5658 = vmatprep.subr.mxu0 0.0
      %5659 = vmatpush1.msra.mxu0 0.0
      %5660 = vmatprep.subr.mxu0 0.0
      %5661 = vmatpush1.msra.mxu0 0.0
      %5662 = vmatprep.subr.mxu0 0.0
      %5663 = vmatpush1.msra.mxu0 0.0
      %5664 = vmatprep.subr.mxu0 0.0
      %5665 = vmatpush1.msra.mxu0 0.0
      %5666 = vmatprep.subr.mxu0 0.0
      %5667 = vmatpush1.msra.mxu0 0.0
      %5668 = vmatprep.subr.mxu0 0.0
      %5669 = vmatpush1.msra.mxu0 0.0
      %5670 = vmatprep.subr.mxu0 0.0
      %5671 = vmatpush1.msra.mxu0 0.0
      %5672 = vmatprep.subr.mxu0 0.0
      %5673 = vmatpush1.msra.mxu0 0.0
      %5674 = vmatprep.subr.mxu0 0.0
      %5675 = vmatpush1.msra.mxu0 0.0
      %5676 = vmatprep.subr.mxu0 0.0
      %5677 = vmatpush1.msra.mxu0 0.0
      %5678 = vmatprep.subr.mxu0 0.0
      %5679 = vmatpush1.msra.mxu0 0.0
      %5680 = vmatprep.subr.mxu0 0.0
      %5681 = vmatpush1.msra.mxu0 0.0
      %5682 = vmatprep.subr.mxu0 0.0
      %5683 = vmatpush1.msra.mxu0 0.0
      %5684 = vmatprep.subr.mxu0 0.0
      %5685 = vmatpush1.msra.mxu0 0.0
      %5686 = vmatprep.mubr.f32.mxu0 0.0
      %5687 = vmatmul.mubr.f32.gmra.mrb[0].mxu0 %v5617
      %v5688 = vpop.f32.mrb[0].mxu0
      %v5689 = vadd.f32 0.0, %v5688
      %v5690 = vpop.f32.mrb[0].mxu0
      %5691 = vmatprep.mubr.f32.mxu0 0.0
      %5692 = vmatmul.mubr.f32.gmra.mrb[0].mxu0 %v5620
      %v5693 = vpop.f32.mrb[0].mxu0
      %v5694 = vadd.f32 0.0, %v5693
      %v5695 = vpop.f32.mrb[0].mxu0
      %5696 = vdwg.mxu0
      %v5697 = vadd.f32 %v5535, %v5689
      %v5698 = vadd.f32 %v5536, %v5694
      %v5699 = vadd.f32 %v5697, %v1529
      %v5700 = vadd.f32 %v5698, %v1534
      %5701 = vst.msk [vmem:[%s143] sm:$0xff] %vm161, %v1359
      %5702 = vst.msk [vmem:[%s143 + $0x8] sm:$0xff] %vm161, %v1529
      %5703 = vst.msk [vmem:[%s143 + $0x10] sm:$0xff] %vm161, %v1534
      %5704 = vst.msk [vmem:[%s143 + $0x18] sm:$0xff] %vm161, %v5699
      %5705 = vst.msk [vmem:[%s143 + $0x20] sm:$0xff] %vm161, %v5700
      %vm5706 = vcmask 257024
      %5707 = vst.msk [vmem:[%s143 + $0x28] sm:$0xf] %vm5706, %v232
      %5708 = vst.msk [vmem:[%s143 + $0x2c] sm:$0xf] %vm5706, %v314
      %p5709 = scmp.lt.s32.totalorder %s13, 1
      %s5710 = scalar_select %p5709, %s13, 1
      %s5711 = smul.addr %s5710, 6
      %s5712 = smul.addr %s5711, 8
      %s5713 = scalar_lea.vmem %s2, %s5712
      // Predicated region
      $region29: #{fitted_dt_forward.1} parent=27 // pred_check
        %p5714 = pneg %p78
      $region30: #{fitted_dt_forward.1} parent=27 // pred_check_branch
        %5716 = sbr.rel (%p5714) target = $region32
      $region31: #{fitted_dt_forward.1} parent=27 // pred_region
        _
      $region32: #{fitted_dt_forward.1} parent=27 // pred_fallthru
        _
    $region28: #{fitted_dt_forward.1} parent=5 // pred_fallthru
      _
    %p5717 = scmp.le.s32.totalorder 2, %s8
    // Predicated region
    $region33: #{fitted_dt_forward.1} parent=5 // pred_check
      %p5718 = pneg %p5717
    $region34: #{fitted_dt_forward.1} parent=5 // pred_check_branch
      %5720 = sbr.rel (%p5718) target = $region36
    $region35: #{fitted_dt_forward.1} parent=5 // pred_region
      %s5721 = ssub.s32 %s8, 2
      // Predicated region
      $region37: #{fitted_dt_forward.1} parent=35 // pred_check
        %p5722 = pneg %p84
      $region38: #{fitted_dt_forward.1} parent=35 // pred_check_branch
        %5724 = sbr.rel (%p5722) target = $region40
      $region39: #{fitted_dt_forward.1} parent=35 // pred_region
        %p5725 = scmp.lt.s32.totalorder %s14, 1
        %s5726 = scalar_select %p5725, %s14, 1
        %s5727 = smul.addr %s5726, 6
        %s5728 = smul.addr %s5727, 8
        %s5729 = scalar_lea.vmem %s2, %s5728
      $region40: #{fitted_dt_forward.1} parent=35 // pred_fallthru
        _
    $region36: #{fitted_dt_forward.1} parent=5 // pred_fallthru
      _
  $region6: #{fitted_dt_forward.1} parent=0 // loop_footer
    %s12 = sadd.s32 1, %s8
  $region7: #{fitted_dt_forward.1} parent=0 // loop_footer_branch
    %7 = sbr.rel target = $region3
  $region8: #{fitted_dt_forward.1} parent=0 // loop_exit
    _

</llo_original>
